<compile_context>
chip_gen: v7x
topology: tpu7x:2x2x1
jax: 0.10.0
libtpu: 0.0.40
codegen_flags: <defaults>
</compile_context>

<pallas_src>
import jax
import jax.numpy as jnp
import numpy as np
from jax import lax
from jax.experimental import pallas as pl
from jax.experimental.pallas import tpu as pltpu


_NEG = -1e30  # stands in for MaxPool2d's -inf padding (every 5x5 window of an
              # in-image pixel contains that pixel, so the sentinel never wins).


def _crp_kernel(x_ref, w_ref, o_ref, pad_sc, row_sc):
    # x_ref : (1, H+12, W, C) f32   whole H-padded image (resident, 6-row halo)
    # w_ref : (2, 9*C, C)     bf16  conv weights; row index = (ky*3+kx)*C + c_in
    # o_ref : (1, TH, W, C)   f32   output rows [t0, t0+TH)
    # pad_sc: (TH+12, W+4, C) bf16  merged pool-pad / conv-pad scratch
    # row_sc: (TH+12, W,   C) bf16  separable-pool row-max scratch
    TH, W, C = o_ref.shape[1], o_ref.shape[2], o_ref.shape[3]
    h = pl.program_id(1)
    is_first = h == 0
    is_last = h == pl.num_programs(1) - 1
    t0 = pl.multiple_of(h * TH, TH)

    def run_stage(path, off, w_mat):
        # path : (n_in, W, C) bf16; row j of `path` is image row (t0 - off + j).
        # off  : 6 for stage 1, 3 for stage 2 (static Python ints).
        # Returns the stage's conv output, (n_in-6, W, C) f32.
        n_in = path.shape[0]
        n_mid = n_in - 4            # pooled rows == conv-input rows
        n_out = n_in - 6            # conv-output rows

        # ---- MaxPool2d(5, stride=1, padding=2): pool role of pad_sc ---------
        pad_sc[:n_in, 2:2 + W, :] = path
        pad_sc[:n_in, 0:2, :] = jnp.full((n_in, 2, C), _NEG, jnp.bfloat16)
        pad_sc[:n_in, W + 2:W + 4, :] = jnp.full((n_in, 2, C), _NEG, jnp.bfloat16)

        # Rows outside the image act as -inf pool padding; they only occur in
        # the first / last H-tile (the wrapper guarantees TH >= 6 when tiled).
        @pl.when(is_first)
        def _():
            pad_sc[0:off, 2:2 + W, :] = jnp.full((off, W, C), _NEG, jnp.bfloat16)

        @pl.when(is_last)
        def _():
            pad_sc[n_in - off:n_in, 2:2 + W, :] = jnp.full((off, W, C), _NEG,
                                                           jnp.bfloat16)

        # Separable 5x5 max: 1x5 along W (sublane axis), then 5x1 along rows
        # (leading dim -> free vreg re-indexing).
        rm = pad_sc[:n_in, 0:W, :]
        for dx in range(1, 5):
            rm = jnp.maximum(rm, pad_sc[:n_in, dx:dx + W, :])
        row_sc[:n_in, :, :] = rm
        pooled = row_sc[0:n_mid, :, :]
        for dy in range(1, 5):
            pooled = jnp.maximum(pooled, row_sc[dy:dy + n_mid, :, :])

        # ---- Conv2d(C, C, 3, stride=1, padding=1, bias=False) ---------------
        # conv role of pad_sc: data at cols [2, W+2); zero padding is read from
        # cols 1 and W+2 (zeroed 2-wide so bf16 sublane stores stay pair-aligned).
        pad_sc[:n_mid, 2:2 + W, :] = pooled
        pad_sc[:n_mid, 0:2, :] = jnp.zeros((n_mid, 2, C), jnp.bfloat16)
        pad_sc[:n_mid, W + 2:W + 4, :] = jnp.zeros((n_mid, 2, C), jnp.bfloat16)

        # Rows outside the image are the conv's zero padding.
        @pl.when(is_first)
        def _():
            pad_sc[0:off - 2, 2:2 + W, :] = jnp.zeros((off - 2, W, C),
                                                      jnp.bfloat16)

        @pl.when(is_last)
        def _():
            pad_sc[n_mid - (off - 2):n_mid, 2:2 + W, :] = jnp.zeros(
                (off - 2, W, C), jnp.bfloat16)

        # im2col: 9 taps concatenated on the channel (lane) axis -> a single MXU
        # matmul with K = 9*C and f32 accumulation (replaces 9 small dots plus
        # 8 full-tile f32 VALU adds).
        taps = [pad_sc[ky:ky + n_out, 1 + kx:1 + kx + W, :]
                for ky in range(3) for kx in range(3)]
        patches = jnp.concatenate(taps, axis=-1)           # (n_out, W, 9C) bf16
        out = jnp.dot(patches.reshape(n_out * W, 9 * C), w_mat,
                      preferred_element_type=jnp.float32)
        return out.reshape(n_out, W, C)

    # ReLU over the (TH+12)-row window; residual chain stays in registers.
    xw = x_ref[0, pl.ds(t0, TH + 12), :, :]                # (TH+12, W, C) f32
    y0 = jnp.maximum(xw, 0.0)
    c1 = run_stage(y0.astype(jnp.bfloat16), 6, w_ref[0])   # rows [t0-3, t0+TH+3)
    c2 = run_stage(c1.astype(jnp.bfloat16), 3, w_ref[1])   # rows [t0,   t0+TH)
    # Single output write (no read-modify-write of the output block).
    o_ref[0] = y0[6:6 + TH] + c1[3:3 + TH] + c2


def _pick_tile_h(H, tile_h):
    # Largest divisor of H that is <= tile_h and >= 6 (so pool/conv halos never
    # span more than one tile boundary); else fall back to one whole-image tile.
    for th in range(min(tile_h, H), 5, -1):
        if H % th == 0:
            return th
    return H


def _pick_vmem_limit():
    # ~56 MiB on v7x (64 MiB physical/TC, leave headroom); ~112 MiB on v5e/v6e.
    try:
        cap = int(pltpu.get_tpu_info().vmem_capacity_bytes)
        return int(max(32 << 20, min(cap - (8 << 20), 112 << 20)))
    except Exception:
        return 64 << 20


def chained_residual_pool(x_nchw, w1_hwio, w2_hwio, *, tile_h=16):
    """x_nchw: (N, C, H, W); w*_hwio: (3, 3, C, C). Returns NCHW float32."""
    N, C, H, W = x_nchw.shape
    x = jnp.transpose(x_nchw, (0, 2, 3, 1)).astype(jnp.float32)    # -> NHWC
    Cp = -(-C // 128) * 128            # lane-align channels (zero-padded)
    TH = _pick_tile_h(H, tile_h)

    # 6-row H halo (2 pool + 1 conv per stage, 2 stages); halo content is
    # replaced in-kernel with the proper -inf / 0 padding for boundary tiles.
    x_pad = jnp.pad(x, ((0, 0), (6, 6), (0, 0), (0, Cp - C)))

    w = jnp.stack([w1_hwio, w2_hwio], axis=0)                      # (2,3,3,C,C)
    w = jnp.pad(w, ((0, 0), (0, 0), (0, 0), (0, Cp - C), (0, Cp - C)))
    w = w.reshape(2, 9 * Cp, Cp).astype(jnp.bfloat16)  # rows: (ky*3+kx)*Cp + cin

    out = pl.pallas_call(
        _crp_kernel,
        out_shape=jax.ShapeDtypeStruct((N, H, W, Cp), jnp.float32),
        grid_spec=pltpu.PrefetchScalarGridSpec(
            num_scalar_prefetch=0,
            grid=(N, H // TH),
            in_specs=[
                # whole H-padded image stays resident across the H-tile axis
                pl.BlockSpec((1, H + 12, W, Cp), lambda n, h: (n, 0, 0, 0)),
                pl.BlockSpec((2, 9 * Cp, Cp), lambda n, h: (0, 0, 0)),
            ],
            out_specs=pl.BlockSpec((1, TH, W, Cp), lambda n, h: (n, h, 0, 0)),
            scratch_shapes=[
                pltpu.VMEM((TH + 12, W + 4, Cp), jnp.bfloat16),  # pool/conv pad
                pltpu.VMEM((TH + 12, W, Cp), jnp.bfloat16),      # row-max
            ],
        ),
        compiler_params=pltpu.CompilerParams(
            dimension_semantics=("parallel", "parallel"),
            vmem_limit_bytes=_pick_vmem_limit(),
        ),
    )(x_pad, w)

    return jnp.transpose(out[..., :C], (0, 3, 1, 2))   # back to NCHW


def _reference(x_nchw, w1_hwio, w2_hwio):
    # Pure-JAX f32 reference of the PyTorch forward (NHWC internally).
    x = jnp.transpose(x_nchw, (0, 2, 3, 1)).astype(jnp.float32)
    x = jnp.maximum(x, 0.0)
    out = x
    path = x
    for w in (w1_hwio, w2_hwio):
        path = lax.reduce_window(
            path, -jnp.inf, lax.max,
            window_dimensions=(1, 5, 5, 1),
            window_strides=(1, 1, 1, 1),
            padding=((0, 0), (2, 2), (2, 2), (0, 0)))
        path = lax.conv_general_dilated(
            path, w, window_strides=(1, 1), padding=((1, 1), (1, 1)),
            dimension_numbers=('NHWC', 'HWIO', 'NHWC'))
        out = out + path
    return jnp.transpose(out, (0, 3, 1, 2))


if __name__ == "__main__":
    N, C, H, W = 2, 4, 16, 16
    key = jax.random.PRNGKey(0)
    kx, k1, k2 = jax.random.split(key, 3)
    x = jax.random.normal(kx, (N, C, H, W), jnp.float32)

    # Deterministic synthetic conv weights (nn.Conv2d(C, C, 3)-shaped, stored as
    # HWIO); magnitude mimics PyTorch's default init.
    bound = 1.0 / np.sqrt(C * 3 * 3)
    w1 = jax.random.uniform(k1, (3, 3, C, C), jnp.float32, -bound, bound)
    w2 = jax.random.uniform(k2, (3, 3, C, C), jnp.float32, -bound, bound)

    # tile_h=8 -> two H-tiles per image: exercises the halo / boundary-padding
    # logic of the tiled kernel at this small test size.
    out = jax.block_until_ready(chained_residual_pool(x, w1, w2, tile_h=8))
    ref = jax.block_until_ready(_reference(x, w1, w2))

    # Tolerance reflects the intentional bf16 MXU feed (f32 accumulation); the
    # bf16 pooling path adds no extra error (max commutes with round-to-nearest).
    np.testing.assert_allclose(np.asarray(out), np.asarray(ref),
                               rtol=5e-2, atol=5e-2)
    print("KERNEL_OK")
</pallas_src>

<mosaic_0001>
module attributes {stable_mosaic.version = 11 : i64} {
  func.func @_crp_kernel(%arg0: i32, %arg1: i32, %arg2: memref<1x28x16x128xf32, #tpu.memory_space<vmem>>, %arg3: memref<2x1152x128xbf16, #tpu.memory_space<vmem>>, %arg4: memref<1x8x16x128xf32, #tpu.memory_space<vmem>>, %arg5: memref<20x20x128xbf16, #tpu.memory_space<vmem>>, %arg6: memref<20x16x128xbf16, #tpu.memory_space<vmem>>) attributes {dimension_semantics = [#tpu.dimension_semantics<parallel>, #tpu.dimension_semantics<parallel>], iteration_bounds = array<i64: 2, 2>, scalar_prefetch = 0 : i64, scratch_operands = 2 : i64, tpu.core_type = #tpu.core_type<tc>, window_params = [{transform_indices = @transform_0, window_bounds = array<i64: 1, 28, 16, 128>}, {pipeline_mode = #tpu.pipeline_mode<synchronous>, transform_indices = @transform_1, window_bounds = array<i64: 2, 1152, 128>}, {transform_indices = @transform_2, window_bounds = array<i64: 1, 8, 16, 128>}]} {
    %c0_i32 = arith.constant 0 : i32
    %0 = arith.cmpi eq, %arg1, %c0_i32 : i32
    %c1_i32 = arith.constant 1 : i32
    %1 = arith.cmpi eq, %arg1, %c1_i32 : i32
    %c8_i32 = arith.constant 8 : i32
    %2 = arith.muli %arg1, %c8_i32 : i32
    %3 = tpu.assume_multiple %2, 8 : i32
    %c0 = arith.constant 0 : index
    %4 = arith.index_cast %3 : i32 to index
    %c0_0 = arith.constant 0 : index
    %c0_1 = arith.constant 0 : index
    %5 = vector.load %arg2[%c0, %4, %c0_0, %c0_1] : memref<1x28x16x128xf32, #tpu.memory_space<vmem>>, vector<1x20x16x128xf32>
    %6 = vector.shape_cast %5 : vector<1x20x16x128xf32> to vector<20x16x128xf32>
    %cst = arith.constant 0.000000e+00 : f32
    %7 = vector.broadcast %cst : f32 to vector<20x16x128xf32>
    %8 = arith.maximumf %6, %7 : vector<20x16x128xf32>
    %9 = arith.truncf %8 : vector<20x16x128xf32> to vector<20x16x128xbf16>
    %c0_2 = arith.constant 0 : index
    %c0_3 = arith.constant 0 : index
    %c0_4 = arith.constant 0 : index
    %10 = vector.load %arg3[%c0_2, %c0_3, %c0_4] : memref<2x1152x128xbf16, #tpu.memory_space<vmem>>, vector<1x1152x128xbf16>
    %11 = vector.shape_cast %10 : vector<1x1152x128xbf16> to vector<1152x128xbf16>
    %c0_5 = arith.constant 0 : index
    %c2 = arith.constant 2 : index
    %c0_6 = arith.constant 0 : index
    %12 = vector.load %arg5[%c0_5, %c2, %c0_6] : memref<20x20x128xbf16, #tpu.memory_space<vmem>>, vector<20x16x128xbf16>
    tpu.vector_store %arg5[%c0_5, %c2, %c0_6], %9 {strides = array<i32>} : memref<20x20x128xbf16, #tpu.memory_space<vmem>>, vector<20x16x128xbf16>,
    %cst_7 = arith.constant -1.000260e+30 : bf16
    %13 = vector.broadcast %cst_7 : bf16 to vector<20x2x128xbf16>
    %c0_8 = arith.constant 0 : index
    %c0_9 = arith.constant 0 : index
    %c0_10 = arith.constant 0 : index
    %14 = vector.load %arg5[%c0_8, %c0_9, %c0_10] : memref<20x20x128xbf16, #tpu.memory_space<vmem>>, vector<20x2x128xbf16>
    tpu.vector_store %arg5[%c0_8, %c0_9, %c0_10], %13 {strides = array<i32>} : memref<20x20x128xbf16, #tpu.memory_space<vmem>>, vector<20x2x128xbf16>,
    %cst_11 = arith.constant -1.000260e+30 : bf16
    %15 = vector.broadcast %cst_11 : bf16 to vector<20x2x128xbf16>
    %c0_12 = arith.constant 0 : index
    %c18 = arith.constant 18 : index
    %c0_13 = arith.constant 0 : index
    %16 = vector.load %arg5[%c0_12, %c18, %c0_13] : memref<20x20x128xbf16, #tpu.memory_space<vmem>>, vector<20x2x128xbf16>
    tpu.vector_store %arg5[%c0_12, %c18, %c0_13], %15 {strides = array<i32>} : memref<20x20x128xbf16, #tpu.memory_space<vmem>>, vector<20x2x128xbf16>,
    %17 = arith.extui %0 : i1 to i32
    %c0_i32_14 = arith.constant 0 : i32
    %18 = arith.cmpi ne, %17, %c0_i32_14 : i32
    scf.if %18 {
      %cst_181 = arith.constant -1.000260e+30 : bf16
      %122 = vector.broadcast %cst_181 : bf16 to vector<6x16x128xbf16>
      %c0_182 = arith.constant 0 : index
      %c2_183 = arith.constant 2 : index
      %c0_184 = arith.constant 0 : index
      %123 = vector.load %arg5[%c0_182, %c2_183, %c0_184] : memref<20x20x128xbf16, #tpu.memory_space<vmem>>, vector<6x16x128xbf16>
      tpu.vector_store %arg5[%c0_182, %c2_183, %c0_184], %122 {strides = array<i32>} : memref<20x20x128xbf16, #tpu.memory_space<vmem>>, vector<6x16x128xbf16>,
    } else {
    }
    %19 = arith.extui %1 : i1 to i32
    %c0_i32_15 = arith.constant 0 : i32
    %20 = arith.cmpi ne, %19, %c0_i32_15 : i32
    scf.if %20 {
      %cst_181 = arith.constant -1.000260e+30 : bf16
      %122 = vector.broadcast %cst_181 : bf16 to vector<6x16x128xbf16>
      %c14 = arith.constant 14 : index
      %c2_182 = arith.constant 2 : index
      %c0_183 = arith.constant 0 : index
      %123 = vector.load %arg5[%c14, %c2_182, %c0_183] : memref<20x20x128xbf16, #tpu.memory_space<vmem>>, vector<6x16x128xbf16>
      tpu.vector_store %arg5[%c14, %c2_182, %c0_183], %122 {strides = array<i32>} : memref<20x20x128xbf16, #tpu.memory_space<vmem>>, vector<6x16x128xbf16>,
    } else {
    }
    %c0_16 = arith.constant 0 : index
    %c0_17 = arith.constant 0 : index
    %c0_18 = arith.constant 0 : index
    %21 = vector.load %arg5[%c0_16, %c0_17, %c0_18] : memref<20x20x128xbf16, #tpu.memory_space<vmem>>, vector<20x16x128xbf16>
    %c0_19 = arith.constant 0 : index
    %c1 = arith.constant 1 : index
    %c0_20 = arith.constant 0 : index
    %22 = vector.load %arg5[%c0_19, %c1, %c0_20] : memref<20x20x128xbf16, #tpu.memory_space<vmem>>, vector<20x16x128xbf16>
    %23 = arith.maximumf %21, %22 : vector<20x16x128xbf16>
    %c0_21 = arith.constant 0 : index
    %c2_22 = arith.constant 2 : index
    %c0_23 = arith.constant 0 : index
    %24 = vector.load %arg5[%c0_21, %c2_22, %c0_23] : memref<20x20x128xbf16, #tpu.memory_space<vmem>>, vector<20x16x128xbf16>
    %25 = arith.maximumf %23, %24 : vector<20x16x128xbf16>
    %c0_24 = arith.constant 0 : index
    %c3 = arith.constant 3 : index
    %c0_25 = arith.constant 0 : index
    %26 = vector.load %arg5[%c0_24, %c3, %c0_25] : memref<20x20x128xbf16, #tpu.memory_space<vmem>>, vector<20x16x128xbf16>
    %27 = arith.maximumf %25, %26 : vector<20x16x128xbf16>
    %c0_26 = arith.constant 0 : index
    %c4 = arith.constant 4 : index
    %c0_27 = arith.constant 0 : index
    %28 = vector.load %arg5[%c0_26, %c4, %c0_27] : memref<20x20x128xbf16, #tpu.memory_space<vmem>>, vector<20x16x128xbf16>
    %29 = arith.maximumf %27, %28 : vector<20x16x128xbf16>
    %c0_28 = arith.constant 0 : index
    %c0_29 = arith.constant 0 : index
    %c0_30 = arith.constant 0 : index
    %30 = vector.load %arg6[%c0_28, %c0_29, %c0_30] : memref<20x16x128xbf16, #tpu.memory_space<vmem>>, vector<20x16x128xbf16>
    tpu.vector_store %arg6[%c0_28, %c0_29, %c0_30], %29 {strides = array<i32>} : memref<20x16x128xbf16, #tpu.memory_space<vmem>>, vector<20x16x128xbf16>,
    %c0_31 = arith.constant 0 : index
    %c0_32 = arith.constant 0 : index
    %c0_33 = arith.constant 0 : index
    %31 = vector.load %arg6[%c0_31, %c0_32, %c0_33] : memref<20x16x128xbf16, #tpu.memory_space<vmem>>, vector<16x16x128xbf16>
    %c1_34 = arith.constant 1 : index
    %c0_35 = arith.constant 0 : index
    %c0_36 = arith.constant 0 : index
    %32 = vector.load %arg6[%c1_34, %c0_35, %c0_36] : memref<20x16x128xbf16, #tpu.memory_space<vmem>>, vector<16x16x128xbf16>
    %33 = arith.maximumf %31, %32 : vector<16x16x128xbf16>
    %c2_37 = arith.constant 2 : index
    %c0_38 = arith.constant 0 : index
    %c0_39 = arith.constant 0 : index
    %34 = vector.load %arg6[%c2_37, %c0_38, %c0_39] : memref<20x16x128xbf16, #tpu.memory_space<vmem>>, vector<16x16x128xbf16>
    %35 = arith.maximumf %33, %34 : vector<16x16x128xbf16>
    %c3_40 = arith.constant 3 : index
    %c0_41 = arith.constant 0 : index
    %c0_42 = arith.constant 0 : index
    %36 = vector.load %arg6[%c3_40, %c0_41, %c0_42] : memref<20x16x128xbf16, #tpu.memory_space<vmem>>, vector<16x16x128xbf16>
    %37 = arith.maximumf %35, %36 : vector<16x16x128xbf16>
    %c4_43 = arith.constant 4 : index
    %c0_44 = arith.constant 0 : index
    %c0_45 = arith.constant 0 : index
    %38 = vector.load %arg6[%c4_43, %c0_44, %c0_45] : memref<20x16x128xbf16, #tpu.memory_space<vmem>>, vector<16x16x128xbf16>
    %39 = arith.maximumf %37, %38 : vector<16x16x128xbf16>
    %c0_46 = arith.constant 0 : index
    %c2_47 = arith.constant 2 : index
    %c0_48 = arith.constant 0 : index
    %40 = vector.load %arg5[%c0_46, %c2_47, %c0_48] : memref<20x20x128xbf16, #tpu.memory_space<vmem>>, vector<16x16x128xbf16>
    tpu.vector_store %arg5[%c0_46, %c2_47, %c0_48], %39 {strides = array<i32>} : memref<20x20x128xbf16, #tpu.memory_space<vmem>>, vector<16x16x128xbf16>,
    %cst_49 = arith.constant 0.000000e+00 : bf16
    %41 = vector.broadcast %cst_49 : bf16 to vector<16x2x128xbf16>
    %c0_50 = arith.constant 0 : index
    %c0_51 = arith.constant 0 : index
    %c0_52 = arith.constant 0 : index
    %42 = vector.load %arg5[%c0_50, %c0_51, %c0_52] : memref<20x20x128xbf16, #tpu.memory_space<vmem>>, vector<16x2x128xbf16>
    tpu.vector_store %arg5[%c0_50, %c0_51, %c0_52], %41 {strides = array<i32>} : memref<20x20x128xbf16, #tpu.memory_space<vmem>>, vector<16x2x128xbf16>,
    %cst_53 = arith.constant 0.000000e+00 : bf16
    %43 = vector.broadcast %cst_53 : bf16 to vector<16x2x128xbf16>
    %c0_54 = arith.constant 0 : index
    %c18_55 = arith.constant 18 : index
    %c0_56 = arith.constant 0 : index
    %44 = vector.load %arg5[%c0_54, %c18_55, %c0_56] : memref<20x20x128xbf16, #tpu.memory_space<vmem>>, vector<16x2x128xbf16>
    tpu.vector_store %arg5[%c0_54, %c18_55, %c0_56], %43 {strides = array<i32>} : memref<20x20x128xbf16, #tpu.memory_space<vmem>>, vector<16x2x128xbf16>,
    %45 = arith.extui %0 : i1 to i32
    %c0_i32_57 = arith.constant 0 : i32
    %46 = arith.cmpi ne, %45, %c0_i32_57 : i32
    scf.if %46 {
      %cst_181 = arith.constant 0.000000e+00 : bf16
      %122 = vector.broadcast %cst_181 : bf16 to vector<4x16x128xbf16>
      %c0_182 = arith.constant 0 : index
      %c2_183 = arith.constant 2 : index
      %c0_184 = arith.constant 0 : index
      %123 = vector.load %arg5[%c0_182, %c2_183, %c0_184] : memref<20x20x128xbf16, #tpu.memory_space<vmem>>, vector<4x16x128xbf16>
      tpu.vector_store %arg5[%c0_182, %c2_183, %c0_184], %122 {strides = array<i32>} : memref<20x20x128xbf16, #tpu.memory_space<vmem>>, vector<4x16x128xbf16>,
    } else {
    }
    %47 = arith.extui %1 : i1 to i32
    %c0_i32_58 = arith.constant 0 : i32
    %48 = arith.cmpi ne, %47, %c0_i32_58 : i32
    scf.if %48 {
      %cst_181 = arith.constant 0.000000e+00 : bf16
      %122 = vector.broadcast %cst_181 : bf16 to vector<4x16x128xbf16>
      %c12 = arith.constant 12 : index
      %c2_182 = arith.constant 2 : index
      %c0_183 = arith.constant 0 : index
      %123 = vector.load %arg5[%c12, %c2_182, %c0_183] : memref<20x20x128xbf16, #tpu.memory_space<vmem>>, vector<4x16x128xbf16>
      tpu.vector_store %arg5[%c12, %c2_182, %c0_183], %122 {strides = array<i32>} : memref<20x20x128xbf16, #tpu.memory_space<vmem>>, vector<4x16x128xbf16>,
    } else {
    }
    %c0_59 = arith.constant 0 : index
    %c1_60 = arith.constant 1 : index
    %c0_61 = arith.constant 0 : index
    %49 = vector.load %arg5[%c0_59, %c1_60, %c0_61] : memref<20x20x128xbf16, #tpu.memory_space<vmem>>, vector<14x16x128xbf16>
    %c0_62 = arith.constant 0 : index
    %c2_63 = arith.constant 2 : index
    %c0_64 = arith.constant 0 : index
    %50 = vector.load %arg5[%c0_62, %c2_63, %c0_64] : memref<20x20x128xbf16, #tpu.memory_space<vmem>>, vector<14x16x128xbf16>
    %c0_65 = arith.constant 0 : index
    %c3_66 = arith.constant 3 : index
    %c0_67 = arith.constant 0 : index
    %51 = vector.load %arg5[%c0_65, %c3_66, %c0_67] : memref<20x20x128xbf16, #tpu.memory_space<vmem>>, vector<14x16x128xbf16>
    %c1_68 = arith.constant 1 : index
    %c1_69 = arith.constant 1 : index
    %c0_70 = arith.constant 0 : index
    %52 = vector.load %arg5[%c1_68, %c1_69, %c0_70] : memref<20x20x128xbf16, #tpu.memory_space<vmem>>, vector<14x16x128xbf16>
    %c1_71 = arith.constant 1 : index
    %c2_72 = arith.constant 2 : index
    %c0_73 = arith.constant 0 : index
    %53 = vector.load %arg5[%c1_71, %c2_72, %c0_73] : memref<20x20x128xbf16, #tpu.memory_space<vmem>>, vector<14x16x128xbf16>
    %c1_74 = arith.constant 1 : index
    %c3_75 = arith.constant 3 : index
    %c0_76 = arith.constant 0 : index
    %54 = vector.load %arg5[%c1_74, %c3_75, %c0_76] : memref<20x20x128xbf16, #tpu.memory_space<vmem>>, vector<14x16x128xbf16>
    %c2_77 = arith.constant 2 : index
    %c1_78 = arith.constant 1 : index
    %c0_79 = arith.constant 0 : index
    %55 = vector.load %arg5[%c2_77, %c1_78, %c0_79] : memref<20x20x128xbf16, #tpu.memory_space<vmem>>, vector<14x16x128xbf16>
    %c2_80 = arith.constant 2 : index
    %c2_81 = arith.constant 2 : index
    %c0_82 = arith.constant 0 : index
    %56 = vector.load %arg5[%c2_80, %c2_81, %c0_82] : memref<20x20x128xbf16, #tpu.memory_space<vmem>>, vector<14x16x128xbf16>
    %c2_83 = arith.constant 2 : index
    %c3_84 = arith.constant 3 : index
    %c0_85 = arith.constant 0 : index
    %57 = vector.load %arg5[%c2_83, %c3_84, %c0_85] : memref<20x20x128xbf16, #tpu.memory_space<vmem>>, vector<14x16x128xbf16>
    %58 = tpu.concatenate %49, %50, %51, %52, %53, %54, %55, %56, %57 in 2 : vector<14x16x128xbf16>, vector<14x16x128xbf16>, vector<14x16x128xbf16>, vector<14x16x128xbf16>, vector<14x16x128xbf16>, vector<14x16x128xbf16>, vector<14x16x128xbf16>, vector<14x16x128xbf16>, vector<14x16x128xbf16> -> vector<14x16x1152xbf16>
    %59 = vector.shape_cast %58 : vector<14x16x1152xbf16> to vector<224x1152xbf16>
    %cst_86 = arith.constant dense<0.000000e+00> : vector<224x128xf32>
    %60 = tpu.matmul %59, %11, %cst_86 {dimension_numbers = #tpu.dot_dimension_numbers<[1], [0], [0], [1], [0, 0, 1, 1], [], []>} : vector<224x1152xbf16>, vector<1152x128xbf16>, vector<224x128xf32> -> vector<224x128xf32>
    %61 = vector.shape_cast %60 : vector<224x128xf32> to vector<14x16x128xf32>
    %62 = arith.truncf %61 : vector<14x16x128xf32> to vector<14x16x128xbf16>
    %c1_87 = arith.constant 1 : index
    %c0_88 = arith.constant 0 : index
    %c0_89 = arith.constant 0 : index
    %63 = vector.load %arg3[%c1_87, %c0_88, %c0_89] : memref<2x1152x128xbf16, #tpu.memory_space<vmem>>, vector<1x1152x128xbf16>
    %64 = vector.shape_cast %63 : vector<1x1152x128xbf16> to vector<1152x128xbf16>
    %c0_90 = arith.constant 0 : index
    %c2_91 = arith.constant 2 : index
    %c0_92 = arith.constant 0 : index
    %65 = vector.load %arg5[%c0_90, %c2_91, %c0_92] : memref<20x20x128xbf16, #tpu.memory_space<vmem>>, vector<14x16x128xbf16>
    tpu.vector_store %arg5[%c0_90, %c2_91, %c0_92], %62 {strides = array<i32>} : memref<20x20x128xbf16, #tpu.memory_space<vmem>>, vector<14x16x128xbf16>,
    %cst_93 = arith.constant -1.000260e+30 : bf16
    %66 = vector.broadcast %cst_93 : bf16 to vector<14x2x128xbf16>
    %c0_94 = arith.constant 0 : index
    %c0_95 = arith.constant 0 : index
    %c0_96 = arith.constant 0 : index
    %67 = vector.load %arg5[%c0_94, %c0_95, %c0_96] : memref<20x20x128xbf16, #tpu.memory_space<vmem>>, vector<14x2x128xbf16>
    tpu.vector_store %arg5[%c0_94, %c0_95, %c0_96], %66 {strides = array<i32>} : memref<20x20x128xbf16, #tpu.memory_space<vmem>>, vector<14x2x128xbf16>,
    %cst_97 = arith.constant -1.000260e+30 : bf16
    %68 = vector.broadcast %cst_97 : bf16 to vector<14x2x128xbf16>
    %c0_98 = arith.constant 0 : index
    %c18_99 = arith.constant 18 : index
    %c0_100 = arith.constant 0 : index
    %69 = vector.load %arg5[%c0_98, %c18_99, %c0_100] : memref<20x20x128xbf16, #tpu.memory_space<vmem>>, vector<14x2x128xbf16>
    tpu.vector_store %arg5[%c0_98, %c18_99, %c0_100], %68 {strides = array<i32>} : memref<20x20x128xbf16, #tpu.memory_space<vmem>>, vector<14x2x128xbf16>,
    %70 = arith.extui %0 : i1 to i32
    %c0_i32_101 = arith.constant 0 : i32
    %71 = arith.cmpi ne, %70, %c0_i32_101 : i32
    scf.if %71 {
      %cst_181 = arith.constant -1.000260e+30 : bf16
      %122 = vector.broadcast %cst_181 : bf16 to vector<3x16x128xbf16>
      %c0_182 = arith.constant 0 : index
      %c2_183 = arith.constant 2 : index
      %c0_184 = arith.constant 0 : index
      %123 = vector.load %arg5[%c0_182, %c2_183, %c0_184] : memref<20x20x128xbf16, #tpu.memory_space<vmem>>, vector<3x16x128xbf16>
      tpu.vector_store %arg5[%c0_182, %c2_183, %c0_184], %122 {strides = array<i32>} : memref<20x20x128xbf16, #tpu.memory_space<vmem>>, vector<3x16x128xbf16>,
    } else {
    }
    %72 = arith.extui %1 : i1 to i32
    %c0_i32_102 = arith.constant 0 : i32
    %73 = arith.cmpi ne, %72, %c0_i32_102 : i32
    scf.if %73 {
      %cst_181 = arith.constant -1.000260e+30 : bf16
      %122 = vector.broadcast %cst_181 : bf16 to vector<3x16x128xbf16>
      %c11 = arith.constant 11 : index
      %c2_182 = arith.constant 2 : index
      %c0_183 = arith.constant 0 : index
      %123 = vector.load %arg5[%c11, %c2_182, %c0_183] : memref<20x20x128xbf16, #tpu.memory_space<vmem>>, vector<3x16x128xbf16>
      tpu.vector_store %arg5[%c11, %c2_182, %c0_183], %122 {strides = array<i32>} : memref<20x20x128xbf16, #tpu.memory_space<vmem>>, vector<3x16x128xbf16>,
    } else {
    }
    %c0_103 = arith.constant 0 : index
    %c0_104 = arith.constant 0 : index
    %c0_105 = arith.constant 0 : index
    %74 = vector.load %arg5[%c0_103, %c0_104, %c0_105] : memref<20x20x128xbf16, #tpu.memory_space<vmem>>, vector<14x16x128xbf16>
    %c0_106 = arith.constant 0 : index
    %c1_107 = arith.constant 1 : index
    %c0_108 = arith.constant 0 : index
    %75 = vector.load %arg5[%c0_106, %c1_107, %c0_108] : memref<20x20x128xbf16, #tpu.memory_space<vmem>>, vector<14x16x128xbf16>
    %76 = arith.maximumf %74, %75 : vector<14x16x128xbf16>
    %c0_109 = arith.constant 0 : index
    %c2_110 = arith.constant 2 : index
    %c0_111 = arith.constant 0 : index
    %77 = vector.load %arg5[%c0_109, %c2_110, %c0_111] : memref<20x20x128xbf16, #tpu.memory_space<vmem>>, vector<14x16x128xbf16>
    %78 = arith.maximumf %76, %77 : vector<14x16x128xbf16>
    %c0_112 = arith.constant 0 : index
    %c3_113 = arith.constant 3 : index
    %c0_114 = arith.constant 0 : index
    %79 = vector.load %arg5[%c0_112, %c3_113, %c0_114] : memref<20x20x128xbf16, #tpu.memory_space<vmem>>, vector<14x16x128xbf16>
    %80 = arith.maximumf %78, %79 : vector<14x16x128xbf16>
    %c0_115 = arith.constant 0 : index
    %c4_116 = arith.constant 4 : index
    %c0_117 = arith.constant 0 : index
    %81 = vector.load %arg5[%c0_115, %c4_116, %c0_117] : memref<20x20x128xbf16, #tpu.memory_space<vmem>>, vector<14x16x128xbf16>
    %82 = arith.maximumf %80, %81 : vector<14x16x128xbf16>
    %c0_118 = arith.constant 0 : index
    %c0_119 = arith.constant 0 : index
    %c0_120 = arith.constant 0 : index
    %83 = vector.load %arg6[%c0_118, %c0_119, %c0_120] : memref<20x16x128xbf16, #tpu.memory_space<vmem>>, vector<14x16x128xbf16>
    tpu.vector_store %arg6[%c0_118, %c0_119, %c0_120], %82 {strides = array<i32>} : memref<20x16x128xbf16, #tpu.memory_space<vmem>>, vector<14x16x128xbf16>,
    %c0_121 = arith.constant 0 : index
    %c0_122 = arith.constant 0 : index
    %c0_123 = arith.constant 0 : index
    %84 = vector.load %arg6[%c0_121, %c0_122, %c0_123] : memref<20x16x128xbf16, #tpu.memory_space<vmem>>, vector<10x16x128xbf16>
    %c1_124 = arith.constant 1 : index
    %c0_125 = arith.constant 0 : index
    %c0_126 = arith.constant 0 : index
    %85 = vector.load %arg6[%c1_124, %c0_125, %c0_126] : memref<20x16x128xbf16, #tpu.memory_space<vmem>>, vector<10x16x128xbf16>
    %86 = arith.maximumf %84, %85 : vector<10x16x128xbf16>
    %c2_127 = arith.constant 2 : index
    %c0_128 = arith.constant 0 : index
    %c0_129 = arith.constant 0 : index
    %87 = vector.load %arg6[%c2_127, %c0_128, %c0_129] : memref<20x16x128xbf16, #tpu.memory_space<vmem>>, vector<10x16x128xbf16>
    %88 = arith.maximumf %86, %87 : vector<10x16x128xbf16>
    %c3_130 = arith.constant 3 : index
    %c0_131 = arith.constant 0 : index
    %c0_132 = arith.constant 0 : index
    %89 = vector.load %arg6[%c3_130, %c0_131, %c0_132] : memref<20x16x128xbf16, #tpu.memory_space<vmem>>, vector<10x16x128xbf16>
    %90 = arith.maximumf %88, %89 : vector<10x16x128xbf16>
    %c4_133 = arith.constant 4 : index
    %c0_134 = arith.constant 0 : index
    %c0_135 = arith.constant 0 : index
    %91 = vector.load %arg6[%c4_133, %c0_134, %c0_135] : memref<20x16x128xbf16, #tpu.memory_space<vmem>>, vector<10x16x128xbf16>
    %92 = arith.maximumf %90, %91 : vector<10x16x128xbf16>
    %c0_136 = arith.constant 0 : index
    %c2_137 = arith.constant 2 : index
    %c0_138 = arith.constant 0 : index
    %93 = vector.load %arg5[%c0_136, %c2_137, %c0_138] : memref<20x20x128xbf16, #tpu.memory_space<vmem>>, vector<10x16x128xbf16>
    tpu.vector_store %arg5[%c0_136, %c2_137, %c0_138], %92 {strides = array<i32>} : memref<20x20x128xbf16, #tpu.memory_space<vmem>>, vector<10x16x128xbf16>,
    %cst_139 = arith.constant 0.000000e+00 : bf16
    %94 = vector.broadcast %cst_139 : bf16 to vector<10x2x128xbf16>
    %c0_140 = arith.constant 0 : index
    %c0_141 = arith.constant 0 : index
    %c0_142 = arith.constant 0 : index
    %95 = vector.load %arg5[%c0_140, %c0_141, %c0_142] : memref<20x20x128xbf16, #tpu.memory_space<vmem>>, vector<10x2x128xbf16>
    tpu.vector_store %arg5[%c0_140, %c0_141, %c0_142], %94 {strides = array<i32>} : memref<20x20x128xbf16, #tpu.memory_space<vmem>>, vector<10x2x128xbf16>,
    %cst_143 = arith.constant 0.000000e+00 : bf16
    %96 = vector.broadcast %cst_143 : bf16 to vector<10x2x128xbf16>
    %c0_144 = arith.constant 0 : index
    %c18_145 = arith.constant 18 : index
    %c0_146 = arith.constant 0 : index
    %97 = vector.load %arg5[%c0_144, %c18_145, %c0_146] : memref<20x20x128xbf16, #tpu.memory_space<vmem>>, vector<10x2x128xbf16>
    tpu.vector_store %arg5[%c0_144, %c18_145, %c0_146], %96 {strides = array<i32>} : memref<20x20x128xbf16, #tpu.memory_space<vmem>>, vector<10x2x128xbf16>,
    %98 = arith.extui %0 : i1 to i32
    %c0_i32_147 = arith.constant 0 : i32
    %99 = arith.cmpi ne, %98, %c0_i32_147 : i32
    scf.if %99 {
      %cst_181 = arith.constant 0.000000e+00 : bf16
      %122 = vector.broadcast %cst_181 : bf16 to vector<1x16x128xbf16>
      %c0_182 = arith.constant 0 : index
      %c2_183 = arith.constant 2 : index
      %c0_184 = arith.constant 0 : index
      %123 = vector.load %arg5[%c0_182, %c2_183, %c0_184] : memref<20x20x128xbf16, #tpu.memory_space<vmem>>, vector<1x16x128xbf16>
      tpu.vector_store %arg5[%c0_182, %c2_183, %c0_184], %122 {strides = array<i32>} : memref<20x20x128xbf16, #tpu.memory_space<vmem>>, vector<1x16x128xbf16>,
    } else {
    }
    %100 = arith.extui %1 : i1 to i32
    %c0_i32_148 = arith.constant 0 : i32
    %101 = arith.cmpi ne, %100, %c0_i32_148 : i32
    scf.if %101 {
      %cst_181 = arith.constant 0.000000e+00 : bf16
      %122 = vector.broadcast %cst_181 : bf16 to vector<1x16x128xbf16>
      %c9 = arith.constant 9 : index
      %c2_182 = arith.constant 2 : index
      %c0_183 = arith.constant 0 : index
      %123 = vector.load %arg5[%c9, %c2_182, %c0_183] : memref<20x20x128xbf16, #tpu.memory_space<vmem>>, vector<1x16x128xbf16>
      tpu.vector_store %arg5[%c9, %c2_182, %c0_183], %122 {strides = array<i32>} : memref<20x20x128xbf16, #tpu.memory_space<vmem>>, vector<1x16x128xbf16>,
    } else {
    }
    %c0_149 = arith.constant 0 : index
    %c1_150 = arith.constant 1 : index
    %c0_151 = arith.constant 0 : index
    %102 = vector.load %arg5[%c0_149, %c1_150, %c0_151] : memref<20x20x128xbf16, #tpu.memory_space<vmem>>, vector<8x16x128xbf16>
    %c0_152 = arith.constant 0 : index
    %c2_153 = arith.constant 2 : index
    %c0_154 = arith.constant 0 : index
    %103 = vector.load %arg5[%c0_152, %c2_153, %c0_154] : memref<20x20x128xbf16, #tpu.memory_space<vmem>>, vector<8x16x128xbf16>
    %c0_155 = arith.constant 0 : index
    %c3_156 = arith.constant 3 : index
    %c0_157 = arith.constant 0 : index
    %104 = vector.load %arg5[%c0_155, %c3_156, %c0_157] : memref<20x20x128xbf16, #tpu.memory_space<vmem>>, vector<8x16x128xbf16>
    %c1_158 = arith.constant 1 : index
    %c1_159 = arith.constant 1 : index
    %c0_160 = arith.constant 0 : index
    %105 = vector.load %arg5[%c1_158, %c1_159, %c0_160] : memref<20x20x128xbf16, #tpu.memory_space<vmem>>, vector<8x16x128xbf16>
    %c1_161 = arith.constant 1 : index
    %c2_162 = arith.constant 2 : index
    %c0_163 = arith.constant 0 : index
    %106 = vector.load %arg5[%c1_161, %c2_162, %c0_163] : memref<20x20x128xbf16, #tpu.memory_space<vmem>>, vector<8x16x128xbf16>
    %c1_164 = arith.constant 1 : index
    %c3_165 = arith.constant 3 : index
    %c0_166 = arith.constant 0 : index
    %107 = vector.load %arg5[%c1_164, %c3_165, %c0_166] : memref<20x20x128xbf16, #tpu.memory_space<vmem>>, vector<8x16x128xbf16>
    %c2_167 = arith.constant 2 : index
    %c1_168 = arith.constant 1 : index
    %c0_169 = arith.constant 0 : index
    %108 = vector.load %arg5[%c2_167, %c1_168, %c0_169] : memref<20x20x128xbf16, #tpu.memory_space<vmem>>, vector<8x16x128xbf16>
    %c2_170 = arith.constant 2 : index
    %c2_171 = arith.constant 2 : index
    %c0_172 = arith.constant 0 : index
    %109 = vector.load %arg5[%c2_170, %c2_171, %c0_172] : memref<20x20x128xbf16, #tpu.memory_space<vmem>>, vector<8x16x128xbf16>
    %c2_173 = arith.constant 2 : index
    %c3_174 = arith.constant 3 : index
    %c0_175 = arith.constant 0 : index
    %110 = vector.load %arg5[%c2_173, %c3_174, %c0_175] : memref<20x20x128xbf16, #tpu.memory_space<vmem>>, vector<8x16x128xbf16>
    %111 = tpu.concatenate %102, %103, %104, %105, %106, %107, %108, %109, %110 in 2 : vector<8x16x128xbf16>, vector<8x16x128xbf16>, vector<8x16x128xbf16>, vector<8x16x128xbf16>, vector<8x16x128xbf16>, vector<8x16x128xbf16>, vector<8x16x128xbf16>, vector<8x16x128xbf16>, vector<8x16x128xbf16> -> vector<8x16x1152xbf16>
    %112 = vector.shape_cast %111 : vector<8x16x1152xbf16> to vector<128x1152xbf16>
    %cst_176 = arith.constant dense<0.000000e+00> : vector<128x128xf32>
    %113 = tpu.matmul %112, %64, %cst_176 {dimension_numbers = #tpu.dot_dimension_numbers<[1], [0], [0], [1], [0, 0, 1, 1], [], []>} : vector<128x1152xbf16>, vector<1152x128xbf16>, vector<128x128xf32> -> vector<128x128xf32>
    %114 = vector.shape_cast %113 : vector<128x128xf32> to vector<8x16x128xf32>
    %115 = vector.extract_strided_slice %8 {offsets = [6, 0, 0], sizes = [8, 16, 128], strides = [1, 1, 1]} : vector<20x16x128xf32> to vector<8x16x128xf32>
    %116 = vector.extract_strided_slice %61 {offsets = [3, 0, 0], sizes = [8, 16, 128], strides = [1, 1, 1]} : vector<14x16x128xf32> to vector<8x16x128xf32>
    %117 = arith.addf %115, %116 : vector<8x16x128xf32>
    %118 = arith.addf %117, %114 : vector<8x16x128xf32>
    %c0_177 = arith.constant 0 : index
    %c0_178 = arith.constant 0 : index
    %c0_179 = arith.constant 0 : index
    %c0_180 = arith.constant 0 : index
    %119 = vector.load %arg4[%c0_177, %c0_178, %c0_179, %c0_180] : memref<1x8x16x128xf32, #tpu.memory_space<vmem>>, vector<1x8x16x128xf32>
    %120 = vector.shape_cast %119 : vector<1x8x16x128xf32> to vector<8x16x128xf32>
    %121 = vector.shape_cast %118 : vector<8x16x128xf32> to vector<1x8x16x128xf32>
    tpu.vector_store %arg4[%c0_177, %c0_178, %c0_179, %c0_180], %121 {strides = array<i32>} : memref<1x8x16x128xf32, #tpu.memory_space<vmem>>, vector<1x8x16x128xf32>,
    return
  }
  func.func @transform_0(%arg0: i32, %arg1: i32) -> (i32, i32, i32, i32) {
    %c0_i32 = arith.constant 0 : i32
    %c0_i32_0 = arith.constant 0 : i32
    %c0_i32_1 = arith.constant 0 : i32
    %c0_i32_2 = arith.constant 0 : i32
    return %arg0, %c0_i32, %c0_i32_0, %c0_i32_1 : i32, i32, i32, i32
  }
  func.func @transform_1(%arg0: i32, %arg1: i32) -> (i32, i32, i32) {
    %c0_i32 = arith.constant 0 : i32
    %c0_i32_0 = arith.constant 0 : i32
    %c0_i32_1 = arith.constant 0 : i32
    %c0_i32_2 = arith.constant 0 : i32
    return %c0_i32, %c0_i32_0, %c0_i32_1 : i32, i32, i32
  }
  func.func @transform_2(%arg0: i32, %arg1: i32) -> (i32, i32, i32, i32) {
    %c0_i32 = arith.constant 0 : i32
    %c0_i32_0 = arith.constant 0 : i32
    %c0_i32_1 = arith.constant 0 : i32
    return %arg0, %arg1, %c0_i32, %c0_i32_0 : i32, i32, i32, i32
  }
}

</mosaic_0001>

<llo_original>
// kernel: tpu_custom_call.1
$region0: #{tpu_custom_call.1}
  #allocation0 [shape = 'u32[]', space=smem, size = 0x4, offset = 0x4, fixed_abs, tag = 'smem constant byte address 0x4 - core index']
  #allocation1 [shape = 'u32[144,128]{1,0:T(1,128)}', space=vmem, size = 0x12000, scoped, tag = 'internal scratch']
  #allocation2 [shape = 'bf16[20,20,128]{2,1,0:T(8,128)(2,1)}', space=vmem, size = 0x1e000, scoped, tag = 'scratch operand']
  #allocation3 [shape = 'bf16[20,16,128]{2,1,0:T(16,128)(2,1)}', space=vmem, size = 0x14000, scoped, tag = 'scratch operand']
  %s0 = inlined_call_operand.hbm [shape: f32[2,28,16,128], index: 0, kind: input, shape index: {}]
  %s1 = inlined_call_operand.hbm [shape: bf16[2,1152,128], index: 1, kind: input, shape index: {}]
  %s2 = inlined_call_operand.hbm [shape: f32[2,16,16,128], index: 2, kind: output, shape index: {}]
  %s3 = sld [smem:[#allocation0]]
  $region81: #{tpu_custom_call.1} parent=0
    _
  %s5 = ssub.s32 1, %s3
  %s6 = scalar_select 0, %s5, %s3
  $region1: #{tpu_custom_call.1} parent=0
    #allocation4 [shape = 'u8[458752]{0}', space=vmem, size = 0x70000, scoped, tag = 'input window, operand 0']
    #allocation5 [shape = 's32[2]{0}', space=sflag, size = 0x8, scoped, tag = 'scoped memory for tpu_custom_call.1']
    #allocation6 [shape = 's32[2]{0}', space=sflag, size = 0x8, scoped, tag = 'scoped memory for tpu_custom_call.1']
    #allocation7 [shape = 'u8[589824]{0}', space=vmem, size = 0x90000, scoped, tag = 'input window, operand 1, single buffered']
    #allocation8 [shape = 's32[1]{0}', space=sflag, size = 0x4, scoped, tag = 'scoped memory for tpu_custom_call.1']
    #allocation9 [shape = 'u8[131072]{0}', space=vmem, size = 0x20000, scoped, tag = 'output window, operand 0']
    %7 = vsyncpa [#allocation5], 0
    %s8 = scalar_lea.sflag [#allocation5], 1
    %9 = vsyncpa %s8, 0
    %10 = vsyncpa [#allocation8], 0
    %11 = vsyncpa [#allocation6], 0
    %s12 = scalar_lea.sflag [#allocation6], 1
    %13 = vsyncpa %s12, 0
    loop: start=0, step=1, limit=6
    $region2: #{tpu_custom_call.1} parent=1 // loop_pre_header
      _
    $region3: #{tpu_custom_call.1} parent=1 // loop_header
      %s15 = sphi 0, %s19
      %p16 = scmp.ge.s32.totalorder %s15, 6
      %s22 = sphi 0, %s34
      %s23 = sphi 0, %s30
      %s24 = sphi 0, %s22
      %s25 = sphi 0, %s23
      %s26 = sphi 0, %s24
      %s27 = sphi 0, %s25
      %s37 = sphi 0, %s39
      %s40 = sphi 0, %s37
      %s41 = sphi 0, %s40
      %s57 = sphi 0, %s41
      %s61 = sphi 0, %s61
      %s63 = sphi 0, %s61
      %s64 = sphi 0, %s63
      %s78 = sphi 0, %s64
      %s86 = sphi 0, %s88
      %s89 = sphi 0, %s86
      %s90 = sphi 0, %s89
      %s106 = sphi 0, %s90
    $region4: #{tpu_custom_call.1} parent=1 // loop_header_branch
      %18 = sbr.rel (%p16) target = $region8
    $region5: #{tpu_custom_call.1} parent=1 // loop_body
      %s20 = ssub.s32 %s15, 1
      %s21 = ssub.s32 %s15, 2
      %s28 = sadd.s32 1, %s23
      %p29 = scmp.ge.s32.totalorder %s28, 2
      %s30 = scalar_select %p29, 0, %s28
      %s31 = sadd.s32 1, %s22
      %s32 = scalar_select %p29, %s31, %s22
      %p33 = scmp.ge.s32.totalorder %s32, 2
      %s34 = scalar_select %p33, 0, %s32
      %s35 = ssub.s32 %s22, %s34
      %p36 = scmp.eq.s32.totalorder %s35, 0
      %s38 = sadd.s32 %s37, 1
      %s39 = scalar_select %p36, %s37, %s38
      %p42 = pneg %p36
      %p43 = scmp.eq.s32.totalorder %s15, 3
      %p44 = por %p42, %p43
      %p45 = scmp.ne.s32.totalorder %s37, %s40
      %p46 = scmp.eq.s32.totalorder %s15, 0
      %p47 = por %p45, %p46
      %p48 = scmp.ne.s32.totalorder %s37, %s40
      %p49 = scmp.eq.s32.totalorder %s20, 3
      %p50 = por %p48, %p49
      %p51 = scmp.ne.s32.totalorder %s40, %s41
      %p52 = scmp.eq.s32.totalorder %s20, 0
      %p53 = por %p51, %p52
      %p54 = scmp.ne.s32.totalorder %s40, %s41
      %p55 = scmp.eq.s32.totalorder %s21, 3
      %p56 = por %p54, %p55
      %p58 = scmp.ne.s32.totalorder %s41, %s57
      %p59 = scmp.eq.s32.totalorder %s21, 0
      %p60 = por %p58, %p59
      %s62 = sadd.s32 %s61, 1
      %p65 = scmp.eq.s32.totalorder %s15, 3
      %p66 = scmp.ne.s32.totalorder %s61, %s63
      %p67 = scmp.eq.s32.totalorder %s15, 0
      %p68 = por %p66, %p67
      %p69 = scmp.ne.s32.totalorder %s61, %s63
      %p70 = scmp.eq.s32.totalorder %s20, 3
      %p71 = por %p69, %p70
      %p72 = scmp.ne.s32.totalorder %s63, %s64
      %p73 = scmp.eq.s32.totalorder %s20, 0
      %p74 = por %p72, %p73
      %p75 = scmp.ne.s32.totalorder %s63, %s64
      %p76 = scmp.eq.s32.totalorder %s21, 3
      %p77 = por %p75, %p76
      %p79 = scmp.ne.s32.totalorder %s64, %s78
      %p80 = scmp.eq.s32.totalorder %s21, 0
      %p81 = por %p79, %p80
      %s82 = ssub.s32 %s22, %s34
      %s83 = ssub.s32 %s23, %s30
      %s84 = sor.u32 %s82, %s83
      %p85 = scmp.eq.s32.totalorder %s84, 0
      %s87 = sadd.s32 %s86, 1
      %s88 = scalar_select %p85, %s86, %s87
      %p91 = pneg %p85
      %p92 = scmp.eq.s32.totalorder %s15, 3
      %p93 = por %p91, %p92
      %p94 = scmp.ne.s32.totalorder %s86, %s89
      %p95 = scmp.eq.s32.totalorder %s15, 0
      %p96 = por %p94, %p95
      %p97 = scmp.ne.s32.totalorder %s86, %s89
      %p98 = scmp.eq.s32.totalorder %s20, 3
      %p99 = por %p97, %p98
      %p100 = scmp.ne.s32.totalorder %s89, %s90
      %p101 = scmp.eq.s32.totalorder %s20, 0
      %p102 = por %p100, %p101
      %p103 = scmp.ne.s32.totalorder %s89, %s90
      %p104 = scmp.eq.s32.totalorder %s21, 3
      %p105 = por %p103, %p104
      %p107 = scmp.ne.s32.totalorder %s90, %s106
      %p108 = scmp.eq.s32.totalorder %s21, 0
      %p109 = por %p107, %p108
      %p110 = scmp.le.s32.totalorder 1, %s15
      %p111 = scmp.lt.s32.totalorder %s15, 5
      %p112 = pnand %p110, %p111
      %p113 = pneg %p112
      // Predicated region
      $region9: #{tpu_custom_call.1} parent=5 // pred_check
        _
      $region10: #{tpu_custom_call.1} parent=5 // pred_check_branch
        %115 = sbr.rel (%p112) target = $region12
      $region11: #{tpu_custom_call.1} parent=5 // pred_region
        %s116 = ssub.s32 %s15, 1
        // Predicated region
        $region13: #{tpu_custom_call.1} parent=11 // pred_check
          %p117 = pneg %p74
        $region14: #{tpu_custom_call.1} parent=11 // pred_check_branch
          %119 = sbr.rel (%p117) target = $region16
        $region15: #{tpu_custom_call.1} parent=11 // pred_region
          %s121 = ssub.s32 18432, 18432
          %122 = vsyncadd [#allocation8], %s121
          %s123 = sshll.u32 [#allocation7], 4
          %s124 = int_to_ptr.vmem [resolvable:$true] %s123
          %129 = dma.hbm_to_vmem [thread:$0]  %s1, 18432, %s124, [#allocation8], 64, 64, 4
        $region16: #{tpu_custom_call.1} parent=11 // pred_fallthru
          _
      $region12: #{tpu_custom_call.1} parent=5 // pred_fallthru
        _
      %p130 = scmp.lt.s32.totalorder %s15, 4
      // Predicated region
      $region17: #{tpu_custom_call.1} parent=5 // pred_check
        %p131 = pneg %p130
      $region18: #{tpu_custom_call.1} parent=5 // pred_check_branch
        %133 = sbr.rel (%p131) target = $region20
      $region19: #{tpu_custom_call.1} parent=5 // pred_region
        // Predicated region
        $region21: #{tpu_custom_call.1} parent=19 // pred_check
          %p134 = pneg %p47
        $region22: #{tpu_custom_call.1} parent=19 // pred_check_branch
          %136 = sbr.rel (%p134) target = $region24
        $region23: #{tpu_custom_call.1} parent=19 // pred_region
          %s137 = sand.u32 %s37, 1
          %s138 = scalar_lea.sflag [#allocation5], %s137
          %s139 = sand.u32 %s37, 1
          %s140 = smul.addr %s139, 448
          %s141 = scalar_lea.vmem [#allocation4], %s140
          %s143 = ssub.s32 7168, 7168
          %144 = vsyncadd %s138, %s143
          %s145 = smul.addr %s22, 56
          %s146 = smul.addr %s145, 128
          %s147 = scalar_lea.hbm %s0, %s146
          %s148 = sshll.u32 %s141, 4
          %s149 = int_to_ptr.vmem [resolvable:$true] %s148
          %154 = dma.hbm_to_vmem [thread:$0]  %s147, 7168, %s149, %s138, 128, 128, 8
        $region24: #{tpu_custom_call.1} parent=19 // pred_fallthru
          _
      $region20: #{tpu_custom_call.1} parent=5 // pred_fallthru
        _
      %p155 = scmp.le.s32.totalorder 1, %s15
      %p156 = scmp.lt.s32.totalorder %s15, 5
      %p157 = pnand %p155, %p156
      %p158 = pneg %p157
      // Predicated region
      $region25: #{tpu_custom_call.1} parent=5 // pred_check
        _
      $region26: #{tpu_custom_call.1} parent=5 // pred_check_branch
        %160 = sbr.rel (%p157) target = $region28
      $region27: #{tpu_custom_call.1} parent=5 // pred_region
        %s161 = ssub.s32 %s15, 1
        %s162 = sand.u32 %s40, 1
        %s163 = scalar_lea.sflag [#allocation5], %s162
        %s164 = sand.u32 %s40, 1
        %s165 = smul.addr %s164, 448
        %s166 = scalar_lea.vmem [#allocation4], %s165
        // Predicated region
        $region29: #{tpu_custom_call.1} parent=27 // pred_check
          %p167 = pneg %p53
        $region30: #{tpu_custom_call.1} parent=27 // pred_check_branch
          %169 = sbr.rel (%p167) target = $region32
        $region31: #{tpu_custom_call.1} parent=27 // pred_region
          %170 = dma.done %s163, 7168
        $region32: #{tpu_custom_call.1} parent=27 // pred_fallthru
          _
        // Predicated region
        $region33: #{tpu_custom_call.1} parent=27 // pred_check
          %p171 = pneg %p74
        $region34: #{tpu_custom_call.1} parent=27 // pred_check_branch
          %173 = sbr.rel (%p171) target = $region36
        $region35: #{tpu_custom_call.1} parent=27 // pred_region
          %174 = dma.done [#allocation8], 18432
        $region36: #{tpu_custom_call.1} parent=27 // pred_fallthru
          _
        %s175 = sand.u32 %s40, 1
        %s176 = scalar_lea.sflag [#allocation5], %s175
        %s177 = sand.u32 %s40, 1
        %s178 = smul.addr %s177, 448
        %s179 = scalar_lea.vmem [#allocation4], %s178
        %p180 = pneg %p53
        %p181 = pneg %p50
        %p182 = pneg %p74
        %p183 = pneg %p71
        %p184 = pneg %p102
        %p185 = pneg %p99
        %s186 = sand.u32 %s89, 1
        %s187 = scalar_lea.sflag [#allocation6], %s186
        %s188 = sand.u32 %s89, 1
        %s189 = smul.addr %s188, 128
        %s190 = scalar_lea.vmem [#allocation9], %s189
        %s191 = smul.u32 8, %s25
        %p194 = scmp.eq.s32.totalorder %s25, 0
        %p195 = scmp.eq.s32.totalorder %s25, 1
        %s196 = smul.u32 %s25, 8
        %s197 = smul.u32 %s196, 16
        %s198 = scalar_lea.vmem %s166, %s197 [#allocation4]
        %v199 = vld [vmem:[%s198] sm:$0xff]
        %v200 = vld [vmem:[%s198 + $0x8] sm:$0xff]
        %v201 = vld [vmem:[%s198 + $0x10] sm:$0xff]
        %v202 = vld [vmem:[%s198 + $0x18] sm:$0xff]
        %v203 = vld [vmem:[%s198 + $0x20] sm:$0xff]
        %v204 = vld [vmem:[%s198 + $0x28] sm:$0xff]
        %v205 = vld [vmem:[%s198 + $0x30] sm:$0xff]
        %v206 = vld [vmem:[%s198 + $0x38] sm:$0xff]
        %v207 = vld [vmem:[%s198 + $0x40] sm:$0xff]
        %v208 = vld [vmem:[%s198 + $0x48] sm:$0xff]
        %v209 = vld [vmem:[%s198 + $0x50] sm:$0xff]
        %v210 = vld [vmem:[%s198 + $0x58] sm:$0xff]
        %v211 = vld [vmem:[%s198 + $0x60] sm:$0xff]
        %v212 = vld [vmem:[%s198 + $0x68] sm:$0xff]
        %v213 = vld [vmem:[%s198 + $0x70] sm:$0xff]
        %v214 = vld [vmem:[%s198 + $0x78] sm:$0xff]
        %v215 = vld [vmem:[%s198 + $0x80] sm:$0xff]
        %v216 = vld [vmem:[%s198 + $0x88] sm:$0xff]
        %v217 = vld [vmem:[%s198 + $0x90] sm:$0xff]
        %v218 = vld [vmem:[%s198 + $0x98] sm:$0xff]
        %v219 = vld [vmem:[%s198 + $0xa0] sm:$0xff]
        %v220 = vld [vmem:[%s198 + $0xa8] sm:$0xff]
        %v221 = vld [vmem:[%s198 + $0xb0] sm:$0xff]
        %v222 = vld [vmem:[%s198 + $0xb8] sm:$0xff]
        %v223 = vld [vmem:[%s198 + $0xc0] sm:$0xff]
        %v224 = vld [vmem:[%s198 + $0xc8] sm:$0xff]
        %v225 = vld [vmem:[%s198 + $0xd0] sm:$0xff]
        %v226 = vld [vmem:[%s198 + $0xd8] sm:$0xff]
        %v227 = vld [vmem:[%s198 + $0xe0] sm:$0xff]
        %v228 = vld [vmem:[%s198 + $0xe8] sm:$0xff]
        %v229 = vld [vmem:[%s198 + $0xf0] sm:$0xff]
        %v230 = vld [vmem:[%s198 + $0xf8] sm:$0xff]
        %v231 = vld [vmem:[%s198 + $0x100] sm:$0xff]
        %v232 = vld [vmem:[%s198 + $0x108] sm:$0xff]
        %v233 = vld [vmem:[%s198 + $0x110] sm:$0xff]
        %v234 = vld [vmem:[%s198 + $0x118] sm:$0xff]
        %v235 = vld [vmem:[%s198 + $0x120] sm:$0xff]
        %v236 = vld [vmem:[%s198 + $0x128] sm:$0xff]
        %v237 = vld [vmem:[%s198 + $0x130] sm:$0xff]
        %v238 = vld [vmem:[%s198 + $0x138] sm:$0xff]
        %v239 = vmax.f32 %v199, 0.0
        %v240 = vmax.f32 %v200, 0.0
        %v241 = vmax.f32 %v201, 0.0
        %v242 = vmax.f32 %v202, 0.0
        %v243 = vmax.f32 %v203, 0.0
        %v244 = vmax.f32 %v204, 0.0
        %v245 = vmax.f32 %v205, 0.0
        %v246 = vmax.f32 %v206, 0.0
        %v247 = vmax.f32 %v207, 0.0
        %v248 = vmax.f32 %v208, 0.0
        %v249 = vmax.f32 %v209, 0.0
        %v250 = vmax.f32 %v210, 0.0
        %v251 = vmax.f32 %v211, 0.0
        %v252 = vmax.f32 %v212, 0.0
        %v253 = vmax.f32 %v213, 0.0
        %v254 = vmax.f32 %v214, 0.0
        %v255 = vmax.f32 %v215, 0.0
        %v256 = vmax.f32 %v216, 0.0
        %v257 = vmax.f32 %v217, 0.0
        %v258 = vmax.f32 %v218, 0.0
        %v259 = vmax.f32 %v219, 0.0
        %v260 = vmax.f32 %v220, 0.0
        %v261 = vmax.f32 %v221, 0.0
        %v262 = vmax.f32 %v222, 0.0
        %v263 = vmax.f32 %v223, 0.0
        %v264 = vmax.f32 %v224, 0.0
        %v265 = vmax.f32 %v225, 0.0
        %v266 = vmax.f32 %v226, 0.0
        %v267 = vmax.f32 %v227, 0.0
        %v268 = vmax.f32 %v228, 0.0
        %v269 = vmax.f32 %v229, 0.0
        %v270 = vmax.f32 %v230, 0.0
        %v271 = vmax.f32 %v231, 0.0
        %v272 = vmax.f32 %v232, 0.0
        %v273 = vmax.f32 %v233, 0.0
        %v274 = vmax.f32 %v234, 0.0
        %v275 = vmax.f32 %v235, 0.0
        %v276 = vmax.f32 %v236, 0.0
        %v277 = vmax.f32 %v237, 0.0
        %v278 = vmax.f32 %v238, 0.0
        %v279 = vpack.c.bf16 %v240, %v239
        %v280 = vpack.c.bf16 %v242, %v241
        %v281 = vpack.c.bf16 %v244, %v243
        %v282 = vpack.c.bf16 %v246, %v245
        %v283 = vpack.c.bf16 %v248, %v247
        %v284 = vpack.c.bf16 %v250, %v249
        %v285 = vpack.c.bf16 %v252, %v251
        %v286 = vpack.c.bf16 %v254, %v253
        %v287 = vpack.c.bf16 %v256, %v255
        %v288 = vpack.c.bf16 %v258, %v257
        %v289 = vpack.c.bf16 %v260, %v259
        %v290 = vpack.c.bf16 %v262, %v261
        %v291 = vpack.c.bf16 %v264, %v263
        %v292 = vpack.c.bf16 %v266, %v265
        %v293 = vpack.c.bf16 %v268, %v267
        %v294 = vpack.c.bf16 %v270, %v269
        %v295 = vpack.c.bf16 %v272, %v271
        %v296 = vpack.c.bf16 %v274, %v273
        %v297 = vpack.c.bf16 %v276, %v275
        %v298 = vpack.c.bf16 %v278, %v277
        %v299 = vld [vmem:[#allocation7] sm:$0xf]
        %v300 = vld [vmem:[#allocation7 + $0x4] sm:$0xf]
        %v301 = vld [vmem:[#allocation7 + $0x8] sm:$0xf]
        %v302 = vld [vmem:[#allocation7 + $0xc] sm:$0xf]
        %v303 = vld [vmem:[#allocation7 + $0x10] sm:$0xf]
        %v304 = vld [vmem:[#allocation7 + $0x14] sm:$0xf]
        %v305 = vld [vmem:[#allocation7 + $0x18] sm:$0xf]
        %v306 = vld [vmem:[#allocation7 + $0x1c] sm:$0xf]
        %v307 = vld [vmem:[#allocation7 + $0x20] sm:$0xf]
        %v308 = vld [vmem:[#allocation7 + $0x24] sm:$0xf]
        %v309 = vld [vmem:[#allocation7 + $0x28] sm:$0xf]
        %v310 = vld [vmem:[#allocation7 + $0x2c] sm:$0xf]
        %v311 = vld [vmem:[#allocation7 + $0x30] sm:$0xf]
        %v312 = vld [vmem:[#allocation7 + $0x34] sm:$0xf]
        %v313 = vld [vmem:[#allocation7 + $0x38] sm:$0xf]
        %v314 = vld [vmem:[#allocation7 + $0x3c] sm:$0xf]
        %v315 = vld [vmem:[#allocation7 + $0x40] sm:$0xf]
        %v316 = vld [vmem:[#allocation7 + $0x44] sm:$0xf]
        %v317 = vld [vmem:[#allocation7 + $0x48] sm:$0xf]
        %v318 = vld [vmem:[#allocation7 + $0x4c] sm:$0xf]
        %v319 = vld [vmem:[#allocation7 + $0x50] sm:$0xf]
        %v320 = vld [vmem:[#allocation7 + $0x54] sm:$0xf]
        %v321 = vld [vmem:[#allocation7 + $0x58] sm:$0xf]
        %v322 = vld [vmem:[#allocation7 + $0x5c] sm:$0xf]
        %v323 = vld [vmem:[#allocation7 + $0x60] sm:$0xf]
        %v324 = vld [vmem:[#allocation7 + $0x64] sm:$0xf]
        %v325 = vld [vmem:[#allocation7 + $0x68] sm:$0xf]
        %v326 = vld [vmem:[#allocation7 + $0x6c] sm:$0xf]
        %v327 = vld [vmem:[#allocation7 + $0x70] sm:$0xf]
        %v328 = vld [vmem:[#allocation7 + $0x74] sm:$0xf]
        %v329 = vld [vmem:[#allocation7 + $0x78] sm:$0xf]
        %v330 = vld [vmem:[#allocation7 + $0x7c] sm:$0xf]
        %v331 = vld [vmem:[#allocation7 + $0x80] sm:$0xf]
        %v332 = vld [vmem:[#allocation7 + $0x84] sm:$0xf]
        %v333 = vld [vmem:[#allocation7 + $0x88] sm:$0xf]
        %v334 = vld [vmem:[#allocation7 + $0x8c] sm:$0xf]
        %v335 = vld [vmem:[#allocation7 + $0x90] sm:$0xf]
        %v336 = vld [vmem:[#allocation7 + $0x94] sm:$0xf]
        %v337 = vld [vmem:[#allocation7 + $0x98] sm:$0xf]
        %v338 = vld [vmem:[#allocation7 + $0x9c] sm:$0xf]
        %v339 = vld [vmem:[#allocation7 + $0xa0] sm:$0xf]
        %v340 = vld [vmem:[#allocation7 + $0xa4] sm:$0xf]
        %v341 = vld [vmem:[#allocation7 + $0xa8] sm:$0xf]
        %v342 = vld [vmem:[#allocation7 + $0xac] sm:$0xf]
        %v343 = vld [vmem:[#allocation7 + $0xb0] sm:$0xf]
        %v344 = vld [vmem:[#allocation7 + $0xb4] sm:$0xf]
        %v345 = vld [vmem:[#allocation7 + $0xb8] sm:$0xf]
        %v346 = vld [vmem:[#allocation7 + $0xbc] sm:$0xf]
        %v347 = vld [vmem:[#allocation7 + $0xc0] sm:$0xf]
        %v348 = vld [vmem:[#allocation7 + $0xc4] sm:$0xf]
        %v349 = vld [vmem:[#allocation7 + $0xc8] sm:$0xf]
        %v350 = vld [vmem:[#allocation7 + $0xcc] sm:$0xf]
        %v351 = vld [vmem:[#allocation7 + $0xd0] sm:$0xf]
        %v352 = vld [vmem:[#allocation7 + $0xd4] sm:$0xf]
        %v353 = vld [vmem:[#allocation7 + $0xd8] sm:$0xf]
        %v354 = vld [vmem:[#allocation7 + $0xdc] sm:$0xf]
        %v355 = vld [vmem:[#allocation7 + $0xe0] sm:$0xf]
        %v356 = vld [vmem:[#allocation7 + $0xe4] sm:$0xf]
        %v357 = vld [vmem:[#allocation7 + $0xe8] sm:$0xf]
        %v358 = vld [vmem:[#allocation7 + $0xec] sm:$0xf]
        %v359 = vld [vmem:[#allocation7 + $0xf0] sm:$0xf]
        %v360 = vld [vmem:[#allocation7 + $0xf4] sm:$0xf]
        %v361 = vld [vmem:[#allocation7 + $0xf8] sm:$0xf]
        %v362 = vld [vmem:[#allocation7 + $0xfc] sm:$0xf]
        %v363 = vld [vmem:[#allocation7 + $0x100] sm:$0xf]
        %v364 = vld [vmem:[#allocation7 + $0x104] sm:$0xf]
        %v365 = vld [vmem:[#allocation7 + $0x108] sm:$0xf]
        %v366 = vld [vmem:[#allocation7 + $0x10c] sm:$0xf]
        %v367 = vld [vmem:[#allocation7 + $0x110] sm:$0xf]
        %v368 = vld [vmem:[#allocation7 + $0x114] sm:$0xf]
        %v369 = vld [vmem:[#allocation7 + $0x118] sm:$0xf]
        %v370 = vld [vmem:[#allocation7 + $0x11c] sm:$0xf]
        %v371 = vld [vmem:[#allocation7 + $0x120] sm:$0xf]
        %v372 = vld [vmem:[#allocation7 + $0x124] sm:$0xf]
        %v373 = vld [vmem:[#allocation7 + $0x128] sm:$0xf]
        %v374 = vld [vmem:[#allocation7 + $0x12c] sm:$0xf]
        %v375 = vld [vmem:[#allocation7 + $0x130] sm:$0xf]
        %v376 = vld [vmem:[#allocation7 + $0x134] sm:$0xf]
        %v377 = vld [vmem:[#allocation7 + $0x138] sm:$0xf]
        %v378 = vld [vmem:[#allocation7 + $0x13c] sm:$0xf]
        %v379 = vld [vmem:[#allocation7 + $0x140] sm:$0xf]
        %v380 = vld [vmem:[#allocation7 + $0x144] sm:$0xf]
        %v381 = vld [vmem:[#allocation7 + $0x148] sm:$0xf]
        %v382 = vld [vmem:[#allocation7 + $0x14c] sm:$0xf]
        %v383 = vld [vmem:[#allocation7 + $0x150] sm:$0xf]
        %v384 = vld [vmem:[#allocation7 + $0x154] sm:$0xf]
        %v385 = vld [vmem:[#allocation7 + $0x158] sm:$0xf]
        %v386 = vld [vmem:[#allocation7 + $0x15c] sm:$0xf]
        %v387 = vld [vmem:[#allocation7 + $0x160] sm:$0xf]
        %v388 = vld [vmem:[#allocation7 + $0x164] sm:$0xf]
        %v389 = vld [vmem:[#allocation7 + $0x168] sm:$0xf]
        %v390 = vld [vmem:[#allocation7 + $0x16c] sm:$0xf]
        %v391 = vld [vmem:[#allocation7 + $0x170] sm:$0xf]
        %v392 = vld [vmem:[#allocation7 + $0x174] sm:$0xf]
        %v393 = vld [vmem:[#allocation7 + $0x178] sm:$0xf]
        %v394 = vld [vmem:[#allocation7 + $0x17c] sm:$0xf]
        %v395 = vld [vmem:[#allocation7 + $0x180] sm:$0xf]
        %v396 = vld [vmem:[#allocation7 + $0x184] sm:$0xf]
        %v397 = vld [vmem:[#allocation7 + $0x188] sm:$0xf]
        %v398 = vld [vmem:[#allocation7 + $0x18c] sm:$0xf]
        %v399 = vld [vmem:[#allocation7 + $0x190] sm:$0xf]
        %v400 = vld [vmem:[#allocation7 + $0x194] sm:$0xf]
        %v401 = vld [vmem:[#allocation7 + $0x198] sm:$0xf]
        %v402 = vld [vmem:[#allocation7 + $0x19c] sm:$0xf]
        %v403 = vld [vmem:[#allocation7 + $0x1a0] sm:$0xf]
        %v404 = vld [vmem:[#allocation7 + $0x1a4] sm:$0xf]
        %v405 = vld [vmem:[#allocation7 + $0x1a8] sm:$0xf]
        %v406 = vld [vmem:[#allocation7 + $0x1ac] sm:$0xf]
        %v407 = vld [vmem:[#allocation7 + $0x1b0] sm:$0xf]
        %v408 = vld [vmem:[#allocation7 + $0x1b4] sm:$0xf]
        %v409 = vld [vmem:[#allocation7 + $0x1b8] sm:$0xf]
        %v410 = vld [vmem:[#allocation7 + $0x1bc] sm:$0xf]
        %v411 = vld [vmem:[#allocation7 + $0x1c0] sm:$0xf]
        %v412 = vld [vmem:[#allocation7 + $0x1c4] sm:$0xf]
        %v413 = vld [vmem:[#allocation7 + $0x1c8] sm:$0xf]
        %v414 = vld [vmem:[#allocation7 + $0x1cc] sm:$0xf]
        %v415 = vld [vmem:[#allocation7 + $0x1d0] sm:$0xf]
        %v416 = vld [vmem:[#allocation7 + $0x1d4] sm:$0xf]
        %v417 = vld [vmem:[#allocation7 + $0x1d8] sm:$0xf]
        %v418 = vld [vmem:[#allocation7 + $0x1dc] sm:$0xf]
        %v419 = vld [vmem:[#allocation7 + $0x1e0] sm:$0xf]
        %v420 = vld [vmem:[#allocation7 + $0x1e4] sm:$0xf]
        %v421 = vld [vmem:[#allocation7 + $0x1e8] sm:$0xf]
        %v422 = vld [vmem:[#allocation7 + $0x1ec] sm:$0xf]
        %v423 = vld [vmem:[#allocation7 + $0x1f0] sm:$0xf]
        %v424 = vld [vmem:[#allocation7 + $0x1f4] sm:$0xf]
        %v425 = vld [vmem:[#allocation7 + $0x1f8] sm:$0xf]
        %v426 = vld [vmem:[#allocation7 + $0x1fc] sm:$0xf]
        %v427 = vld [vmem:[#allocation7 + $0x200] sm:$0xf]
        %v428 = vld [vmem:[#allocation7 + $0x204] sm:$0xf]
        %v429 = vld [vmem:[#allocation7 + $0x208] sm:$0xf]
        %v430 = vld [vmem:[#allocation7 + $0x20c] sm:$0xf]
        %v431 = vld [vmem:[#allocation7 + $0x210] sm:$0xf]
        %v432 = vld [vmem:[#allocation7 + $0x214] sm:$0xf]
        %v433 = vld [vmem:[#allocation7 + $0x218] sm:$0xf]
        %v434 = vld [vmem:[#allocation7 + $0x21c] sm:$0xf]
        %v435 = vld [vmem:[#allocation7 + $0x220] sm:$0xf]
        %v436 = vld [vmem:[#allocation7 + $0x224] sm:$0xf]
        %v437 = vld [vmem:[#allocation7 + $0x228] sm:$0xf]
        %v438 = vld [vmem:[#allocation7 + $0x22c] sm:$0xf]
        %v439 = vld [vmem:[#allocation7 + $0x230] sm:$0xf]
        %v440 = vld [vmem:[#allocation7 + $0x234] sm:$0xf]
        %v441 = vld [vmem:[#allocation7 + $0x238] sm:$0xf]
        %v442 = vld [vmem:[#allocation7 + $0x23c] sm:$0xf]
        %v463 = vunpack.c.l.b16 %v279
        %v464 = vunpack.c.h.b16 %v279
        %v465 = vunpack.c.l.b16 %v280
        %v466 = vunpack.c.h.b16 %v280
        %v467 = vunpack.c.l.b16 %v281
        %v468 = vunpack.c.h.b16 %v281
        %v469 = vunpack.c.l.b16 %v282
        %v470 = vunpack.c.h.b16 %v282
        %v471 = vunpack.c.l.b16 %v283
        %v472 = vunpack.c.h.b16 %v283
        %v473 = vunpack.c.l.b16 %v284
        %v474 = vunpack.c.h.b16 %v284
        %v475 = vunpack.c.l.b16 %v285
        %v476 = vunpack.c.h.b16 %v285
        %v477 = vunpack.c.l.b16 %v286
        %v478 = vunpack.c.h.b16 %v286
        %v479 = vunpack.c.l.b16 %v287
        %v480 = vunpack.c.h.b16 %v287
        %v481 = vunpack.c.l.b16 %v288
        %v482 = vunpack.c.h.b16 %v288
        %v483 = vunpack.c.l.b16 %v289
        %v484 = vunpack.c.h.b16 %v289
        %v485 = vunpack.c.l.b16 %v290
        %v486 = vunpack.c.h.b16 %v290
        %v487 = vunpack.c.l.b16 %v291
        %v488 = vunpack.c.h.b16 %v291
        %v489 = vunpack.c.l.b16 %v292
        %v490 = vunpack.c.h.b16 %v292
        %v491 = vunpack.c.l.b16 %v293
        %v492 = vunpack.c.h.b16 %v293
        %v493 = vunpack.c.l.b16 %v294
        %v494 = vunpack.c.h.b16 %v294
        %v495 = vunpack.c.l.b16 %v295
        %v496 = vunpack.c.h.b16 %v295
        %v497 = vunpack.c.l.b16 %v296
        %v498 = vunpack.c.h.b16 %v296
        %v499 = vunpack.c.l.b16 %v297
        %v500 = vunpack.c.h.b16 %v297
        %v501 = vunpack.c.l.b16 %v298
        %v502 = vunpack.c.h.b16 %v298
        %v503 = vpack.c.b16 %v463, %v463
        %v504 = vpack.c.b16 %v464, %v464
        %v505 = vpack.c.b16 %v465, %v465
        %v506 = vpack.c.b16 %v466, %v466
        %v507 = vpack.c.b16 %v467, %v467
        %v508 = vpack.c.b16 %v468, %v468
        %v509 = vpack.c.b16 %v469, %v469
        %v510 = vpack.c.b16 %v470, %v470
        %v511 = vpack.c.b16 %v471, %v471
        %v512 = vpack.c.b16 %v472, %v472
        %v513 = vpack.c.b16 %v473, %v473
        %v514 = vpack.c.b16 %v474, %v474
        %v515 = vpack.c.b16 %v475, %v475
        %v516 = vpack.c.b16 %v476, %v476
        %v517 = vpack.c.b16 %v477, %v477
        %v518 = vpack.c.b16 %v478, %v478
        %v519 = vpack.c.b16 %v479, %v479
        %v520 = vpack.c.b16 %v480, %v480
        %v521 = vpack.c.b16 %v481, %v481
        %v522 = vpack.c.b16 %v482, %v482
        %v523 = vpack.c.b16 %v483, %v483
        %v524 = vpack.c.b16 %v484, %v484
        %v525 = vpack.c.b16 %v485, %v485
        %v526 = vpack.c.b16 %v486, %v486
        %v527 = vpack.c.b16 %v487, %v487
        %v528 = vpack.c.b16 %v488, %v488
        %v529 = vpack.c.b16 %v489, %v489
        %v530 = vpack.c.b16 %v490, %v490
        %v531 = vpack.c.b16 %v491, %v491
        %v532 = vpack.c.b16 %v492, %v492
        %v533 = vpack.c.b16 %v493, %v493
        %v534 = vpack.c.b16 %v494, %v494
        %v535 = vpack.c.b16 %v495, %v495
        %v536 = vpack.c.b16 %v496, %v496
        %v537 = vpack.c.b16 %v497, %v497
        %v538 = vpack.c.b16 %v498, %v498
        %v539 = vpack.c.b16 %v499, %v499
        %v540 = vpack.c.b16 %v500, %v500
        %v541 = vpack.c.b16 %v501, %v501
        %v542 = vpack.c.b16 %v502, %v502
        %vm543 = vcmask 1040384
        %vm544 = vcmask 1044484
        %vm545 = vmor %vm543, %vm544
        %v546 = vrot.slane %v503, 7
        %v547 = vrot.slane %v546, 4
        %v548 = vrot.slane %v504, 7
        %v549 = vsel %vm545, %v547, %v548
        %v550 = vrot.slane %v548, 4
        %v551 = vrot.slane %v505, 7
        %v552 = vrot.slane %v551, 4
        %v553 = vrot.slane %v506, 7
        %v554 = vsel %vm545, %v552, %v553
        %v555 = vrot.slane %v553, 4
        %v556 = vrot.slane %v507, 7
        %v557 = vrot.slane %v556, 4
        %v558 = vrot.slane %v508, 7
        %v559 = vsel %vm545, %v557, %v558
        %v560 = vrot.slane %v558, 4
        %v561 = vrot.slane %v509, 7
        %v562 = vrot.slane %v561, 4
        %v563 = vrot.slane %v510, 7
        %v564 = vsel %vm545, %v562, %v563
        %v565 = vrot.slane %v563, 4
        %v566 = vrot.slane %v511, 7
        %v567 = vrot.slane %v566, 4
        %v568 = vrot.slane %v512, 7
        %v569 = vsel %vm545, %v567, %v568
        %v570 = vrot.slane %v568, 4
        %v571 = vrot.slane %v513, 7
        %v572 = vrot.slane %v571, 4
        %v573 = vrot.slane %v514, 7
        %v574 = vsel %vm545, %v572, %v573
        %v575 = vrot.slane %v573, 4
        %v576 = vrot.slane %v515, 7
        %v577 = vrot.slane %v576, 4
        %v578 = vrot.slane %v516, 7
        %v579 = vsel %vm545, %v577, %v578
        %v580 = vrot.slane %v578, 4
        %v581 = vrot.slane %v517, 7
        %v582 = vrot.slane %v581, 4
        %v583 = vrot.slane %v518, 7
        %v584 = vsel %vm545, %v582, %v583
        %v585 = vrot.slane %v583, 4
        %v586 = vrot.slane %v519, 7
        %v587 = vrot.slane %v586, 4
        %v588 = vrot.slane %v520, 7
        %v589 = vsel %vm545, %v587, %v588
        %v590 = vrot.slane %v588, 4
        %v591 = vrot.slane %v521, 7
        %v592 = vrot.slane %v591, 4
        %v593 = vrot.slane %v522, 7
        %v594 = vsel %vm545, %v592, %v593
        %v595 = vrot.slane %v593, 4
        %v596 = vrot.slane %v523, 7
        %v597 = vrot.slane %v596, 4
        %v598 = vrot.slane %v524, 7
        %v599 = vsel %vm545, %v597, %v598
        %v600 = vrot.slane %v598, 4
        %v601 = vrot.slane %v525, 7
        %v602 = vrot.slane %v601, 4
        %v603 = vrot.slane %v526, 7
        %v604 = vsel %vm545, %v602, %v603
        %v605 = vrot.slane %v603, 4
        %v606 = vrot.slane %v527, 7
        %v607 = vrot.slane %v606, 4
        %v608 = vrot.slane %v528, 7
        %v609 = vsel %vm545, %v607, %v608
        %v610 = vrot.slane %v608, 4
        %v611 = vrot.slane %v529, 7
        %v612 = vrot.slane %v611, 4
        %v613 = vrot.slane %v530, 7
        %v614 = vsel %vm545, %v612, %v613
        %v615 = vrot.slane %v613, 4
        %v616 = vrot.slane %v531, 7
        %v617 = vrot.slane %v616, 4
        %v618 = vrot.slane %v532, 7
        %v619 = vsel %vm545, %v617, %v618
        %v620 = vrot.slane %v618, 4
        %v621 = vrot.slane %v533, 7
        %v622 = vrot.slane %v621, 4
        %v623 = vrot.slane %v534, 7
        %v624 = vsel %vm545, %v622, %v623
        %v625 = vrot.slane %v623, 4
        %v626 = vrot.slane %v535, 7
        %v627 = vrot.slane %v626, 4
        %v628 = vrot.slane %v536, 7
        %v629 = vsel %vm545, %v627, %v628
        %v630 = vrot.slane %v628, 4
        %v631 = vrot.slane %v537, 7
        %v632 = vrot.slane %v631, 4
        %v633 = vrot.slane %v538, 7
        %v634 = vsel %vm545, %v632, %v633
        %v635 = vrot.slane %v633, 4
        %v636 = vrot.slane %v539, 7
        %v637 = vrot.slane %v636, 4
        %v638 = vrot.slane %v540, 7
        %v639 = vsel %vm545, %v637, %v638
        %v640 = vrot.slane %v638, 4
        %v641 = vrot.slane %v541, 7
        %v642 = vrot.slane %v641, 4
        %v643 = vrot.slane %v542, 7
        %v644 = vsel %vm545, %v642, %v643
        %v645 = vrot.slane %v643, 4
        %706 = vst [vmem:[#allocation2] sm:$0xe] %v546
        %707 = vst [vmem:[#allocation2 + $0x4] sm:$0xf] %v549
        %708 = vst [vmem:[#allocation2 + $0x8] sm:$0x1] %v550
        %709 = vst [vmem:[#allocation2 + $0xc] sm:$0xe] %v551
        %710 = vst [vmem:[#allocation2 + $0x10] sm:$0xf] %v554
        %711 = vst [vmem:[#allocation2 + $0x14] sm:$0x1] %v555
        %712 = vst [vmem:[#allocation2 + $0x18] sm:$0xe] %v556
        %713 = vst [vmem:[#allocation2 + $0x1c] sm:$0xf] %v559
        %714 = vst [vmem:[#allocation2 + $0x20] sm:$0x1] %v560
        %715 = vst [vmem:[#allocation2 + $0x24] sm:$0xe] %v561
        %716 = vst [vmem:[#allocation2 + $0x28] sm:$0xf] %v564
        %717 = vst [vmem:[#allocation2 + $0x2c] sm:$0x1] %v565
        %718 = vst [vmem:[#allocation2 + $0x30] sm:$0xe] %v566
        %719 = vst [vmem:[#allocation2 + $0x34] sm:$0xf] %v569
        %720 = vst [vmem:[#allocation2 + $0x38] sm:$0x1] %v570
        %721 = vst [vmem:[#allocation2 + $0x3c] sm:$0xe] %v571
        %722 = vst [vmem:[#allocation2 + $0x40] sm:$0xf] %v574
        %723 = vst [vmem:[#allocation2 + $0x44] sm:$0x1] %v575
        %724 = vst [vmem:[#allocation2 + $0x48] sm:$0xe] %v576
        %725 = vst [vmem:[#allocation2 + $0x4c] sm:$0xf] %v579
        %726 = vst [vmem:[#allocation2 + $0x50] sm:$0x1] %v580
        %727 = vst [vmem:[#allocation2 + $0x54] sm:$0xe] %v581
        %728 = vst [vmem:[#allocation2 + $0x58] sm:$0xf] %v584
        %729 = vst [vmem:[#allocation2 + $0x5c] sm:$0x1] %v585
        %730 = vst [vmem:[#allocation2 + $0x60] sm:$0xe] %v586
        %731 = vst [vmem:[#allocation2 + $0x64] sm:$0xf] %v589
        %732 = vst [vmem:[#allocation2 + $0x68] sm:$0x1] %v590
        %733 = vst [vmem:[#allocation2 + $0x6c] sm:$0xe] %v591
        %734 = vst [vmem:[#allocation2 + $0x70] sm:$0xf] %v594
        %735 = vst [vmem:[#allocation2 + $0x74] sm:$0x1] %v595
        %736 = vst [vmem:[#allocation2 + $0x78] sm:$0xe] %v596
        %737 = vst [vmem:[#allocation2 + $0x7c] sm:$0xf] %v599
        %738 = vst [vmem:[#allocation2 + $0x80] sm:$0x1] %v600
        %739 = vst [vmem:[#allocation2 + $0x84] sm:$0xe] %v601
        %740 = vst [vmem:[#allocation2 + $0x88] sm:$0xf] %v604
        %741 = vst [vmem:[#allocation2 + $0x8c] sm:$0x1] %v605
        %742 = vst [vmem:[#allocation2 + $0x90] sm:$0xe] %v606
        %743 = vst [vmem:[#allocation2 + $0x94] sm:$0xf] %v609
        %744 = vst [vmem:[#allocation2 + $0x98] sm:$0x1] %v610
        %745 = vst [vmem:[#allocation2 + $0x9c] sm:$0xe] %v611
        %746 = vst [vmem:[#allocation2 + $0xa0] sm:$0xf] %v614
        %747 = vst [vmem:[#allocation2 + $0xa4] sm:$0x1] %v615
        %748 = vst [vmem:[#allocation2 + $0xa8] sm:$0xe] %v616
        %749 = vst [vmem:[#allocation2 + $0xac] sm:$0xf] %v619
        %750 = vst [vmem:[#allocation2 + $0xb0] sm:$0x1] %v620
        %751 = vst [vmem:[#allocation2 + $0xb4] sm:$0xe] %v621
        %752 = vst [vmem:[#allocation2 + $0xb8] sm:$0xf] %v624
        %753 = vst [vmem:[#allocation2 + $0xbc] sm:$0x1] %v625
        %754 = vst [vmem:[#allocation2 + $0xc0] sm:$0xe] %v626
        %755 = vst [vmem:[#allocation2 + $0xc4] sm:$0xf] %v629
        %756 = vst [vmem:[#allocation2 + $0xc8] sm:$0x1] %v630
        %757 = vst [vmem:[#allocation2 + $0xcc] sm:$0xe] %v631
        %758 = vst [vmem:[#allocation2 + $0xd0] sm:$0xf] %v634
        %759 = vst [vmem:[#allocation2 + $0xd4] sm:$0x1] %v635
        %760 = vst [vmem:[#allocation2 + $0xd8] sm:$0xe] %v636
        %761 = vst [vmem:[#allocation2 + $0xdc] sm:$0xf] %v639
        %762 = vst [vmem:[#allocation2 + $0xe0] sm:$0x1] %v640
        %763 = vst [vmem:[#allocation2 + $0xe4] sm:$0xe] %v641
        %764 = vst [vmem:[#allocation2 + $0xe8] sm:$0xf] %v644
        %765 = vst [vmem:[#allocation2 + $0xec] sm:$0x1] %v645
        %766 = vst [vmem:[#allocation2] sm:$0x1] 4048220490
        %767 = vst [vmem:[#allocation2 + $0xc] sm:$0x1] 4048220490
        %768 = vst [vmem:[#allocation2 + $0x18] sm:$0x1] 4048220490
        %769 = vst [vmem:[#allocation2 + $0x24] sm:$0x1] 4048220490
        %770 = vst [vmem:[#allocation2 + $0x30] sm:$0x1] 4048220490
        %771 = vst [vmem:[#allocation2 + $0x3c] sm:$0x1] 4048220490
        %772 = vst [vmem:[#allocation2 + $0x48] sm:$0x1] 4048220490
        %773 = vst [vmem:[#allocation2 + $0x54] sm:$0x1] 4048220490
        %774 = vst [vmem:[#allocation2 + $0x60] sm:$0x1] 4048220490
        %775 = vst [vmem:[#allocation2 + $0x6c] sm:$0x1] 4048220490
        %776 = vst [vmem:[#allocation2 + $0x78] sm:$0x1] 4048220490
        %777 = vst [vmem:[#allocation2 + $0x84] sm:$0x1] 4048220490
        %778 = vst [vmem:[#allocation2 + $0x90] sm:$0x1] 4048220490
        %779 = vst [vmem:[#allocation2 + $0x9c] sm:$0x1] 4048220490
        %780 = vst [vmem:[#allocation2 + $0xa8] sm:$0x1] 4048220490
        %781 = vst [vmem:[#allocation2 + $0xb4] sm:$0x1] 4048220490
        %782 = vst [vmem:[#allocation2 + $0xc0] sm:$0x1] 4048220490
        %783 = vst [vmem:[#allocation2 + $0xcc] sm:$0x1] 4048220490
        %784 = vst [vmem:[#allocation2 + $0xd8] sm:$0x1] 4048220490
        %785 = vst [vmem:[#allocation2 + $0xe4] sm:$0x1] 4048220490
        %786 = vst [vmem:[#allocation2 + $0x8] sm:$0x2] 4048220490
        %787 = vst [vmem:[#allocation2 + $0x14] sm:$0x2] 4048220490
        %788 = vst [vmem:[#allocation2 + $0x20] sm:$0x2] 4048220490
        %789 = vst [vmem:[#allocation2 + $0x2c] sm:$0x2] 4048220490
        %790 = vst [vmem:[#allocation2 + $0x38] sm:$0x2] 4048220490
        %791 = vst [vmem:[#allocation2 + $0x44] sm:$0x2] 4048220490
        %792 = vst [vmem:[#allocation2 + $0x50] sm:$0x2] 4048220490
        %793 = vst [vmem:[#allocation2 + $0x5c] sm:$0x2] 4048220490
        %794 = vst [vmem:[#allocation2 + $0x68] sm:$0x2] 4048220490
        %795 = vst [vmem:[#allocation2 + $0x74] sm:$0x2] 4048220490
        %796 = vst [vmem:[#allocation2 + $0x80] sm:$0x2] 4048220490
        %797 = vst [vmem:[#allocation2 + $0x8c] sm:$0x2] 4048220490
        %798 = vst [vmem:[#allocation2 + $0x98] sm:$0x2] 4048220490
        %799 = vst [vmem:[#allocation2 + $0xa4] sm:$0x2] 4048220490
        %800 = vst [vmem:[#allocation2 + $0xb0] sm:$0x2] 4048220490
        %801 = vst [vmem:[#allocation2 + $0xbc] sm:$0x2] 4048220490
        %802 = vst [vmem:[#allocation2 + $0xc8] sm:$0x2] 4048220490
        %803 = vst [vmem:[#allocation2 + $0xd4] sm:$0x2] 4048220490
        %804 = vst [vmem:[#allocation2 + $0xe0] sm:$0x2] 4048220490
        %805 = vst [vmem:[#allocation2 + $0xec] sm:$0x2] 4048220490
        // Predicated region
        $region37: #{tpu_custom_call.1} parent=27 // pred_check
          %p806 = pneg %p194
        $region38: #{tpu_custom_call.1} parent=27 // pred_check_branch
          %808 = sbr.rel (%p806) target = $region40
        $region39: #{tpu_custom_call.1} parent=27 // pred_region
          %809 = vst [vmem:[#allocation2] sm:$0xe] 4048220490
          %810 = vst [vmem:[#allocation2 + $0x4] sm:$0xf] 4048220490
          %811 = vst [vmem:[#allocation2 + $0x8] sm:$0x1] 4048220490
          %812 = vst [vmem:[#allocation2 + $0xc] sm:$0xe] 4048220490
          %813 = vst [vmem:[#allocation2 + $0x10] sm:$0xf] 4048220490
          %814 = vst [vmem:[#allocation2 + $0x14] sm:$0x1] 4048220490
          %815 = vst [vmem:[#allocation2 + $0x18] sm:$0xe] 4048220490
          %816 = vst [vmem:[#allocation2 + $0x1c] sm:$0xf] 4048220490
          %817 = vst [vmem:[#allocation2 + $0x20] sm:$0x1] 4048220490
          %818 = vst [vmem:[#allocation2 + $0x24] sm:$0xe] 4048220490
          %819 = vst [vmem:[#allocation2 + $0x28] sm:$0xf] 4048220490
          %820 = vst [vmem:[#allocation2 + $0x2c] sm:$0x1] 4048220490
          %821 = vst [vmem:[#allocation2 + $0x30] sm:$0xe] 4048220490
          %822 = vst [vmem:[#allocation2 + $0x34] sm:$0xf] 4048220490
          %823 = vst [vmem:[#allocation2 + $0x38] sm:$0x1] 4048220490
          %824 = vst [vmem:[#allocation2 + $0x3c] sm:$0xe] 4048220490
          %825 = vst [vmem:[#allocation2 + $0x40] sm:$0xf] 4048220490
          %826 = vst [vmem:[#allocation2 + $0x44] sm:$0x1] 4048220490
        $region40: #{tpu_custom_call.1} parent=27 // pred_fallthru
          _
        // Predicated region
        $region41: #{tpu_custom_call.1} parent=27 // pred_check
          %p827 = pneg %p195
        $region42: #{tpu_custom_call.1} parent=27 // pred_check_branch
          %829 = sbr.rel (%p827) target = $region44
        $region43: #{tpu_custom_call.1} parent=27 // pred_region
          %s830 = scalar_lea.vmem [#allocation2], 168
          %831 = vst [vmem:[%s830] sm:$0xe] 4048220490
          %832 = vst [vmem:[%s830 + $0x4] sm:$0xf] 4048220490
          %833 = vst [vmem:[%s830 + $0x8] sm:$0x1] 4048220490
          %834 = vst [vmem:[%s830 + $0xc] sm:$0xe] 4048220490
          %835 = vst [vmem:[%s830 + $0x10] sm:$0xf] 4048220490
          %836 = vst [vmem:[%s830 + $0x14] sm:$0x1] 4048220490
          %837 = vst [vmem:[%s830 + $0x18] sm:$0xe] 4048220490
          %838 = vst [vmem:[%s830 + $0x1c] sm:$0xf] 4048220490
          %839 = vst [vmem:[%s830 + $0x20] sm:$0x1] 4048220490
          %840 = vst [vmem:[%s830 + $0x24] sm:$0xe] 4048220490
          %841 = vst [vmem:[%s830 + $0x28] sm:$0xf] 4048220490
          %842 = vst [vmem:[%s830 + $0x2c] sm:$0x1] 4048220490
          %843 = vst [vmem:[%s830 + $0x30] sm:$0xe] 4048220490
          %844 = vst [vmem:[%s830 + $0x34] sm:$0xf] 4048220490
          %845 = vst [vmem:[%s830 + $0x38] sm:$0x1] 4048220490
          %846 = vst [vmem:[%s830 + $0x3c] sm:$0xe] 4048220490
          %847 = vst [vmem:[%s830 + $0x40] sm:$0xf] 4048220490
          %848 = vst [vmem:[%s830 + $0x44] sm:$0x1] 4048220490
        $region44: #{tpu_custom_call.1} parent=27 // pred_fallthru
          _
        %v849 = vld [vmem:[#allocation2] sm:$0xf]
        %v850 = vld [vmem:[#allocation2 + $0x4] sm:$0xf]
        %v851 = vld [vmem:[#allocation2 + $0xc] sm:$0xf]
        %v852 = vld [vmem:[#allocation2 + $0x10] sm:$0xf]
        %v853 = vld [vmem:[#allocation2 + $0x18] sm:$0xf]
        %v854 = vld [vmem:[#allocation2 + $0x1c] sm:$0xf]
        %v855 = vld [vmem:[#allocation2 + $0x24] sm:$0xf]
        %v856 = vld [vmem:[#allocation2 + $0x28] sm:$0xf]
        %v857 = vld [vmem:[#allocation2 + $0x30] sm:$0xf]
        %v858 = vld [vmem:[#allocation2 + $0x34] sm:$0xf]
        %v859 = vld [vmem:[#allocation2 + $0x3c] sm:$0xf]
        %v860 = vld [vmem:[#allocation2 + $0x40] sm:$0xf]
        %v861 = vld [vmem:[#allocation2 + $0x48] sm:$0xf]
        %v862 = vld [vmem:[#allocation2 + $0x4c] sm:$0xf]
        %v863 = vld [vmem:[#allocation2 + $0x54] sm:$0xf]
        %v864 = vld [vmem:[#allocation2 + $0x58] sm:$0xf]
        %v865 = vld [vmem:[#allocation2 + $0x60] sm:$0xf]
        %v866 = vld [vmem:[#allocation2 + $0x64] sm:$0xf]
        %v867 = vld [vmem:[#allocation2 + $0x6c] sm:$0xf]
        %v868 = vld [vmem:[#allocation2 + $0x70] sm:$0xf]
        %v869 = vld [vmem:[#allocation2 + $0x78] sm:$0xf]
        %v870 = vld [vmem:[#allocation2 + $0x7c] sm:$0xf]
        %v871 = vld [vmem:[#allocation2 + $0x84] sm:$0xf]
        %v872 = vld [vmem:[#allocation2 + $0x88] sm:$0xf]
        %v873 = vld [vmem:[#allocation2 + $0x90] sm:$0xf]
        %v874 = vld [vmem:[#allocation2 + $0x94] sm:$0xf]
        %v875 = vld [vmem:[#allocation2 + $0x9c] sm:$0xf]
        %v876 = vld [vmem:[#allocation2 + $0xa0] sm:$0xf]
        %v877 = vld [vmem:[#allocation2 + $0xa8] sm:$0xf]
        %v878 = vld [vmem:[#allocation2 + $0xac] sm:$0xf]
        %v879 = vld [vmem:[#allocation2 + $0xb4] sm:$0xf]
        %v880 = vld [vmem:[#allocation2 + $0xb8] sm:$0xf]
        %v881 = vld [vmem:[#allocation2 + $0xc0] sm:$0xf]
        %v882 = vld [vmem:[#allocation2 + $0xc4] sm:$0xf]
        %v883 = vld [vmem:[#allocation2 + $0xcc] sm:$0xf]
        %v884 = vld [vmem:[#allocation2 + $0xd0] sm:$0xf]
        %v885 = vld [vmem:[#allocation2 + $0xd8] sm:$0xf]
        %v886 = vld [vmem:[#allocation2 + $0xdc] sm:$0xf]
        %v887 = vld [vmem:[#allocation2 + $0xe4] sm:$0xf]
        %v888 = vld [vmem:[#allocation2 + $0xe8] sm:$0xf]
        %v889 = vld [vmem:[#allocation2 + $0x8] sm:$0x1]
        %v890 = vld [vmem:[#allocation2 + $0x14] sm:$0x1]
        %v891 = vld [vmem:[#allocation2 + $0x20] sm:$0x1]
        %v892 = vld [vmem:[#allocation2 + $0x2c] sm:$0x1]
        %v893 = vld [vmem:[#allocation2 + $0x38] sm:$0x1]
        %v894 = vld [vmem:[#allocation2 + $0x44] sm:$0x1]
        %v895 = vld [vmem:[#allocation2 + $0x50] sm:$0x1]
        %v896 = vld [vmem:[#allocation2 + $0x5c] sm:$0x1]
        %v897 = vld [vmem:[#allocation2 + $0x68] sm:$0x1]
        %v898 = vld [vmem:[#allocation2 + $0x74] sm:$0x1]
        %v899 = vld [vmem:[#allocation2 + $0x80] sm:$0x1]
        %v900 = vld [vmem:[#allocation2 + $0x8c] sm:$0x1]
        %v901 = vld [vmem:[#allocation2 + $0x98] sm:$0x1]
        %v902 = vld [vmem:[#allocation2 + $0xa4] sm:$0x1]
        %v903 = vld [vmem:[#allocation2 + $0xb0] sm:$0x1]
        %v904 = vld [vmem:[#allocation2 + $0xbc] sm:$0x1]
        %v905 = vld [vmem:[#allocation2 + $0xc8] sm:$0x1]
        %v906 = vld [vmem:[#allocation2 + $0xd4] sm:$0x1]
        %v907 = vld [vmem:[#allocation2 + $0xe0] sm:$0x1]
        %v908 = vld [vmem:[#allocation2 + $0xec] sm:$0x1]
        %vm909 = vsmask.f32 3328
        %vm910 = vsmask.f32 7440
        %vm911 = vmor %vm909, %vm910
        %v913 = vshrl.u32 %v849, 16
        %v915 = vrot.slane %v913, 4
        %v916 = vshll.u32 %v849, 16
        %v918 = vrot.slane %v916, 5
        %v919 = vor.u32 %v915, %v918
        %v920 = vrot.slane %v919, 4
        %v922 = vshll.u32 %v850, 16
        %v924 = vrot.slane %v922, 5
        %v925 = vsel %vm911, %v920, %v924
        %v926 = vshrl.u32 %v850, 16
        %v928 = vrot.slane %v926, 4
        %v929 = vor.u32 %v928, %v924
        %v930 = vrot.slane %v929, 4
        %v932 = vshll.u32 %v889, 16
        %v934 = vrot.slane %v932, 5
        %v935 = vsel %vm911, %v930, %v934
        %v937 = vshrl.u32 %v851, 16
        %v939 = vrot.slane %v937, 4
        %v940 = vshll.u32 %v851, 16
        %v942 = vrot.slane %v940, 5
        %v943 = vor.u32 %v939, %v942
        %v944 = vrot.slane %v943, 4
        %v946 = vshll.u32 %v852, 16
        %v948 = vrot.slane %v946, 5
        %v949 = vsel %vm911, %v944, %v948
        %v950 = vshrl.u32 %v852, 16
        %v952 = vrot.slane %v950, 4
        %v953 = vor.u32 %v952, %v948
        %v954 = vrot.slane %v953, 4
        %v956 = vshll.u32 %v890, 16
        %v958 = vrot.slane %v956, 5
        %v959 = vsel %vm911, %v954, %v958
        %v961 = vshrl.u32 %v853, 16
        %v963 = vrot.slane %v961, 4
        %v964 = vshll.u32 %v853, 16
        %v966 = vrot.slane %v964, 5
        %v967 = vor.u32 %v963, %v966
        %v968 = vrot.slane %v967, 4
        %v970 = vshll.u32 %v854, 16
        %v972 = vrot.slane %v970, 5
        %v973 = vsel %vm911, %v968, %v972
        %v974 = vshrl.u32 %v854, 16
        %v976 = vrot.slane %v974, 4
        %v977 = vor.u32 %v976, %v972
        %v978 = vrot.slane %v977, 4
        %v980 = vshll.u32 %v891, 16
        %v982 = vrot.slane %v980, 5
        %v983 = vsel %vm911, %v978, %v982
        %v985 = vshrl.u32 %v855, 16
        %v987 = vrot.slane %v985, 4
        %v988 = vshll.u32 %v855, 16
        %v990 = vrot.slane %v988, 5
        %v991 = vor.u32 %v987, %v990
        %v992 = vrot.slane %v991, 4
        %v994 = vshll.u32 %v856, 16
        %v996 = vrot.slane %v994, 5
        %v997 = vsel %vm911, %v992, %v996
        %v998 = vshrl.u32 %v856, 16
        %v1000 = vrot.slane %v998, 4
        %v1001 = vor.u32 %v1000, %v996
        %v1002 = vrot.slane %v1001, 4
        %v1004 = vshll.u32 %v892, 16
        %v1006 = vrot.slane %v1004, 5
        %v1007 = vsel %vm911, %v1002, %v1006
        %v1009 = vshrl.u32 %v857, 16
        %v1011 = vrot.slane %v1009, 4
        %v1012 = vshll.u32 %v857, 16
        %v1014 = vrot.slane %v1012, 5
        %v1015 = vor.u32 %v1011, %v1014
        %v1016 = vrot.slane %v1015, 4
        %v1018 = vshll.u32 %v858, 16
        %v1020 = vrot.slane %v1018, 5
        %v1021 = vsel %vm911, %v1016, %v1020
        %v1022 = vshrl.u32 %v858, 16
        %v1024 = vrot.slane %v1022, 4
        %v1025 = vor.u32 %v1024, %v1020
        %v1026 = vrot.slane %v1025, 4
        %v1028 = vshll.u32 %v893, 16
        %v1030 = vrot.slane %v1028, 5
        %v1031 = vsel %vm911, %v1026, %v1030
        %v1033 = vshrl.u32 %v859, 16
        %v1035 = vrot.slane %v1033, 4
        %v1036 = vshll.u32 %v859, 16
        %v1038 = vrot.slane %v1036, 5
        %v1039 = vor.u32 %v1035, %v1038
        %v1040 = vrot.slane %v1039, 4
        %v1042 = vshll.u32 %v860, 16
        %v1044 = vrot.slane %v1042, 5
        %v1045 = vsel %vm911, %v1040, %v1044
        %v1046 = vshrl.u32 %v860, 16
        %v1048 = vrot.slane %v1046, 4
        %v1049 = vor.u32 %v1048, %v1044
        %v1050 = vrot.slane %v1049, 4
        %v1052 = vshll.u32 %v894, 16
        %v1054 = vrot.slane %v1052, 5
        %v1055 = vsel %vm911, %v1050, %v1054
        %v1057 = vshrl.u32 %v861, 16
        %v1059 = vrot.slane %v1057, 4
        %v1060 = vshll.u32 %v861, 16
        %v1062 = vrot.slane %v1060, 5
        %v1063 = vor.u32 %v1059, %v1062
        %v1064 = vrot.slane %v1063, 4
        %v1066 = vshll.u32 %v862, 16
        %v1068 = vrot.slane %v1066, 5
        %v1069 = vsel %vm911, %v1064, %v1068
        %v1070 = vshrl.u32 %v862, 16
        %v1072 = vrot.slane %v1070, 4
        %v1073 = vor.u32 %v1072, %v1068
        %v1074 = vrot.slane %v1073, 4
        %v1076 = vshll.u32 %v895, 16
        %v1078 = vrot.slane %v1076, 5
        %v1079 = vsel %vm911, %v1074, %v1078
        %v1081 = vshrl.u32 %v863, 16
        %v1083 = vrot.slane %v1081, 4
        %v1084 = vshll.u32 %v863, 16
        %v1086 = vrot.slane %v1084, 5
        %v1087 = vor.u32 %v1083, %v1086
        %v1088 = vrot.slane %v1087, 4
        %v1090 = vshll.u32 %v864, 16
        %v1092 = vrot.slane %v1090, 5
        %v1093 = vsel %vm911, %v1088, %v1092
        %v1094 = vshrl.u32 %v864, 16
        %v1096 = vrot.slane %v1094, 4
        %v1097 = vor.u32 %v1096, %v1092
        %v1098 = vrot.slane %v1097, 4
        %v1100 = vshll.u32 %v896, 16
        %v1102 = vrot.slane %v1100, 5
        %v1103 = vsel %vm911, %v1098, %v1102
        %v1105 = vshrl.u32 %v865, 16
        %v1107 = vrot.slane %v1105, 4
        %v1108 = vshll.u32 %v865, 16
        %v1110 = vrot.slane %v1108, 5
        %v1111 = vor.u32 %v1107, %v1110
        %v1112 = vrot.slane %v1111, 4
        %v1114 = vshll.u32 %v866, 16
        %v1116 = vrot.slane %v1114, 5
        %v1117 = vsel %vm911, %v1112, %v1116
        %v1118 = vshrl.u32 %v866, 16
        %v1120 = vrot.slane %v1118, 4
        %v1121 = vor.u32 %v1120, %v1116
        %v1122 = vrot.slane %v1121, 4
        %v1124 = vshll.u32 %v897, 16
        %v1126 = vrot.slane %v1124, 5
        %v1127 = vsel %vm911, %v1122, %v1126
        %v1129 = vshrl.u32 %v867, 16
        %v1131 = vrot.slane %v1129, 4
        %v1132 = vshll.u32 %v867, 16
        %v1134 = vrot.slane %v1132, 5
        %v1135 = vor.u32 %v1131, %v1134
        %v1136 = vrot.slane %v1135, 4
        %v1138 = vshll.u32 %v868, 16
        %v1140 = vrot.slane %v1138, 5
        %v1141 = vsel %vm911, %v1136, %v1140
        %v1142 = vshrl.u32 %v868, 16
        %v1144 = vrot.slane %v1142, 4
        %v1145 = vor.u32 %v1144, %v1140
        %v1146 = vrot.slane %v1145, 4
        %v1148 = vshll.u32 %v898, 16
        %v1150 = vrot.slane %v1148, 5
        %v1151 = vsel %vm911, %v1146, %v1150
        %v1153 = vshrl.u32 %v869, 16
        %v1155 = vrot.slane %v1153, 4
        %v1156 = vshll.u32 %v869, 16
        %v1158 = vrot.slane %v1156, 5
        %v1159 = vor.u32 %v1155, %v1158
        %v1160 = vrot.slane %v1159, 4
        %v1162 = vshll.u32 %v870, 16
        %v1164 = vrot.slane %v1162, 5
        %v1165 = vsel %vm911, %v1160, %v1164
        %v1166 = vshrl.u32 %v870, 16
        %v1168 = vrot.slane %v1166, 4
        %v1169 = vor.u32 %v1168, %v1164
        %v1170 = vrot.slane %v1169, 4
        %v1172 = vshll.u32 %v899, 16
        %v1174 = vrot.slane %v1172, 5
        %v1175 = vsel %vm911, %v1170, %v1174
        %v1177 = vshrl.u32 %v871, 16
        %v1179 = vrot.slane %v1177, 4
        %v1180 = vshll.u32 %v871, 16
        %v1182 = vrot.slane %v1180, 5
        %v1183 = vor.u32 %v1179, %v1182
        %v1184 = vrot.slane %v1183, 4
        %v1186 = vshll.u32 %v872, 16
        %v1188 = vrot.slane %v1186, 5
        %v1189 = vsel %vm911, %v1184, %v1188
        %v1190 = vshrl.u32 %v872, 16
        %v1192 = vrot.slane %v1190, 4
        %v1193 = vor.u32 %v1192, %v1188
        %v1194 = vrot.slane %v1193, 4
        %v1196 = vshll.u32 %v900, 16
        %v1198 = vrot.slane %v1196, 5
        %v1199 = vsel %vm911, %v1194, %v1198
        %v1201 = vshrl.u32 %v873, 16
        %v1203 = vrot.slane %v1201, 4
        %v1204 = vshll.u32 %v873, 16
        %v1206 = vrot.slane %v1204, 5
        %v1207 = vor.u32 %v1203, %v1206
        %v1208 = vrot.slane %v1207, 4
        %v1210 = vshll.u32 %v874, 16
        %v1212 = vrot.slane %v1210, 5
        %v1213 = vsel %vm911, %v1208, %v1212
        %v1214 = vshrl.u32 %v874, 16
        %v1216 = vrot.slane %v1214, 4
        %v1217 = vor.u32 %v1216, %v1212
        %v1218 = vrot.slane %v1217, 4
        %v1220 = vshll.u32 %v901, 16
        %v1222 = vrot.slane %v1220, 5
        %v1223 = vsel %vm911, %v1218, %v1222
        %v1225 = vshrl.u32 %v875, 16
        %v1227 = vrot.slane %v1225, 4
        %v1228 = vshll.u32 %v875, 16
        %v1230 = vrot.slane %v1228, 5
        %v1231 = vor.u32 %v1227, %v1230
        %v1232 = vrot.slane %v1231, 4
        %v1234 = vshll.u32 %v876, 16
        %v1236 = vrot.slane %v1234, 5
        %v1237 = vsel %vm911, %v1232, %v1236
        %v1238 = vshrl.u32 %v876, 16
        %v1240 = vrot.slane %v1238, 4
        %v1241 = vor.u32 %v1240, %v1236
        %v1242 = vrot.slane %v1241, 4
        %v1244 = vshll.u32 %v902, 16
        %v1246 = vrot.slane %v1244, 5
        %v1247 = vsel %vm911, %v1242, %v1246
        %v1249 = vshrl.u32 %v877, 16
        %v1251 = vrot.slane %v1249, 4
        %v1252 = vshll.u32 %v877, 16
        %v1254 = vrot.slane %v1252, 5
        %v1255 = vor.u32 %v1251, %v1254
        %v1256 = vrot.slane %v1255, 4
        %v1258 = vshll.u32 %v878, 16
        %v1260 = vrot.slane %v1258, 5
        %v1261 = vsel %vm911, %v1256, %v1260
        %v1262 = vshrl.u32 %v878, 16
        %v1264 = vrot.slane %v1262, 4
        %v1265 = vor.u32 %v1264, %v1260
        %v1266 = vrot.slane %v1265, 4
        %v1268 = vshll.u32 %v903, 16
        %v1270 = vrot.slane %v1268, 5
        %v1271 = vsel %vm911, %v1266, %v1270
        %v1273 = vshrl.u32 %v879, 16
        %v1275 = vrot.slane %v1273, 4
        %v1276 = vshll.u32 %v879, 16
        %v1278 = vrot.slane %v1276, 5
        %v1279 = vor.u32 %v1275, %v1278
        %v1280 = vrot.slane %v1279, 4
        %v1282 = vshll.u32 %v880, 16
        %v1284 = vrot.slane %v1282, 5
        %v1285 = vsel %vm911, %v1280, %v1284
        %v1286 = vshrl.u32 %v880, 16
        %v1288 = vrot.slane %v1286, 4
        %v1289 = vor.u32 %v1288, %v1284
        %v1290 = vrot.slane %v1289, 4
        %v1292 = vshll.u32 %v904, 16
        %v1294 = vrot.slane %v1292, 5
        %v1295 = vsel %vm911, %v1290, %v1294
        %v1297 = vshrl.u32 %v881, 16
        %v1299 = vrot.slane %v1297, 4
        %v1300 = vshll.u32 %v881, 16
        %v1302 = vrot.slane %v1300, 5
        %v1303 = vor.u32 %v1299, %v1302
        %v1304 = vrot.slane %v1303, 4
        %v1306 = vshll.u32 %v882, 16
        %v1308 = vrot.slane %v1306, 5
        %v1309 = vsel %vm911, %v1304, %v1308
        %v1310 = vshrl.u32 %v882, 16
        %v1312 = vrot.slane %v1310, 4
        %v1313 = vor.u32 %v1312, %v1308
        %v1314 = vrot.slane %v1313, 4
        %v1316 = vshll.u32 %v905, 16
        %v1318 = vrot.slane %v1316, 5
        %v1319 = vsel %vm911, %v1314, %v1318
        %v1321 = vshrl.u32 %v883, 16
        %v1323 = vrot.slane %v1321, 4
        %v1324 = vshll.u32 %v883, 16
        %v1326 = vrot.slane %v1324, 5
        %v1327 = vor.u32 %v1323, %v1326
        %v1328 = vrot.slane %v1327, 4
        %v1330 = vshll.u32 %v884, 16
        %v1332 = vrot.slane %v1330, 5
        %v1333 = vsel %vm911, %v1328, %v1332
        %v1334 = vshrl.u32 %v884, 16
        %v1336 = vrot.slane %v1334, 4
        %v1337 = vor.u32 %v1336, %v1332
        %v1338 = vrot.slane %v1337, 4
        %v1340 = vshll.u32 %v906, 16
        %v1342 = vrot.slane %v1340, 5
        %v1343 = vsel %vm911, %v1338, %v1342
        %v1345 = vshrl.u32 %v885, 16
        %v1347 = vrot.slane %v1345, 4
        %v1348 = vshll.u32 %v885, 16
        %v1350 = vrot.slane %v1348, 5
        %v1351 = vor.u32 %v1347, %v1350
        %v1352 = vrot.slane %v1351, 4
        %v1354 = vshll.u32 %v886, 16
        %v1356 = vrot.slane %v1354, 5
        %v1357 = vsel %vm911, %v1352, %v1356
        %v1358 = vshrl.u32 %v886, 16
        %v1360 = vrot.slane %v1358, 4
        %v1361 = vor.u32 %v1360, %v1356
        %v1362 = vrot.slane %v1361, 4
        %v1364 = vshll.u32 %v907, 16
        %v1366 = vrot.slane %v1364, 5
        %v1367 = vsel %vm911, %v1362, %v1366
        %v1369 = vshrl.u32 %v887, 16
        %v1371 = vrot.slane %v1369, 4
        %v1372 = vshll.u32 %v887, 16
        %v1374 = vrot.slane %v1372, 5
        %v1375 = vor.u32 %v1371, %v1374
        %v1376 = vrot.slane %v1375, 4
        %v1378 = vshll.u32 %v888, 16
        %v1380 = vrot.slane %v1378, 5
        %v1381 = vsel %vm911, %v1376, %v1380
        %v1382 = vshrl.u32 %v888, 16
        %v1384 = vrot.slane %v1382, 4
        %v1385 = vor.u32 %v1384, %v1380
        %v1386 = vrot.slane %v1385, 4
        %v1388 = vshll.u32 %v908, 16
        %v1390 = vrot.slane %v1388, 5
        %v1391 = vsel %vm911, %v1386, %v1390
        %v1432 = vmax.bf16 %v849, %v925
        %v1433 = vmax.bf16 %v850, %v935
        %v1434 = vmax.bf16 %v851, %v949
        %v1435 = vmax.bf16 %v852, %v959
        %v1436 = vmax.bf16 %v853, %v973
        %v1437 = vmax.bf16 %v854, %v983
        %v1438 = vmax.bf16 %v855, %v997
        %v1439 = vmax.bf16 %v856, %v1007
        %v1440 = vmax.bf16 %v857, %v1021
        %v1441 = vmax.bf16 %v858, %v1031
        %v1442 = vmax.bf16 %v859, %v1045
        %v1443 = vmax.bf16 %v860, %v1055
        %v1444 = vmax.bf16 %v861, %v1069
        %v1445 = vmax.bf16 %v862, %v1079
        %v1446 = vmax.bf16 %v863, %v1093
        %v1447 = vmax.bf16 %v864, %v1103
        %v1448 = vmax.bf16 %v865, %v1117
        %v1449 = vmax.bf16 %v866, %v1127
        %v1450 = vmax.bf16 %v867, %v1141
        %v1451 = vmax.bf16 %v868, %v1151
        %v1452 = vmax.bf16 %v869, %v1165
        %v1453 = vmax.bf16 %v870, %v1175
        %v1454 = vmax.bf16 %v871, %v1189
        %v1455 = vmax.bf16 %v872, %v1199
        %v1456 = vmax.bf16 %v873, %v1213
        %v1457 = vmax.bf16 %v874, %v1223
        %v1458 = vmax.bf16 %v875, %v1237
        %v1459 = vmax.bf16 %v876, %v1247
        %v1460 = vmax.bf16 %v877, %v1261
        %v1461 = vmax.bf16 %v878, %v1271
        %v1462 = vmax.bf16 %v879, %v1285
        %v1463 = vmax.bf16 %v880, %v1295
        %v1464 = vmax.bf16 %v881, %v1309
        %v1465 = vmax.bf16 %v882, %v1319
        %v1466 = vmax.bf16 %v883, %v1333
        %v1467 = vmax.bf16 %v884, %v1343
        %v1468 = vmax.bf16 %v885, %v1357
        %v1469 = vmax.bf16 %v886, %v1367
        %v1470 = vmax.bf16 %v887, %v1381
        %v1471 = vmax.bf16 %v888, %v1391
        %v1472 = vld [vmem:[#allocation2] sm:$0xe]
        %v1473 = vld [vmem:[#allocation2 + $0xc] sm:$0xe]
        %v1474 = vld [vmem:[#allocation2 + $0x18] sm:$0xe]
        %v1475 = vld [vmem:[#allocation2 + $0x24] sm:$0xe]
        %v1476 = vld [vmem:[#allocation2 + $0x30] sm:$0xe]
        %v1477 = vld [vmem:[#allocation2 + $0x3c] sm:$0xe]
        %v1478 = vld [vmem:[#allocation2 + $0x48] sm:$0xe]
        %v1479 = vld [vmem:[#allocation2 + $0x54] sm:$0xe]
        %v1480 = vld [vmem:[#allocation2 + $0x60] sm:$0xe]
        %v1481 = vld [vmem:[#allocation2 + $0x6c] sm:$0xe]
        %v1482 = vld [vmem:[#allocation2 + $0x78] sm:$0xe]
        %v1483 = vld [vmem:[#allocation2 + $0x84] sm:$0xe]
        %v1484 = vld [vmem:[#allocation2 + $0x90] sm:$0xe]
        %v1485 = vld [vmem:[#allocation2 + $0x9c] sm:$0xe]
        %v1486 = vld [vmem:[#allocation2 + $0xa8] sm:$0xe]
        %v1487 = vld [vmem:[#allocation2 + $0xb4] sm:$0xe]
        %v1488 = vld [vmem:[#allocation2 + $0xc0] sm:$0xe]
        %v1489 = vld [vmem:[#allocation2 + $0xcc] sm:$0xe]
        %v1490 = vld [vmem:[#allocation2 + $0xd8] sm:$0xe]
        %v1491 = vld [vmem:[#allocation2 + $0xe4] sm:$0xe]
        %vm1552 = vcmask 1042432
        %vm1553 = vcmask 1046532
        %vm1554 = vmor %vm1552, %vm1553
        %v1555 = vrot.slane %v1472, 5
        %v1556 = vrot.slane %v1555, 4
        %v1557 = vrot.slane %v850, 5
        %v1558 = vsel %vm1554, %v1556, %v1557
        %v1559 = vrot.slane %v1557, 4
        %v1560 = vrot.slane %v889, 5
        %v1561 = vsel %vm1554, %v1559, %v1560
        %v1562 = vrot.slane %v1473, 5
        %v1563 = vrot.slane %v1562, 4
        %v1564 = vrot.slane %v852, 5
        %v1565 = vsel %vm1554, %v1563, %v1564
        %v1566 = vrot.slane %v1564, 4
        %v1567 = vrot.slane %v890, 5
        %v1568 = vsel %vm1554, %v1566, %v1567
        %v1569 = vrot.slane %v1474, 5
        %v1570 = vrot.slane %v1569, 4
        %v1571 = vrot.slane %v854, 5
        %v1572 = vsel %vm1554, %v1570, %v1571
        %v1573 = vrot.slane %v1571, 4
        %v1574 = vrot.slane %v891, 5
        %v1575 = vsel %vm1554, %v1573, %v1574
        %v1576 = vrot.slane %v1475, 5
        %v1577 = vrot.slane %v1576, 4
        %v1578 = vrot.slane %v856, 5
        %v1579 = vsel %vm1554, %v1577, %v1578
        %v1580 = vrot.slane %v1578, 4
        %v1581 = vrot.slane %v892, 5
        %v1582 = vsel %vm1554, %v1580, %v1581
        %v1583 = vrot.slane %v1476, 5
        %v1584 = vrot.slane %v1583, 4
        %v1585 = vrot.slane %v858, 5
        %v1586 = vsel %vm1554, %v1584, %v1585
        %v1587 = vrot.slane %v1585, 4
        %v1588 = vrot.slane %v893, 5
        %v1589 = vsel %vm1554, %v1587, %v1588
        %v1590 = vrot.slane %v1477, 5
        %v1591 = vrot.slane %v1590, 4
        %v1592 = vrot.slane %v860, 5
        %v1593 = vsel %vm1554, %v1591, %v1592
        %v1594 = vrot.slane %v1592, 4
        %v1595 = vrot.slane %v894, 5
        %v1596 = vsel %vm1554, %v1594, %v1595
        %v1597 = vrot.slane %v1478, 5
        %v1598 = vrot.slane %v1597, 4
        %v1599 = vrot.slane %v862, 5
        %v1600 = vsel %vm1554, %v1598, %v1599
        %v1601 = vrot.slane %v1599, 4
        %v1602 = vrot.slane %v895, 5
        %v1603 = vsel %vm1554, %v1601, %v1602
        %v1604 = vrot.slane %v1479, 5
        %v1605 = vrot.slane %v1604, 4
        %v1606 = vrot.slane %v864, 5
        %v1607 = vsel %vm1554, %v1605, %v1606
        %v1608 = vrot.slane %v1606, 4
        %v1609 = vrot.slane %v896, 5
        %v1610 = vsel %vm1554, %v1608, %v1609
        %v1611 = vrot.slane %v1480, 5
        %v1612 = vrot.slane %v1611, 4
        %v1613 = vrot.slane %v866, 5
        %v1614 = vsel %vm1554, %v1612, %v1613
        %v1615 = vrot.slane %v1613, 4
        %v1616 = vrot.slane %v897, 5
        %v1617 = vsel %vm1554, %v1615, %v1616
        %v1618 = vrot.slane %v1481, 5
        %v1619 = vrot.slane %v1618, 4
        %v1620 = vrot.slane %v868, 5
        %v1621 = vsel %vm1554, %v1619, %v1620
        %v1622 = vrot.slane %v1620, 4
        %v1623 = vrot.slane %v898, 5
        %v1624 = vsel %vm1554, %v1622, %v1623
        %v1625 = vrot.slane %v1482, 5
        %v1626 = vrot.slane %v1625, 4
        %v1627 = vrot.slane %v870, 5
        %v1628 = vsel %vm1554, %v1626, %v1627
        %v1629 = vrot.slane %v1627, 4
        %v1630 = vrot.slane %v899, 5
        %v1631 = vsel %vm1554, %v1629, %v1630
        %v1632 = vrot.slane %v1483, 5
        %v1633 = vrot.slane %v1632, 4
        %v1634 = vrot.slane %v872, 5
        %v1635 = vsel %vm1554, %v1633, %v1634
        %v1636 = vrot.slane %v1634, 4
        %v1637 = vrot.slane %v900, 5
        %v1638 = vsel %vm1554, %v1636, %v1637
        %v1639 = vrot.slane %v1484, 5
        %v1640 = vrot.slane %v1639, 4
        %v1641 = vrot.slane %v874, 5
        %v1642 = vsel %vm1554, %v1640, %v1641
        %v1643 = vrot.slane %v1641, 4
        %v1644 = vrot.slane %v901, 5
        %v1645 = vsel %vm1554, %v1643, %v1644
        %v1646 = vrot.slane %v1485, 5
        %v1647 = vrot.slane %v1646, 4
        %v1648 = vrot.slane %v876, 5
        %v1649 = vsel %vm1554, %v1647, %v1648
        %v1650 = vrot.slane %v1648, 4
        %v1651 = vrot.slane %v902, 5
        %v1652 = vsel %vm1554, %v1650, %v1651
        %v1653 = vrot.slane %v1486, 5
        %v1654 = vrot.slane %v1653, 4
        %v1655 = vrot.slane %v878, 5
        %v1656 = vsel %vm1554, %v1654, %v1655
        %v1657 = vrot.slane %v1655, 4
        %v1658 = vrot.slane %v903, 5
        %v1659 = vsel %vm1554, %v1657, %v1658
        %v1660 = vrot.slane %v1487, 5
        %v1661 = vrot.slane %v1660, 4
        %v1662 = vrot.slane %v880, 5
        %v1663 = vsel %vm1554, %v1661, %v1662
        %v1664 = vrot.slane %v1662, 4
        %v1665 = vrot.slane %v904, 5
        %v1666 = vsel %vm1554, %v1664, %v1665
        %v1667 = vrot.slane %v1488, 5
        %v1668 = vrot.slane %v1667, 4
        %v1669 = vrot.slane %v882, 5
        %v1670 = vsel %vm1554, %v1668, %v1669
        %v1671 = vrot.slane %v1669, 4
        %v1672 = vrot.slane %v905, 5
        %v1673 = vsel %vm1554, %v1671, %v1672
        %v1674 = vrot.slane %v1489, 5
        %v1675 = vrot.slane %v1674, 4
        %v1676 = vrot.slane %v884, 5
        %v1677 = vsel %vm1554, %v1675, %v1676
        %v1678 = vrot.slane %v1676, 4
        %v1679 = vrot.slane %v906, 5
        %v1680 = vsel %vm1554, %v1678, %v1679
        %v1681 = vrot.slane %v1490, 5
        %v1682 = vrot.slane %v1681, 4
        %v1683 = vrot.slane %v886, 5
        %v1684 = vsel %vm1554, %v1682, %v1683
        %v1685 = vrot.slane %v1683, 4
        %v1686 = vrot.slane %v907, 5
        %v1687 = vsel %vm1554, %v1685, %v1686
        %v1688 = vrot.slane %v1491, 5
        %v1689 = vrot.slane %v1688, 4
        %v1690 = vrot.slane %v888, 5
        %v1691 = vsel %vm1554, %v1689, %v1690
        %v1692 = vrot.slane %v1690, 4
        %v1693 = vrot.slane %v908, 5
        %v1694 = vsel %vm1554, %v1692, %v1693
        %v1735 = vmax.bf16 %v1432, %v1558
        %v1736 = vmax.bf16 %v1433, %v1561
        %v1737 = vmax.bf16 %v1434, %v1565
        %v1738 = vmax.bf16 %v1435, %v1568
        %v1739 = vmax.bf16 %v1436, %v1572
        %v1740 = vmax.bf16 %v1437, %v1575
        %v1741 = vmax.bf16 %v1438, %v1579
        %v1742 = vmax.bf16 %v1439, %v1582
        %v1743 = vmax.bf16 %v1440, %v1586
        %v1744 = vmax.bf16 %v1441, %v1589
        %v1745 = vmax.bf16 %v1442, %v1593
        %v1746 = vmax.bf16 %v1443, %v1596
        %v1747 = vmax.bf16 %v1444, %v1600
        %v1748 = vmax.bf16 %v1445, %v1603
        %v1749 = vmax.bf16 %v1446, %v1607
        %v1750 = vmax.bf16 %v1447, %v1610
        %v1751 = vmax.bf16 %v1448, %v1614
        %v1752 = vmax.bf16 %v1449, %v1617
        %v1753 = vmax.bf16 %v1450, %v1621
        %v1754 = vmax.bf16 %v1451, %v1624
        %v1755 = vmax.bf16 %v1452, %v1628
        %v1756 = vmax.bf16 %v1453, %v1631
        %v1757 = vmax.bf16 %v1454, %v1635
        %v1758 = vmax.bf16 %v1455, %v1638
        %v1759 = vmax.bf16 %v1456, %v1642
        %v1760 = vmax.bf16 %v1457, %v1645
        %v1761 = vmax.bf16 %v1458, %v1649
        %v1762 = vmax.bf16 %v1459, %v1652
        %v1763 = vmax.bf16 %v1460, %v1656
        %v1764 = vmax.bf16 %v1461, %v1659
        %v1765 = vmax.bf16 %v1462, %v1663
        %v1766 = vmax.bf16 %v1463, %v1666
        %v1767 = vmax.bf16 %v1464, %v1670
        %v1768 = vmax.bf16 %v1465, %v1673
        %v1769 = vmax.bf16 %v1466, %v1677
        %v1770 = vmax.bf16 %v1467, %v1680
        %v1771 = vmax.bf16 %v1468, %v1684
        %v1772 = vmax.bf16 %v1469, %v1687
        %v1773 = vmax.bf16 %v1470, %v1691
        %v1774 = vmax.bf16 %v1471, %v1694
        %v1775 = vld [vmem:[#allocation2 + $0x8] sm:$0x3]
        %v1776 = vld [vmem:[#allocation2 + $0x14] sm:$0x3]
        %v1777 = vld [vmem:[#allocation2 + $0x20] sm:$0x3]
        %v1778 = vld [vmem:[#allocation2 + $0x2c] sm:$0x3]
        %v1779 = vld [vmem:[#allocation2 + $0x38] sm:$0x3]
        %v1780 = vld [vmem:[#allocation2 + $0x44] sm:$0x3]
        %v1781 = vld [vmem:[#allocation2 + $0x50] sm:$0x3]
        %v1782 = vld [vmem:[#allocation2 + $0x5c] sm:$0x3]
        %v1783 = vld [vmem:[#allocation2 + $0x68] sm:$0x3]
        %v1784 = vld [vmem:[#allocation2 + $0x74] sm:$0x3]
        %v1785 = vld [vmem:[#allocation2 + $0x80] sm:$0x3]
        %v1786 = vld [vmem:[#allocation2 + $0x8c] sm:$0x3]
        %v1787 = vld [vmem:[#allocation2 + $0x98] sm:$0x3]
        %v1788 = vld [vmem:[#allocation2 + $0xa4] sm:$0x3]
        %v1789 = vld [vmem:[#allocation2 + $0xb0] sm:$0x3]
        %v1790 = vld [vmem:[#allocation2 + $0xbc] sm:$0x3]
        %v1791 = vld [vmem:[#allocation2 + $0xc8] sm:$0x3]
        %v1792 = vld [vmem:[#allocation2 + $0xd4] sm:$0x3]
        %v1793 = vld [vmem:[#allocation2 + $0xe0] sm:$0x3]
        %v1794 = vld [vmem:[#allocation2 + $0xec] sm:$0x3]
        %vm1795 = vsmask.f32 2304
        %vm1796 = vsmask.f32 6416
        %vm1797 = vmor %vm1795, %vm1796
        %v1799 = vshrl.u32 %v1472, 16
        %v1801 = vrot.slane %v1799, 5
        %v1802 = vshll.u32 %v1472, 16
        %v1804 = vrot.slane %v1802, 6
        %v1805 = vor.u32 %v1801, %v1804
        %v1806 = vrot.slane %v1805, 4
        %v1807 = vrot.slane %v926, 5
        %v1808 = vrot.slane %v922, 6
        %v1809 = vor.u32 %v1807, %v1808
        %v1810 = vsel %vm1797, %v1806, %v1809
        %v1811 = vrot.slane %v1809, 4
        %v1813 = vshrl.u32 %v1775, 16
        %v1815 = vrot.slane %v1813, 5
        %v1816 = vshll.u32 %v1775, 16
        %v1818 = vrot.slane %v1816, 6
        %v1819 = vor.u32 %v1815, %v1818
        %v1820 = vsel %vm1797, %v1811, %v1819
        %v1822 = vshrl.u32 %v1473, 16
        %v1824 = vrot.slane %v1822, 5
        %v1825 = vshll.u32 %v1473, 16
        %v1827 = vrot.slane %v1825, 6
        %v1828 = vor.u32 %v1824, %v1827
        %v1829 = vrot.slane %v1828, 4
        %v1830 = vrot.slane %v950, 5
        %v1831 = vrot.slane %v946, 6
        %v1832 = vor.u32 %v1830, %v1831
        %v1833 = vsel %vm1797, %v1829, %v1832
        %v1834 = vrot.slane %v1832, 4
        %v1836 = vshrl.u32 %v1776, 16
        %v1838 = vrot.slane %v1836, 5
        %v1839 = vshll.u32 %v1776, 16
        %v1841 = vrot.slane %v1839, 6
        %v1842 = vor.u32 %v1838, %v1841
        %v1843 = vsel %vm1797, %v1834, %v1842
        %v1845 = vshrl.u32 %v1474, 16
        %v1847 = vrot.slane %v1845, 5
        %v1848 = vshll.u32 %v1474, 16
        %v1850 = vrot.slane %v1848, 6
        %v1851 = vor.u32 %v1847, %v1850
        %v1852 = vrot.slane %v1851, 4
        %v1853 = vrot.slane %v974, 5
        %v1854 = vrot.slane %v970, 6
        %v1855 = vor.u32 %v1853, %v1854
        %v1856 = vsel %vm1797, %v1852, %v1855
        %v1857 = vrot.slane %v1855, 4
        %v1859 = vshrl.u32 %v1777, 16
        %v1861 = vrot.slane %v1859, 5
        %v1862 = vshll.u32 %v1777, 16
        %v1864 = vrot.slane %v1862, 6
        %v1865 = vor.u32 %v1861, %v1864
        %v1866 = vsel %vm1797, %v1857, %v1865
        %v1868 = vshrl.u32 %v1475, 16
        %v1870 = vrot.slane %v1868, 5
        %v1871 = vshll.u32 %v1475, 16
        %v1873 = vrot.slane %v1871, 6
        %v1874 = vor.u32 %v1870, %v1873
        %v1875 = vrot.slane %v1874, 4
        %v1876 = vrot.slane %v998, 5
        %v1877 = vrot.slane %v994, 6
        %v1878 = vor.u32 %v1876, %v1877
        %v1879 = vsel %vm1797, %v1875, %v1878
        %v1880 = vrot.slane %v1878, 4
        %v1882 = vshrl.u32 %v1778, 16
        %v1884 = vrot.slane %v1882, 5
        %v1885 = vshll.u32 %v1778, 16
        %v1887 = vrot.slane %v1885, 6
        %v1888 = vor.u32 %v1884, %v1887
        %v1889 = vsel %vm1797, %v1880, %v1888
        %v1891 = vshrl.u32 %v1476, 16
        %v1893 = vrot.slane %v1891, 5
        %v1894 = vshll.u32 %v1476, 16
        %v1896 = vrot.slane %v1894, 6
        %v1897 = vor.u32 %v1893, %v1896
        %v1898 = vrot.slane %v1897, 4
        %v1899 = vrot.slane %v1022, 5
        %v1900 = vrot.slane %v1018, 6
        %v1901 = vor.u32 %v1899, %v1900
        %v1902 = vsel %vm1797, %v1898, %v1901
        %v1903 = vrot.slane %v1901, 4
        %v1905 = vshrl.u32 %v1779, 16
        %v1907 = vrot.slane %v1905, 5
        %v1908 = vshll.u32 %v1779, 16
        %v1910 = vrot.slane %v1908, 6
        %v1911 = vor.u32 %v1907, %v1910
        %v1912 = vsel %vm1797, %v1903, %v1911
        %v1914 = vshrl.u32 %v1477, 16
        %v1916 = vrot.slane %v1914, 5
        %v1917 = vshll.u32 %v1477, 16
        %v1919 = vrot.slane %v1917, 6
        %v1920 = vor.u32 %v1916, %v1919
        %v1921 = vrot.slane %v1920, 4
        %v1922 = vrot.slane %v1046, 5
        %v1923 = vrot.slane %v1042, 6
        %v1924 = vor.u32 %v1922, %v1923
        %v1925 = vsel %vm1797, %v1921, %v1924
        %v1926 = vrot.slane %v1924, 4
        %v1928 = vshrl.u32 %v1780, 16
        %v1930 = vrot.slane %v1928, 5
        %v1931 = vshll.u32 %v1780, 16
        %v1933 = vrot.slane %v1931, 6
        %v1934 = vor.u32 %v1930, %v1933
        %v1935 = vsel %vm1797, %v1926, %v1934
        %v1937 = vshrl.u32 %v1478, 16
        %v1939 = vrot.slane %v1937, 5
        %v1940 = vshll.u32 %v1478, 16
        %v1942 = vrot.slane %v1940, 6
        %v1943 = vor.u32 %v1939, %v1942
        %v1944 = vrot.slane %v1943, 4
        %v1945 = vrot.slane %v1070, 5
        %v1946 = vrot.slane %v1066, 6
        %v1947 = vor.u32 %v1945, %v1946
        %v1948 = vsel %vm1797, %v1944, %v1947
        %v1949 = vrot.slane %v1947, 4
        %v1951 = vshrl.u32 %v1781, 16
        %v1953 = vrot.slane %v1951, 5
        %v1954 = vshll.u32 %v1781, 16
        %v1956 = vrot.slane %v1954, 6
        %v1957 = vor.u32 %v1953, %v1956
        %v1958 = vsel %vm1797, %v1949, %v1957
        %v1960 = vshrl.u32 %v1479, 16
        %v1962 = vrot.slane %v1960, 5
        %v1963 = vshll.u32 %v1479, 16
        %v1965 = vrot.slane %v1963, 6
        %v1966 = vor.u32 %v1962, %v1965
        %v1967 = vrot.slane %v1966, 4
        %v1968 = vrot.slane %v1094, 5
        %v1969 = vrot.slane %v1090, 6
        %v1970 = vor.u32 %v1968, %v1969
        %v1971 = vsel %vm1797, %v1967, %v1970
        %v1972 = vrot.slane %v1970, 4
        %v1974 = vshrl.u32 %v1782, 16
        %v1976 = vrot.slane %v1974, 5
        %v1977 = vshll.u32 %v1782, 16
        %v1979 = vrot.slane %v1977, 6
        %v1980 = vor.u32 %v1976, %v1979
        %v1981 = vsel %vm1797, %v1972, %v1980
        %v1983 = vshrl.u32 %v1480, 16
        %v1985 = vrot.slane %v1983, 5
        %v1986 = vshll.u32 %v1480, 16
        %v1988 = vrot.slane %v1986, 6
        %v1989 = vor.u32 %v1985, %v1988
        %v1990 = vrot.slane %v1989, 4
        %v1991 = vrot.slane %v1118, 5
        %v1992 = vrot.slane %v1114, 6
        %v1993 = vor.u32 %v1991, %v1992
        %v1994 = vsel %vm1797, %v1990, %v1993
        %v1995 = vrot.slane %v1993, 4
        %v1997 = vshrl.u32 %v1783, 16
        %v1999 = vrot.slane %v1997, 5
        %v2000 = vshll.u32 %v1783, 16
        %v2002 = vrot.slane %v2000, 6
        %v2003 = vor.u32 %v1999, %v2002
        %v2004 = vsel %vm1797, %v1995, %v2003
        %v2006 = vshrl.u32 %v1481, 16
        %v2008 = vrot.slane %v2006, 5
        %v2009 = vshll.u32 %v1481, 16
        %v2011 = vrot.slane %v2009, 6
        %v2012 = vor.u32 %v2008, %v2011
        %v2013 = vrot.slane %v2012, 4
        %v2014 = vrot.slane %v1142, 5
        %v2015 = vrot.slane %v1138, 6
        %v2016 = vor.u32 %v2014, %v2015
        %v2017 = vsel %vm1797, %v2013, %v2016
        %v2018 = vrot.slane %v2016, 4
        %v2020 = vshrl.u32 %v1784, 16
        %v2022 = vrot.slane %v2020, 5
        %v2023 = vshll.u32 %v1784, 16
        %v2025 = vrot.slane %v2023, 6
        %v2026 = vor.u32 %v2022, %v2025
        %v2027 = vsel %vm1797, %v2018, %v2026
        %v2029 = vshrl.u32 %v1482, 16
        %v2031 = vrot.slane %v2029, 5
        %v2032 = vshll.u32 %v1482, 16
        %v2034 = vrot.slane %v2032, 6
        %v2035 = vor.u32 %v2031, %v2034
        %v2036 = vrot.slane %v2035, 4
        %v2037 = vrot.slane %v1166, 5
        %v2038 = vrot.slane %v1162, 6
        %v2039 = vor.u32 %v2037, %v2038
        %v2040 = vsel %vm1797, %v2036, %v2039
        %v2041 = vrot.slane %v2039, 4
        %v2043 = vshrl.u32 %v1785, 16
        %v2045 = vrot.slane %v2043, 5
        %v2046 = vshll.u32 %v1785, 16
        %v2048 = vrot.slane %v2046, 6
        %v2049 = vor.u32 %v2045, %v2048
        %v2050 = vsel %vm1797, %v2041, %v2049
        %v2052 = vshrl.u32 %v1483, 16
        %v2054 = vrot.slane %v2052, 5
        %v2055 = vshll.u32 %v1483, 16
        %v2057 = vrot.slane %v2055, 6
        %v2058 = vor.u32 %v2054, %v2057
        %v2059 = vrot.slane %v2058, 4
        %v2060 = vrot.slane %v1190, 5
        %v2061 = vrot.slane %v1186, 6
        %v2062 = vor.u32 %v2060, %v2061
        %v2063 = vsel %vm1797, %v2059, %v2062
        %v2064 = vrot.slane %v2062, 4
        %v2066 = vshrl.u32 %v1786, 16
        %v2068 = vrot.slane %v2066, 5
        %v2069 = vshll.u32 %v1786, 16
        %v2071 = vrot.slane %v2069, 6
        %v2072 = vor.u32 %v2068, %v2071
        %v2073 = vsel %vm1797, %v2064, %v2072
        %v2075 = vshrl.u32 %v1484, 16
        %v2077 = vrot.slane %v2075, 5
        %v2078 = vshll.u32 %v1484, 16
        %v2080 = vrot.slane %v2078, 6
        %v2081 = vor.u32 %v2077, %v2080
        %v2082 = vrot.slane %v2081, 4
        %v2083 = vrot.slane %v1214, 5
        %v2084 = vrot.slane %v1210, 6
        %v2085 = vor.u32 %v2083, %v2084
        %v2086 = vsel %vm1797, %v2082, %v2085
        %v2087 = vrot.slane %v2085, 4
        %v2089 = vshrl.u32 %v1787, 16
        %v2091 = vrot.slane %v2089, 5
        %v2092 = vshll.u32 %v1787, 16
        %v2094 = vrot.slane %v2092, 6
        %v2095 = vor.u32 %v2091, %v2094
        %v2096 = vsel %vm1797, %v2087, %v2095
        %v2098 = vshrl.u32 %v1485, 16
        %v2100 = vrot.slane %v2098, 5
        %v2101 = vshll.u32 %v1485, 16
        %v2103 = vrot.slane %v2101, 6
        %v2104 = vor.u32 %v2100, %v2103
        %v2105 = vrot.slane %v2104, 4
        %v2106 = vrot.slane %v1238, 5
        %v2107 = vrot.slane %v1234, 6
        %v2108 = vor.u32 %v2106, %v2107
        %v2109 = vsel %vm1797, %v2105, %v2108
        %v2110 = vrot.slane %v2108, 4
        %v2112 = vshrl.u32 %v1788, 16
        %v2114 = vrot.slane %v2112, 5
        %v2115 = vshll.u32 %v1788, 16
        %v2117 = vrot.slane %v2115, 6
        %v2118 = vor.u32 %v2114, %v2117
        %v2119 = vsel %vm1797, %v2110, %v2118
        %v2121 = vshrl.u32 %v1486, 16
        %v2123 = vrot.slane %v2121, 5
        %v2124 = vshll.u32 %v1486, 16
        %v2126 = vrot.slane %v2124, 6
        %v2127 = vor.u32 %v2123, %v2126
        %v2128 = vrot.slane %v2127, 4
        %v2129 = vrot.slane %v1262, 5
        %v2130 = vrot.slane %v1258, 6
        %v2131 = vor.u32 %v2129, %v2130
        %v2132 = vsel %vm1797, %v2128, %v2131
        %v2133 = vrot.slane %v2131, 4
        %v2135 = vshrl.u32 %v1789, 16
        %v2137 = vrot.slane %v2135, 5
        %v2138 = vshll.u32 %v1789, 16
        %v2140 = vrot.slane %v2138, 6
        %v2141 = vor.u32 %v2137, %v2140
        %v2142 = vsel %vm1797, %v2133, %v2141
        %v2144 = vshrl.u32 %v1487, 16
        %v2146 = vrot.slane %v2144, 5
        %v2147 = vshll.u32 %v1487, 16
        %v2149 = vrot.slane %v2147, 6
        %v2150 = vor.u32 %v2146, %v2149
        %v2151 = vrot.slane %v2150, 4
        %v2152 = vrot.slane %v1286, 5
        %v2153 = vrot.slane %v1282, 6
        %v2154 = vor.u32 %v2152, %v2153
        %v2155 = vsel %vm1797, %v2151, %v2154
        %v2156 = vrot.slane %v2154, 4
        %v2158 = vshrl.u32 %v1790, 16
        %v2160 = vrot.slane %v2158, 5
        %v2161 = vshll.u32 %v1790, 16
        %v2163 = vrot.slane %v2161, 6
        %v2164 = vor.u32 %v2160, %v2163
        %v2165 = vsel %vm1797, %v2156, %v2164
        %v2167 = vshrl.u32 %v1488, 16
        %v2169 = vrot.slane %v2167, 5
        %v2170 = vshll.u32 %v1488, 16
        %v2172 = vrot.slane %v2170, 6
        %v2173 = vor.u32 %v2169, %v2172
        %v2174 = vrot.slane %v2173, 4
        %v2175 = vrot.slane %v1310, 5
        %v2176 = vrot.slane %v1306, 6
        %v2177 = vor.u32 %v2175, %v2176
        %v2178 = vsel %vm1797, %v2174, %v2177
        %v2179 = vrot.slane %v2177, 4
        %v2181 = vshrl.u32 %v1791, 16
        %v2183 = vrot.slane %v2181, 5
        %v2184 = vshll.u32 %v1791, 16
        %v2186 = vrot.slane %v2184, 6
        %v2187 = vor.u32 %v2183, %v2186
        %v2188 = vsel %vm1797, %v2179, %v2187
        %v2190 = vshrl.u32 %v1489, 16
        %v2192 = vrot.slane %v2190, 5
        %v2193 = vshll.u32 %v1489, 16
        %v2195 = vrot.slane %v2193, 6
        %v2196 = vor.u32 %v2192, %v2195
        %v2197 = vrot.slane %v2196, 4
        %v2198 = vrot.slane %v1334, 5
        %v2199 = vrot.slane %v1330, 6
        %v2200 = vor.u32 %v2198, %v2199
        %v2201 = vsel %vm1797, %v2197, %v2200
        %v2202 = vrot.slane %v2200, 4
        %v2204 = vshrl.u32 %v1792, 16
        %v2206 = vrot.slane %v2204, 5
        %v2207 = vshll.u32 %v1792, 16
        %v2209 = vrot.slane %v2207, 6
        %v2210 = vor.u32 %v2206, %v2209
        %v2211 = vsel %vm1797, %v2202, %v2210
        %v2213 = vshrl.u32 %v1490, 16
        %v2215 = vrot.slane %v2213, 5
        %v2216 = vshll.u32 %v1490, 16
        %v2218 = vrot.slane %v2216, 6
        %v2219 = vor.u32 %v2215, %v2218
        %v2220 = vrot.slane %v2219, 4
        %v2221 = vrot.slane %v1358, 5
        %v2222 = vrot.slane %v1354, 6
        %v2223 = vor.u32 %v2221, %v2222
        %v2224 = vsel %vm1797, %v2220, %v2223
        %v2225 = vrot.slane %v2223, 4
        %v2227 = vshrl.u32 %v1793, 16
        %v2229 = vrot.slane %v2227, 5
        %v2230 = vshll.u32 %v1793, 16
        %v2232 = vrot.slane %v2230, 6
        %v2233 = vor.u32 %v2229, %v2232
        %v2234 = vsel %vm1797, %v2225, %v2233
        %v2236 = vshrl.u32 %v1491, 16
        %v2238 = vrot.slane %v2236, 5
        %v2239 = vshll.u32 %v1491, 16
        %v2241 = vrot.slane %v2239, 6
        %v2242 = vor.u32 %v2238, %v2241
        %v2243 = vrot.slane %v2242, 4
        %v2244 = vrot.slane %v1382, 5
        %v2245 = vrot.slane %v1378, 6
        %v2246 = vor.u32 %v2244, %v2245
        %v2247 = vsel %vm1797, %v2243, %v2246
        %v2248 = vrot.slane %v2246, 4
        %v2250 = vshrl.u32 %v1794, 16
        %v2252 = vrot.slane %v2250, 5
        %v2253 = vshll.u32 %v1794, 16
        %v2255 = vrot.slane %v2253, 6
        %v2256 = vor.u32 %v2252, %v2255
        %v2257 = vsel %vm1797, %v2248, %v2256
        %v2298 = vmax.bf16 %v1735, %v1810
        %v2299 = vmax.bf16 %v1736, %v1820
        %v2300 = vmax.bf16 %v1737, %v1833
        %v2301 = vmax.bf16 %v1738, %v1843
        %v2302 = vmax.bf16 %v1739, %v1856
        %v2303 = vmax.bf16 %v1740, %v1866
        %v2304 = vmax.bf16 %v1741, %v1879
        %v2305 = vmax.bf16 %v1742, %v1889
        %v2306 = vmax.bf16 %v1743, %v1902
        %v2307 = vmax.bf16 %v1744, %v1912
        %v2308 = vmax.bf16 %v1745, %v1925
        %v2309 = vmax.bf16 %v1746, %v1935
        %v2310 = vmax.bf16 %v1747, %v1948
        %v2311 = vmax.bf16 %v1748, %v1958
        %v2312 = vmax.bf16 %v1749, %v1971
        %v2313 = vmax.bf16 %v1750, %v1981
        %v2314 = vmax.bf16 %v1751, %v1994
        %v2315 = vmax.bf16 %v1752, %v2004
        %v2316 = vmax.bf16 %v1753, %v2017
        %v2317 = vmax.bf16 %v1754, %v2027
        %v2318 = vmax.bf16 %v1755, %v2040
        %v2319 = vmax.bf16 %v1756, %v2050
        %v2320 = vmax.bf16 %v1757, %v2063
        %v2321 = vmax.bf16 %v1758, %v2073
        %v2322 = vmax.bf16 %v1759, %v2086
        %v2323 = vmax.bf16 %v1760, %v2096
        %v2324 = vmax.bf16 %v1761, %v2109
        %v2325 = vmax.bf16 %v1762, %v2119
        %v2326 = vmax.bf16 %v1763, %v2132
        %v2327 = vmax.bf16 %v1764, %v2142
        %v2328 = vmax.bf16 %v1765, %v2155
        %v2329 = vmax.bf16 %v1766, %v2165
        %v2330 = vmax.bf16 %v1767, %v2178
        %v2331 = vmax.bf16 %v1768, %v2188
        %v2332 = vmax.bf16 %v1769, %v2201
        %v2333 = vmax.bf16 %v1770, %v2211
        %v2334 = vmax.bf16 %v1771, %v2224
        %v2335 = vmax.bf16 %v1772, %v2234
        %v2336 = vmax.bf16 %v1773, %v2247
        %v2337 = vmax.bf16 %v1774, %v2257
        %v2338 = vld [vmem:[#allocation2] sm:$0xc]
        %v2339 = vld [vmem:[#allocation2 + $0xc] sm:$0xc]
        %v2340 = vld [vmem:[#allocation2 + $0x18] sm:$0xc]
        %v2341 = vld [vmem:[#allocation2 + $0x24] sm:$0xc]
        %v2342 = vld [vmem:[#allocation2 + $0x30] sm:$0xc]
        %v2343 = vld [vmem:[#allocation2 + $0x3c] sm:$0xc]
        %v2344 = vld [vmem:[#allocation2 + $0x48] sm:$0xc]
        %v2345 = vld [vmem:[#allocation2 + $0x54] sm:$0xc]
        %v2346 = vld [vmem:[#allocation2 + $0x60] sm:$0xc]
        %v2347 = vld [vmem:[#allocation2 + $0x6c] sm:$0xc]
        %v2348 = vld [vmem:[#allocation2 + $0x78] sm:$0xc]
        %v2349 = vld [vmem:[#allocation2 + $0x84] sm:$0xc]
        %v2350 = vld [vmem:[#allocation2 + $0x90] sm:$0xc]
        %v2351 = vld [vmem:[#allocation2 + $0x9c] sm:$0xc]
        %v2352 = vld [vmem:[#allocation2 + $0xa8] sm:$0xc]
        %v2353 = vld [vmem:[#allocation2 + $0xb4] sm:$0xc]
        %v2354 = vld [vmem:[#allocation2 + $0xc0] sm:$0xc]
        %v2355 = vld [vmem:[#allocation2 + $0xcc] sm:$0xc]
        %v2356 = vld [vmem:[#allocation2 + $0xd8] sm:$0xc]
        %v2357 = vld [vmem:[#allocation2 + $0xe4] sm:$0xc]
        %vm2398 = vcmask 1041408
        %vm2399 = vcmask 1045508
        %vm2400 = vmor %vm2398, %vm2399
        %v2401 = vrot.slane %v2338, 6
        %v2402 = vrot.slane %v2401, 4
        %v2403 = vrot.slane %v850, 6
        %v2404 = vsel %vm2400, %v2402, %v2403
        %v2405 = vrot.slane %v2403, 4
        %v2406 = vrot.slane %v1775, 6
        %v2407 = vsel %vm2400, %v2405, %v2406
        %v2408 = vrot.slane %v2339, 6
        %v2409 = vrot.slane %v2408, 4
        %v2410 = vrot.slane %v852, 6
        %v2411 = vsel %vm2400, %v2409, %v2410
        %v2412 = vrot.slane %v2410, 4
        %v2413 = vrot.slane %v1776, 6
        %v2414 = vsel %vm2400, %v2412, %v2413
        %v2415 = vrot.slane %v2340, 6
        %v2416 = vrot.slane %v2415, 4
        %v2417 = vrot.slane %v854, 6
        %v2418 = vsel %vm2400, %v2416, %v2417
        %v2419 = vrot.slane %v2417, 4
        %v2420 = vrot.slane %v1777, 6
        %v2421 = vsel %vm2400, %v2419, %v2420
        %v2422 = vrot.slane %v2341, 6
        %v2423 = vrot.slane %v2422, 4
        %v2424 = vrot.slane %v856, 6
        %v2425 = vsel %vm2400, %v2423, %v2424
        %v2426 = vrot.slane %v2424, 4
        %v2427 = vrot.slane %v1778, 6
        %v2428 = vsel %vm2400, %v2426, %v2427
        %v2429 = vrot.slane %v2342, 6
        %v2430 = vrot.slane %v2429, 4
        %v2431 = vrot.slane %v858, 6
        %v2432 = vsel %vm2400, %v2430, %v2431
        %v2433 = vrot.slane %v2431, 4
        %v2434 = vrot.slane %v1779, 6
        %v2435 = vsel %vm2400, %v2433, %v2434
        %v2436 = vrot.slane %v2343, 6
        %v2437 = vrot.slane %v2436, 4
        %v2438 = vrot.slane %v860, 6
        %v2439 = vsel %vm2400, %v2437, %v2438
        %v2440 = vrot.slane %v2438, 4
        %v2441 = vrot.slane %v1780, 6
        %v2442 = vsel %vm2400, %v2440, %v2441
        %v2443 = vrot.slane %v2344, 6
        %v2444 = vrot.slane %v2443, 4
        %v2445 = vrot.slane %v862, 6
        %v2446 = vsel %vm2400, %v2444, %v2445
        %v2447 = vrot.slane %v2445, 4
        %v2448 = vrot.slane %v1781, 6
        %v2449 = vsel %vm2400, %v2447, %v2448
        %v2450 = vrot.slane %v2345, 6
        %v2451 = vrot.slane %v2450, 4
        %v2452 = vrot.slane %v864, 6
        %v2453 = vsel %vm2400, %v2451, %v2452
        %v2454 = vrot.slane %v2452, 4
        %v2455 = vrot.slane %v1782, 6
        %v2456 = vsel %vm2400, %v2454, %v2455
        %v2457 = vrot.slane %v2346, 6
        %v2458 = vrot.slane %v2457, 4
        %v2459 = vrot.slane %v866, 6
        %v2460 = vsel %vm2400, %v2458, %v2459
        %v2461 = vrot.slane %v2459, 4
        %v2462 = vrot.slane %v1783, 6
        %v2463 = vsel %vm2400, %v2461, %v2462
        %v2464 = vrot.slane %v2347, 6
        %v2465 = vrot.slane %v2464, 4
        %v2466 = vrot.slane %v868, 6
        %v2467 = vsel %vm2400, %v2465, %v2466
        %v2468 = vrot.slane %v2466, 4
        %v2469 = vrot.slane %v1784, 6
        %v2470 = vsel %vm2400, %v2468, %v2469
        %v2471 = vrot.slane %v2348, 6
        %v2472 = vrot.slane %v2471, 4
        %v2473 = vrot.slane %v870, 6
        %v2474 = vsel %vm2400, %v2472, %v2473
        %v2475 = vrot.slane %v2473, 4
        %v2476 = vrot.slane %v1785, 6
        %v2477 = vsel %vm2400, %v2475, %v2476
        %v2478 = vrot.slane %v2349, 6
        %v2479 = vrot.slane %v2478, 4
        %v2480 = vrot.slane %v872, 6
        %v2481 = vsel %vm2400, %v2479, %v2480
        %v2482 = vrot.slane %v2480, 4
        %v2483 = vrot.slane %v1786, 6
        %v2484 = vsel %vm2400, %v2482, %v2483
        %v2485 = vrot.slane %v2350, 6
        %v2486 = vrot.slane %v2485, 4
        %v2487 = vrot.slane %v874, 6
        %v2488 = vsel %vm2400, %v2486, %v2487
        %v2489 = vrot.slane %v2487, 4
        %v2490 = vrot.slane %v1787, 6
        %v2491 = vsel %vm2400, %v2489, %v2490
        %v2492 = vrot.slane %v2351, 6
        %v2493 = vrot.slane %v2492, 4
        %v2494 = vrot.slane %v876, 6
        %v2495 = vsel %vm2400, %v2493, %v2494
        %v2496 = vrot.slane %v2494, 4
        %v2497 = vrot.slane %v1788, 6
        %v2498 = vsel %vm2400, %v2496, %v2497
        %v2499 = vrot.slane %v2352, 6
        %v2500 = vrot.slane %v2499, 4
        %v2501 = vrot.slane %v878, 6
        %v2502 = vsel %vm2400, %v2500, %v2501
        %v2503 = vrot.slane %v2501, 4
        %v2504 = vrot.slane %v1789, 6
        %v2505 = vsel %vm2400, %v2503, %v2504
        %v2506 = vrot.slane %v2353, 6
        %v2507 = vrot.slane %v2506, 4
        %v2508 = vrot.slane %v880, 6
        %v2509 = vsel %vm2400, %v2507, %v2508
        %v2510 = vrot.slane %v2508, 4
        %v2511 = vrot.slane %v1790, 6
        %v2512 = vsel %vm2400, %v2510, %v2511
        %v2513 = vrot.slane %v2354, 6
        %v2514 = vrot.slane %v2513, 4
        %v2515 = vrot.slane %v882, 6
        %v2516 = vsel %vm2400, %v2514, %v2515
        %v2517 = vrot.slane %v2515, 4
        %v2518 = vrot.slane %v1791, 6
        %v2519 = vsel %vm2400, %v2517, %v2518
        %v2520 = vrot.slane %v2355, 6
        %v2521 = vrot.slane %v2520, 4
        %v2522 = vrot.slane %v884, 6
        %v2523 = vsel %vm2400, %v2521, %v2522
        %v2524 = vrot.slane %v2522, 4
        %v2525 = vrot.slane %v1792, 6
        %v2526 = vsel %vm2400, %v2524, %v2525
        %v2527 = vrot.slane %v2356, 6
        %v2528 = vrot.slane %v2527, 4
        %v2529 = vrot.slane %v886, 6
        %v2530 = vsel %vm2400, %v2528, %v2529
        %v2531 = vrot.slane %v2529, 4
        %v2532 = vrot.slane %v1793, 6
        %v2533 = vsel %vm2400, %v2531, %v2532
        %v2534 = vrot.slane %v2357, 6
        %v2535 = vrot.slane %v2534, 4
        %v2536 = vrot.slane %v888, 6
        %v2537 = vsel %vm2400, %v2535, %v2536
        %v2538 = vrot.slane %v2536, 4
        %v2539 = vrot.slane %v1794, 6
        %v2540 = vsel %vm2400, %v2538, %v2539
        %v2581 = vmax.bf16 %v2298, %v2404
        %v2582 = vmax.bf16 %v2299, %v2407
        %v2583 = vmax.bf16 %v2300, %v2411
        %v2584 = vmax.bf16 %v2301, %v2414
        %v2585 = vmax.bf16 %v2302, %v2418
        %v2586 = vmax.bf16 %v2303, %v2421
        %v2587 = vmax.bf16 %v2304, %v2425
        %v2588 = vmax.bf16 %v2305, %v2428
        %v2589 = vmax.bf16 %v2306, %v2432
        %v2590 = vmax.bf16 %v2307, %v2435
        %v2591 = vmax.bf16 %v2308, %v2439
        %v2592 = vmax.bf16 %v2309, %v2442
        %v2593 = vmax.bf16 %v2310, %v2446
        %v2594 = vmax.bf16 %v2311, %v2449
        %v2595 = vmax.bf16 %v2312, %v2453
        %v2596 = vmax.bf16 %v2313, %v2456
        %v2597 = vmax.bf16 %v2314, %v2460
        %v2598 = vmax.bf16 %v2315, %v2463
        %v2599 = vmax.bf16 %v2316, %v2467
        %v2600 = vmax.bf16 %v2317, %v2470
        %v2601 = vmax.bf16 %v2318, %v2474
        %v2602 = vmax.bf16 %v2319, %v2477
        %v2603 = vmax.bf16 %v2320, %v2481
        %v2604 = vmax.bf16 %v2321, %v2484
        %v2605 = vmax.bf16 %v2322, %v2488
        %v2606 = vmax.bf16 %v2323, %v2491
        %v2607 = vmax.bf16 %v2324, %v2495
        %v2608 = vmax.bf16 %v2325, %v2498
        %v2609 = vmax.bf16 %v2326, %v2502
        %v2610 = vmax.bf16 %v2327, %v2505
        %v2611 = vmax.bf16 %v2328, %v2509
        %v2612 = vmax.bf16 %v2329, %v2512
        %v2613 = vmax.bf16 %v2330, %v2516
        %v2614 = vmax.bf16 %v2331, %v2519
        %v2615 = vmax.bf16 %v2332, %v2523
        %v2616 = vmax.bf16 %v2333, %v2526
        %v2617 = vmax.bf16 %v2334, %v2530
        %v2618 = vmax.bf16 %v2335, %v2533
        %v2619 = vmax.bf16 %v2336, %v2537
        %v2620 = vmax.bf16 %v2337, %v2540
        %v2661 = vunpack.c.l.b16 %v2581
        %v2662 = vunpack.c.l.b16 %v2582
        %v2663 = vunpack.c.l.b16 %v2583
        %v2664 = vunpack.c.l.b16 %v2584
        %v2665 = vunpack.c.l.b16 %v2585
        %v2666 = vunpack.c.l.b16 %v2586
        %v2667 = vunpack.c.l.b16 %v2587
        %v2668 = vunpack.c.l.b16 %v2588
        %v2669 = vunpack.c.l.b16 %v2589
        %v2670 = vunpack.c.l.b16 %v2590
        %v2671 = vunpack.c.l.b16 %v2591
        %v2672 = vunpack.c.l.b16 %v2592
        %v2673 = vunpack.c.l.b16 %v2593
        %v2674 = vunpack.c.l.b16 %v2594
        %v2675 = vunpack.c.l.b16 %v2595
        %v2676 = vunpack.c.l.b16 %v2596
        %v2677 = vunpack.c.l.b16 %v2597
        %v2678 = vunpack.c.l.b16 %v2598
        %v2679 = vunpack.c.l.b16 %v2599
        %v2680 = vunpack.c.l.b16 %v2600
        %v2681 = vunpack.c.l.b16 %v2601
        %v2682 = vunpack.c.l.b16 %v2602
        %v2683 = vunpack.c.l.b16 %v2603
        %v2684 = vunpack.c.l.b16 %v2604
        %v2685 = vunpack.c.l.b16 %v2605
        %v2686 = vunpack.c.l.b16 %v2606
        %v2687 = vunpack.c.l.b16 %v2607
        %v2688 = vunpack.c.l.b16 %v2608
        %v2689 = vunpack.c.l.b16 %v2609
        %v2690 = vunpack.c.l.b16 %v2610
        %v2691 = vunpack.c.l.b16 %v2611
        %v2692 = vunpack.c.l.b16 %v2612
        %v2693 = vunpack.c.l.b16 %v2613
        %v2694 = vunpack.c.l.b16 %v2614
        %v2695 = vunpack.c.l.b16 %v2615
        %v2696 = vunpack.c.l.b16 %v2616
        %v2697 = vunpack.c.l.b16 %v2617
        %v2698 = vunpack.c.l.b16 %v2618
        %v2699 = vunpack.c.l.b16 %v2619
        %v2700 = vunpack.c.l.b16 %v2620
        %v2701 = vpack.c.b16 %v2662, %v2661
        %v2702 = vpack.c.b16 %v2664, %v2663
        %v2703 = vpack.c.b16 %v2666, %v2665
        %v2704 = vpack.c.b16 %v2668, %v2667
        %v2705 = vpack.c.b16 %v2670, %v2669
        %v2706 = vpack.c.b16 %v2672, %v2671
        %v2707 = vpack.c.b16 %v2674, %v2673
        %v2708 = vpack.c.b16 %v2676, %v2675
        %v2709 = vpack.c.b16 %v2678, %v2677
        %v2710 = vpack.c.b16 %v2680, %v2679
        %v2711 = vpack.c.b16 %v2682, %v2681
        %v2712 = vpack.c.b16 %v2684, %v2683
        %v2713 = vpack.c.b16 %v2686, %v2685
        %v2714 = vpack.c.b16 %v2688, %v2687
        %v2715 = vpack.c.b16 %v2690, %v2689
        %v2716 = vpack.c.b16 %v2692, %v2691
        %v2717 = vpack.c.b16 %v2694, %v2693
        %v2718 = vpack.c.b16 %v2696, %v2695
        %v2719 = vpack.c.b16 %v2698, %v2697
        %v2720 = vpack.c.b16 %v2700, %v2699
        %2741 = vst [vmem:[#allocation3] sm:$0xff] %v2701
        %2742 = vst [vmem:[#allocation3 + $0x8] sm:$0xff] %v2702
        %2743 = vst [vmem:[#allocation3 + $0x10] sm:$0xff] %v2703
        %2744 = vst [vmem:[#allocation3 + $0x18] sm:$0xff] %v2704
        %2745 = vst [vmem:[#allocation3 + $0x20] sm:$0xff] %v2705
        %2746 = vst [vmem:[#allocation3 + $0x28] sm:$0xff] %v2706
        %2747 = vst [vmem:[#allocation3 + $0x30] sm:$0xff] %v2707
        %2748 = vst [vmem:[#allocation3 + $0x38] sm:$0xff] %v2708
        %2749 = vst [vmem:[#allocation3 + $0x40] sm:$0xff] %v2709
        %2750 = vst [vmem:[#allocation3 + $0x48] sm:$0xff] %v2710
        %2751 = vst [vmem:[#allocation3 + $0x50] sm:$0xff] %v2711
        %2752 = vst [vmem:[#allocation3 + $0x58] sm:$0xff] %v2712
        %2753 = vst [vmem:[#allocation3 + $0x60] sm:$0xff] %v2713
        %2754 = vst [vmem:[#allocation3 + $0x68] sm:$0xff] %v2714
        %2755 = vst [vmem:[#allocation3 + $0x70] sm:$0xff] %v2715
        %2756 = vst [vmem:[#allocation3 + $0x78] sm:$0xff] %v2716
        %2757 = vst [vmem:[#allocation3 + $0x80] sm:$0xff] %v2717
        %2758 = vst [vmem:[#allocation3 + $0x88] sm:$0xff] %v2718
        %2759 = vst [vmem:[#allocation3 + $0x90] sm:$0xff] %v2719
        %2760 = vst [vmem:[#allocation3 + $0x98] sm:$0xff] %v2720
        %v2761 = vld [vmem:[#allocation3] sm:$0xff]
        %v2762 = vld [vmem:[#allocation3 + $0x8] sm:$0xff]
        %v2763 = vld [vmem:[#allocation3 + $0x10] sm:$0xff]
        %v2764 = vld [vmem:[#allocation3 + $0x18] sm:$0xff]
        %v2765 = vld [vmem:[#allocation3 + $0x20] sm:$0xff]
        %v2766 = vld [vmem:[#allocation3 + $0x28] sm:$0xff]
        %v2767 = vld [vmem:[#allocation3 + $0x30] sm:$0xff]
        %v2768 = vld [vmem:[#allocation3 + $0x38] sm:$0xff]
        %v2769 = vld [vmem:[#allocation3 + $0x40] sm:$0xff]
        %v2770 = vld [vmem:[#allocation3 + $0x48] sm:$0xff]
        %v2771 = vld [vmem:[#allocation3 + $0x50] sm:$0xff]
        %v2772 = vld [vmem:[#allocation3 + $0x58] sm:$0xff]
        %v2773 = vld [vmem:[#allocation3 + $0x60] sm:$0xff]
        %v2774 = vld [vmem:[#allocation3 + $0x68] sm:$0xff]
        %v2775 = vld [vmem:[#allocation3 + $0x70] sm:$0xff]
        %v2776 = vld [vmem:[#allocation3 + $0x78] sm:$0xff]
        %s2777 = scalar_lea.vmem [#allocation3], 8
        %v2778 = vld [vmem:[%s2777] sm:$0xff]
        %v2779 = vld [vmem:[%s2777 + $0x8] sm:$0xff]
        %v2780 = vld [vmem:[%s2777 + $0x10] sm:$0xff]
        %v2781 = vld [vmem:[%s2777 + $0x18] sm:$0xff]
        %v2782 = vld [vmem:[%s2777 + $0x20] sm:$0xff]
        %v2783 = vld [vmem:[%s2777 + $0x28] sm:$0xff]
        %v2784 = vld [vmem:[%s2777 + $0x30] sm:$0xff]
        %v2785 = vld [vmem:[%s2777 + $0x38] sm:$0xff]
        %v2786 = vld [vmem:[%s2777 + $0x40] sm:$0xff]
        %v2787 = vld [vmem:[%s2777 + $0x48] sm:$0xff]
        %v2788 = vld [vmem:[%s2777 + $0x50] sm:$0xff]
        %v2789 = vld [vmem:[%s2777 + $0x58] sm:$0xff]
        %v2790 = vld [vmem:[%s2777 + $0x60] sm:$0xff]
        %v2791 = vld [vmem:[%s2777 + $0x68] sm:$0xff]
        %v2792 = vld [vmem:[%s2777 + $0x70] sm:$0xff]
        %v2793 = vld [vmem:[%s2777 + $0x78] sm:$0xff]
        %v2794 = vmax.bf16 %v2761, %v2778
        %v2795 = vmax.bf16 %v2762, %v2779
        %v2796 = vmax.bf16 %v2763, %v2780
        %v2797 = vmax.bf16 %v2764, %v2781
        %v2798 = vmax.bf16 %v2765, %v2782
        %v2799 = vmax.bf16 %v2766, %v2783
        %v2800 = vmax.bf16 %v2767, %v2784
        %v2801 = vmax.bf16 %v2768, %v2785
        %v2802 = vmax.bf16 %v2769, %v2786
        %v2803 = vmax.bf16 %v2770, %v2787
        %v2804 = vmax.bf16 %v2771, %v2788
        %v2805 = vmax.bf16 %v2772, %v2789
        %v2806 = vmax.bf16 %v2773, %v2790
        %v2807 = vmax.bf16 %v2774, %v2791
        %v2808 = vmax.bf16 %v2775, %v2792
        %v2809 = vmax.bf16 %v2776, %v2793
        %s2810 = scalar_lea.vmem [#allocation3], 16
        %v2811 = vld [vmem:[%s2810] sm:$0xff]
        %v2812 = vld [vmem:[%s2810 + $0x8] sm:$0xff]
        %v2813 = vld [vmem:[%s2810 + $0x10] sm:$0xff]
        %v2814 = vld [vmem:[%s2810 + $0x18] sm:$0xff]
        %v2815 = vld [vmem:[%s2810 + $0x20] sm:$0xff]
        %v2816 = vld [vmem:[%s2810 + $0x28] sm:$0xff]
        %v2817 = vld [vmem:[%s2810 + $0x30] sm:$0xff]
        %v2818 = vld [vmem:[%s2810 + $0x38] sm:$0xff]
        %v2819 = vld [vmem:[%s2810 + $0x40] sm:$0xff]
        %v2820 = vld [vmem:[%s2810 + $0x48] sm:$0xff]
        %v2821 = vld [vmem:[%s2810 + $0x50] sm:$0xff]
        %v2822 = vld [vmem:[%s2810 + $0x58] sm:$0xff]
        %v2823 = vld [vmem:[%s2810 + $0x60] sm:$0xff]
        %v2824 = vld [vmem:[%s2810 + $0x68] sm:$0xff]
        %v2825 = vld [vmem:[%s2810 + $0x70] sm:$0xff]
        %v2826 = vld [vmem:[%s2810 + $0x78] sm:$0xff]
        %v2827 = vmax.bf16 %v2794, %v2811
        %v2828 = vmax.bf16 %v2795, %v2812
        %v2829 = vmax.bf16 %v2796, %v2813
        %v2830 = vmax.bf16 %v2797, %v2814
        %v2831 = vmax.bf16 %v2798, %v2815
        %v2832 = vmax.bf16 %v2799, %v2816
        %v2833 = vmax.bf16 %v2800, %v2817
        %v2834 = vmax.bf16 %v2801, %v2818
        %v2835 = vmax.bf16 %v2802, %v2819
        %v2836 = vmax.bf16 %v2803, %v2820
        %v2837 = vmax.bf16 %v2804, %v2821
        %v2838 = vmax.bf16 %v2805, %v2822
        %v2839 = vmax.bf16 %v2806, %v2823
        %v2840 = vmax.bf16 %v2807, %v2824
        %v2841 = vmax.bf16 %v2808, %v2825
        %v2842 = vmax.bf16 %v2809, %v2826
        %s2843 = scalar_lea.vmem [#allocation3], 24
        %v2844 = vld [vmem:[%s2843] sm:$0xff]
        %v2845 = vld [vmem:[%s2843 + $0x8] sm:$0xff]
        %v2846 = vld [vmem:[%s2843 + $0x10] sm:$0xff]
        %v2847 = vld [vmem:[%s2843 + $0x18] sm:$0xff]
        %v2848 = vld [vmem:[%s2843 + $0x20] sm:$0xff]
        %v2849 = vld [vmem:[%s2843 + $0x28] sm:$0xff]
        %v2850 = vld [vmem:[%s2843 + $0x30] sm:$0xff]
        %v2851 = vld [vmem:[%s2843 + $0x38] sm:$0xff]
        %v2852 = vld [vmem:[%s2843 + $0x40] sm:$0xff]
        %v2853 = vld [vmem:[%s2843 + $0x48] sm:$0xff]
        %v2854 = vld [vmem:[%s2843 + $0x50] sm:$0xff]
        %v2855 = vld [vmem:[%s2843 + $0x58] sm:$0xff]
        %v2856 = vld [vmem:[%s2843 + $0x60] sm:$0xff]
        %v2857 = vld [vmem:[%s2843 + $0x68] sm:$0xff]
        %v2858 = vld [vmem:[%s2843 + $0x70] sm:$0xff]
        %v2859 = vld [vmem:[%s2843 + $0x78] sm:$0xff]
        %v2860 = vmax.bf16 %v2827, %v2844
        %v2861 = vmax.bf16 %v2828, %v2845
        %v2862 = vmax.bf16 %v2829, %v2846
        %v2863 = vmax.bf16 %v2830, %v2847
        %v2864 = vmax.bf16 %v2831, %v2848
        %v2865 = vmax.bf16 %v2832, %v2849
        %v2866 = vmax.bf16 %v2833, %v2850
        %v2867 = vmax.bf16 %v2834, %v2851
        %v2868 = vmax.bf16 %v2835, %v2852
        %v2869 = vmax.bf16 %v2836, %v2853
        %v2870 = vmax.bf16 %v2837, %v2854
        %v2871 = vmax.bf16 %v2838, %v2855
        %v2872 = vmax.bf16 %v2839, %v2856
        %v2873 = vmax.bf16 %v2840, %v2857
        %v2874 = vmax.bf16 %v2841, %v2858
        %v2875 = vmax.bf16 %v2842, %v2859
        %s2876 = scalar_lea.vmem [#allocation3], 32
        %v2877 = vld [vmem:[%s2876] sm:$0xff]
        %v2878 = vld [vmem:[%s2876 + $0x8] sm:$0xff]
        %v2879 = vld [vmem:[%s2876 + $0x10] sm:$0xff]
        %v2880 = vld [vmem:[%s2876 + $0x18] sm:$0xff]
        %v2881 = vld [vmem:[%s2876 + $0x20] sm:$0xff]
        %v2882 = vld [vmem:[%s2876 + $0x28] sm:$0xff]
        %v2883 = vld [vmem:[%s2876 + $0x30] sm:$0xff]
        %v2884 = vld [vmem:[%s2876 + $0x38] sm:$0xff]
        %v2885 = vld [vmem:[%s2876 + $0x40] sm:$0xff]
        %v2886 = vld [vmem:[%s2876 + $0x48] sm:$0xff]
        %v2887 = vld [vmem:[%s2876 + $0x50] sm:$0xff]
        %v2888 = vld [vmem:[%s2876 + $0x58] sm:$0xff]
        %v2889 = vld [vmem:[%s2876 + $0x60] sm:$0xff]
        %v2890 = vld [vmem:[%s2876 + $0x68] sm:$0xff]
        %v2891 = vld [vmem:[%s2876 + $0x70] sm:$0xff]
        %v2892 = vld [vmem:[%s2876 + $0x78] sm:$0xff]
        %v2893 = vmax.bf16 %v2860, %v2877
        %v2894 = vmax.bf16 %v2861, %v2878
        %v2895 = vmax.bf16 %v2862, %v2879
        %v2896 = vmax.bf16 %v2863, %v2880
        %v2897 = vmax.bf16 %v2864, %v2881
        %v2898 = vmax.bf16 %v2865, %v2882
        %v2899 = vmax.bf16 %v2866, %v2883
        %v2900 = vmax.bf16 %v2867, %v2884
        %v2901 = vmax.bf16 %v2868, %v2885
        %v2902 = vmax.bf16 %v2869, %v2886
        %v2903 = vmax.bf16 %v2870, %v2887
        %v2904 = vmax.bf16 %v2871, %v2888
        %v2905 = vmax.bf16 %v2872, %v2889
        %v2906 = vmax.bf16 %v2873, %v2890
        %v2907 = vmax.bf16 %v2874, %v2891
        %v2908 = vmax.bf16 %v2875, %v2892
        %v2925 = vunpack.c.l.b16 %v2893
        %v2926 = vunpack.c.h.b16 %v2893
        %v2927 = vunpack.c.l.b16 %v2894
        %v2928 = vunpack.c.h.b16 %v2894
        %v2929 = vunpack.c.l.b16 %v2895
        %v2930 = vunpack.c.h.b16 %v2895
        %v2931 = vunpack.c.l.b16 %v2896
        %v2932 = vunpack.c.h.b16 %v2896
        %v2933 = vunpack.c.l.b16 %v2897
        %v2934 = vunpack.c.h.b16 %v2897
        %v2935 = vunpack.c.l.b16 %v2898
        %v2936 = vunpack.c.h.b16 %v2898
        %v2937 = vunpack.c.l.b16 %v2899
        %v2938 = vunpack.c.h.b16 %v2899
        %v2939 = vunpack.c.l.b16 %v2900
        %v2940 = vunpack.c.h.b16 %v2900
        %v2941 = vunpack.c.l.b16 %v2901
        %v2942 = vunpack.c.h.b16 %v2901
        %v2943 = vunpack.c.l.b16 %v2902
        %v2944 = vunpack.c.h.b16 %v2902
        %v2945 = vunpack.c.l.b16 %v2903
        %v2946 = vunpack.c.h.b16 %v2903
        %v2947 = vunpack.c.l.b16 %v2904
        %v2948 = vunpack.c.h.b16 %v2904
        %v2949 = vunpack.c.l.b16 %v2905
        %v2950 = vunpack.c.h.b16 %v2905
        %v2951 = vunpack.c.l.b16 %v2906
        %v2952 = vunpack.c.h.b16 %v2906
        %v2953 = vunpack.c.l.b16 %v2907
        %v2954 = vunpack.c.h.b16 %v2907
        %v2955 = vunpack.c.l.b16 %v2908
        %v2956 = vunpack.c.h.b16 %v2908
        %v2957 = vpack.c.b16 %v2925, %v2925
        %v2958 = vpack.c.b16 %v2926, %v2926
        %v2959 = vpack.c.b16 %v2927, %v2927
        %v2960 = vpack.c.b16 %v2928, %v2928
        %v2961 = vpack.c.b16 %v2929, %v2929
        %v2962 = vpack.c.b16 %v2930, %v2930
        %v2963 = vpack.c.b16 %v2931, %v2931
        %v2964 = vpack.c.b16 %v2932, %v2932
        %v2965 = vpack.c.b16 %v2933, %v2933
        %v2966 = vpack.c.b16 %v2934, %v2934
        %v2967 = vpack.c.b16 %v2935, %v2935
        %v2968 = vpack.c.b16 %v2936, %v2936
        %v2969 = vpack.c.b16 %v2937, %v2937
        %v2970 = vpack.c.b16 %v2938, %v2938
        %v2971 = vpack.c.b16 %v2939, %v2939
        %v2972 = vpack.c.b16 %v2940, %v2940
        %v2973 = vpack.c.b16 %v2941, %v2941
        %v2974 = vpack.c.b16 %v2942, %v2942
        %v2975 = vpack.c.b16 %v2943, %v2943
        %v2976 = vpack.c.b16 %v2944, %v2944
        %v2977 = vpack.c.b16 %v2945, %v2945
        %v2978 = vpack.c.b16 %v2946, %v2946
        %v2979 = vpack.c.b16 %v2947, %v2947
        %v2980 = vpack.c.b16 %v2948, %v2948
        %v2981 = vpack.c.b16 %v2949, %v2949
        %v2982 = vpack.c.b16 %v2950, %v2950
        %v2983 = vpack.c.b16 %v2951, %v2951
        %v2984 = vpack.c.b16 %v2952, %v2952
        %v2985 = vpack.c.b16 %v2953, %v2953
        %v2986 = vpack.c.b16 %v2954, %v2954
        %v2987 = vpack.c.b16 %v2955, %v2955
        %v2988 = vpack.c.b16 %v2956, %v2956
        %v2989 = vrot.slane %v2957, 7
        %v2990 = vrot.slane %v2989, 4
        %v2991 = vrot.slane %v2958, 7
        %v2992 = vsel %vm545, %v2990, %v2991
        %v2993 = vrot.slane %v2991, 4
        %v2994 = vrot.slane %v2959, 7
        %v2995 = vrot.slane %v2994, 4
        %v2996 = vrot.slane %v2960, 7
        %v2997 = vsel %vm545, %v2995, %v2996
        %v2998 = vrot.slane %v2996, 4
        %v2999 = vrot.slane %v2961, 7
        %v3000 = vrot.slane %v2999, 4
        %v3001 = vrot.slane %v2962, 7
        %v3002 = vsel %vm545, %v3000, %v3001
        %v3003 = vrot.slane %v3001, 4
        %v3004 = vrot.slane %v2963, 7
        %v3005 = vrot.slane %v3004, 4
        %v3006 = vrot.slane %v2964, 7
        %v3007 = vsel %vm545, %v3005, %v3006
        %v3008 = vrot.slane %v3006, 4
        %v3009 = vrot.slane %v2965, 7
        %v3010 = vrot.slane %v3009, 4
        %v3011 = vrot.slane %v2966, 7
        %v3012 = vsel %vm545, %v3010, %v3011
        %v3013 = vrot.slane %v3011, 4
        %v3014 = vrot.slane %v2967, 7
        %v3015 = vrot.slane %v3014, 4
        %v3016 = vrot.slane %v2968, 7
        %v3017 = vsel %vm545, %v3015, %v3016
        %v3018 = vrot.slane %v3016, 4
        %v3019 = vrot.slane %v2969, 7
        %v3020 = vrot.slane %v3019, 4
        %v3021 = vrot.slane %v2970, 7
        %v3022 = vsel %vm545, %v3020, %v3021
        %v3023 = vrot.slane %v3021, 4
        %v3024 = vrot.slane %v2971, 7
        %v3025 = vrot.slane %v3024, 4
        %v3026 = vrot.slane %v2972, 7
        %v3027 = vsel %vm545, %v3025, %v3026
        %v3028 = vrot.slane %v3026, 4
        %v3029 = vrot.slane %v2973, 7
        %v3030 = vrot.slane %v3029, 4
        %v3031 = vrot.slane %v2974, 7
        %v3032 = vsel %vm545, %v3030, %v3031
        %v3033 = vrot.slane %v3031, 4
        %v3034 = vrot.slane %v2975, 7
        %v3035 = vrot.slane %v3034, 4
        %v3036 = vrot.slane %v2976, 7
        %v3037 = vsel %vm545, %v3035, %v3036
        %v3038 = vrot.slane %v3036, 4
        %v3039 = vrot.slane %v2977, 7
        %v3040 = vrot.slane %v3039, 4
        %v3041 = vrot.slane %v2978, 7
        %v3042 = vsel %vm545, %v3040, %v3041
        %v3043 = vrot.slane %v3041, 4
        %v3044 = vrot.slane %v2979, 7
        %v3045 = vrot.slane %v3044, 4
        %v3046 = vrot.slane %v2980, 7
        %v3047 = vsel %vm545, %v3045, %v3046
        %v3048 = vrot.slane %v3046, 4
        %v3049 = vrot.slane %v2981, 7
        %v3050 = vrot.slane %v3049, 4
        %v3051 = vrot.slane %v2982, 7
        %v3052 = vsel %vm545, %v3050, %v3051
        %v3053 = vrot.slane %v3051, 4
        %v3054 = vrot.slane %v2983, 7
        %v3055 = vrot.slane %v3054, 4
        %v3056 = vrot.slane %v2984, 7
        %v3057 = vsel %vm545, %v3055, %v3056
        %v3058 = vrot.slane %v3056, 4
        %v3059 = vrot.slane %v2985, 7
        %v3060 = vrot.slane %v3059, 4
        %v3061 = vrot.slane %v2986, 7
        %v3062 = vsel %vm545, %v3060, %v3061
        %v3063 = vrot.slane %v3061, 4
        %v3064 = vrot.slane %v2987, 7
        %v3065 = vrot.slane %v3064, 4
        %v3066 = vrot.slane %v2988, 7
        %v3067 = vsel %vm545, %v3065, %v3066
        %v3068 = vrot.slane %v3066, 4
        %3117 = vst [vmem:[#allocation2] sm:$0xe] %v2989
        %3118 = vst [vmem:[#allocation2 + $0x4] sm:$0xf] %v2992
        %3119 = vst [vmem:[#allocation2 + $0x8] sm:$0x1] %v2993
        %3120 = vst [vmem:[#allocation2 + $0xc] sm:$0xe] %v2994
        %3121 = vst [vmem:[#allocation2 + $0x10] sm:$0xf] %v2997
        %3122 = vst [vmem:[#allocation2 + $0x14] sm:$0x1] %v2998
        %3123 = vst [vmem:[#allocation2 + $0x18] sm:$0xe] %v2999
        %3124 = vst [vmem:[#allocation2 + $0x1c] sm:$0xf] %v3002
        %3125 = vst [vmem:[#allocation2 + $0x20] sm:$0x1] %v3003
        %3126 = vst [vmem:[#allocation2 + $0x24] sm:$0xe] %v3004
        %3127 = vst [vmem:[#allocation2 + $0x28] sm:$0xf] %v3007
        %3128 = vst [vmem:[#allocation2 + $0x2c] sm:$0x1] %v3008
        %3129 = vst [vmem:[#allocation2 + $0x30] sm:$0xe] %v3009
        %3130 = vst [vmem:[#allocation2 + $0x34] sm:$0xf] %v3012
        %3131 = vst [vmem:[#allocation2 + $0x38] sm:$0x1] %v3013
        %3132 = vst [vmem:[#allocation2 + $0x3c] sm:$0xe] %v3014
        %3133 = vst [vmem:[#allocation2 + $0x40] sm:$0xf] %v3017
        %3134 = vst [vmem:[#allocation2 + $0x44] sm:$0x1] %v3018
        %3135 = vst [vmem:[#allocation2 + $0x48] sm:$0xe] %v3019
        %3136 = vst [vmem:[#allocation2 + $0x4c] sm:$0xf] %v3022
        %3137 = vst [vmem:[#allocation2 + $0x50] sm:$0x1] %v3023
        %3138 = vst [vmem:[#allocation2 + $0x54] sm:$0xe] %v3024
        %3139 = vst [vmem:[#allocation2 + $0x58] sm:$0xf] %v3027
        %3140 = vst [vmem:[#allocation2 + $0x5c] sm:$0x1] %v3028
        %3141 = vst [vmem:[#allocation2 + $0x60] sm:$0xe] %v3029
        %3142 = vst [vmem:[#allocation2 + $0x64] sm:$0xf] %v3032
        %3143 = vst [vmem:[#allocation2 + $0x68] sm:$0x1] %v3033
        %3144 = vst [vmem:[#allocation2 + $0x6c] sm:$0xe] %v3034
        %3145 = vst [vmem:[#allocation2 + $0x70] sm:$0xf] %v3037
        %3146 = vst [vmem:[#allocation2 + $0x74] sm:$0x1] %v3038
        %3147 = vst [vmem:[#allocation2 + $0x78] sm:$0xe] %v3039
        %3148 = vst [vmem:[#allocation2 + $0x7c] sm:$0xf] %v3042
        %3149 = vst [vmem:[#allocation2 + $0x80] sm:$0x1] %v3043
        %3150 = vst [vmem:[#allocation2 + $0x84] sm:$0xe] %v3044
        %3151 = vst [vmem:[#allocation2 + $0x88] sm:$0xf] %v3047
        %3152 = vst [vmem:[#allocation2 + $0x8c] sm:$0x1] %v3048
        %3153 = vst [vmem:[#allocation2 + $0x90] sm:$0xe] %v3049
        %3154 = vst [vmem:[#allocation2 + $0x94] sm:$0xf] %v3052
        %3155 = vst [vmem:[#allocation2 + $0x98] sm:$0x1] %v3053
        %3156 = vst [vmem:[#allocation2 + $0x9c] sm:$0xe] %v3054
        %3157 = vst [vmem:[#allocation2 + $0xa0] sm:$0xf] %v3057
        %3158 = vst [vmem:[#allocation2 + $0xa4] sm:$0x1] %v3058
        %3159 = vst [vmem:[#allocation2 + $0xa8] sm:$0xe] %v3059
        %3160 = vst [vmem:[#allocation2 + $0xac] sm:$0xf] %v3062
        %3161 = vst [vmem:[#allocation2 + $0xb0] sm:$0x1] %v3063
        %3162 = vst [vmem:[#allocation2 + $0xb4] sm:$0xe] %v3064
        %3163 = vst [vmem:[#allocation2 + $0xb8] sm:$0xf] %v3067
        %3164 = vst [vmem:[#allocation2 + $0xbc] sm:$0x1] %v3068
        %3165 = vst [vmem:[#allocation2] sm:$0x1] 0
        %3166 = vst [vmem:[#allocation2 + $0xc] sm:$0x1] 0
        %3167 = vst [vmem:[#allocation2 + $0x18] sm:$0x1] 0
        %3168 = vst [vmem:[#allocation2 + $0x24] sm:$0x1] 0
        %3169 = vst [vmem:[#allocation2 + $0x30] sm:$0x1] 0
        %3170 = vst [vmem:[#allocation2 + $0x3c] sm:$0x1] 0
        %3171 = vst [vmem:[#allocation2 + $0x48] sm:$0x1] 0
        %3172 = vst [vmem:[#allocation2 + $0x54] sm:$0x1] 0
        %3173 = vst [vmem:[#allocation2 + $0x60] sm:$0x1] 0
        %3174 = vst [vmem:[#allocation2 + $0x6c] sm:$0x1] 0
        %3175 = vst [vmem:[#allocation2 + $0x78] sm:$0x1] 0
        %3176 = vst [vmem:[#allocation2 + $0x84] sm:$0x1] 0
        %3177 = vst [vmem:[#allocation2 + $0x90] sm:$0x1] 0
        %3178 = vst [vmem:[#allocation2 + $0x9c] sm:$0x1] 0
        %3179 = vst [vmem:[#allocation2 + $0xa8] sm:$0x1] 0
        %3180 = vst [vmem:[#allocation2 + $0xb4] sm:$0x1] 0
        %3181 = vst [vmem:[#allocation2 + $0x8] sm:$0x2] 0
        %3182 = vst [vmem:[#allocation2 + $0x14] sm:$0x2] 0
        %3183 = vst [vmem:[#allocation2 + $0x20] sm:$0x2] 0
        %3184 = vst [vmem:[#allocation2 + $0x2c] sm:$0x2] 0
        %3185 = vst [vmem:[#allocation2 + $0x38] sm:$0x2] 0
        %3186 = vst [vmem:[#allocation2 + $0x44] sm:$0x2] 0
        %3187 = vst [vmem:[#allocation2 + $0x50] sm:$0x2] 0
        %3188 = vst [vmem:[#allocation2 + $0x5c] sm:$0x2] 0
        %3189 = vst [vmem:[#allocation2 + $0x68] sm:$0x2] 0
        %3190 = vst [vmem:[#allocation2 + $0x74] sm:$0x2] 0
        %3191 = vst [vmem:[#allocation2 + $0x80] sm:$0x2] 0
        %3192 = vst [vmem:[#allocation2 + $0x8c] sm:$0x2] 0
        %3193 = vst [vmem:[#allocation2 + $0x98] sm:$0x2] 0
        %3194 = vst [vmem:[#allocation2 + $0xa4] sm:$0x2] 0
        %3195 = vst [vmem:[#allocation2 + $0xb0] sm:$0x2] 0
        %3196 = vst [vmem:[#allocation2 + $0xbc] sm:$0x2] 0
        // Predicated region
        $region45: #{tpu_custom_call.1} parent=27 // pred_check
          %p3197 = pneg %p194
        $region46: #{tpu_custom_call.1} parent=27 // pred_check_branch
          %3199 = sbr.rel (%p3197) target = $region48
        $region47: #{tpu_custom_call.1} parent=27 // pred_region
          %3200 = vst [vmem:[#allocation2] sm:$0xe] 0
          %3201 = vst [vmem:[#allocation2 + $0x4] sm:$0xf] 0
          %3202 = vst [vmem:[#allocation2 + $0x8] sm:$0x1] 0
          %3203 = vst [vmem:[#allocation2 + $0xc] sm:$0xe] 0
          %3204 = vst [vmem:[#allocation2 + $0x10] sm:$0xf] 0
          %3205 = vst [vmem:[#allocation2 + $0x14] sm:$0x1] 0
          %3206 = vst [vmem:[#allocation2 + $0x18] sm:$0xe] 0
          %3207 = vst [vmem:[#allocation2 + $0x1c] sm:$0xf] 0
          %3208 = vst [vmem:[#allocation2 + $0x20] sm:$0x1] 0
          %3209 = vst [vmem:[#allocation2 + $0x24] sm:$0xe] 0
          %3210 = vst [vmem:[#allocation2 + $0x28] sm:$0xf] 0
          %3211 = vst [vmem:[#allocation2 + $0x2c] sm:$0x1] 0
        $region48: #{tpu_custom_call.1} parent=27 // pred_fallthru
          _
        // Predicated region
        $region49: #{tpu_custom_call.1} parent=27 // pred_check
          %p3212 = pneg %p195
        $region50: #{tpu_custom_call.1} parent=27 // pred_check_branch
          %3214 = sbr.rel (%p3212) target = $region52
        $region51: #{tpu_custom_call.1} parent=27 // pred_region
          %s3215 = scalar_lea.vmem [#allocation2], 144
          %3216 = vst [vmem:[%s3215] sm:$0xe] 0
          %3217 = vst [vmem:[%s3215 + $0x4] sm:$0xf] 0
          %3218 = vst [vmem:[%s3215 + $0x8] sm:$0x1] 0
          %3219 = vst [vmem:[%s3215 + $0xc] sm:$0xe] 0
          %3220 = vst [vmem:[%s3215 + $0x10] sm:$0xf] 0
          %3221 = vst [vmem:[%s3215 + $0x14] sm:$0x1] 0
          %3222 = vst [vmem:[%s3215 + $0x18] sm:$0xe] 0
          %3223 = vst [vmem:[%s3215 + $0x1c] sm:$0xf] 0
          %3224 = vst [vmem:[%s3215 + $0x20] sm:$0x1] 0
          %3225 = vst [vmem:[%s3215 + $0x24] sm:$0xe] 0
          %3226 = vst [vmem:[%s3215 + $0x28] sm:$0xf] 0
          %3227 = vst [vmem:[%s3215 + $0x2c] sm:$0x1] 0
        $region52: #{tpu_custom_call.1} parent=27 // pred_fallthru
          _
        %v3228 = vld [vmem:[#allocation2] sm:$0xf]
        %v3229 = vld [vmem:[#allocation2 + $0x4] sm:$0xf]
        %v3230 = vld [vmem:[#allocation2 + $0x8] sm:$0x1]
        %v3231 = vld [vmem:[#allocation2 + $0xc] sm:$0xf]
        %v3232 = vld [vmem:[#allocation2 + $0x10] sm:$0xf]
        %v3233 = vld [vmem:[#allocation2 + $0x14] sm:$0x1]
        %v3234 = vld [vmem:[#allocation2 + $0x18] sm:$0xf]
        %v3235 = vld [vmem:[#allocation2 + $0x1c] sm:$0xf]
        %v3236 = vld [vmem:[#allocation2 + $0x20] sm:$0x1]
        %v3237 = vld [vmem:[#allocation2 + $0x24] sm:$0xf]
        %v3238 = vld [vmem:[#allocation2 + $0x28] sm:$0xf]
        %v3239 = vld [vmem:[#allocation2 + $0x2c] sm:$0x1]
        %v3240 = vld [vmem:[#allocation2 + $0x30] sm:$0xf]
        %v3241 = vld [vmem:[#allocation2 + $0x34] sm:$0xf]
        %v3242 = vld [vmem:[#allocation2 + $0x38] sm:$0x1]
        %v3243 = vld [vmem:[#allocation2 + $0x3c] sm:$0xf]
        %v3244 = vld [vmem:[#allocation2 + $0x40] sm:$0xf]
        %v3245 = vld [vmem:[#allocation2 + $0x44] sm:$0x1]
        %v3246 = vld [vmem:[#allocation2 + $0x48] sm:$0xf]
        %v3247 = vld [vmem:[#allocation2 + $0x4c] sm:$0xf]
        %v3248 = vld [vmem:[#allocation2 + $0x50] sm:$0x1]
        %v3249 = vld [vmem:[#allocation2 + $0x54] sm:$0xf]
        %v3250 = vld [vmem:[#allocation2 + $0x58] sm:$0xf]
        %v3251 = vld [vmem:[#allocation2 + $0x5c] sm:$0x1]
        %v3252 = vld [vmem:[#allocation2 + $0x60] sm:$0xf]
        %v3253 = vld [vmem:[#allocation2 + $0x64] sm:$0xf]
        %v3254 = vld [vmem:[#allocation2 + $0x68] sm:$0x1]
        %v3255 = vld [vmem:[#allocation2 + $0x6c] sm:$0xf]
        %v3256 = vld [vmem:[#allocation2 + $0x70] sm:$0xf]
        %v3257 = vld [vmem:[#allocation2 + $0x74] sm:$0x1]
        %v3258 = vld [vmem:[#allocation2 + $0x78] sm:$0xf]
        %v3259 = vld [vmem:[#allocation2 + $0x7c] sm:$0xf]
        %v3260 = vld [vmem:[#allocation2 + $0x80] sm:$0x1]
        %v3261 = vld [vmem:[#allocation2 + $0x84] sm:$0xf]
        %v3262 = vld [vmem:[#allocation2 + $0x88] sm:$0xf]
        %v3263 = vld [vmem:[#allocation2 + $0x8c] sm:$0x1]
        %v3264 = vld [vmem:[#allocation2 + $0x90] sm:$0xf]
        %v3265 = vld [vmem:[#allocation2 + $0x94] sm:$0xf]
        %v3266 = vld [vmem:[#allocation2 + $0x98] sm:$0x1]
        %v3267 = vld [vmem:[#allocation2 + $0x9c] sm:$0xf]
        %v3268 = vld [vmem:[#allocation2 + $0xa0] sm:$0xf]
        %v3269 = vld [vmem:[#allocation2 + $0xa4] sm:$0x1]
        %v3270 = vld [vmem:[#allocation2] sm:$0xe]
        %v3271 = vld [vmem:[#allocation2 + $0xc] sm:$0xe]
        %v3272 = vld [vmem:[#allocation2 + $0x18] sm:$0xe]
        %v3273 = vld [vmem:[#allocation2 + $0x24] sm:$0xe]
        %v3274 = vld [vmem:[#allocation2 + $0x30] sm:$0xe]
        %v3275 = vld [vmem:[#allocation2 + $0x3c] sm:$0xe]
        %v3276 = vld [vmem:[#allocation2 + $0x48] sm:$0xe]
        %v3277 = vld [vmem:[#allocation2 + $0x54] sm:$0xe]
        %v3278 = vld [vmem:[#allocation2 + $0x60] sm:$0xe]
        %v3279 = vld [vmem:[#allocation2 + $0x6c] sm:$0xe]
        %v3280 = vld [vmem:[#allocation2 + $0x78] sm:$0xe]
        %v3281 = vld [vmem:[#allocation2 + $0x84] sm:$0xe]
        %v3282 = vld [vmem:[#allocation2 + $0x90] sm:$0xe]
        %v3283 = vld [vmem:[#allocation2 + $0x9c] sm:$0xe]
        %v3284 = vld [vmem:[#allocation2 + $0x8] sm:$0x3]
        %v3285 = vld [vmem:[#allocation2 + $0x14] sm:$0x3]
        %v3286 = vld [vmem:[#allocation2 + $0x20] sm:$0x3]
        %v3287 = vld [vmem:[#allocation2 + $0x2c] sm:$0x3]
        %v3288 = vld [vmem:[#allocation2 + $0x38] sm:$0x3]
        %v3289 = vld [vmem:[#allocation2 + $0x44] sm:$0x3]
        %v3290 = vld [vmem:[#allocation2 + $0x50] sm:$0x3]
        %v3291 = vld [vmem:[#allocation2 + $0x5c] sm:$0x3]
        %v3292 = vld [vmem:[#allocation2 + $0x68] sm:$0x3]
        %v3293 = vld [vmem:[#allocation2 + $0x74] sm:$0x3]
        %v3294 = vld [vmem:[#allocation2 + $0x80] sm:$0x3]
        %v3295 = vld [vmem:[#allocation2 + $0x8c] sm:$0x3]
        %v3296 = vld [vmem:[#allocation2 + $0x98] sm:$0x3]
        %v3297 = vld [vmem:[#allocation2 + $0xa4] sm:$0x3]
        %s3298 = scalar_lea.vmem [#allocation2], 12
        %v3299 = vld [vmem:[%s3298] sm:$0xf]
        %v3300 = vld [vmem:[%s3298 + $0x4] sm:$0xf]
        %v3301 = vld [vmem:[%s3298 + $0x8] sm:$0x1]
        %v3302 = vld [vmem:[%s3298 + $0xc] sm:$0xf]
        %v3303 = vld [vmem:[%s3298 + $0x10] sm:$0xf]
        %v3304 = vld [vmem:[%s3298 + $0x14] sm:$0x1]
        %v3305 = vld [vmem:[%s3298 + $0x18] sm:$0xf]
        %v3306 = vld [vmem:[%s3298 + $0x1c] sm:$0xf]
        %v3307 = vld [vmem:[%s3298 + $0x20] sm:$0x1]
        %v3308 = vld [vmem:[%s3298 + $0x24] sm:$0xf]
        %v3309 = vld [vmem:[%s3298 + $0x28] sm:$0xf]
        %v3310 = vld [vmem:[%s3298 + $0x2c] sm:$0x1]
        %v3311 = vld [vmem:[%s3298 + $0x30] sm:$0xf]
        %v3312 = vld [vmem:[%s3298 + $0x34] sm:$0xf]
        %v3313 = vld [vmem:[%s3298 + $0x38] sm:$0x1]
        %v3314 = vld [vmem:[%s3298 + $0x3c] sm:$0xf]
        %v3315 = vld [vmem:[%s3298 + $0x40] sm:$0xf]
        %v3316 = vld [vmem:[%s3298 + $0x44] sm:$0x1]
        %v3317 = vld [vmem:[%s3298 + $0x48] sm:$0xf]
        %v3318 = vld [vmem:[%s3298 + $0x4c] sm:$0xf]
        %v3319 = vld [vmem:[%s3298 + $0x50] sm:$0x1]
        %v3320 = vld [vmem:[%s3298 + $0x54] sm:$0xf]
        %v3321 = vld [vmem:[%s3298 + $0x58] sm:$0xf]
        %v3322 = vld [vmem:[%s3298 + $0x5c] sm:$0x1]
        %v3323 = vld [vmem:[%s3298 + $0x60] sm:$0xf]
        %v3324 = vld [vmem:[%s3298 + $0x64] sm:$0xf]
        %v3325 = vld [vmem:[%s3298 + $0x68] sm:$0x1]
        %v3326 = vld [vmem:[%s3298 + $0x6c] sm:$0xf]
        %v3327 = vld [vmem:[%s3298 + $0x70] sm:$0xf]
        %v3328 = vld [vmem:[%s3298 + $0x74] sm:$0x1]
        %v3329 = vld [vmem:[%s3298 + $0x78] sm:$0xf]
        %v3330 = vld [vmem:[%s3298 + $0x7c] sm:$0xf]
        %v3331 = vld [vmem:[%s3298 + $0x80] sm:$0x1]
        %v3332 = vld [vmem:[%s3298 + $0x84] sm:$0xf]
        %v3333 = vld [vmem:[%s3298 + $0x88] sm:$0xf]
        %v3334 = vld [vmem:[%s3298 + $0x8c] sm:$0x1]
        %v3335 = vld [vmem:[%s3298 + $0x90] sm:$0xf]
        %v3336 = vld [vmem:[%s3298 + $0x94] sm:$0xf]
        %v3337 = vld [vmem:[%s3298 + $0x98] sm:$0x1]
        %v3338 = vld [vmem:[%s3298 + $0x9c] sm:$0xf]
        %v3339 = vld [vmem:[%s3298 + $0xa0] sm:$0xf]
        %v3340 = vld [vmem:[%s3298 + $0xa4] sm:$0x1]
        %v3341 = vld [vmem:[%s3298] sm:$0xe]
        %v3342 = vld [vmem:[%s3298 + $0xc] sm:$0xe]
        %v3343 = vld [vmem:[%s3298 + $0x18] sm:$0xe]
        %v3344 = vld [vmem:[%s3298 + $0x24] sm:$0xe]
        %v3345 = vld [vmem:[%s3298 + $0x30] sm:$0xe]
        %v3346 = vld [vmem:[%s3298 + $0x3c] sm:$0xe]
        %v3347 = vld [vmem:[%s3298 + $0x48] sm:$0xe]
        %v3348 = vld [vmem:[%s3298 + $0x54] sm:$0xe]
        %v3349 = vld [vmem:[%s3298 + $0x60] sm:$0xe]
        %v3350 = vld [vmem:[%s3298 + $0x6c] sm:$0xe]
        %v3351 = vld [vmem:[%s3298 + $0x78] sm:$0xe]
        %v3352 = vld [vmem:[%s3298 + $0x84] sm:$0xe]
        %v3353 = vld [vmem:[%s3298 + $0x90] sm:$0xe]
        %v3354 = vld [vmem:[%s3298 + $0x9c] sm:$0xe]
        %v3355 = vld [vmem:[%s3298 + $0x8] sm:$0x3]
        %v3356 = vld [vmem:[%s3298 + $0x14] sm:$0x3]
        %v3357 = vld [vmem:[%s3298 + $0x20] sm:$0x3]
        %v3358 = vld [vmem:[%s3298 + $0x2c] sm:$0x3]
        %v3359 = vld [vmem:[%s3298 + $0x38] sm:$0x3]
        %v3360 = vld [vmem:[%s3298 + $0x44] sm:$0x3]
        %v3361 = vld [vmem:[%s3298 + $0x50] sm:$0x3]
        %v3362 = vld [vmem:[%s3298 + $0x5c] sm:$0x3]
        %v3363 = vld [vmem:[%s3298 + $0x68] sm:$0x3]
        %v3364 = vld [vmem:[%s3298 + $0x74] sm:$0x3]
        %v3365 = vld [vmem:[%s3298 + $0x80] sm:$0x3]
        %v3366 = vld [vmem:[%s3298 + $0x8c] sm:$0x3]
        %v3367 = vld [vmem:[%s3298 + $0x98] sm:$0x3]
        %v3368 = vld [vmem:[%s3298 + $0xa4] sm:$0x3]
        %s3369 = scalar_lea.vmem [#allocation2], 24
        %v3370 = vld [vmem:[%s3369] sm:$0xf]
        %v3371 = vld [vmem:[%s3369 + $0x4] sm:$0xf]
        %v3372 = vld [vmem:[%s3369 + $0x8] sm:$0x1]
        %v3373 = vld [vmem:[%s3369 + $0xc] sm:$0xf]
        %v3374 = vld [vmem:[%s3369 + $0x10] sm:$0xf]
        %v3375 = vld [vmem:[%s3369 + $0x14] sm:$0x1]
        %v3376 = vld [vmem:[%s3369 + $0x18] sm:$0xf]
        %v3377 = vld [vmem:[%s3369 + $0x1c] sm:$0xf]
        %v3378 = vld [vmem:[%s3369 + $0x20] sm:$0x1]
        %v3379 = vld [vmem:[%s3369 + $0x24] sm:$0xf]
        %v3380 = vld [vmem:[%s3369 + $0x28] sm:$0xf]
        %v3381 = vld [vmem:[%s3369 + $0x2c] sm:$0x1]
        %v3382 = vld [vmem:[%s3369 + $0x30] sm:$0xf]
        %v3383 = vld [vmem:[%s3369 + $0x34] sm:$0xf]
        %v3384 = vld [vmem:[%s3369 + $0x38] sm:$0x1]
        %v3385 = vld [vmem:[%s3369 + $0x3c] sm:$0xf]
        %v3386 = vld [vmem:[%s3369 + $0x40] sm:$0xf]
        %v3387 = vld [vmem:[%s3369 + $0x44] sm:$0x1]
        %v3388 = vld [vmem:[%s3369 + $0x48] sm:$0xf]
        %v3389 = vld [vmem:[%s3369 + $0x4c] sm:$0xf]
        %v3390 = vld [vmem:[%s3369 + $0x50] sm:$0x1]
        %v3391 = vld [vmem:[%s3369 + $0x54] sm:$0xf]
        %v3392 = vld [vmem:[%s3369 + $0x58] sm:$0xf]
        %v3393 = vld [vmem:[%s3369 + $0x5c] sm:$0x1]
        %v3394 = vld [vmem:[%s3369 + $0x60] sm:$0xf]
        %v3395 = vld [vmem:[%s3369 + $0x64] sm:$0xf]
        %v3396 = vld [vmem:[%s3369 + $0x68] sm:$0x1]
        %v3397 = vld [vmem:[%s3369 + $0x6c] sm:$0xf]
        %v3398 = vld [vmem:[%s3369 + $0x70] sm:$0xf]
        %v3399 = vld [vmem:[%s3369 + $0x74] sm:$0x1]
        %v3400 = vld [vmem:[%s3369 + $0x78] sm:$0xf]
        %v3401 = vld [vmem:[%s3369 + $0x7c] sm:$0xf]
        %v3402 = vld [vmem:[%s3369 + $0x80] sm:$0x1]
        %v3403 = vld [vmem:[%s3369 + $0x84] sm:$0xf]
        %v3404 = vld [vmem:[%s3369 + $0x88] sm:$0xf]
        %v3405 = vld [vmem:[%s3369 + $0x8c] sm:$0x1]
        %v3406 = vld [vmem:[%s3369 + $0x90] sm:$0xf]
        %v3407 = vld [vmem:[%s3369 + $0x94] sm:$0xf]
        %v3408 = vld [vmem:[%s3369 + $0x98] sm:$0x1]
        %v3409 = vld [vmem:[%s3369 + $0x9c] sm:$0xf]
        %v3410 = vld [vmem:[%s3369 + $0xa0] sm:$0xf]
        %v3411 = vld [vmem:[%s3369 + $0xa4] sm:$0x1]
        %v3412 = vld [vmem:[%s3369] sm:$0xe]
        %v3413 = vld [vmem:[%s3369 + $0xc] sm:$0xe]
        %v3414 = vld [vmem:[%s3369 + $0x18] sm:$0xe]
        %v3415 = vld [vmem:[%s3369 + $0x24] sm:$0xe]
        %v3416 = vld [vmem:[%s3369 + $0x30] sm:$0xe]
        %v3417 = vld [vmem:[%s3369 + $0x3c] sm:$0xe]
        %v3418 = vld [vmem:[%s3369 + $0x48] sm:$0xe]
        %v3419 = vld [vmem:[%s3369 + $0x54] sm:$0xe]
        %v3420 = vld [vmem:[%s3369 + $0x60] sm:$0xe]
        %v3421 = vld [vmem:[%s3369 + $0x6c] sm:$0xe]
        %v3422 = vld [vmem:[%s3369 + $0x78] sm:$0xe]
        %v3423 = vld [vmem:[%s3369 + $0x84] sm:$0xe]
        %v3424 = vld [vmem:[%s3369 + $0x90] sm:$0xe]
        %v3425 = vld [vmem:[%s3369 + $0x9c] sm:$0xe]
        %v3426 = vld [vmem:[%s3369 + $0x8] sm:$0x3]
        %v3427 = vld [vmem:[%s3369 + $0x14] sm:$0x3]
        %v3428 = vld [vmem:[%s3369 + $0x20] sm:$0x3]
        %v3429 = vld [vmem:[%s3369 + $0x2c] sm:$0x3]
        %v3430 = vld [vmem:[%s3369 + $0x38] sm:$0x3]
        %v3431 = vld [vmem:[%s3369 + $0x44] sm:$0x3]
        %v3432 = vld [vmem:[%s3369 + $0x50] sm:$0x3]
        %v3433 = vld [vmem:[%s3369 + $0x5c] sm:$0x3]
        %v3434 = vld [vmem:[%s3369 + $0x68] sm:$0x3]
        %v3435 = vld [vmem:[%s3369 + $0x74] sm:$0x3]
        %v3436 = vld [vmem:[%s3369 + $0x80] sm:$0x3]
        %v3437 = vld [vmem:[%s3369 + $0x8c] sm:$0x3]
        %v3438 = vld [vmem:[%s3369 + $0x98] sm:$0x3]
        %v3439 = vld [vmem:[%s3369 + $0xa4] sm:$0x3]
        %v3482 = vunpack.c.l.b16 %v3228
        %v3483 = vunpack.c.l.b16 %v3229
        %v3484 = vunpack.c.l.b16 %v3230
        %v3485 = vunpack.c.l.b16 %v3231
        %v3486 = vunpack.c.l.b16 %v3232
        %v3487 = vunpack.c.l.b16 %v3233
        %v3488 = vunpack.c.l.b16 %v3234
        %v3489 = vunpack.c.l.b16 %v3235
        %v3490 = vunpack.c.l.b16 %v3236
        %v3491 = vunpack.c.l.b16 %v3237
        %v3492 = vunpack.c.l.b16 %v3238
        %v3493 = vunpack.c.l.b16 %v3239
        %v3494 = vunpack.c.l.b16 %v3240
        %v3495 = vunpack.c.l.b16 %v3241
        %v3496 = vunpack.c.l.b16 %v3242
        %v3497 = vunpack.c.l.b16 %v3243
        %v3498 = vunpack.c.l.b16 %v3244
        %v3499 = vunpack.c.l.b16 %v3245
        %v3500 = vunpack.c.l.b16 %v3246
        %v3501 = vunpack.c.l.b16 %v3247
        %v3502 = vunpack.c.l.b16 %v3248
        %v3503 = vunpack.c.l.b16 %v3249
        %v3504 = vunpack.c.l.b16 %v3250
        %v3505 = vunpack.c.l.b16 %v3251
        %v3506 = vunpack.c.l.b16 %v3252
        %v3507 = vunpack.c.l.b16 %v3253
        %v3508 = vunpack.c.l.b16 %v3254
        %v3509 = vunpack.c.l.b16 %v3255
        %v3510 = vunpack.c.l.b16 %v3256
        %v3511 = vunpack.c.l.b16 %v3257
        %v3512 = vunpack.c.l.b16 %v3258
        %v3513 = vunpack.c.l.b16 %v3259
        %v3514 = vunpack.c.l.b16 %v3260
        %v3515 = vunpack.c.l.b16 %v3261
        %v3516 = vunpack.c.l.b16 %v3262
        %v3517 = vunpack.c.l.b16 %v3263
        %v3518 = vunpack.c.l.b16 %v3264
        %v3519 = vunpack.c.l.b16 %v3265
        %v3520 = vunpack.c.l.b16 %v3266
        %v3521 = vunpack.c.l.b16 %v3267
        %v3522 = vunpack.c.l.b16 %v3268
        %v3523 = vunpack.c.l.b16 %v3269
        %v3524 = vpack.c.b16 %v3483, %v3482
        %v3525 = vpack.c.b16 %v3484, %v3484
        %v3526 = vpack.c.b16 %v3486, %v3485
        %v3527 = vpack.c.b16 %v3487, %v3487
        %v3528 = vpack.c.b16 %v3489, %v3488
        %v3529 = vpack.c.b16 %v3490, %v3490
        %v3530 = vpack.c.b16 %v3492, %v3491
        %v3531 = vpack.c.b16 %v3493, %v3493
        %v3532 = vpack.c.b16 %v3495, %v3494
        %v3533 = vpack.c.b16 %v3496, %v3496
        %v3534 = vpack.c.b16 %v3498, %v3497
        %v3535 = vpack.c.b16 %v3499, %v3499
        %v3536 = vpack.c.b16 %v3501, %v3500
        %v3537 = vpack.c.b16 %v3502, %v3502
        %v3538 = vpack.c.b16 %v3504, %v3503
        %v3539 = vpack.c.b16 %v3505, %v3505
        %v3540 = vpack.c.b16 %v3507, %v3506
        %v3541 = vpack.c.b16 %v3508, %v3508
        %v3542 = vpack.c.b16 %v3510, %v3509
        %v3543 = vpack.c.b16 %v3511, %v3511
        %v3544 = vpack.c.b16 %v3513, %v3512
        %v3545 = vpack.c.b16 %v3514, %v3514
        %v3546 = vpack.c.b16 %v3516, %v3515
        %v3547 = vpack.c.b16 %v3517, %v3517
        %v3548 = vpack.c.b16 %v3519, %v3518
        %v3549 = vpack.c.b16 %v3520, %v3520
        %v3550 = vpack.c.b16 %v3522, %v3521
        %v3551 = vpack.c.b16 %v3523, %v3523
        %v3566 = vunpack.c.l.b16 %v3270
        %v3567 = vunpack.c.l.b16 %v3271
        %v3568 = vunpack.c.l.b16 %v3272
        %v3569 = vunpack.c.l.b16 %v3273
        %v3570 = vunpack.c.l.b16 %v3274
        %v3571 = vunpack.c.l.b16 %v3275
        %v3572 = vunpack.c.l.b16 %v3276
        %v3573 = vunpack.c.l.b16 %v3277
        %v3574 = vunpack.c.l.b16 %v3278
        %v3575 = vunpack.c.l.b16 %v3279
        %v3576 = vunpack.c.l.b16 %v3280
        %v3577 = vunpack.c.l.b16 %v3281
        %v3578 = vunpack.c.l.b16 %v3282
        %v3579 = vunpack.c.l.b16 %v3283
        %v3580 = vpack.c.b16 %v3483, %v3566
        %v3581 = vpack.c.b16 %v3486, %v3567
        %v3582 = vpack.c.b16 %v3489, %v3568
        %v3583 = vpack.c.b16 %v3492, %v3569
        %v3584 = vpack.c.b16 %v3495, %v3570
        %v3585 = vpack.c.b16 %v3498, %v3571
        %v3586 = vpack.c.b16 %v3501, %v3572
        %v3587 = vpack.c.b16 %v3504, %v3573
        %v3588 = vpack.c.b16 %v3507, %v3574
        %v3589 = vpack.c.b16 %v3510, %v3575
        %v3590 = vpack.c.b16 %v3513, %v3576
        %v3591 = vpack.c.b16 %v3516, %v3577
        %v3592 = vpack.c.b16 %v3519, %v3578
        %v3593 = vpack.c.b16 %v3522, %v3579
        %vm3594 = vsmask.f32 7424
        %v3596 = vshrl.u32 %v3580, 16
        %v3598 = vshll.u32 %v3580, 16
        %v3600 = vrot.slane %v3598, 1
        %v3601 = vor.u32 %v3596, %v3600
        %v3603 = vshll.u32 %v3525, 16
        %v3605 = vrot.slane %v3603, 1
        %v3606 = vsel %vm3594, %v3601, %v3605
        %v3607 = vshrl.u32 %v3525, 16
        %v3610 = vshrl.u32 %v3581, 16
        %v3612 = vshll.u32 %v3581, 16
        %v3614 = vrot.slane %v3612, 1
        %v3615 = vor.u32 %v3610, %v3614
        %v3617 = vshll.u32 %v3527, 16
        %v3619 = vrot.slane %v3617, 1
        %v3620 = vsel %vm3594, %v3615, %v3619
        %v3621 = vshrl.u32 %v3527, 16
        %v3624 = vshrl.u32 %v3582, 16
        %v3626 = vshll.u32 %v3582, 16
        %v3628 = vrot.slane %v3626, 1
        %v3629 = vor.u32 %v3624, %v3628
        %v3631 = vshll.u32 %v3529, 16
        %v3633 = vrot.slane %v3631, 1
        %v3634 = vsel %vm3594, %v3629, %v3633
        %v3635 = vshrl.u32 %v3529, 16
        %v3638 = vshrl.u32 %v3583, 16
        %v3640 = vshll.u32 %v3583, 16
        %v3642 = vrot.slane %v3640, 1
        %v3643 = vor.u32 %v3638, %v3642
        %v3645 = vshll.u32 %v3531, 16
        %v3647 = vrot.slane %v3645, 1
        %v3648 = vsel %vm3594, %v3643, %v3647
        %v3649 = vshrl.u32 %v3531, 16
        %v3652 = vshrl.u32 %v3584, 16
        %v3654 = vshll.u32 %v3584, 16
        %v3656 = vrot.slane %v3654, 1
        %v3657 = vor.u32 %v3652, %v3656
        %v3659 = vshll.u32 %v3533, 16
        %v3661 = vrot.slane %v3659, 1
        %v3662 = vsel %vm3594, %v3657, %v3661
        %v3663 = vshrl.u32 %v3533, 16
        %v3666 = vshrl.u32 %v3585, 16
        %v3668 = vshll.u32 %v3585, 16
        %v3670 = vrot.slane %v3668, 1
        %v3671 = vor.u32 %v3666, %v3670
        %v3673 = vshll.u32 %v3535, 16
        %v3675 = vrot.slane %v3673, 1
        %v3676 = vsel %vm3594, %v3671, %v3675
        %v3677 = vshrl.u32 %v3535, 16
        %v3680 = vshrl.u32 %v3586, 16
        %v3682 = vshll.u32 %v3586, 16
        %v3684 = vrot.slane %v3682, 1
        %v3685 = vor.u32 %v3680, %v3684
        %v3687 = vshll.u32 %v3537, 16
        %v3689 = vrot.slane %v3687, 1
        %v3690 = vsel %vm3594, %v3685, %v3689
        %v3691 = vshrl.u32 %v3537, 16
        %v3694 = vshrl.u32 %v3587, 16
        %v3696 = vshll.u32 %v3587, 16
        %v3698 = vrot.slane %v3696, 1
        %v3699 = vor.u32 %v3694, %v3698
        %v3701 = vshll.u32 %v3539, 16
        %v3703 = vrot.slane %v3701, 1
        %v3704 = vsel %vm3594, %v3699, %v3703
        %v3705 = vshrl.u32 %v3539, 16
        %v3708 = vshrl.u32 %v3588, 16
        %v3710 = vshll.u32 %v3588, 16
        %v3712 = vrot.slane %v3710, 1
        %v3713 = vor.u32 %v3708, %v3712
        %v3715 = vshll.u32 %v3541, 16
        %v3717 = vrot.slane %v3715, 1
        %v3718 = vsel %vm3594, %v3713, %v3717
        %v3719 = vshrl.u32 %v3541, 16
        %v3722 = vshrl.u32 %v3589, 16
        %v3724 = vshll.u32 %v3589, 16
        %v3726 = vrot.slane %v3724, 1
        %v3727 = vor.u32 %v3722, %v3726
        %v3729 = vshll.u32 %v3543, 16
        %v3731 = vrot.slane %v3729, 1
        %v3732 = vsel %vm3594, %v3727, %v3731
        %v3733 = vshrl.u32 %v3543, 16
        %v3736 = vshrl.u32 %v3590, 16
        %v3738 = vshll.u32 %v3590, 16
        %v3740 = vrot.slane %v3738, 1
        %v3741 = vor.u32 %v3736, %v3740
        %v3743 = vshll.u32 %v3545, 16
        %v3745 = vrot.slane %v3743, 1
        %v3746 = vsel %vm3594, %v3741, %v3745
        %v3747 = vshrl.u32 %v3545, 16
        %v3750 = vshrl.u32 %v3591, 16
        %v3752 = vshll.u32 %v3591, 16
        %v3754 = vrot.slane %v3752, 1
        %v3755 = vor.u32 %v3750, %v3754
        %v3757 = vshll.u32 %v3547, 16
        %v3759 = vrot.slane %v3757, 1
        %v3760 = vsel %vm3594, %v3755, %v3759
        %v3761 = vshrl.u32 %v3547, 16
        %v3764 = vshrl.u32 %v3592, 16
        %v3766 = vshll.u32 %v3592, 16
        %v3768 = vrot.slane %v3766, 1
        %v3769 = vor.u32 %v3764, %v3768
        %v3771 = vshll.u32 %v3549, 16
        %v3773 = vrot.slane %v3771, 1
        %v3774 = vsel %vm3594, %v3769, %v3773
        %v3775 = vshrl.u32 %v3549, 16
        %v3778 = vshrl.u32 %v3593, 16
        %v3780 = vshll.u32 %v3593, 16
        %v3782 = vrot.slane %v3780, 1
        %v3783 = vor.u32 %v3778, %v3782
        %v3785 = vshll.u32 %v3551, 16
        %v3787 = vrot.slane %v3785, 1
        %v3788 = vsel %vm3594, %v3783, %v3787
        %v3789 = vshrl.u32 %v3551, 16
        %v3805 = vunpack.c.l.b16 %v3284
        %v3806 = vunpack.c.l.b16 %v3285
        %v3807 = vunpack.c.l.b16 %v3286
        %v3808 = vunpack.c.l.b16 %v3287
        %v3809 = vunpack.c.l.b16 %v3288
        %v3810 = vunpack.c.l.b16 %v3289
        %v3811 = vunpack.c.l.b16 %v3290
        %v3812 = vunpack.c.l.b16 %v3291
        %v3813 = vunpack.c.l.b16 %v3292
        %v3814 = vunpack.c.l.b16 %v3293
        %v3815 = vunpack.c.l.b16 %v3294
        %v3816 = vunpack.c.l.b16 %v3295
        %v3817 = vunpack.c.l.b16 %v3296
        %v3818 = vunpack.c.l.b16 %v3297
        %v3819 = vpack.c.b16 %v3805, %v3805
        %v3820 = vpack.c.b16 %v3806, %v3806
        %v3821 = vpack.c.b16 %v3807, %v3807
        %v3822 = vpack.c.b16 %v3808, %v3808
        %v3823 = vpack.c.b16 %v3809, %v3809
        %v3824 = vpack.c.b16 %v3810, %v3810
        %v3825 = vpack.c.b16 %v3811, %v3811
        %v3826 = vpack.c.b16 %v3812, %v3812
        %v3827 = vpack.c.b16 %v3813, %v3813
        %v3828 = vpack.c.b16 %v3814, %v3814
        %v3829 = vpack.c.b16 %v3815, %v3815
        %v3830 = vpack.c.b16 %v3816, %v3816
        %v3831 = vpack.c.b16 %v3817, %v3817
        %v3832 = vpack.c.b16 %v3818, %v3818
        %vm3833 = vcmask 1046528
        %v3834 = vrot.slane %v3580, 1
        %v3835 = vrot.slane %v3819, 1
        %v3836 = vsel %vm3833, %v3834, %v3835
        %v3837 = vrot.slane %v3581, 1
        %v3838 = vrot.slane %v3820, 1
        %v3839 = vsel %vm3833, %v3837, %v3838
        %v3840 = vrot.slane %v3582, 1
        %v3841 = vrot.slane %v3821, 1
        %v3842 = vsel %vm3833, %v3840, %v3841
        %v3843 = vrot.slane %v3583, 1
        %v3844 = vrot.slane %v3822, 1
        %v3845 = vsel %vm3833, %v3843, %v3844
        %v3846 = vrot.slane %v3584, 1
        %v3847 = vrot.slane %v3823, 1
        %v3848 = vsel %vm3833, %v3846, %v3847
        %v3849 = vrot.slane %v3585, 1
        %v3850 = vrot.slane %v3824, 1
        %v3851 = vsel %vm3833, %v3849, %v3850
        %v3852 = vrot.slane %v3586, 1
        %v3853 = vrot.slane %v3825, 1
        %v3854 = vsel %vm3833, %v3852, %v3853
        %v3855 = vrot.slane %v3587, 1
        %v3856 = vrot.slane %v3826, 1
        %v3857 = vsel %vm3833, %v3855, %v3856
        %v3858 = vrot.slane %v3588, 1
        %v3859 = vrot.slane %v3827, 1
        %v3860 = vsel %vm3833, %v3858, %v3859
        %v3861 = vrot.slane %v3589, 1
        %v3862 = vrot.slane %v3828, 1
        %v3863 = vsel %vm3833, %v3861, %v3862
        %v3864 = vrot.slane %v3590, 1
        %v3865 = vrot.slane %v3829, 1
        %v3866 = vsel %vm3833, %v3864, %v3865
        %v3867 = vrot.slane %v3591, 1
        %v3868 = vrot.slane %v3830, 1
        %v3869 = vsel %vm3833, %v3867, %v3868
        %v3870 = vrot.slane %v3592, 1
        %v3871 = vrot.slane %v3831, 1
        %v3872 = vsel %vm3833, %v3870, %v3871
        %v3873 = vrot.slane %v3593, 1
        %v3874 = vrot.slane %v3832, 1
        %v3875 = vsel %vm3833, %v3873, %v3874
        %v3918 = vunpack.c.l.b16 %v3299
        %v3919 = vunpack.c.l.b16 %v3300
        %v3920 = vunpack.c.l.b16 %v3301
        %v3921 = vunpack.c.l.b16 %v3302
        %v3922 = vunpack.c.l.b16 %v3303
        %v3923 = vunpack.c.l.b16 %v3304
        %v3924 = vunpack.c.l.b16 %v3305
        %v3925 = vunpack.c.l.b16 %v3306
        %v3926 = vunpack.c.l.b16 %v3307
        %v3927 = vunpack.c.l.b16 %v3308
        %v3928 = vunpack.c.l.b16 %v3309
        %v3929 = vunpack.c.l.b16 %v3310
        %v3930 = vunpack.c.l.b16 %v3311
        %v3931 = vunpack.c.l.b16 %v3312
        %v3932 = vunpack.c.l.b16 %v3313
        %v3933 = vunpack.c.l.b16 %v3314
        %v3934 = vunpack.c.l.b16 %v3315
        %v3935 = vunpack.c.l.b16 %v3316
        %v3936 = vunpack.c.l.b16 %v3317
        %v3937 = vunpack.c.l.b16 %v3318
        %v3938 = vunpack.c.l.b16 %v3319
        %v3939 = vunpack.c.l.b16 %v3320
        %v3940 = vunpack.c.l.b16 %v3321
        %v3941 = vunpack.c.l.b16 %v3322
        %v3942 = vunpack.c.l.b16 %v3323
        %v3943 = vunpack.c.l.b16 %v3324
        %v3944 = vunpack.c.l.b16 %v3325
        %v3945 = vunpack.c.l.b16 %v3326
        %v3946 = vunpack.c.l.b16 %v3327
        %v3947 = vunpack.c.l.b16 %v3328
        %v3948 = vunpack.c.l.b16 %v3329
        %v3949 = vunpack.c.l.b16 %v3330
        %v3950 = vunpack.c.l.b16 %v3331
        %v3951 = vunpack.c.l.b16 %v3332
        %v3952 = vunpack.c.l.b16 %v3333
        %v3953 = vunpack.c.l.b16 %v3334
        %v3954 = vunpack.c.l.b16 %v3335
        %v3955 = vunpack.c.l.b16 %v3336
        %v3956 = vunpack.c.l.b16 %v3337
        %v3957 = vunpack.c.l.b16 %v3338
        %v3958 = vunpack.c.l.b16 %v3339
        %v3959 = vunpack.c.l.b16 %v3340
        %v3960 = vpack.c.b16 %v3919, %v3918
        %v3961 = vpack.c.b16 %v3920, %v3920
        %v3962 = vpack.c.b16 %v3922, %v3921
        %v3963 = vpack.c.b16 %v3923, %v3923
        %v3964 = vpack.c.b16 %v3925, %v3924
        %v3965 = vpack.c.b16 %v3926, %v3926
        %v3966 = vpack.c.b16 %v3928, %v3927
        %v3967 = vpack.c.b16 %v3929, %v3929
        %v3968 = vpack.c.b16 %v3931, %v3930
        %v3969 = vpack.c.b16 %v3932, %v3932
        %v3970 = vpack.c.b16 %v3934, %v3933
        %v3971 = vpack.c.b16 %v3935, %v3935
        %v3972 = vpack.c.b16 %v3937, %v3936
        %v3973 = vpack.c.b16 %v3938, %v3938
        %v3974 = vpack.c.b16 %v3940, %v3939
        %v3975 = vpack.c.b16 %v3941, %v3941
        %v3976 = vpack.c.b16 %v3943, %v3942
        %v3977 = vpack.c.b16 %v3944, %v3944
        %v3978 = vpack.c.b16 %v3946, %v3945
        %v3979 = vpack.c.b16 %v3947, %v3947
        %v3980 = vpack.c.b16 %v3949, %v3948
        %v3981 = vpack.c.b16 %v3950, %v3950
        %v3982 = vpack.c.b16 %v3952, %v3951
        %v3983 = vpack.c.b16 %v3953, %v3953
        %v3984 = vpack.c.b16 %v3955, %v3954
        %v3985 = vpack.c.b16 %v3956, %v3956
        %v3986 = vpack.c.b16 %v3958, %v3957
        %v3987 = vpack.c.b16 %v3959, %v3959
        %v4002 = vunpack.c.l.b16 %v3341
        %v4003 = vunpack.c.l.b16 %v3342
        %v4004 = vunpack.c.l.b16 %v3343
        %v4005 = vunpack.c.l.b16 %v3344
        %v4006 = vunpack.c.l.b16 %v3345
        %v4007 = vunpack.c.l.b16 %v3346
        %v4008 = vunpack.c.l.b16 %v3347
        %v4009 = vunpack.c.l.b16 %v3348
        %v4010 = vunpack.c.l.b16 %v3349
        %v4011 = vunpack.c.l.b16 %v3350
        %v4012 = vunpack.c.l.b16 %v3351
        %v4013 = vunpack.c.l.b16 %v3352
        %v4014 = vunpack.c.l.b16 %v3353
        %v4015 = vunpack.c.l.b16 %v3354
        %v4016 = vpack.c.b16 %v3919, %v4002
        %v4017 = vpack.c.b16 %v3922, %v4003
        %v4018 = vpack.c.b16 %v3925, %v4004
        %v4019 = vpack.c.b16 %v3928, %v4005
        %v4020 = vpack.c.b16 %v3931, %v4006
        %v4021 = vpack.c.b16 %v3934, %v4007
        %v4022 = vpack.c.b16 %v3937, %v4008
        %v4023 = vpack.c.b16 %v3940, %v4009
        %v4024 = vpack.c.b16 %v3943, %v4010
        %v4025 = vpack.c.b16 %v3946, %v4011
        %v4026 = vpack.c.b16 %v3949, %v4012
        %v4027 = vpack.c.b16 %v3952, %v4013
        %v4028 = vpack.c.b16 %v3955, %v4014
        %v4029 = vpack.c.b16 %v3958, %v4015
        %v4031 = vshrl.u32 %v4016, 16
        %v4033 = vshll.u32 %v4016, 16
        %v4035 = vrot.slane %v4033, 1
        %v4036 = vor.u32 %v4031, %v4035
        %v4038 = vshll.u32 %v3961, 16
        %v4040 = vrot.slane %v4038, 1
        %v4041 = vsel %vm3594, %v4036, %v4040
        %v4042 = vshrl.u32 %v3961, 16
        %v4045 = vshrl.u32 %v4017, 16
        %v4047 = vshll.u32 %v4017, 16
        %v4049 = vrot.slane %v4047, 1
        %v4050 = vor.u32 %v4045, %v4049
        %v4052 = vshll.u32 %v3963, 16
        %v4054 = vrot.slane %v4052, 1
        %v4055 = vsel %vm3594, %v4050, %v4054
        %v4056 = vshrl.u32 %v3963, 16
        %v4059 = vshrl.u32 %v4018, 16
        %v4061 = vshll.u32 %v4018, 16
        %v4063 = vrot.slane %v4061, 1
        %v4064 = vor.u32 %v4059, %v4063
        %v4066 = vshll.u32 %v3965, 16
        %v4068 = vrot.slane %v4066, 1
        %v4069 = vsel %vm3594, %v4064, %v4068
        %v4070 = vshrl.u32 %v3965, 16
        %v4073 = vshrl.u32 %v4019, 16
        %v4075 = vshll.u32 %v4019, 16
        %v4077 = vrot.slane %v4075, 1
        %v4078 = vor.u32 %v4073, %v4077
        %v4080 = vshll.u32 %v3967, 16
        %v4082 = vrot.slane %v4080, 1
        %v4083 = vsel %vm3594, %v4078, %v4082
        %v4084 = vshrl.u32 %v3967, 16
        %v4087 = vshrl.u32 %v4020, 16
        %v4089 = vshll.u32 %v4020, 16
        %v4091 = vrot.slane %v4089, 1
        %v4092 = vor.u32 %v4087, %v4091
        %v4094 = vshll.u32 %v3969, 16
        %v4096 = vrot.slane %v4094, 1
        %v4097 = vsel %vm3594, %v4092, %v4096
        %v4098 = vshrl.u32 %v3969, 16
        %v4101 = vshrl.u32 %v4021, 16
        %v4103 = vshll.u32 %v4021, 16
        %v4105 = vrot.slane %v4103, 1
        %v4106 = vor.u32 %v4101, %v4105
        %v4108 = vshll.u32 %v3971, 16
        %v4110 = vrot.slane %v4108, 1
        %v4111 = vsel %vm3594, %v4106, %v4110
        %v4112 = vshrl.u32 %v3971, 16
        %v4115 = vshrl.u32 %v4022, 16
        %v4117 = vshll.u32 %v4022, 16
        %v4119 = vrot.slane %v4117, 1
        %v4120 = vor.u32 %v4115, %v4119
        %v4122 = vshll.u32 %v3973, 16
        %v4124 = vrot.slane %v4122, 1
        %v4125 = vsel %vm3594, %v4120, %v4124
        %v4126 = vshrl.u32 %v3973, 16
        %v4129 = vshrl.u32 %v4023, 16
        %v4131 = vshll.u32 %v4023, 16
        %v4133 = vrot.slane %v4131, 1
        %v4134 = vor.u32 %v4129, %v4133
        %v4136 = vshll.u32 %v3975, 16
        %v4138 = vrot.slane %v4136, 1
        %v4139 = vsel %vm3594, %v4134, %v4138
        %v4140 = vshrl.u32 %v3975, 16
        %v4143 = vshrl.u32 %v4024, 16
        %v4145 = vshll.u32 %v4024, 16
        %v4147 = vrot.slane %v4145, 1
        %v4148 = vor.u32 %v4143, %v4147
        %v4150 = vshll.u32 %v3977, 16
        %v4152 = vrot.slane %v4150, 1
        %v4153 = vsel %vm3594, %v4148, %v4152
        %v4154 = vshrl.u32 %v3977, 16
        %v4157 = vshrl.u32 %v4025, 16
        %v4159 = vshll.u32 %v4025, 16
        %v4161 = vrot.slane %v4159, 1
        %v4162 = vor.u32 %v4157, %v4161
        %v4164 = vshll.u32 %v3979, 16
        %v4166 = vrot.slane %v4164, 1
        %v4167 = vsel %vm3594, %v4162, %v4166
        %v4168 = vshrl.u32 %v3979, 16
        %v4171 = vshrl.u32 %v4026, 16
        %v4173 = vshll.u32 %v4026, 16
        %v4175 = vrot.slane %v4173, 1
        %v4176 = vor.u32 %v4171, %v4175
        %v4178 = vshll.u32 %v3981, 16
        %v4180 = vrot.slane %v4178, 1
        %v4181 = vsel %vm3594, %v4176, %v4180
        %v4182 = vshrl.u32 %v3981, 16
        %v4185 = vshrl.u32 %v4027, 16
        %v4187 = vshll.u32 %v4027, 16
        %v4189 = vrot.slane %v4187, 1
        %v4190 = vor.u32 %v4185, %v4189
        %v4192 = vshll.u32 %v3983, 16
        %v4194 = vrot.slane %v4192, 1
        %v4195 = vsel %vm3594, %v4190, %v4194
        %v4196 = vshrl.u32 %v3983, 16
        %v4199 = vshrl.u32 %v4028, 16
        %v4201 = vshll.u32 %v4028, 16
        %v4203 = vrot.slane %v4201, 1
        %v4204 = vor.u32 %v4199, %v4203
        %v4206 = vshll.u32 %v3985, 16
        %v4208 = vrot.slane %v4206, 1
        %v4209 = vsel %vm3594, %v4204, %v4208
        %v4210 = vshrl.u32 %v3985, 16
        %v4213 = vshrl.u32 %v4029, 16
        %v4215 = vshll.u32 %v4029, 16
        %v4217 = vrot.slane %v4215, 1
        %v4218 = vor.u32 %v4213, %v4217
        %v4220 = vshll.u32 %v3987, 16
        %v4222 = vrot.slane %v4220, 1
        %v4223 = vsel %vm3594, %v4218, %v4222
        %v4224 = vshrl.u32 %v3987, 16
        %v4240 = vunpack.c.l.b16 %v3355
        %v4241 = vunpack.c.l.b16 %v3356
        %v4242 = vunpack.c.l.b16 %v3357
        %v4243 = vunpack.c.l.b16 %v3358
        %v4244 = vunpack.c.l.b16 %v3359
        %v4245 = vunpack.c.l.b16 %v3360
        %v4246 = vunpack.c.l.b16 %v3361
        %v4247 = vunpack.c.l.b16 %v3362
        %v4248 = vunpack.c.l.b16 %v3363
        %v4249 = vunpack.c.l.b16 %v3364
        %v4250 = vunpack.c.l.b16 %v3365
        %v4251 = vunpack.c.l.b16 %v3366
        %v4252 = vunpack.c.l.b16 %v3367
        %v4253 = vunpack.c.l.b16 %v3368
        %v4254 = vpack.c.b16 %v4240, %v4240
        %v4255 = vpack.c.b16 %v4241, %v4241
        %v4256 = vpack.c.b16 %v4242, %v4242
        %v4257 = vpack.c.b16 %v4243, %v4243
        %v4258 = vpack.c.b16 %v4244, %v4244
        %v4259 = vpack.c.b16 %v4245, %v4245
        %v4260 = vpack.c.b16 %v4246, %v4246
        %v4261 = vpack.c.b16 %v4247, %v4247
        %v4262 = vpack.c.b16 %v4248, %v4248
        %v4263 = vpack.c.b16 %v4249, %v4249
        %v4264 = vpack.c.b16 %v4250, %v4250
        %v4265 = vpack.c.b16 %v4251, %v4251
        %v4266 = vpack.c.b16 %v4252, %v4252
        %v4267 = vpack.c.b16 %v4253, %v4253
        %v4268 = vrot.slane %v4016, 1
        %v4269 = vrot.slane %v4254, 1
        %v4270 = vsel %vm3833, %v4268, %v4269
        %v4271 = vrot.slane %v4017, 1
        %v4272 = vrot.slane %v4255, 1
        %v4273 = vsel %vm3833, %v4271, %v4272
        %v4274 = vrot.slane %v4018, 1
        %v4275 = vrot.slane %v4256, 1
        %v4276 = vsel %vm3833, %v4274, %v4275
        %v4277 = vrot.slane %v4019, 1
        %v4278 = vrot.slane %v4257, 1
        %v4279 = vsel %vm3833, %v4277, %v4278
        %v4280 = vrot.slane %v4020, 1
        %v4281 = vrot.slane %v4258, 1
        %v4282 = vsel %vm3833, %v4280, %v4281
        %v4283 = vrot.slane %v4021, 1
        %v4284 = vrot.slane %v4259, 1
        %v4285 = vsel %vm3833, %v4283, %v4284
        %v4286 = vrot.slane %v4022, 1
        %v4287 = vrot.slane %v4260, 1
        %v4288 = vsel %vm3833, %v4286, %v4287
        %v4289 = vrot.slane %v4023, 1
        %v4290 = vrot.slane %v4261, 1
        %v4291 = vsel %vm3833, %v4289, %v4290
        %v4292 = vrot.slane %v4024, 1
        %v4293 = vrot.slane %v4262, 1
        %v4294 = vsel %vm3833, %v4292, %v4293
        %v4295 = vrot.slane %v4025, 1
        %v4296 = vrot.slane %v4263, 1
        %v4297 = vsel %vm3833, %v4295, %v4296
        %v4298 = vrot.slane %v4026, 1
        %v4299 = vrot.slane %v4264, 1
        %v4300 = vsel %vm3833, %v4298, %v4299
        %v4301 = vrot.slane %v4027, 1
        %v4302 = vrot.slane %v4265, 1
        %v4303 = vsel %vm3833, %v4301, %v4302
        %v4304 = vrot.slane %v4028, 1
        %v4305 = vrot.slane %v4266, 1
        %v4306 = vsel %vm3833, %v4304, %v4305
        %v4307 = vrot.slane %v4029, 1
        %v4308 = vrot.slane %v4267, 1
        %v4309 = vsel %vm3833, %v4307, %v4308
        %v4352 = vunpack.c.l.b16 %v3370
        %v4353 = vunpack.c.l.b16 %v3371
        %v4354 = vunpack.c.l.b16 %v3372
        %v4355 = vunpack.c.l.b16 %v3373
        %v4356 = vunpack.c.l.b16 %v3374
        %v4357 = vunpack.c.l.b16 %v3375
        %v4358 = vunpack.c.l.b16 %v3376
        %v4359 = vunpack.c.l.b16 %v3377
        %v4360 = vunpack.c.l.b16 %v3378
        %v4361 = vunpack.c.l.b16 %v3379
        %v4362 = vunpack.c.l.b16 %v3380
        %v4363 = vunpack.c.l.b16 %v3381
        %v4364 = vunpack.c.l.b16 %v3382
        %v4365 = vunpack.c.l.b16 %v3383
        %v4366 = vunpack.c.l.b16 %v3384
        %v4367 = vunpack.c.l.b16 %v3385
        %v4368 = vunpack.c.l.b16 %v3386
        %v4369 = vunpack.c.l.b16 %v3387
        %v4370 = vunpack.c.l.b16 %v3388
        %v4371 = vunpack.c.l.b16 %v3389
        %v4372 = vunpack.c.l.b16 %v3390
        %v4373 = vunpack.c.l.b16 %v3391
        %v4374 = vunpack.c.l.b16 %v3392
        %v4375 = vunpack.c.l.b16 %v3393
        %v4376 = vunpack.c.l.b16 %v3394
        %v4377 = vunpack.c.l.b16 %v3395
        %v4378 = vunpack.c.l.b16 %v3396
        %v4379 = vunpack.c.l.b16 %v3397
        %v4380 = vunpack.c.l.b16 %v3398
        %v4381 = vunpack.c.l.b16 %v3399
        %v4382 = vunpack.c.l.b16 %v3400
        %v4383 = vunpack.c.l.b16 %v3401
        %v4384 = vunpack.c.l.b16 %v3402
        %v4385 = vunpack.c.l.b16 %v3403
        %v4386 = vunpack.c.l.b16 %v3404
        %v4387 = vunpack.c.l.b16 %v3405
        %v4388 = vunpack.c.l.b16 %v3406
        %v4389 = vunpack.c.l.b16 %v3407
        %v4390 = vunpack.c.l.b16 %v3408
        %v4391 = vunpack.c.l.b16 %v3409
        %v4392 = vunpack.c.l.b16 %v3410
        %v4393 = vunpack.c.l.b16 %v3411
        %v4394 = vpack.c.b16 %v4353, %v4352
        %v4395 = vpack.c.b16 %v4354, %v4354
        %v4396 = vpack.c.b16 %v4356, %v4355
        %v4397 = vpack.c.b16 %v4357, %v4357
        %v4398 = vpack.c.b16 %v4359, %v4358
        %v4399 = vpack.c.b16 %v4360, %v4360
        %v4400 = vpack.c.b16 %v4362, %v4361
        %v4401 = vpack.c.b16 %v4363, %v4363
        %v4402 = vpack.c.b16 %v4365, %v4364
        %v4403 = vpack.c.b16 %v4366, %v4366
        %v4404 = vpack.c.b16 %v4368, %v4367
        %v4405 = vpack.c.b16 %v4369, %v4369
        %v4406 = vpack.c.b16 %v4371, %v4370
        %v4407 = vpack.c.b16 %v4372, %v4372
        %v4408 = vpack.c.b16 %v4374, %v4373
        %v4409 = vpack.c.b16 %v4375, %v4375
        %v4410 = vpack.c.b16 %v4377, %v4376
        %v4411 = vpack.c.b16 %v4378, %v4378
        %v4412 = vpack.c.b16 %v4380, %v4379
        %v4413 = vpack.c.b16 %v4381, %v4381
        %v4414 = vpack.c.b16 %v4383, %v4382
        %v4415 = vpack.c.b16 %v4384, %v4384
        %v4416 = vpack.c.b16 %v4386, %v4385
        %v4417 = vpack.c.b16 %v4387, %v4387
        %v4418 = vpack.c.b16 %v4389, %v4388
        %v4419 = vpack.c.b16 %v4390, %v4390
        %v4420 = vpack.c.b16 %v4392, %v4391
        %v4421 = vpack.c.b16 %v4393, %v4393
        %v4436 = vunpack.c.l.b16 %v3412
        %v4437 = vunpack.c.l.b16 %v3413
        %v4438 = vunpack.c.l.b16 %v3414
        %v4439 = vunpack.c.l.b16 %v3415
        %v4440 = vunpack.c.l.b16 %v3416
        %v4441 = vunpack.c.l.b16 %v3417
        %v4442 = vunpack.c.l.b16 %v3418
        %v4443 = vunpack.c.l.b16 %v3419
        %v4444 = vunpack.c.l.b16 %v3420
        %v4445 = vunpack.c.l.b16 %v3421
        %v4446 = vunpack.c.l.b16 %v3422
        %v4447 = vunpack.c.l.b16 %v3423
        %v4448 = vunpack.c.l.b16 %v3424
        %v4449 = vunpack.c.l.b16 %v3425
        %v4450 = vpack.c.b16 %v4353, %v4436
        %v4451 = vpack.c.b16 %v4356, %v4437
        %v4452 = vpack.c.b16 %v4359, %v4438
        %v4453 = vpack.c.b16 %v4362, %v4439
        %v4454 = vpack.c.b16 %v4365, %v4440
        %v4455 = vpack.c.b16 %v4368, %v4441
        %v4456 = vpack.c.b16 %v4371, %v4442
        %v4457 = vpack.c.b16 %v4374, %v4443
        %v4458 = vpack.c.b16 %v4377, %v4444
        %v4459 = vpack.c.b16 %v4380, %v4445
        %v4460 = vpack.c.b16 %v4383, %v4446
        %v4461 = vpack.c.b16 %v4386, %v4447
        %v4462 = vpack.c.b16 %v4389, %v4448
        %v4463 = vpack.c.b16 %v4392, %v4449
        %v4465 = vshrl.u32 %v4450, 16
        %v4467 = vshll.u32 %v4450, 16
        %v4469 = vrot.slane %v4467, 1
        %v4470 = vor.u32 %v4465, %v4469
        %v4472 = vshll.u32 %v4395, 16
        %v4474 = vrot.slane %v4472, 1
        %v4475 = vsel %vm3594, %v4470, %v4474
        %v4476 = vshrl.u32 %v4395, 16
        %v4479 = vshrl.u32 %v4451, 16
        %v4481 = vshll.u32 %v4451, 16
        %v4483 = vrot.slane %v4481, 1
        %v4484 = vor.u32 %v4479, %v4483
        %v4486 = vshll.u32 %v4397, 16
        %v4488 = vrot.slane %v4486, 1
        %v4489 = vsel %vm3594, %v4484, %v4488
        %v4490 = vshrl.u32 %v4397, 16
        %v4493 = vshrl.u32 %v4452, 16
        %v4495 = vshll.u32 %v4452, 16
        %v4497 = vrot.slane %v4495, 1
        %v4498 = vor.u32 %v4493, %v4497
        %v4500 = vshll.u32 %v4399, 16
        %v4502 = vrot.slane %v4500, 1
        %v4503 = vsel %vm3594, %v4498, %v4502
        %v4504 = vshrl.u32 %v4399, 16
        %v4507 = vshrl.u32 %v4453, 16
        %v4509 = vshll.u32 %v4453, 16
        %v4511 = vrot.slane %v4509, 1
        %v4512 = vor.u32 %v4507, %v4511
        %v4514 = vshll.u32 %v4401, 16
        %v4516 = vrot.slane %v4514, 1
        %v4517 = vsel %vm3594, %v4512, %v4516
        %v4518 = vshrl.u32 %v4401, 16
        %v4521 = vshrl.u32 %v4454, 16
        %v4523 = vshll.u32 %v4454, 16
        %v4525 = vrot.slane %v4523, 1
        %v4526 = vor.u32 %v4521, %v4525
        %v4528 = vshll.u32 %v4403, 16
        %v4530 = vrot.slane %v4528, 1
        %v4531 = vsel %vm3594, %v4526, %v4530
        %v4532 = vshrl.u32 %v4403, 16
        %v4535 = vshrl.u32 %v4455, 16
        %v4537 = vshll.u32 %v4455, 16
        %v4539 = vrot.slane %v4537, 1
        %v4540 = vor.u32 %v4535, %v4539
        %v4542 = vshll.u32 %v4405, 16
        %v4544 = vrot.slane %v4542, 1
        %v4545 = vsel %vm3594, %v4540, %v4544
        %v4546 = vshrl.u32 %v4405, 16
        %v4549 = vshrl.u32 %v4456, 16
        %v4551 = vshll.u32 %v4456, 16
        %v4553 = vrot.slane %v4551, 1
        %v4554 = vor.u32 %v4549, %v4553
        %v4556 = vshll.u32 %v4407, 16
        %v4558 = vrot.slane %v4556, 1
        %v4559 = vsel %vm3594, %v4554, %v4558
        %v4560 = vshrl.u32 %v4407, 16
        %v4563 = vshrl.u32 %v4457, 16
        %v4565 = vshll.u32 %v4457, 16
        %v4567 = vrot.slane %v4565, 1
        %v4568 = vor.u32 %v4563, %v4567
        %v4570 = vshll.u32 %v4409, 16
        %v4572 = vrot.slane %v4570, 1
        %v4573 = vsel %vm3594, %v4568, %v4572
        %v4574 = vshrl.u32 %v4409, 16
        %v4577 = vshrl.u32 %v4458, 16
        %v4579 = vshll.u32 %v4458, 16
        %v4581 = vrot.slane %v4579, 1
        %v4582 = vor.u32 %v4577, %v4581
        %v4584 = vshll.u32 %v4411, 16
        %v4586 = vrot.slane %v4584, 1
        %v4587 = vsel %vm3594, %v4582, %v4586
        %v4588 = vshrl.u32 %v4411, 16
        %v4591 = vshrl.u32 %v4459, 16
        %v4593 = vshll.u32 %v4459, 16
        %v4595 = vrot.slane %v4593, 1
        %v4596 = vor.u32 %v4591, %v4595
        %v4598 = vshll.u32 %v4413, 16
        %v4600 = vrot.slane %v4598, 1
        %v4601 = vsel %vm3594, %v4596, %v4600
        %v4602 = vshrl.u32 %v4413, 16
        %v4605 = vshrl.u32 %v4460, 16
        %v4607 = vshll.u32 %v4460, 16
        %v4609 = vrot.slane %v4607, 1
        %v4610 = vor.u32 %v4605, %v4609
        %v4612 = vshll.u32 %v4415, 16
        %v4614 = vrot.slane %v4612, 1
        %v4615 = vsel %vm3594, %v4610, %v4614
        %v4616 = vshrl.u32 %v4415, 16
        %v4619 = vshrl.u32 %v4461, 16
        %v4621 = vshll.u32 %v4461, 16
        %v4623 = vrot.slane %v4621, 1
        %v4624 = vor.u32 %v4619, %v4623
        %v4626 = vshll.u32 %v4417, 16
        %v4628 = vrot.slane %v4626, 1
        %v4629 = vsel %vm3594, %v4624, %v4628
        %v4630 = vshrl.u32 %v4417, 16
        %v4633 = vshrl.u32 %v4462, 16
        %v4635 = vshll.u32 %v4462, 16
        %v4637 = vrot.slane %v4635, 1
        %v4638 = vor.u32 %v4633, %v4637
        %v4640 = vshll.u32 %v4419, 16
        %v4642 = vrot.slane %v4640, 1
        %v4643 = vsel %vm3594, %v4638, %v4642
        %v4644 = vshrl.u32 %v4419, 16
        %v4647 = vshrl.u32 %v4463, 16
        %v4649 = vshll.u32 %v4463, 16
        %v4651 = vrot.slane %v4649, 1
        %v4652 = vor.u32 %v4647, %v4651
        %v4654 = vshll.u32 %v4421, 16
        %v4656 = vrot.slane %v4654, 1
        %v4657 = vsel %vm3594, %v4652, %v4656
        %v4658 = vshrl.u32 %v4421, 16
        %v4674 = vunpack.c.l.b16 %v3426
        %v4675 = vunpack.c.l.b16 %v3427
        %v4676 = vunpack.c.l.b16 %v3428
        %v4677 = vunpack.c.l.b16 %v3429
        %v4678 = vunpack.c.l.b16 %v3430
        %v4679 = vunpack.c.l.b16 %v3431
        %v4680 = vunpack.c.l.b16 %v3432
        %v4681 = vunpack.c.l.b16 %v3433
        %v4682 = vunpack.c.l.b16 %v3434
        %v4683 = vunpack.c.l.b16 %v3435
        %v4684 = vunpack.c.l.b16 %v3436
        %v4685 = vunpack.c.l.b16 %v3437
        %v4686 = vunpack.c.l.b16 %v3438
        %v4687 = vunpack.c.l.b16 %v3439
        %v4688 = vpack.c.b16 %v4674, %v4674
        %v4689 = vpack.c.b16 %v4675, %v4675
        %v4690 = vpack.c.b16 %v4676, %v4676
        %v4691 = vpack.c.b16 %v4677, %v4677
        %v4692 = vpack.c.b16 %v4678, %v4678
        %v4693 = vpack.c.b16 %v4679, %v4679
        %v4694 = vpack.c.b16 %v4680, %v4680
        %v4695 = vpack.c.b16 %v4681, %v4681
        %v4696 = vpack.c.b16 %v4682, %v4682
        %v4697 = vpack.c.b16 %v4683, %v4683
        %v4698 = vpack.c.b16 %v4684, %v4684
        %v4699 = vpack.c.b16 %v4685, %v4685
        %v4700 = vpack.c.b16 %v4686, %v4686
        %v4701 = vpack.c.b16 %v4687, %v4687
        %v4702 = vrot.slane %v4450, 1
        %v4703 = vrot.slane %v4688, 1
        %v4704 = vsel %vm3833, %v4702, %v4703
        %v4705 = vrot.slane %v4451, 1
        %v4706 = vrot.slane %v4689, 1
        %v4707 = vsel %vm3833, %v4705, %v4706
        %v4708 = vrot.slane %v4452, 1
        %v4709 = vrot.slane %v4690, 1
        %v4710 = vsel %vm3833, %v4708, %v4709
        %v4711 = vrot.slane %v4453, 1
        %v4712 = vrot.slane %v4691, 1
        %v4713 = vsel %vm3833, %v4711, %v4712
        %v4714 = vrot.slane %v4454, 1
        %v4715 = vrot.slane %v4692, 1
        %v4716 = vsel %vm3833, %v4714, %v4715
        %v4717 = vrot.slane %v4455, 1
        %v4718 = vrot.slane %v4693, 1
        %v4719 = vsel %vm3833, %v4717, %v4718
        %v4720 = vrot.slane %v4456, 1
        %v4721 = vrot.slane %v4694, 1
        %v4722 = vsel %vm3833, %v4720, %v4721
        %v4723 = vrot.slane %v4457, 1
        %v4724 = vrot.slane %v4695, 1
        %v4725 = vsel %vm3833, %v4723, %v4724
        %v4726 = vrot.slane %v4458, 1
        %v4727 = vrot.slane %v4696, 1
        %v4728 = vsel %vm3833, %v4726, %v4727
        %v4729 = vrot.slane %v4459, 1
        %v4730 = vrot.slane %v4697, 1
        %v4731 = vsel %vm3833, %v4729, %v4730
        %v4732 = vrot.slane %v4460, 1
        %v4733 = vrot.slane %v4698, 1
        %v4734 = vsel %vm3833, %v4732, %v4733
        %v4735 = vrot.slane %v4461, 1
        %v4736 = vrot.slane %v4699, 1
        %v4737 = vsel %vm3833, %v4735, %v4736
        %v4738 = vrot.slane %v4462, 1
        %v4739 = vrot.slane %v4700, 1
        %v4740 = vsel %vm3833, %v4738, %v4739
        %v4741 = vrot.slane %v4463, 1
        %v4742 = vrot.slane %v4701, 1
        %v4743 = vsel %vm3833, %v4741, %v4742
        %v4745 = vshrl.u32 %v3524, 16
        %v4747 = vshll.u32 %v3524, 16
        %v4749 = vrot.slane %v4747, 1
        %v4750 = vor.u32 %v4745, %v4749
        %v4751 = vsel %vm3594, %v4750, %v3605
        %v4753 = vshrl.u32 %v3606, 16
        %v4755 = vshll.u32 %v3606, 16
        %v4757 = vrot.slane %v4755, 1
        %v4758 = vor.u32 %v4753, %v4757
        %v4760 = vshll.u32 %v3607, 16
        %v4762 = vrot.slane %v4760, 1
        %v4763 = vsel %vm3594, %v4758, %v4762
        %v4765 = vshrl.u32 %v3836, 16
        %v4767 = vshll.u32 %v3836, 16
        %v4769 = vrot.slane %v4767, 1
        %v4770 = vor.u32 %v4765, %v4769
        %v4772 = vshll.u32 %v3835, 16
        %v4774 = vrot.slane %v4772, 1
        %v4775 = vsel %vm3594, %v4770, %v4774
        %v4777 = vshrl.u32 %v3960, 16
        %v4779 = vshll.u32 %v3960, 16
        %v4781 = vrot.slane %v4779, 1
        %v4782 = vor.u32 %v4777, %v4781
        %v4783 = vsel %vm3594, %v4782, %v4040
        %v4785 = vshrl.u32 %v4041, 16
        %v4787 = vshll.u32 %v4041, 16
        %v4789 = vrot.slane %v4787, 1
        %v4790 = vor.u32 %v4785, %v4789
        %v4792 = vshll.u32 %v4042, 16
        %v4794 = vrot.slane %v4792, 1
        %v4795 = vsel %vm3594, %v4790, %v4794
        %v4797 = vshrl.u32 %v4270, 16
        %v4799 = vshll.u32 %v4270, 16
        %v4801 = vrot.slane %v4799, 1
        %v4802 = vor.u32 %v4797, %v4801
        %v4804 = vshll.u32 %v4269, 16
        %v4806 = vrot.slane %v4804, 1
        %v4807 = vsel %vm3594, %v4802, %v4806
        %v4809 = vshrl.u32 %v4394, 16
        %v4811 = vshll.u32 %v4394, 16
        %v4813 = vrot.slane %v4811, 1
        %v4814 = vor.u32 %v4809, %v4813
        %v4815 = vsel %vm3594, %v4814, %v4474
        %v4817 = vshrl.u32 %v4475, 16
        %v4819 = vshll.u32 %v4475, 16
        %v4821 = vrot.slane %v4819, 1
        %v4822 = vor.u32 %v4817, %v4821
        %v4824 = vshll.u32 %v4476, 16
        %v4826 = vrot.slane %v4824, 1
        %v4827 = vsel %vm3594, %v4822, %v4826
        %v4829 = vshrl.u32 %v4704, 16
        %v4831 = vshll.u32 %v4704, 16
        %v4833 = vrot.slane %v4831, 1
        %v4834 = vor.u32 %v4829, %v4833
        %v4836 = vshll.u32 %v4703, 16
        %v4838 = vrot.slane %v4836, 1
        %v4839 = vsel %vm3594, %v4834, %v4838
        %v4841 = vshrl.u32 %v3526, 16
        %v4843 = vshll.u32 %v3526, 16
        %v4845 = vrot.slane %v4843, 1
        %v4846 = vor.u32 %v4841, %v4845
        %v4847 = vsel %vm3594, %v4846, %v3619
        %v4849 = vshrl.u32 %v3620, 16
        %v4851 = vshll.u32 %v3620, 16
        %v4853 = vrot.slane %v4851, 1
        %v4854 = vor.u32 %v4849, %v4853
        %v4856 = vshll.u32 %v3621, 16
        %v4858 = vrot.slane %v4856, 1
        %v4859 = vsel %vm3594, %v4854, %v4858
        %v4861 = vshrl.u32 %v3839, 16
        %v4863 = vshll.u32 %v3839, 16
        %v4865 = vrot.slane %v4863, 1
        %v4866 = vor.u32 %v4861, %v4865
        %v4868 = vshll.u32 %v3838, 16
        %v4870 = vrot.slane %v4868, 1
        %v4871 = vsel %vm3594, %v4866, %v4870
        %v4873 = vshrl.u32 %v3962, 16
        %v4875 = vshll.u32 %v3962, 16
        %v4877 = vrot.slane %v4875, 1
        %v4878 = vor.u32 %v4873, %v4877
        %v4879 = vsel %vm3594, %v4878, %v4054
        %v4881 = vshrl.u32 %v4055, 16
        %v4883 = vshll.u32 %v4055, 16
        %v4885 = vrot.slane %v4883, 1
        %v4886 = vor.u32 %v4881, %v4885
        %v4888 = vshll.u32 %v4056, 16
        %v4890 = vrot.slane %v4888, 1
        %v4891 = vsel %vm3594, %v4886, %v4890
        %v4893 = vshrl.u32 %v4273, 16
        %v4895 = vshll.u32 %v4273, 16
        %v4897 = vrot.slane %v4895, 1
        %v4898 = vor.u32 %v4893, %v4897
        %v4900 = vshll.u32 %v4272, 16
        %v4902 = vrot.slane %v4900, 1
        %v4903 = vsel %vm3594, %v4898, %v4902
        %v4905 = vshrl.u32 %v4396, 16
        %v4907 = vshll.u32 %v4396, 16
        %v4909 = vrot.slane %v4907, 1
        %v4910 = vor.u32 %v4905, %v4909
        %v4911 = vsel %vm3594, %v4910, %v4488
        %v4913 = vshrl.u32 %v4489, 16
        %v4915 = vshll.u32 %v4489, 16
        %v4917 = vrot.slane %v4915, 1
        %v4918 = vor.u32 %v4913, %v4917
        %v4920 = vshll.u32 %v4490, 16
        %v4922 = vrot.slane %v4920, 1
        %v4923 = vsel %vm3594, %v4918, %v4922
        %v4925 = vshrl.u32 %v4707, 16
        %v4927 = vshll.u32 %v4707, 16
        %v4929 = vrot.slane %v4927, 1
        %v4930 = vor.u32 %v4925, %v4929
        %v4932 = vshll.u32 %v4706, 16
        %v4934 = vrot.slane %v4932, 1
        %v4935 = vsel %vm3594, %v4930, %v4934
        %v4937 = vshrl.u32 %v3528, 16
        %v4939 = vshll.u32 %v3528, 16
        %v4941 = vrot.slane %v4939, 1
        %v4942 = vor.u32 %v4937, %v4941
        %v4943 = vsel %vm3594, %v4942, %v3633
        %v4945 = vshrl.u32 %v3634, 16
        %v4947 = vshll.u32 %v3634, 16
        %v4949 = vrot.slane %v4947, 1
        %v4950 = vor.u32 %v4945, %v4949
        %v4952 = vshll.u32 %v3635, 16
        %v4954 = vrot.slane %v4952, 1
        %v4955 = vsel %vm3594, %v4950, %v4954
        %v4957 = vshrl.u32 %v3842, 16
        %v4959 = vshll.u32 %v3842, 16
        %v4961 = vrot.slane %v4959, 1
        %v4962 = vor.u32 %v4957, %v4961
        %v4964 = vshll.u32 %v3841, 16
        %v4966 = vrot.slane %v4964, 1
        %v4967 = vsel %vm3594, %v4962, %v4966
        %v4969 = vshrl.u32 %v3964, 16
        %v4971 = vshll.u32 %v3964, 16
        %v4973 = vrot.slane %v4971, 1
        %v4974 = vor.u32 %v4969, %v4973
        %v4975 = vsel %vm3594, %v4974, %v4068
        %v4977 = vshrl.u32 %v4069, 16
        %v4979 = vshll.u32 %v4069, 16
        %v4981 = vrot.slane %v4979, 1
        %v4982 = vor.u32 %v4977, %v4981
        %v4984 = vshll.u32 %v4070, 16
        %v4986 = vrot.slane %v4984, 1
        %v4987 = vsel %vm3594, %v4982, %v4986
        %v4989 = vshrl.u32 %v4276, 16
        %v4991 = vshll.u32 %v4276, 16
        %v4993 = vrot.slane %v4991, 1
        %v4994 = vor.u32 %v4989, %v4993
        %v4996 = vshll.u32 %v4275, 16
        %v4998 = vrot.slane %v4996, 1
        %v4999 = vsel %vm3594, %v4994, %v4998
        %v5001 = vshrl.u32 %v4398, 16
        %v5003 = vshll.u32 %v4398, 16
        %v5005 = vrot.slane %v5003, 1
        %v5006 = vor.u32 %v5001, %v5005
        %v5007 = vsel %vm3594, %v5006, %v4502
        %v5009 = vshrl.u32 %v4503, 16
        %v5011 = vshll.u32 %v4503, 16
        %v5013 = vrot.slane %v5011, 1
        %v5014 = vor.u32 %v5009, %v5013
        %v5016 = vshll.u32 %v4504, 16
        %v5018 = vrot.slane %v5016, 1
        %v5019 = vsel %vm3594, %v5014, %v5018
        %v5021 = vshrl.u32 %v4710, 16
        %v5023 = vshll.u32 %v4710, 16
        %v5025 = vrot.slane %v5023, 1
        %v5026 = vor.u32 %v5021, %v5025
        %v5028 = vshll.u32 %v4709, 16
        %v5030 = vrot.slane %v5028, 1
        %v5031 = vsel %vm3594, %v5026, %v5030
        %v5033 = vshrl.u32 %v3530, 16
        %v5035 = vshll.u32 %v3530, 16
        %v5037 = vrot.slane %v5035, 1
        %v5038 = vor.u32 %v5033, %v5037
        %v5039 = vsel %vm3594, %v5038, %v3647
        %v5041 = vshrl.u32 %v3648, 16
        %v5043 = vshll.u32 %v3648, 16
        %v5045 = vrot.slane %v5043, 1
        %v5046 = vor.u32 %v5041, %v5045
        %v5048 = vshll.u32 %v3649, 16
        %v5050 = vrot.slane %v5048, 1
        %v5051 = vsel %vm3594, %v5046, %v5050
        %v5053 = vshrl.u32 %v3845, 16
        %v5055 = vshll.u32 %v3845, 16
        %v5057 = vrot.slane %v5055, 1
        %v5058 = vor.u32 %v5053, %v5057
        %v5060 = vshll.u32 %v3844, 16
        %v5062 = vrot.slane %v5060, 1
        %v5063 = vsel %vm3594, %v5058, %v5062
        %v5065 = vshrl.u32 %v3966, 16
        %v5067 = vshll.u32 %v3966, 16
        %v5069 = vrot.slane %v5067, 1
        %v5070 = vor.u32 %v5065, %v5069
        %v5071 = vsel %vm3594, %v5070, %v4082
        %v5073 = vshrl.u32 %v4083, 16
        %v5075 = vshll.u32 %v4083, 16
        %v5077 = vrot.slane %v5075, 1
        %v5078 = vor.u32 %v5073, %v5077
        %v5080 = vshll.u32 %v4084, 16
        %v5082 = vrot.slane %v5080, 1
        %v5083 = vsel %vm3594, %v5078, %v5082
        %v5085 = vshrl.u32 %v4279, 16
        %v5087 = vshll.u32 %v4279, 16
        %v5089 = vrot.slane %v5087, 1
        %v5090 = vor.u32 %v5085, %v5089
        %v5092 = vshll.u32 %v4278, 16
        %v5094 = vrot.slane %v5092, 1
        %v5095 = vsel %vm3594, %v5090, %v5094
        %v5097 = vshrl.u32 %v4400, 16
        %v5099 = vshll.u32 %v4400, 16
        %v5101 = vrot.slane %v5099, 1
        %v5102 = vor.u32 %v5097, %v5101
        %v5103 = vsel %vm3594, %v5102, %v4516
        %v5105 = vshrl.u32 %v4517, 16
        %v5107 = vshll.u32 %v4517, 16
        %v5109 = vrot.slane %v5107, 1
        %v5110 = vor.u32 %v5105, %v5109
        %v5112 = vshll.u32 %v4518, 16
        %v5114 = vrot.slane %v5112, 1
        %v5115 = vsel %vm3594, %v5110, %v5114
        %v5117 = vshrl.u32 %v4713, 16
        %v5119 = vshll.u32 %v4713, 16
        %v5121 = vrot.slane %v5119, 1
        %v5122 = vor.u32 %v5117, %v5121
        %v5124 = vshll.u32 %v4712, 16
        %v5126 = vrot.slane %v5124, 1
        %v5127 = vsel %vm3594, %v5122, %v5126
        %v5129 = vshrl.u32 %v3532, 16
        %v5131 = vshll.u32 %v3532, 16
        %v5133 = vrot.slane %v5131, 1
        %v5134 = vor.u32 %v5129, %v5133
        %v5135 = vsel %vm3594, %v5134, %v3661
        %v5137 = vshrl.u32 %v3662, 16
        %v5139 = vshll.u32 %v3662, 16
        %v5141 = vrot.slane %v5139, 1
        %v5142 = vor.u32 %v5137, %v5141
        %v5144 = vshll.u32 %v3663, 16
        %v5146 = vrot.slane %v5144, 1
        %v5147 = vsel %vm3594, %v5142, %v5146
        %v5149 = vshrl.u32 %v3848, 16
        %v5151 = vshll.u32 %v3848, 16
        %v5153 = vrot.slane %v5151, 1
        %v5154 = vor.u32 %v5149, %v5153
        %v5156 = vshll.u32 %v3847, 16
        %v5158 = vrot.slane %v5156, 1
        %v5159 = vsel %vm3594, %v5154, %v5158
        %v5161 = vshrl.u32 %v3968, 16
        %v5163 = vshll.u32 %v3968, 16
        %v5165 = vrot.slane %v5163, 1
        %v5166 = vor.u32 %v5161, %v5165
        %v5167 = vsel %vm3594, %v5166, %v4096
        %v5169 = vshrl.u32 %v4097, 16
        %v5171 = vshll.u32 %v4097, 16
        %v5173 = vrot.slane %v5171, 1
        %v5174 = vor.u32 %v5169, %v5173
        %v5176 = vshll.u32 %v4098, 16
        %v5178 = vrot.slane %v5176, 1
        %v5179 = vsel %vm3594, %v5174, %v5178
        %v5181 = vshrl.u32 %v4282, 16
        %v5183 = vshll.u32 %v4282, 16
        %v5185 = vrot.slane %v5183, 1
        %v5186 = vor.u32 %v5181, %v5185
        %v5188 = vshll.u32 %v4281, 16
        %v5190 = vrot.slane %v5188, 1
        %v5191 = vsel %vm3594, %v5186, %v5190
        %v5193 = vshrl.u32 %v4402, 16
        %v5195 = vshll.u32 %v4402, 16
        %v5197 = vrot.slane %v5195, 1
        %v5198 = vor.u32 %v5193, %v5197
        %v5199 = vsel %vm3594, %v5198, %v4530
        %v5201 = vshrl.u32 %v4531, 16
        %v5203 = vshll.u32 %v4531, 16
        %v5205 = vrot.slane %v5203, 1
        %v5206 = vor.u32 %v5201, %v5205
        %v5208 = vshll.u32 %v4532, 16
        %v5210 = vrot.slane %v5208, 1
        %v5211 = vsel %vm3594, %v5206, %v5210
        %v5213 = vshrl.u32 %v4716, 16
        %v5215 = vshll.u32 %v4716, 16
        %v5217 = vrot.slane %v5215, 1
        %v5218 = vor.u32 %v5213, %v5217
        %v5220 = vshll.u32 %v4715, 16
        %v5222 = vrot.slane %v5220, 1
        %v5223 = vsel %vm3594, %v5218, %v5222
        %v5225 = vshrl.u32 %v3534, 16
        %v5227 = vshll.u32 %v3534, 16
        %v5229 = vrot.slane %v5227, 1
        %v5230 = vor.u32 %v5225, %v5229
        %v5231 = vsel %vm3594, %v5230, %v3675
        %v5233 = vshrl.u32 %v3676, 16
        %v5235 = vshll.u32 %v3676, 16
        %v5237 = vrot.slane %v5235, 1
        %v5238 = vor.u32 %v5233, %v5237
        %v5240 = vshll.u32 %v3677, 16
        %v5242 = vrot.slane %v5240, 1
        %v5243 = vsel %vm3594, %v5238, %v5242
        %v5245 = vshrl.u32 %v3851, 16
        %v5247 = vshll.u32 %v3851, 16
        %v5249 = vrot.slane %v5247, 1
        %v5250 = vor.u32 %v5245, %v5249
        %v5252 = vshll.u32 %v3850, 16
        %v5254 = vrot.slane %v5252, 1
        %v5255 = vsel %vm3594, %v5250, %v5254
        %v5257 = vshrl.u32 %v3970, 16
        %v5259 = vshll.u32 %v3970, 16
        %v5261 = vrot.slane %v5259, 1
        %v5262 = vor.u32 %v5257, %v5261
        %v5263 = vsel %vm3594, %v5262, %v4110
        %v5265 = vshrl.u32 %v4111, 16
        %v5267 = vshll.u32 %v4111, 16
        %v5269 = vrot.slane %v5267, 1
        %v5270 = vor.u32 %v5265, %v5269
        %v5272 = vshll.u32 %v4112, 16
        %v5274 = vrot.slane %v5272, 1
        %v5275 = vsel %vm3594, %v5270, %v5274
        %v5277 = vshrl.u32 %v4285, 16
        %v5279 = vshll.u32 %v4285, 16
        %v5281 = vrot.slane %v5279, 1
        %v5282 = vor.u32 %v5277, %v5281
        %v5284 = vshll.u32 %v4284, 16
        %v5286 = vrot.slane %v5284, 1
        %v5287 = vsel %vm3594, %v5282, %v5286
        %v5289 = vshrl.u32 %v4404, 16
        %v5291 = vshll.u32 %v4404, 16
        %v5293 = vrot.slane %v5291, 1
        %v5294 = vor.u32 %v5289, %v5293
        %v5295 = vsel %vm3594, %v5294, %v4544
        %v5297 = vshrl.u32 %v4545, 16
        %v5299 = vshll.u32 %v4545, 16
        %v5301 = vrot.slane %v5299, 1
        %v5302 = vor.u32 %v5297, %v5301
        %v5304 = vshll.u32 %v4546, 16
        %v5306 = vrot.slane %v5304, 1
        %v5307 = vsel %vm3594, %v5302, %v5306
        %v5309 = vshrl.u32 %v4719, 16
        %v5311 = vshll.u32 %v4719, 16
        %v5313 = vrot.slane %v5311, 1
        %v5314 = vor.u32 %v5309, %v5313
        %v5316 = vshll.u32 %v4718, 16
        %v5318 = vrot.slane %v5316, 1
        %v5319 = vsel %vm3594, %v5314, %v5318
        %v5321 = vshrl.u32 %v3536, 16
        %v5323 = vshll.u32 %v3536, 16
        %v5325 = vrot.slane %v5323, 1
        %v5326 = vor.u32 %v5321, %v5325
        %v5327 = vsel %vm3594, %v5326, %v3689
        %v5329 = vshrl.u32 %v3690, 16
        %v5331 = vshll.u32 %v3690, 16
        %v5333 = vrot.slane %v5331, 1
        %v5334 = vor.u32 %v5329, %v5333
        %v5336 = vshll.u32 %v3691, 16
        %v5338 = vrot.slane %v5336, 1
        %v5339 = vsel %vm3594, %v5334, %v5338
        %v5341 = vshrl.u32 %v3854, 16
        %v5343 = vshll.u32 %v3854, 16
        %v5345 = vrot.slane %v5343, 1
        %v5346 = vor.u32 %v5341, %v5345
        %v5348 = vshll.u32 %v3853, 16
        %v5350 = vrot.slane %v5348, 1
        %v5351 = vsel %vm3594, %v5346, %v5350
        %v5353 = vshrl.u32 %v3972, 16
        %v5355 = vshll.u32 %v3972, 16
        %v5357 = vrot.slane %v5355, 1
        %v5358 = vor.u32 %v5353, %v5357
        %v5359 = vsel %vm3594, %v5358, %v4124
        %v5361 = vshrl.u32 %v4125, 16
        %v5363 = vshll.u32 %v4125, 16
        %v5365 = vrot.slane %v5363, 1
        %v5366 = vor.u32 %v5361, %v5365
        %v5368 = vshll.u32 %v4126, 16
        %v5370 = vrot.slane %v5368, 1
        %v5371 = vsel %vm3594, %v5366, %v5370
        %v5373 = vshrl.u32 %v4288, 16
        %v5375 = vshll.u32 %v4288, 16
        %v5377 = vrot.slane %v5375, 1
        %v5378 = vor.u32 %v5373, %v5377
        %v5380 = vshll.u32 %v4287, 16
        %v5382 = vrot.slane %v5380, 1
        %v5383 = vsel %vm3594, %v5378, %v5382
        %v5385 = vshrl.u32 %v4406, 16
        %v5387 = vshll.u32 %v4406, 16
        %v5389 = vrot.slane %v5387, 1
        %v5390 = vor.u32 %v5385, %v5389
        %v5391 = vsel %vm3594, %v5390, %v4558
        %v5393 = vshrl.u32 %v4559, 16
        %v5395 = vshll.u32 %v4559, 16
        %v5397 = vrot.slane %v5395, 1
        %v5398 = vor.u32 %v5393, %v5397
        %v5400 = vshll.u32 %v4560, 16
        %v5402 = vrot.slane %v5400, 1
        %v5403 = vsel %vm3594, %v5398, %v5402
        %v5405 = vshrl.u32 %v4722, 16
        %v5407 = vshll.u32 %v4722, 16
        %v5409 = vrot.slane %v5407, 1
        %v5410 = vor.u32 %v5405, %v5409
        %v5412 = vshll.u32 %v4721, 16
        %v5414 = vrot.slane %v5412, 1
        %v5415 = vsel %vm3594, %v5410, %v5414
        %v5417 = vshrl.u32 %v3538, 16
        %v5419 = vshll.u32 %v3538, 16
        %v5421 = vrot.slane %v5419, 1
        %v5422 = vor.u32 %v5417, %v5421
        %v5423 = vsel %vm3594, %v5422, %v3703
        %v5425 = vshrl.u32 %v3704, 16
        %v5427 = vshll.u32 %v3704, 16
        %v5429 = vrot.slane %v5427, 1
        %v5430 = vor.u32 %v5425, %v5429
        %v5432 = vshll.u32 %v3705, 16
        %v5434 = vrot.slane %v5432, 1
        %v5435 = vsel %vm3594, %v5430, %v5434
        %v5437 = vshrl.u32 %v3857, 16
        %v5439 = vshll.u32 %v3857, 16
        %v5441 = vrot.slane %v5439, 1
        %v5442 = vor.u32 %v5437, %v5441
        %v5444 = vshll.u32 %v3856, 16
        %v5446 = vrot.slane %v5444, 1
        %v5447 = vsel %vm3594, %v5442, %v5446
        %v5449 = vshrl.u32 %v3974, 16
        %v5451 = vshll.u32 %v3974, 16
        %v5453 = vrot.slane %v5451, 1
        %v5454 = vor.u32 %v5449, %v5453
        %v5455 = vsel %vm3594, %v5454, %v4138
        %v5457 = vshrl.u32 %v4139, 16
        %v5459 = vshll.u32 %v4139, 16
        %v5461 = vrot.slane %v5459, 1
        %v5462 = vor.u32 %v5457, %v5461
        %v5464 = vshll.u32 %v4140, 16
        %v5466 = vrot.slane %v5464, 1
        %v5467 = vsel %vm3594, %v5462, %v5466
        %v5469 = vshrl.u32 %v4291, 16
        %v5471 = vshll.u32 %v4291, 16
        %v5473 = vrot.slane %v5471, 1
        %v5474 = vor.u32 %v5469, %v5473
        %v5476 = vshll.u32 %v4290, 16
        %v5478 = vrot.slane %v5476, 1
        %v5479 = vsel %vm3594, %v5474, %v5478
        %v5481 = vshrl.u32 %v4408, 16
        %v5483 = vshll.u32 %v4408, 16
        %v5485 = vrot.slane %v5483, 1
        %v5486 = vor.u32 %v5481, %v5485
        %v5487 = vsel %vm3594, %v5486, %v4572
        %v5489 = vshrl.u32 %v4573, 16
        %v5491 = vshll.u32 %v4573, 16
        %v5493 = vrot.slane %v5491, 1
        %v5494 = vor.u32 %v5489, %v5493
        %v5496 = vshll.u32 %v4574, 16
        %v5498 = vrot.slane %v5496, 1
        %v5499 = vsel %vm3594, %v5494, %v5498
        %v5501 = vshrl.u32 %v4725, 16
        %v5503 = vshll.u32 %v4725, 16
        %v5505 = vrot.slane %v5503, 1
        %v5506 = vor.u32 %v5501, %v5505
        %v5508 = vshll.u32 %v4724, 16
        %v5510 = vrot.slane %v5508, 1
        %v5511 = vsel %vm3594, %v5506, %v5510
        %v5513 = vshrl.u32 %v3540, 16
        %v5515 = vshll.u32 %v3540, 16
        %v5517 = vrot.slane %v5515, 1
        %v5518 = vor.u32 %v5513, %v5517
        %v5519 = vsel %vm3594, %v5518, %v3717
        %v5521 = vshrl.u32 %v3718, 16
        %v5523 = vshll.u32 %v3718, 16
        %v5525 = vrot.slane %v5523, 1
        %v5526 = vor.u32 %v5521, %v5525
        %v5528 = vshll.u32 %v3719, 16
        %v5530 = vrot.slane %v5528, 1
        %v5531 = vsel %vm3594, %v5526, %v5530
        %v5533 = vshrl.u32 %v3860, 16
        %v5535 = vshll.u32 %v3860, 16
        %v5537 = vrot.slane %v5535, 1
        %v5538 = vor.u32 %v5533, %v5537
        %v5540 = vshll.u32 %v3859, 16
        %v5542 = vrot.slane %v5540, 1
        %v5543 = vsel %vm3594, %v5538, %v5542
        %v5545 = vshrl.u32 %v3976, 16
        %v5547 = vshll.u32 %v3976, 16
        %v5549 = vrot.slane %v5547, 1
        %v5550 = vor.u32 %v5545, %v5549
        %v5551 = vsel %vm3594, %v5550, %v4152
        %v5553 = vshrl.u32 %v4153, 16
        %v5555 = vshll.u32 %v4153, 16
        %v5557 = vrot.slane %v5555, 1
        %v5558 = vor.u32 %v5553, %v5557
        %v5560 = vshll.u32 %v4154, 16
        %v5562 = vrot.slane %v5560, 1
        %v5563 = vsel %vm3594, %v5558, %v5562
        %v5565 = vshrl.u32 %v4294, 16
        %v5567 = vshll.u32 %v4294, 16
        %v5569 = vrot.slane %v5567, 1
        %v5570 = vor.u32 %v5565, %v5569
        %v5572 = vshll.u32 %v4293, 16
        %v5574 = vrot.slane %v5572, 1
        %v5575 = vsel %vm3594, %v5570, %v5574
        %v5577 = vshrl.u32 %v4410, 16
        %v5579 = vshll.u32 %v4410, 16
        %v5581 = vrot.slane %v5579, 1
        %v5582 = vor.u32 %v5577, %v5581
        %v5583 = vsel %vm3594, %v5582, %v4586
        %v5585 = vshrl.u32 %v4587, 16
        %v5587 = vshll.u32 %v4587, 16
        %v5589 = vrot.slane %v5587, 1
        %v5590 = vor.u32 %v5585, %v5589
        %v5592 = vshll.u32 %v4588, 16
        %v5594 = vrot.slane %v5592, 1
        %v5595 = vsel %vm3594, %v5590, %v5594
        %v5597 = vshrl.u32 %v4728, 16
        %v5599 = vshll.u32 %v4728, 16
        %v5601 = vrot.slane %v5599, 1
        %v5602 = vor.u32 %v5597, %v5601
        %v5604 = vshll.u32 %v4727, 16
        %v5606 = vrot.slane %v5604, 1
        %v5607 = vsel %vm3594, %v5602, %v5606
        %v5609 = vshrl.u32 %v3542, 16
        %v5611 = vshll.u32 %v3542, 16
        %v5613 = vrot.slane %v5611, 1
        %v5614 = vor.u32 %v5609, %v5613
        %v5615 = vsel %vm3594, %v5614, %v3731
        %v5617 = vshrl.u32 %v3732, 16
        %v5619 = vshll.u32 %v3732, 16
        %v5621 = vrot.slane %v5619, 1
        %v5622 = vor.u32 %v5617, %v5621
        %v5624 = vshll.u32 %v3733, 16
        %v5626 = vrot.slane %v5624, 1
        %v5627 = vsel %vm3594, %v5622, %v5626
        %v5629 = vshrl.u32 %v3863, 16
        %v5631 = vshll.u32 %v3863, 16
        %v5633 = vrot.slane %v5631, 1
        %v5634 = vor.u32 %v5629, %v5633
        %v5636 = vshll.u32 %v3862, 16
        %v5638 = vrot.slane %v5636, 1
        %v5639 = vsel %vm3594, %v5634, %v5638
        %v5641 = vshrl.u32 %v3978, 16
        %v5643 = vshll.u32 %v3978, 16
        %v5645 = vrot.slane %v5643, 1
        %v5646 = vor.u32 %v5641, %v5645
        %v5647 = vsel %vm3594, %v5646, %v4166
        %v5649 = vshrl.u32 %v4167, 16
        %v5651 = vshll.u32 %v4167, 16
        %v5653 = vrot.slane %v5651, 1
        %v5654 = vor.u32 %v5649, %v5653
        %v5656 = vshll.u32 %v4168, 16
        %v5658 = vrot.slane %v5656, 1
        %v5659 = vsel %vm3594, %v5654, %v5658
        %v5661 = vshrl.u32 %v4297, 16
        %v5663 = vshll.u32 %v4297, 16
        %v5665 = vrot.slane %v5663, 1
        %v5666 = vor.u32 %v5661, %v5665
        %v5668 = vshll.u32 %v4296, 16
        %v5670 = vrot.slane %v5668, 1
        %v5671 = vsel %vm3594, %v5666, %v5670
        %v5673 = vshrl.u32 %v4412, 16
        %v5675 = vshll.u32 %v4412, 16
        %v5677 = vrot.slane %v5675, 1
        %v5678 = vor.u32 %v5673, %v5677
        %v5679 = vsel %vm3594, %v5678, %v4600
        %v5681 = vshrl.u32 %v4601, 16
        %v5683 = vshll.u32 %v4601, 16
        %v5685 = vrot.slane %v5683, 1
        %v5686 = vor.u32 %v5681, %v5685
        %v5688 = vshll.u32 %v4602, 16
        %v5690 = vrot.slane %v5688, 1
        %v5691 = vsel %vm3594, %v5686, %v5690
        %v5693 = vshrl.u32 %v4731, 16
        %v5695 = vshll.u32 %v4731, 16
        %v5697 = vrot.slane %v5695, 1
        %v5698 = vor.u32 %v5693, %v5697
        %v5700 = vshll.u32 %v4730, 16
        %v5702 = vrot.slane %v5700, 1
        %v5703 = vsel %vm3594, %v5698, %v5702
        %v5705 = vshrl.u32 %v3544, 16
        %v5707 = vshll.u32 %v3544, 16
        %v5709 = vrot.slane %v5707, 1
        %v5710 = vor.u32 %v5705, %v5709
        %v5711 = vsel %vm3594, %v5710, %v3745
        %v5713 = vshrl.u32 %v3746, 16
        %v5715 = vshll.u32 %v3746, 16
        %v5717 = vrot.slane %v5715, 1
        %v5718 = vor.u32 %v5713, %v5717
        %v5720 = vshll.u32 %v3747, 16
        %v5722 = vrot.slane %v5720, 1
        %v5723 = vsel %vm3594, %v5718, %v5722
        %v5725 = vshrl.u32 %v3866, 16
        %v5727 = vshll.u32 %v3866, 16
        %v5729 = vrot.slane %v5727, 1
        %v5730 = vor.u32 %v5725, %v5729
        %v5732 = vshll.u32 %v3865, 16
        %v5734 = vrot.slane %v5732, 1
        %v5735 = vsel %vm3594, %v5730, %v5734
        %v5737 = vshrl.u32 %v3980, 16
        %v5739 = vshll.u32 %v3980, 16
        %v5741 = vrot.slane %v5739, 1
        %v5742 = vor.u32 %v5737, %v5741
        %v5743 = vsel %vm3594, %v5742, %v4180
        %v5745 = vshrl.u32 %v4181, 16
        %v5747 = vshll.u32 %v4181, 16
        %v5749 = vrot.slane %v5747, 1
        %v5750 = vor.u32 %v5745, %v5749
        %v5752 = vshll.u32 %v4182, 16
        %v5754 = vrot.slane %v5752, 1
        %v5755 = vsel %vm3594, %v5750, %v5754
        %v5757 = vshrl.u32 %v4300, 16
        %v5759 = vshll.u32 %v4300, 16
        %v5761 = vrot.slane %v5759, 1
        %v5762 = vor.u32 %v5757, %v5761
        %v5764 = vshll.u32 %v4299, 16
        %v5766 = vrot.slane %v5764, 1
        %v5767 = vsel %vm3594, %v5762, %v5766
        %v5769 = vshrl.u32 %v4414, 16
        %v5771 = vshll.u32 %v4414, 16
        %v5773 = vrot.slane %v5771, 1
        %v5774 = vor.u32 %v5769, %v5773
        %v5775 = vsel %vm3594, %v5774, %v4614
        %v5777 = vshrl.u32 %v4615, 16
        %v5779 = vshll.u32 %v4615, 16
        %v5781 = vrot.slane %v5779, 1
        %v5782 = vor.u32 %v5777, %v5781
        %v5784 = vshll.u32 %v4616, 16
        %v5786 = vrot.slane %v5784, 1
        %v5787 = vsel %vm3594, %v5782, %v5786
        %v5789 = vshrl.u32 %v4734, 16
        %v5791 = vshll.u32 %v4734, 16
        %v5793 = vrot.slane %v5791, 1
        %v5794 = vor.u32 %v5789, %v5793
        %v5796 = vshll.u32 %v4733, 16
        %v5798 = vrot.slane %v5796, 1
        %v5799 = vsel %vm3594, %v5794, %v5798
        %v5801 = vshrl.u32 %v3546, 16
        %v5803 = vshll.u32 %v3546, 16
        %v5805 = vrot.slane %v5803, 1
        %v5806 = vor.u32 %v5801, %v5805
        %v5807 = vsel %vm3594, %v5806, %v3759
        %v5809 = vshrl.u32 %v3760, 16
        %v5811 = vshll.u32 %v3760, 16
        %v5813 = vrot.slane %v5811, 1
        %v5814 = vor.u32 %v5809, %v5813
        %v5816 = vshll.u32 %v3761, 16
        %v5818 = vrot.slane %v5816, 1
        %v5819 = vsel %vm3594, %v5814, %v5818
        %v5821 = vshrl.u32 %v3869, 16
        %v5823 = vshll.u32 %v3869, 16
        %v5825 = vrot.slane %v5823, 1
        %v5826 = vor.u32 %v5821, %v5825
        %v5828 = vshll.u32 %v3868, 16
        %v5830 = vrot.slane %v5828, 1
        %v5831 = vsel %vm3594, %v5826, %v5830
        %v5833 = vshrl.u32 %v3982, 16
        %v5835 = vshll.u32 %v3982, 16
        %v5837 = vrot.slane %v5835, 1
        %v5838 = vor.u32 %v5833, %v5837
        %v5839 = vsel %vm3594, %v5838, %v4194
        %v5841 = vshrl.u32 %v4195, 16
        %v5843 = vshll.u32 %v4195, 16
        %v5845 = vrot.slane %v5843, 1
        %v5846 = vor.u32 %v5841, %v5845
        %v5848 = vshll.u32 %v4196, 16
        %v5850 = vrot.slane %v5848, 1
        %v5851 = vsel %vm3594, %v5846, %v5850
        %v5853 = vshrl.u32 %v4303, 16
        %v5855 = vshll.u32 %v4303, 16
        %v5857 = vrot.slane %v5855, 1
        %v5858 = vor.u32 %v5853, %v5857
        %v5860 = vshll.u32 %v4302, 16
        %v5862 = vrot.slane %v5860, 1
        %v5863 = vsel %vm3594, %v5858, %v5862
        %v5865 = vshrl.u32 %v4416, 16
        %v5867 = vshll.u32 %v4416, 16
        %v5869 = vrot.slane %v5867, 1
        %v5870 = vor.u32 %v5865, %v5869
        %v5871 = vsel %vm3594, %v5870, %v4628
        %v5873 = vshrl.u32 %v4629, 16
        %v5875 = vshll.u32 %v4629, 16
        %v5877 = vrot.slane %v5875, 1
        %v5878 = vor.u32 %v5873, %v5877
        %v5880 = vshll.u32 %v4630, 16
        %v5882 = vrot.slane %v5880, 1
        %v5883 = vsel %vm3594, %v5878, %v5882
        %v5885 = vshrl.u32 %v4737, 16
        %v5887 = vshll.u32 %v4737, 16
        %v5889 = vrot.slane %v5887, 1
        %v5890 = vor.u32 %v5885, %v5889
        %v5892 = vshll.u32 %v4736, 16
        %v5894 = vrot.slane %v5892, 1
        %v5895 = vsel %vm3594, %v5890, %v5894
        %v5897 = vshrl.u32 %v3548, 16
        %v5899 = vshll.u32 %v3548, 16
        %v5901 = vrot.slane %v5899, 1
        %v5902 = vor.u32 %v5897, %v5901
        %v5903 = vsel %vm3594, %v5902, %v3773
        %v5905 = vshrl.u32 %v3774, 16
        %v5907 = vshll.u32 %v3774, 16
        %v5909 = vrot.slane %v5907, 1
        %v5910 = vor.u32 %v5905, %v5909
        %v5912 = vshll.u32 %v3775, 16
        %v5914 = vrot.slane %v5912, 1
        %v5915 = vsel %vm3594, %v5910, %v5914
        %v5917 = vshrl.u32 %v3872, 16
        %v5919 = vshll.u32 %v3872, 16
        %v5921 = vrot.slane %v5919, 1
        %v5922 = vor.u32 %v5917, %v5921
        %v5924 = vshll.u32 %v3871, 16
        %v5926 = vrot.slane %v5924, 1
        %v5927 = vsel %vm3594, %v5922, %v5926
        %v5929 = vshrl.u32 %v3984, 16
        %v5931 = vshll.u32 %v3984, 16
        %v5933 = vrot.slane %v5931, 1
        %v5934 = vor.u32 %v5929, %v5933
        %v5935 = vsel %vm3594, %v5934, %v4208
        %v5937 = vshrl.u32 %v4209, 16
        %v5939 = vshll.u32 %v4209, 16
        %v5941 = vrot.slane %v5939, 1
        %v5942 = vor.u32 %v5937, %v5941
        %v5944 = vshll.u32 %v4210, 16
        %v5946 = vrot.slane %v5944, 1
        %v5947 = vsel %vm3594, %v5942, %v5946
        %v5949 = vshrl.u32 %v4306, 16
        %v5951 = vshll.u32 %v4306, 16
        %v5953 = vrot.slane %v5951, 1
        %v5954 = vor.u32 %v5949, %v5953
        %v5956 = vshll.u32 %v4305, 16
        %v5958 = vrot.slane %v5956, 1
        %v5959 = vsel %vm3594, %v5954, %v5958
        %v5961 = vshrl.u32 %v4418, 16
        %v5963 = vshll.u32 %v4418, 16
        %v5965 = vrot.slane %v5963, 1
        %v5966 = vor.u32 %v5961, %v5965
        %v5967 = vsel %vm3594, %v5966, %v4642
        %v5969 = vshrl.u32 %v4643, 16
        %v5971 = vshll.u32 %v4643, 16
        %v5973 = vrot.slane %v5971, 1
        %v5974 = vor.u32 %v5969, %v5973
        %v5976 = vshll.u32 %v4644, 16
        %v5978 = vrot.slane %v5976, 1
        %v5979 = vsel %vm3594, %v5974, %v5978
        %v5981 = vshrl.u32 %v4740, 16
        %v5983 = vshll.u32 %v4740, 16
        %v5985 = vrot.slane %v5983, 1
        %v5986 = vor.u32 %v5981, %v5985
        %v5988 = vshll.u32 %v4739, 16
        %v5990 = vrot.slane %v5988, 1
        %v5991 = vsel %vm3594, %v5986, %v5990
        %v5993 = vshrl.u32 %v3550, 16
        %v5995 = vshll.u32 %v3550, 16
        %v5997 = vrot.slane %v5995, 1
        %v5998 = vor.u32 %v5993, %v5997
        %v5999 = vsel %vm3594, %v5998, %v3787
        %v6001 = vshrl.u32 %v3788, 16
        %v6003 = vshll.u32 %v3788, 16
        %v6005 = vrot.slane %v6003, 1
        %v6006 = vor.u32 %v6001, %v6005
        %v6008 = vshll.u32 %v3789, 16
        %v6010 = vrot.slane %v6008, 1
        %v6011 = vsel %vm3594, %v6006, %v6010
        %v6013 = vshrl.u32 %v3875, 16
        %v6015 = vshll.u32 %v3875, 16
        %v6017 = vrot.slane %v6015, 1
        %v6018 = vor.u32 %v6013, %v6017
        %v6020 = vshll.u32 %v3874, 16
        %v6022 = vrot.slane %v6020, 1
        %v6023 = vsel %vm3594, %v6018, %v6022
        %v6025 = vshrl.u32 %v3986, 16
        %v6027 = vshll.u32 %v3986, 16
        %v6029 = vrot.slane %v6027, 1
        %v6030 = vor.u32 %v6025, %v6029
        %v6031 = vsel %vm3594, %v6030, %v4222
        %v6033 = vshrl.u32 %v4223, 16
        %v6035 = vshll.u32 %v4223, 16
        %v6037 = vrot.slane %v6035, 1
        %v6038 = vor.u32 %v6033, %v6037
        %v6040 = vshll.u32 %v4224, 16
        %v6042 = vrot.slane %v6040, 1
        %v6043 = vsel %vm3594, %v6038, %v6042
        %v6045 = vshrl.u32 %v4309, 16
        %v6047 = vshll.u32 %v4309, 16
        %v6049 = vrot.slane %v6047, 1
        %v6050 = vor.u32 %v6045, %v6049
        %v6052 = vshll.u32 %v4308, 16
        %v6054 = vrot.slane %v6052, 1
        %v6055 = vsel %vm3594, %v6050, %v6054
        %v6057 = vshrl.u32 %v4420, 16
        %v6059 = vshll.u32 %v4420, 16
        %v6061 = vrot.slane %v6059, 1
        %v6062 = vor.u32 %v6057, %v6061
        %v6063 = vsel %vm3594, %v6062, %v4656
        %v6065 = vshrl.u32 %v4657, 16
        %v6067 = vshll.u32 %v4657, 16
        %v6069 = vrot.slane %v6067, 1
        %v6070 = vor.u32 %v6065, %v6069
        %v6072 = vshll.u32 %v4658, 16
        %v6074 = vrot.slane %v6072, 1
        %v6075 = vsel %vm3594, %v6070, %v6074
        %v6077 = vshrl.u32 %v4743, 16
        %v6079 = vshll.u32 %v4743, 16
        %v6081 = vrot.slane %v6079, 1
        %v6082 = vor.u32 %v6077, %v6081
        %v6084 = vshll.u32 %v4742, 16
        %v6086 = vrot.slane %v6084, 1
        %v6087 = vsel %vm3594, %v6082, %v6086
        %v6358 = vunpack.c.l.b16 %v299
        %v6359 = vunpack.c.l.b16 %v300
        %v6360 = vunpack.c.l.b16 %v301
        %v6361 = vunpack.c.l.b16 %v302
        %v6362 = vunpack.c.l.b16 %v303
        %v6363 = vunpack.c.l.b16 %v304
        %v6364 = vunpack.c.l.b16 %v305
        %v6365 = vunpack.c.l.b16 %v306
        %v6366 = vunpack.c.l.b16 %v307
        %v6367 = vunpack.c.l.b16 %v308
        %v6368 = vunpack.c.l.b16 %v309
        %v6369 = vunpack.c.l.b16 %v310
        %v6370 = vunpack.c.l.b16 %v311
        %v6371 = vunpack.c.l.b16 %v312
        %v6372 = vunpack.c.l.b16 %v313
        %v6373 = vunpack.c.l.b16 %v314
        %v6374 = vunpack.c.l.b16 %v315
        %v6375 = vunpack.c.l.b16 %v316
        %v6376 = vunpack.c.l.b16 %v317
        %v6377 = vunpack.c.l.b16 %v318
        %v6378 = vunpack.c.l.b16 %v319
        %v6379 = vunpack.c.l.b16 %v320
        %v6380 = vunpack.c.l.b16 %v321
        %v6381 = vunpack.c.l.b16 %v322
        %v6382 = vunpack.c.l.b16 %v323
        %v6383 = vunpack.c.l.b16 %v324
        %v6384 = vunpack.c.l.b16 %v325
        %v6385 = vunpack.c.l.b16 %v326
        %v6386 = vunpack.c.l.b16 %v327
        %v6387 = vunpack.c.l.b16 %v328
        %v6388 = vunpack.c.l.b16 %v329
        %v6389 = vunpack.c.l.b16 %v330
        %v6390 = vunpack.c.l.b16 %v331
        %v6391 = vunpack.c.l.b16 %v332
        %v6392 = vunpack.c.l.b16 %v333
        %v6393 = vunpack.c.l.b16 %v334
        %v6394 = vunpack.c.l.b16 %v335
        %v6395 = vunpack.c.l.b16 %v336
        %v6396 = vunpack.c.l.b16 %v337
        %v6397 = vunpack.c.l.b16 %v338
        %v6398 = vunpack.c.l.b16 %v339
        %v6399 = vunpack.c.l.b16 %v340
        %v6400 = vunpack.c.l.b16 %v341
        %v6401 = vunpack.c.l.b16 %v342
        %v6402 = vunpack.c.l.b16 %v343
        %v6403 = vunpack.c.l.b16 %v344
        %v6404 = vunpack.c.l.b16 %v345
        %v6405 = vunpack.c.l.b16 %v346
        %v6406 = vunpack.c.l.b16 %v347
        %v6407 = vunpack.c.l.b16 %v348
        %v6408 = vunpack.c.l.b16 %v349
        %v6409 = vunpack.c.l.b16 %v350
        %v6410 = vunpack.c.l.b16 %v351
        %v6411 = vunpack.c.l.b16 %v352
        %v6412 = vunpack.c.l.b16 %v353
        %v6413 = vunpack.c.l.b16 %v354
        %v6414 = vunpack.c.l.b16 %v355
        %v6415 = vunpack.c.l.b16 %v356
        %v6416 = vunpack.c.l.b16 %v357
        %v6417 = vunpack.c.l.b16 %v358
        %v6418 = vunpack.c.l.b16 %v359
        %v6419 = vunpack.c.l.b16 %v360
        %v6420 = vunpack.c.l.b16 %v361
        %v6421 = vunpack.c.l.b16 %v362
        %v6422 = vunpack.c.l.b16 %v363
        %v6423 = vunpack.c.l.b16 %v364
        %v6424 = vunpack.c.l.b16 %v365
        %v6425 = vunpack.c.l.b16 %v366
        %v6426 = vunpack.c.l.b16 %v367
        %v6427 = vunpack.c.l.b16 %v368
        %v6428 = vunpack.c.l.b16 %v369
        %v6429 = vunpack.c.l.b16 %v370
        %v6430 = vunpack.c.l.b16 %v371
        %v6431 = vunpack.c.l.b16 %v372
        %v6432 = vunpack.c.l.b16 %v373
        %v6433 = vunpack.c.l.b16 %v374
        %v6434 = vunpack.c.l.b16 %v375
        %v6435 = vunpack.c.l.b16 %v376
        %v6436 = vunpack.c.l.b16 %v377
        %v6437 = vunpack.c.l.b16 %v378
        %v6438 = vunpack.c.l.b16 %v379
        %v6439 = vunpack.c.l.b16 %v380
        %v6440 = vunpack.c.l.b16 %v381
        %v6441 = vunpack.c.l.b16 %v382
        %v6442 = vunpack.c.l.b16 %v383
        %v6443 = vunpack.c.l.b16 %v384
        %v6444 = vunpack.c.l.b16 %v385
        %v6445 = vunpack.c.l.b16 %v386
        %v6446 = vunpack.c.l.b16 %v387
        %v6447 = vunpack.c.l.b16 %v388
        %v6448 = vunpack.c.l.b16 %v389
        %v6449 = vunpack.c.l.b16 %v390
        %v6450 = vunpack.c.l.b16 %v391
        %v6451 = vunpack.c.l.b16 %v392
        %v6452 = vunpack.c.l.b16 %v393
        %v6453 = vunpack.c.l.b16 %v394
        %v6454 = vunpack.c.l.b16 %v395
        %v6455 = vunpack.c.l.b16 %v396
        %v6456 = vunpack.c.l.b16 %v397
        %v6457 = vunpack.c.l.b16 %v398
        %v6458 = vunpack.c.l.b16 %v399
        %v6459 = vunpack.c.l.b16 %v400
        %v6460 = vunpack.c.l.b16 %v401
        %v6461 = vunpack.c.l.b16 %v402
        %v6462 = vunpack.c.l.b16 %v403
        %v6463 = vunpack.c.l.b16 %v404
        %v6464 = vunpack.c.l.b16 %v405
        %v6465 = vunpack.c.l.b16 %v406
        %v6466 = vunpack.c.l.b16 %v407
        %v6467 = vunpack.c.l.b16 %v408
        %v6468 = vunpack.c.l.b16 %v409
        %v6469 = vunpack.c.l.b16 %v410
        %v6470 = vunpack.c.l.b16 %v411
        %v6471 = vunpack.c.l.b16 %v412
        %v6472 = vunpack.c.l.b16 %v413
        %v6473 = vunpack.c.l.b16 %v414
        %v6474 = vunpack.c.l.b16 %v415
        %v6475 = vunpack.c.l.b16 %v416
        %v6476 = vunpack.c.l.b16 %v417
        %v6477 = vunpack.c.l.b16 %v418
        %v6478 = vunpack.c.l.b16 %v419
        %v6479 = vunpack.c.l.b16 %v420
        %v6480 = vunpack.c.l.b16 %v421
        %v6481 = vunpack.c.l.b16 %v422
        %v6482 = vunpack.c.l.b16 %v423
        %v6483 = vunpack.c.l.b16 %v424
        %v6484 = vunpack.c.l.b16 %v425
        %v6485 = vunpack.c.l.b16 %v426
        %v6486 = vunpack.c.l.b16 %v427
        %v6487 = vunpack.c.l.b16 %v428
        %v6488 = vunpack.c.l.b16 %v429
        %v6489 = vunpack.c.l.b16 %v430
        %v6490 = vunpack.c.l.b16 %v431
        %v6491 = vunpack.c.l.b16 %v432
        %v6492 = vunpack.c.l.b16 %v433
        %v6493 = vunpack.c.l.b16 %v434
        %v6494 = vunpack.c.l.b16 %v435
        %v6495 = vunpack.c.l.b16 %v436
        %v6496 = vunpack.c.l.b16 %v437
        %v6497 = vunpack.c.l.b16 %v438
        %v6498 = vunpack.c.l.b16 %v439
        %v6499 = vunpack.c.l.b16 %v440
        %v6500 = vunpack.c.l.b16 %v441
        %v6501 = vunpack.c.l.b16 %v442
        %v6502 = vpack.c.b16 %v6359, %v6358
        %v6503 = vpack.c.b16 %v6361, %v6360
        %v6504 = vpack.c.b16 %v6363, %v6362
        %v6505 = vpack.c.b16 %v6365, %v6364
        %v6506 = vpack.c.b16 %v6367, %v6366
        %v6507 = vpack.c.b16 %v6369, %v6368
        %v6508 = vpack.c.b16 %v6371, %v6370
        %v6509 = vpack.c.b16 %v6373, %v6372
        %v6510 = vpack.c.b16 %v6375, %v6374
        %v6511 = vpack.c.b16 %v6377, %v6376
        %v6512 = vpack.c.b16 %v6379, %v6378
        %v6513 = vpack.c.b16 %v6381, %v6380
        %v6514 = vpack.c.b16 %v6383, %v6382
        %v6515 = vpack.c.b16 %v6385, %v6384
        %v6516 = vpack.c.b16 %v6387, %v6386
        %v6517 = vpack.c.b16 %v6389, %v6388
        %v6518 = vpack.c.b16 %v6391, %v6390
        %v6519 = vpack.c.b16 %v6393, %v6392
        %v6520 = vpack.c.b16 %v6395, %v6394
        %v6521 = vpack.c.b16 %v6397, %v6396
        %v6522 = vpack.c.b16 %v6399, %v6398
        %v6523 = vpack.c.b16 %v6401, %v6400
        %v6524 = vpack.c.b16 %v6403, %v6402
        %v6525 = vpack.c.b16 %v6405, %v6404
        %v6526 = vpack.c.b16 %v6407, %v6406
        %v6527 = vpack.c.b16 %v6409, %v6408
        %v6528 = vpack.c.b16 %v6411, %v6410
        %v6529 = vpack.c.b16 %v6413, %v6412
        %v6530 = vpack.c.b16 %v6415, %v6414
        %v6531 = vpack.c.b16 %v6417, %v6416
        %v6532 = vpack.c.b16 %v6419, %v6418
        %v6533 = vpack.c.b16 %v6421, %v6420
        %v6534 = vpack.c.b16 %v6423, %v6422
        %v6535 = vpack.c.b16 %v6425, %v6424
        %v6536 = vpack.c.b16 %v6427, %v6426
        %v6537 = vpack.c.b16 %v6429, %v6428
        %v6538 = vpack.c.b16 %v6431, %v6430
        %v6539 = vpack.c.b16 %v6433, %v6432
        %v6540 = vpack.c.b16 %v6435, %v6434
        %v6541 = vpack.c.b16 %v6437, %v6436
        %v6542 = vpack.c.b16 %v6439, %v6438
        %v6543 = vpack.c.b16 %v6441, %v6440
        %v6544 = vpack.c.b16 %v6443, %v6442
        %v6545 = vpack.c.b16 %v6445, %v6444
        %v6546 = vpack.c.b16 %v6447, %v6446
        %v6547 = vpack.c.b16 %v6449, %v6448
        %v6548 = vpack.c.b16 %v6451, %v6450
        %v6549 = vpack.c.b16 %v6453, %v6452
        %v6550 = vpack.c.b16 %v6455, %v6454
        %v6551 = vpack.c.b16 %v6457, %v6456
        %v6552 = vpack.c.b16 %v6459, %v6458
        %v6553 = vpack.c.b16 %v6461, %v6460
        %v6554 = vpack.c.b16 %v6463, %v6462
        %v6555 = vpack.c.b16 %v6465, %v6464
        %v6556 = vpack.c.b16 %v6467, %v6466
        %v6557 = vpack.c.b16 %v6469, %v6468
        %v6558 = vpack.c.b16 %v6471, %v6470
        %v6559 = vpack.c.b16 %v6473, %v6472
        %v6560 = vpack.c.b16 %v6475, %v6474
        %v6561 = vpack.c.b16 %v6477, %v6476
        %v6562 = vpack.c.b16 %v6479, %v6478
        %v6563 = vpack.c.b16 %v6481, %v6480
        %v6564 = vpack.c.b16 %v6483, %v6482
        %v6565 = vpack.c.b16 %v6485, %v6484
        %v6566 = vpack.c.b16 %v6487, %v6486
        %v6567 = vpack.c.b16 %v6489, %v6488
        %v6568 = vpack.c.b16 %v6491, %v6490
        %v6569 = vpack.c.b16 %v6493, %v6492
        %v6570 = vpack.c.b16 %v6495, %v6494
        %v6571 = vpack.c.b16 %v6497, %v6496
        %v6572 = vpack.c.b16 %v6499, %v6498
        %v6573 = vpack.c.b16 %v6501, %v6500
        %6646 = vmatprep.subr.bf16.mxu0 0
        %6647 = vmatpush1.bf16.msra.mxu0 %v6502
        %6648 = vmatprep.subr.bf16.mxu0 0
        %6649 = vmatpush1.bf16.msra.mxu0 %v6503
        %6650 = vmatprep.subr.bf16.mxu0 0
        %6651 = vmatpush1.bf16.msra.mxu0 %v6504
        %6652 = vmatprep.subr.bf16.mxu0 0
        %6653 = vmatpush1.bf16.msra.mxu0 %v6505
        %6654 = vmatprep.subr.bf16.mxu0 0
        %6655 = vmatpush1.bf16.msra.mxu0 %v6506
        %6656 = vmatprep.subr.bf16.mxu0 0
        %6657 = vmatpush1.bf16.msra.mxu0 %v6507
        %6658 = vmatprep.subr.bf16.mxu0 0
        %6659 = vmatpush1.bf16.msra.mxu0 %v6508
        %6660 = vmatprep.subr.bf16.mxu0 0
        %6661 = vmatpush1.bf16.msra.mxu0 %v6509
        %6662 = vmatprep.subr.bf16.mxu0 0
        %6663 = vmatpush1.bf16.msra.mxu0 %v6510
        %6664 = vmatprep.subr.bf16.mxu0 0
        %6665 = vmatpush1.bf16.msra.mxu0 %v6511
        %6666 = vmatprep.subr.bf16.mxu0 0
        %6667 = vmatpush1.bf16.msra.mxu0 %v6512
        %6668 = vmatprep.subr.bf16.mxu0 0
        %6669 = vmatpush1.bf16.msra.mxu0 %v6513
        %6670 = vmatprep.subr.bf16.mxu0 0
        %6671 = vmatpush1.bf16.msra.mxu0 %v6514
        %6672 = vmatprep.subr.bf16.mxu0 0
        %6673 = vmatpush1.bf16.msra.mxu0 %v6515
        %6674 = vmatprep.subr.bf16.mxu0 0
        %6675 = vmatpush1.bf16.msra.mxu0 %v6516
        %6676 = vmatprep.subr.bf16.mxu0 0
        %6677 = vmatpush1.bf16.msra.mxu0 %v6517
        %6678 = vmatprep.mubr.bf16.mxu0 %v4763
        %6679 = vmatmul.mubr.bf16.gmra.mrb[0].mxu0 %v4751
        %v6680 = vpop.f32.mrb[0].mxu0
        %v6681 = vadd.f32 0.0, %v6680
        %v6682 = vpop.f32.mrb[0].mxu0
        %v6683 = vpop.f32.mrb[0].mxu0
        %v6684 = vadd.f32 0.0, %v6683
        %v6685 = vpop.f32.mrb[0].mxu0
        %6686 = vmatprep.mubr.bf16.mxu0 %v4859
        %6687 = vmatmul.mubr.bf16.gmra.mrb[0].mxu0 %v4847
        %v6688 = vpop.f32.mrb[0].mxu0
        %v6689 = vadd.f32 0.0, %v6688
        %v6690 = vpop.f32.mrb[0].mxu0
        %v6691 = vpop.f32.mrb[0].mxu0
        %v6692 = vadd.f32 0.0, %v6691
        %v6693 = vpop.f32.mrb[0].mxu0
        %6694 = vmatprep.mubr.bf16.mxu0 %v4955
        %6695 = vmatmul.mubr.bf16.gmra.mrb[0].mxu0 %v4943
        %v6696 = vpop.f32.mrb[0].mxu0
        %v6697 = vadd.f32 0.0, %v6696
        %v6698 = vpop.f32.mrb[0].mxu0
        %v6699 = vpop.f32.mrb[0].mxu0
        %v6700 = vadd.f32 0.0, %v6699
        %v6701 = vpop.f32.mrb[0].mxu0
        %6702 = vmatprep.mubr.bf16.mxu0 %v5051
        %6703 = vmatmul.mubr.bf16.gmra.mrb[0].mxu0 %v5039
        %v6704 = vpop.f32.mrb[0].mxu0
        %v6705 = vadd.f32 0.0, %v6704
        %v6706 = vpop.f32.mrb[0].mxu0
        %v6707 = vpop.f32.mrb[0].mxu0
        %v6708 = vadd.f32 0.0, %v6707
        %v6709 = vpop.f32.mrb[0].mxu0
        %6710 = vmatprep.mubr.bf16.mxu0 %v5147
        %6711 = vmatmul.mubr.bf16.gmra.mrb[0].mxu0 %v5135
        %v6712 = vpop.f32.mrb[0].mxu0
        %v6713 = vadd.f32 0.0, %v6712
        %v6714 = vpop.f32.mrb[0].mxu0
        %v6715 = vpop.f32.mrb[0].mxu0
        %v6716 = vadd.f32 0.0, %v6715
        %v6717 = vpop.f32.mrb[0].mxu0
        %6718 = vmatprep.mubr.bf16.mxu0 %v5243
        %6719 = vmatmul.mubr.bf16.gmra.mrb[0].mxu0 %v5231
        %v6720 = vpop.f32.mrb[0].mxu0
        %v6721 = vadd.f32 0.0, %v6720
        %v6722 = vpop.f32.mrb[0].mxu0
        %v6723 = vpop.f32.mrb[0].mxu0
        %v6724 = vadd.f32 0.0, %v6723
        %v6725 = vpop.f32.mrb[0].mxu0
        %6726 = vmatprep.mubr.bf16.mxu0 %v5339
        %6727 = vmatmul.mubr.bf16.gmra.mrb[0].mxu0 %v5327
        %v6728 = vpop.f32.mrb[0].mxu0
        %v6729 = vadd.f32 0.0, %v6728
        %v6730 = vpop.f32.mrb[0].mxu0
        %v6731 = vpop.f32.mrb[0].mxu0
        %v6732 = vadd.f32 0.0, %v6731
        %v6733 = vpop.f32.mrb[0].mxu0
        %6734 = vmatprep.mubr.bf16.mxu0 %v5435
        %6735 = vmatmul.mubr.bf16.gmra.mrb[0].mxu0 %v5423
        %v6736 = vpop.f32.mrb[0].mxu0
        %v6737 = vadd.f32 0.0, %v6736
        %v6738 = vpop.f32.mrb[0].mxu0
        %v6739 = vpop.f32.mrb[0].mxu0
        %v6740 = vadd.f32 0.0, %v6739
        %v6741 = vpop.f32.mrb[0].mxu0
        %6742 = vmatprep.mubr.bf16.mxu0 %v5531
        %6743 = vmatmul.mubr.bf16.gmra.mrb[0].mxu0 %v5519
        %v6744 = vpop.f32.mrb[0].mxu0
        %v6745 = vadd.f32 0.0, %v6744
        %v6746 = vpop.f32.mrb[0].mxu0
        %v6747 = vpop.f32.mrb[0].mxu0
        %v6748 = vadd.f32 0.0, %v6747
        %v6749 = vpop.f32.mrb[0].mxu0
        %6750 = vmatprep.mubr.bf16.mxu0 %v5627
        %6751 = vmatmul.mubr.bf16.gmra.mrb[0].mxu0 %v5615
        %v6752 = vpop.f32.mrb[0].mxu0
        %v6753 = vadd.f32 0.0, %v6752
        %v6754 = vpop.f32.mrb[0].mxu0
        %v6755 = vpop.f32.mrb[0].mxu0
        %v6756 = vadd.f32 0.0, %v6755
        %v6757 = vpop.f32.mrb[0].mxu0
        %6758 = vmatprep.mubr.bf16.mxu0 %v5723
        %6759 = vmatmul.mubr.bf16.gmra.mrb[0].mxu0 %v5711
        %v6760 = vpop.f32.mrb[0].mxu0
        %v6761 = vadd.f32 0.0, %v6760
        %v6762 = vpop.f32.mrb[0].mxu0
        %v6763 = vpop.f32.mrb[0].mxu0
        %v6764 = vadd.f32 0.0, %v6763
        %v6765 = vpop.f32.mrb[0].mxu0
        %6766 = vmatprep.mubr.bf16.mxu0 %v5819
        %6767 = vmatmul.mubr.bf16.gmra.mrb[0].mxu0 %v5807
        %v6768 = vpop.f32.mrb[0].mxu0
        %v6769 = vadd.f32 0.0, %v6768
        %v6770 = vpop.f32.mrb[0].mxu0
        %v6771 = vpop.f32.mrb[0].mxu0
        %v6772 = vadd.f32 0.0, %v6771
        %v6773 = vpop.f32.mrb[0].mxu0
        %6774 = vmatprep.mubr.bf16.mxu0 %v5915
        %6775 = vmatmul.mubr.bf16.gmra.mrb[0].mxu0 %v5903
        %v6776 = vpop.f32.mrb[0].mxu0
        %v6777 = vadd.f32 0.0, %v6776
        %v6778 = vpop.f32.mrb[0].mxu0
        %v6779 = vpop.f32.mrb[0].mxu0
        %v6780 = vadd.f32 0.0, %v6779
        %v6781 = vpop.f32.mrb[0].mxu0
        %6782 = vmatprep.mubr.bf16.mxu0 %v6011
        %6783 = vmatmul.mubr.bf16.gmra.mrb[0].mxu0 %v5999
        %v6784 = vpop.f32.mrb[0].mxu0
        %v6785 = vadd.f32 0.0, %v6784
        %v6786 = vpop.f32.mrb[0].mxu0
        %v6787 = vpop.f32.mrb[0].mxu0
        %v6788 = vadd.f32 0.0, %v6787
        %v6789 = vpop.f32.mrb[0].mxu0
        %6790 = vdwg.mxu0
        %6791 = vmatprep.subr.bf16.mxu0 0
        %6792 = vmatpush1.bf16.msra.mxu0 %v6518
        %6793 = vmatprep.subr.bf16.mxu0 0
        %6794 = vmatpush1.bf16.msra.mxu0 %v6519
        %6795 = vmatprep.subr.bf16.mxu0 0
        %6796 = vmatpush1.bf16.msra.mxu0 %v6520
        %6797 = vmatprep.subr.bf16.mxu0 0
        %6798 = vmatpush1.bf16.msra.mxu0 %v6521
        %6799 = vmatprep.subr.bf16.mxu0 0
        %6800 = vmatpush1.bf16.msra.mxu0 %v6522
        %6801 = vmatprep.subr.bf16.mxu0 0
        %6802 = vmatpush1.bf16.msra.mxu0 %v6523
        %6803 = vmatprep.subr.bf16.mxu0 0
        %6804 = vmatpush1.bf16.msra.mxu0 %v6524
        %6805 = vmatprep.subr.bf16.mxu0 0
        %6806 = vmatpush1.bf16.msra.mxu0 %v6525
        %6807 = vmatprep.subr.bf16.mxu0 0
        %6808 = vmatpush1.bf16.msra.mxu0 %v6526
        %6809 = vmatprep.subr.bf16.mxu0 0
        %6810 = vmatpush1.bf16.msra.mxu0 %v6527
        %6811 = vmatprep.subr.bf16.mxu0 0
        %6812 = vmatpush1.bf16.msra.mxu0 %v6528
        %6813 = vmatprep.subr.bf16.mxu0 0
        %6814 = vmatpush1.bf16.msra.mxu0 %v6529
        %6815 = vmatprep.subr.bf16.mxu0 0
        %6816 = vmatpush1.bf16.msra.mxu0 %v6530
        %6817 = vmatprep.subr.bf16.mxu0 0
        %6818 = vmatpush1.bf16.msra.mxu0 %v6531
        %6819 = vmatprep.subr.bf16.mxu0 0
        %6820 = vmatpush1.bf16.msra.mxu0 %v6532
        %6821 = vmatprep.subr.bf16.mxu0 0
        %6822 = vmatpush1.bf16.msra.mxu0 %v6533
        %6823 = vmatprep.mubr.bf16.mxu0 %v4783
        %6824 = vmatmul.mubr.bf16.gmra.mrb[0].mxu0 %v4775
        %v6825 = vpop.f32.mrb[0].mxu0
        %v6826 = vadd.f32 %v6681, %v6825
        %v6827 = vpop.f32.mrb[0].mxu0
        %v6828 = vpop.f32.mrb[0].mxu0
        %v6829 = vadd.f32 %v6684, %v6828
        %v6830 = vpop.f32.mrb[0].mxu0
        %6831 = vmatprep.mubr.bf16.mxu0 %v4879
        %6832 = vmatmul.mubr.bf16.gmra.mrb[0].mxu0 %v4871
        %v6833 = vpop.f32.mrb[0].mxu0
        %v6834 = vadd.f32 %v6689, %v6833
        %v6835 = vpop.f32.mrb[0].mxu0
        %v6836 = vpop.f32.mrb[0].mxu0
        %v6837 = vadd.f32 %v6692, %v6836
        %v6838 = vpop.f32.mrb[0].mxu0
        %6839 = vmatprep.mubr.bf16.mxu0 %v4975
        %6840 = vmatmul.mubr.bf16.gmra.mrb[0].mxu0 %v4967
        %v6841 = vpop.f32.mrb[0].mxu0
        %v6842 = vadd.f32 %v6697, %v6841
        %v6843 = vpop.f32.mrb[0].mxu0
        %v6844 = vpop.f32.mrb[0].mxu0
        %v6845 = vadd.f32 %v6700, %v6844
        %v6846 = vpop.f32.mrb[0].mxu0
        %6847 = vmatprep.mubr.bf16.mxu0 %v5071
        %6848 = vmatmul.mubr.bf16.gmra.mrb[0].mxu0 %v5063
        %v6849 = vpop.f32.mrb[0].mxu0
        %v6850 = vadd.f32 %v6705, %v6849
        %v6851 = vpop.f32.mrb[0].mxu0
        %v6852 = vpop.f32.mrb[0].mxu0
        %v6853 = vadd.f32 %v6708, %v6852
        %v6854 = vpop.f32.mrb[0].mxu0
        %6855 = vmatprep.mubr.bf16.mxu0 %v5167
        %6856 = vmatmul.mubr.bf16.gmra.mrb[0].mxu0 %v5159
        %v6857 = vpop.f32.mrb[0].mxu0
        %v6858 = vadd.f32 %v6713, %v6857
        %v6859 = vpop.f32.mrb[0].mxu0
        %v6860 = vpop.f32.mrb[0].mxu0
        %v6861 = vadd.f32 %v6716, %v6860
        %v6862 = vpop.f32.mrb[0].mxu0
        %6863 = vmatprep.mubr.bf16.mxu0 %v5263
        %6864 = vmatmul.mubr.bf16.gmra.mrb[0].mxu0 %v5255
        %v6865 = vpop.f32.mrb[0].mxu0
        %v6866 = vadd.f32 %v6721, %v6865
        %v6867 = vpop.f32.mrb[0].mxu0
        %v6868 = vpop.f32.mrb[0].mxu0
        %v6869 = vadd.f32 %v6724, %v6868
        %v6870 = vpop.f32.mrb[0].mxu0
        %6871 = vmatprep.mubr.bf16.mxu0 %v5359
        %6872 = vmatmul.mubr.bf16.gmra.mrb[0].mxu0 %v5351
        %v6873 = vpop.f32.mrb[0].mxu0
        %v6874 = vadd.f32 %v6729, %v6873
        %v6875 = vpop.f32.mrb[0].mxu0
        %v6876 = vpop.f32.mrb[0].mxu0
        %v6877 = vadd.f32 %v6732, %v6876
        %v6878 = vpop.f32.mrb[0].mxu0
        %6879 = vmatprep.mubr.bf16.mxu0 %v5455
        %6880 = vmatmul.mubr.bf16.gmra.mrb[0].mxu0 %v5447
        %v6881 = vpop.f32.mrb[0].mxu0
        %v6882 = vadd.f32 %v6737, %v6881
        %v6883 = vpop.f32.mrb[0].mxu0
        %v6884 = vpop.f32.mrb[0].mxu0
        %v6885 = vadd.f32 %v6740, %v6884
        %v6886 = vpop.f32.mrb[0].mxu0
        %6887 = vmatprep.mubr.bf16.mxu0 %v5551
        %6888 = vmatmul.mubr.bf16.gmra.mrb[0].mxu0 %v5543
        %v6889 = vpop.f32.mrb[0].mxu0
        %v6890 = vadd.f32 %v6745, %v6889
        %v6891 = vpop.f32.mrb[0].mxu0
        %v6892 = vpop.f32.mrb[0].mxu0
        %v6893 = vadd.f32 %v6748, %v6892
        %v6894 = vpop.f32.mrb[0].mxu0
        %6895 = vmatprep.mubr.bf16.mxu0 %v5647
        %6896 = vmatmul.mubr.bf16.gmra.mrb[0].mxu0 %v5639
        %v6897 = vpop.f32.mrb[0].mxu0
        %v6898 = vadd.f32 %v6753, %v6897
        %v6899 = vpop.f32.mrb[0].mxu0
        %v6900 = vpop.f32.mrb[0].mxu0
        %v6901 = vadd.f32 %v6756, %v6900
        %v6902 = vpop.f32.mrb[0].mxu0
        %6903 = vmatprep.mubr.bf16.mxu0 %v5743
        %6904 = vmatmul.mubr.bf16.gmra.mrb[0].mxu0 %v5735
        %v6905 = vpop.f32.mrb[0].mxu0
        %v6906 = vadd.f32 %v6761, %v6905
        %v6907 = vpop.f32.mrb[0].mxu0
        %v6908 = vpop.f32.mrb[0].mxu0
        %v6909 = vadd.f32 %v6764, %v6908
        %v6910 = vpop.f32.mrb[0].mxu0
        %6911 = vmatprep.mubr.bf16.mxu0 %v5839
        %6912 = vmatmul.mubr.bf16.gmra.mrb[0].mxu0 %v5831
        %v6913 = vpop.f32.mrb[0].mxu0
        %v6914 = vadd.f32 %v6769, %v6913
        %v6915 = vpop.f32.mrb[0].mxu0
        %v6916 = vpop.f32.mrb[0].mxu0
        %v6917 = vadd.f32 %v6772, %v6916
        %v6918 = vpop.f32.mrb[0].mxu0
        %6919 = vmatprep.mubr.bf16.mxu0 %v5935
        %6920 = vmatmul.mubr.bf16.gmra.mrb[0].mxu0 %v5927
        %v6921 = vpop.f32.mrb[0].mxu0
        %v6922 = vadd.f32 %v6777, %v6921
        %v6923 = vpop.f32.mrb[0].mxu0
        %v6924 = vpop.f32.mrb[0].mxu0
        %v6925 = vadd.f32 %v6780, %v6924
        %v6926 = vpop.f32.mrb[0].mxu0
        %6927 = vmatprep.mubr.bf16.mxu0 %v6031
        %6928 = vmatmul.mubr.bf16.gmra.mrb[0].mxu0 %v6023
        %v6929 = vpop.f32.mrb[0].mxu0
        %v6930 = vadd.f32 %v6785, %v6929
        %v6931 = vpop.f32.mrb[0].mxu0
        %v6932 = vpop.f32.mrb[0].mxu0
        %v6933 = vadd.f32 %v6788, %v6932
        %v6934 = vpop.f32.mrb[0].mxu0
        %6935 = vdwg.mxu0
        %6936 = vmatprep.subr.bf16.mxu0 0
        %6937 = vmatpush1.bf16.msra.mxu0 %v6534
        %6938 = vmatprep.subr.bf16.mxu0 0
        %6939 = vmatpush1.bf16.msra.mxu0 %v6535
        %6940 = vmatprep.subr.bf16.mxu0 0
        %6941 = vmatpush1.bf16.msra.mxu0 %v6536
        %6942 = vmatprep.subr.bf16.mxu0 0
        %6943 = vmatpush1.bf16.msra.mxu0 %v6537
        %6944 = vmatprep.subr.bf16.mxu0 0
        %6945 = vmatpush1.bf16.msra.mxu0 %v6538
        %6946 = vmatprep.subr.bf16.mxu0 0
        %6947 = vmatpush1.bf16.msra.mxu0 %v6539
        %6948 = vmatprep.subr.bf16.mxu0 0
        %6949 = vmatpush1.bf16.msra.mxu0 %v6540
        %6950 = vmatprep.subr.bf16.mxu0 0
        %6951 = vmatpush1.bf16.msra.mxu0 %v6541
        %6952 = vmatprep.subr.bf16.mxu0 0
        %6953 = vmatpush1.bf16.msra.mxu0 %v6542
        %6954 = vmatprep.subr.bf16.mxu0 0
        %6955 = vmatpush1.bf16.msra.mxu0 %v6543
        %6956 = vmatprep.subr.bf16.mxu0 0
        %6957 = vmatpush1.bf16.msra.mxu0 %v6544
        %6958 = vmatprep.subr.bf16.mxu0 0
        %6959 = vmatpush1.bf16.msra.mxu0 %v6545
        %6960 = vmatprep.subr.bf16.mxu0 0
        %6961 = vmatpush1.bf16.msra.mxu0 %v6546
        %6962 = vmatprep.subr.bf16.mxu0 0
        %6963 = vmatpush1.bf16.msra.mxu0 %v6547
        %6964 = vmatprep.subr.bf16.mxu0 0
        %6965 = vmatpush1.bf16.msra.mxu0 %v6548
        %6966 = vmatprep.subr.bf16.mxu0 0
        %6967 = vmatpush1.bf16.msra.mxu0 %v6549
        %6968 = vmatprep.mubr.bf16.mxu0 %v4807
        %6969 = vmatmul.mubr.bf16.gmra.mrb[0].mxu0 %v4795
        %v6970 = vpop.f32.mrb[0].mxu0
        %v6971 = vadd.f32 %v6826, %v6970
        %v6972 = vpop.f32.mrb[0].mxu0
        %v6973 = vpop.f32.mrb[0].mxu0
        %v6974 = vadd.f32 %v6829, %v6973
        %v6975 = vpop.f32.mrb[0].mxu0
        %6976 = vmatprep.mubr.bf16.mxu0 %v4903
        %6977 = vmatmul.mubr.bf16.gmra.mrb[0].mxu0 %v4891
        %v6978 = vpop.f32.mrb[0].mxu0
        %v6979 = vadd.f32 %v6834, %v6978
        %v6980 = vpop.f32.mrb[0].mxu0
        %v6981 = vpop.f32.mrb[0].mxu0
        %v6982 = vadd.f32 %v6837, %v6981
        %v6983 = vpop.f32.mrb[0].mxu0
        %6984 = vmatprep.mubr.bf16.mxu0 %v4999
        %6985 = vmatmul.mubr.bf16.gmra.mrb[0].mxu0 %v4987
        %v6986 = vpop.f32.mrb[0].mxu0
        %v6987 = vadd.f32 %v6842, %v6986
        %v6988 = vpop.f32.mrb[0].mxu0
        %v6989 = vpop.f32.mrb[0].mxu0
        %v6990 = vadd.f32 %v6845, %v6989
        %v6991 = vpop.f32.mrb[0].mxu0
        %6992 = vmatprep.mubr.bf16.mxu0 %v5095
        %6993 = vmatmul.mubr.bf16.gmra.mrb[0].mxu0 %v5083
        %v6994 = vpop.f32.mrb[0].mxu0
        %v6995 = vadd.f32 %v6850, %v6994
        %v6996 = vpop.f32.mrb[0].mxu0
        %v6997 = vpop.f32.mrb[0].mxu0
        %v6998 = vadd.f32 %v6853, %v6997
        %v6999 = vpop.f32.mrb[0].mxu0
        %7000 = vmatprep.mubr.bf16.mxu0 %v5191
        %7001 = vmatmul.mubr.bf16.gmra.mrb[0].mxu0 %v5179
        %v7002 = vpop.f32.mrb[0].mxu0
        %v7003 = vadd.f32 %v6858, %v7002
        %v7004 = vpop.f32.mrb[0].mxu0
        %v7005 = vpop.f32.mrb[0].mxu0
        %v7006 = vadd.f32 %v6861, %v7005
        %v7007 = vpop.f32.mrb[0].mxu0
        %7008 = vmatprep.mubr.bf16.mxu0 %v5287
        %7009 = vmatmul.mubr.bf16.gmra.mrb[0].mxu0 %v5275
        %v7010 = vpop.f32.mrb[0].mxu0
        %v7011 = vadd.f32 %v6866, %v7010
        %v7012 = vpop.f32.mrb[0].mxu0
        %v7013 = vpop.f32.mrb[0].mxu0
        %v7014 = vadd.f32 %v6869, %v7013
        %v7015 = vpop.f32.mrb[0].mxu0
        %7016 = vmatprep.mubr.bf16.mxu0 %v5383
        %7017 = vmatmul.mubr.bf16.gmra.mrb[0].mxu0 %v5371
        %v7018 = vpop.f32.mrb[0].mxu0
        %v7019 = vadd.f32 %v6874, %v7018
        %v7020 = vpop.f32.mrb[0].mxu0
        %v7021 = vpop.f32.mrb[0].mxu0
        %v7022 = vadd.f32 %v6877, %v7021
        %v7023 = vpop.f32.mrb[0].mxu0
        %7024 = vmatprep.mubr.bf16.mxu0 %v5479
        %7025 = vmatmul.mubr.bf16.gmra.mrb[0].mxu0 %v5467
        %v7026 = vpop.f32.mrb[0].mxu0
        %v7027 = vadd.f32 %v6882, %v7026
        %v7028 = vpop.f32.mrb[0].mxu0
        %v7029 = vpop.f32.mrb[0].mxu0
        %v7030 = vadd.f32 %v6885, %v7029
        %v7031 = vpop.f32.mrb[0].mxu0
        %7032 = vmatprep.mubr.bf16.mxu0 %v5575
        %7033 = vmatmul.mubr.bf16.gmra.mrb[0].mxu0 %v5563
        %v7034 = vpop.f32.mrb[0].mxu0
        %v7035 = vadd.f32 %v6890, %v7034
        %v7036 = vpop.f32.mrb[0].mxu0
        %v7037 = vpop.f32.mrb[0].mxu0
        %v7038 = vadd.f32 %v6893, %v7037
        %v7039 = vpop.f32.mrb[0].mxu0
        %7040 = vmatprep.mubr.bf16.mxu0 %v5671
        %7041 = vmatmul.mubr.bf16.gmra.mrb[0].mxu0 %v5659
        %v7042 = vpop.f32.mrb[0].mxu0
        %v7043 = vadd.f32 %v6898, %v7042
        %v7044 = vpop.f32.mrb[0].mxu0
        %v7045 = vpop.f32.mrb[0].mxu0
        %v7046 = vadd.f32 %v6901, %v7045
        %v7047 = vpop.f32.mrb[0].mxu0
        %7048 = vmatprep.mubr.bf16.mxu0 %v5767
        %7049 = vmatmul.mubr.bf16.gmra.mrb[0].mxu0 %v5755
        %v7050 = vpop.f32.mrb[0].mxu0
        %v7051 = vadd.f32 %v6906, %v7050
        %v7052 = vpop.f32.mrb[0].mxu0
        %v7053 = vpop.f32.mrb[0].mxu0
        %v7054 = vadd.f32 %v6909, %v7053
        %v7055 = vpop.f32.mrb[0].mxu0
        %7056 = vmatprep.mubr.bf16.mxu0 %v5863
        %7057 = vmatmul.mubr.bf16.gmra.mrb[0].mxu0 %v5851
        %v7058 = vpop.f32.mrb[0].mxu0
        %v7059 = vadd.f32 %v6914, %v7058
        %v7060 = vpop.f32.mrb[0].mxu0
        %v7061 = vpop.f32.mrb[0].mxu0
        %v7062 = vadd.f32 %v6917, %v7061
        %v7063 = vpop.f32.mrb[0].mxu0
        %7064 = vmatprep.mubr.bf16.mxu0 %v5959
        %7065 = vmatmul.mubr.bf16.gmra.mrb[0].mxu0 %v5947
        %v7066 = vpop.f32.mrb[0].mxu0
        %v7067 = vadd.f32 %v6922, %v7066
        %v7068 = vpop.f32.mrb[0].mxu0
        %v7069 = vpop.f32.mrb[0].mxu0
        %v7070 = vadd.f32 %v6925, %v7069
        %v7071 = vpop.f32.mrb[0].mxu0
        %7072 = vmatprep.mubr.bf16.mxu0 %v6055
        %7073 = vmatmul.mubr.bf16.gmra.mrb[0].mxu0 %v6043
        %v7074 = vpop.f32.mrb[0].mxu0
        %v7075 = vadd.f32 %v6930, %v7074
        %v7076 = vpop.f32.mrb[0].mxu0
        %v7077 = vpop.f32.mrb[0].mxu0
        %v7078 = vadd.f32 %v6933, %v7077
        %v7079 = vpop.f32.mrb[0].mxu0
        %7080 = vdwg.mxu0
        %7081 = vmatprep.subr.bf16.mxu0 0
        %7082 = vmatpush1.bf16.msra.mxu0 %v6550
        %7083 = vmatprep.subr.bf16.mxu0 0
        %7084 = vmatpush1.bf16.msra.mxu0 %v6551
        %7085 = vmatprep.subr.bf16.mxu0 0
        %7086 = vmatpush1.bf16.msra.mxu0 %v6552
        %7087 = vmatprep.subr.bf16.mxu0 0
        %7088 = vmatpush1.bf16.msra.mxu0 %v6553
        %7089 = vmatprep.subr.bf16.mxu0 0
        %7090 = vmatpush1.bf16.msra.mxu0 %v6554
        %7091 = vmatprep.subr.bf16.mxu0 0
        %7092 = vmatpush1.bf16.msra.mxu0 %v6555
        %7093 = vmatprep.subr.bf16.mxu0 0
        %7094 = vmatpush1.bf16.msra.mxu0 %v6556
        %7095 = vmatprep.subr.bf16.mxu0 0
        %7096 = vmatpush1.bf16.msra.mxu0 %v6557
        %7097 = vmatprep.subr.bf16.mxu0 0
        %7098 = vmatpush1.bf16.msra.mxu0 %v6558
        %7099 = vmatprep.subr.bf16.mxu0 0
        %7100 = vmatpush1.bf16.msra.mxu0 %v6559
        %7101 = vmatprep.subr.bf16.mxu0 0
        %7102 = vmatpush1.bf16.msra.mxu0 %v6560
        %7103 = vmatprep.subr.bf16.mxu0 0
        %7104 = vmatpush1.bf16.msra.mxu0 %v6561
        %7105 = vmatprep.subr.bf16.mxu0 0
        %7106 = vmatpush1.bf16.msra.mxu0 %v6562
        %7107 = vmatprep.subr.bf16.mxu0 0
        %7108 = vmatpush1.bf16.msra.mxu0 %v6563
        %7109 = vmatprep.subr.bf16.mxu0 0
        %7110 = vmatpush1.bf16.msra.mxu0 %v6564
        %7111 = vmatprep.subr.bf16.mxu0 0
        %7112 = vmatpush1.bf16.msra.mxu0 %v6565
        %7113 = vmatprep.mubr.bf16.mxu0 %v4827
        %7114 = vmatmul.mubr.bf16.gmra.mrb[0].mxu0 %v4815
        %v7115 = vpop.f32.mrb[0].mxu0
        %v7116 = vadd.f32 %v6971, %v7115
        %v7117 = vpop.f32.mrb[0].mxu0
        %v7118 = vpop.f32.mrb[0].mxu0
        %v7119 = vadd.f32 %v6974, %v7118
        %v7120 = vpop.f32.mrb[0].mxu0
        %7121 = vmatprep.mubr.bf16.mxu0 %v4923
        %7122 = vmatmul.mubr.bf16.gmra.mrb[0].mxu0 %v4911
        %v7123 = vpop.f32.mrb[0].mxu0
        %v7124 = vadd.f32 %v6979, %v7123
        %v7125 = vpop.f32.mrb[0].mxu0
        %v7126 = vpop.f32.mrb[0].mxu0
        %v7127 = vadd.f32 %v6982, %v7126
        %v7128 = vpop.f32.mrb[0].mxu0
        %7129 = vmatprep.mubr.bf16.mxu0 %v5019
        %7130 = vmatmul.mubr.bf16.gmra.mrb[0].mxu0 %v5007
        %v7131 = vpop.f32.mrb[0].mxu0
        %v7132 = vadd.f32 %v6987, %v7131
        %v7133 = vpop.f32.mrb[0].mxu0
        %v7134 = vpop.f32.mrb[0].mxu0
        %v7135 = vadd.f32 %v6990, %v7134
        %v7136 = vpop.f32.mrb[0].mxu0
        %7137 = vmatprep.mubr.bf16.mxu0 %v5115
        %7138 = vmatmul.mubr.bf16.gmra.mrb[0].mxu0 %v5103
        %v7139 = vpop.f32.mrb[0].mxu0
        %v7140 = vadd.f32 %v6995, %v7139
        %v7141 = vpop.f32.mrb[0].mxu0
        %v7142 = vpop.f32.mrb[0].mxu0
        %v7143 = vadd.f32 %v6998, %v7142
        %v7144 = vpop.f32.mrb[0].mxu0
        %7145 = vmatprep.mubr.bf16.mxu0 %v5211
        %7146 = vmatmul.mubr.bf16.gmra.mrb[0].mxu0 %v5199
        %v7147 = vpop.f32.mrb[0].mxu0
        %v7148 = vadd.f32 %v7003, %v7147
        %v7149 = vpop.f32.mrb[0].mxu0
        %v7150 = vpop.f32.mrb[0].mxu0
        %v7151 = vadd.f32 %v7006, %v7150
        %v7152 = vpop.f32.mrb[0].mxu0
        %7153 = vmatprep.mubr.bf16.mxu0 %v5307
        %7154 = vmatmul.mubr.bf16.gmra.mrb[0].mxu0 %v5295
        %v7155 = vpop.f32.mrb[0].mxu0
        %v7156 = vadd.f32 %v7011, %v7155
        %v7157 = vpop.f32.mrb[0].mxu0
        %v7158 = vpop.f32.mrb[0].mxu0
        %v7159 = vadd.f32 %v7014, %v7158
        %v7160 = vpop.f32.mrb[0].mxu0
        %7161 = vmatprep.mubr.bf16.mxu0 %v5403
        %7162 = vmatmul.mubr.bf16.gmra.mrb[0].mxu0 %v5391
        %v7163 = vpop.f32.mrb[0].mxu0
        %v7164 = vadd.f32 %v7019, %v7163
        %v7165 = vpop.f32.mrb[0].mxu0
        %v7166 = vpop.f32.mrb[0].mxu0
        %v7167 = vadd.f32 %v7022, %v7166
        %v7168 = vpop.f32.mrb[0].mxu0
        %7169 = vmatprep.mubr.bf16.mxu0 %v5499
        %7170 = vmatmul.mubr.bf16.gmra.mrb[0].mxu0 %v5487
        %v7171 = vpop.f32.mrb[0].mxu0
        %v7172 = vadd.f32 %v7027, %v7171
        %v7173 = vpop.f32.mrb[0].mxu0
        %v7174 = vpop.f32.mrb[0].mxu0
        %v7175 = vadd.f32 %v7030, %v7174
        %v7176 = vpop.f32.mrb[0].mxu0
        %7177 = vmatprep.mubr.bf16.mxu0 %v5595
        %7178 = vmatmul.mubr.bf16.gmra.mrb[0].mxu0 %v5583
        %v7179 = vpop.f32.mrb[0].mxu0
        %v7180 = vadd.f32 %v7035, %v7179
        %v7181 = vpop.f32.mrb[0].mxu0
        %v7182 = vpop.f32.mrb[0].mxu0
        %v7183 = vadd.f32 %v7038, %v7182
        %v7184 = vpop.f32.mrb[0].mxu0
        %7185 = vmatprep.mubr.bf16.mxu0 %v5691
        %7186 = vmatmul.mubr.bf16.gmra.mrb[0].mxu0 %v5679
        %v7187 = vpop.f32.mrb[0].mxu0
        %v7188 = vadd.f32 %v7043, %v7187
        %v7189 = vpop.f32.mrb[0].mxu0
        %v7190 = vpop.f32.mrb[0].mxu0
        %v7191 = vadd.f32 %v7046, %v7190
        %v7192 = vpop.f32.mrb[0].mxu0
        %7193 = vmatprep.mubr.bf16.mxu0 %v5787
        %7194 = vmatmul.mubr.bf16.gmra.mrb[0].mxu0 %v5775
        %v7195 = vpop.f32.mrb[0].mxu0
        %v7196 = vadd.f32 %v7051, %v7195
        %v7197 = vpop.f32.mrb[0].mxu0
        %v7198 = vpop.f32.mrb[0].mxu0
        %v7199 = vadd.f32 %v7054, %v7198
        %v7200 = vpop.f32.mrb[0].mxu0
        %7201 = vmatprep.mubr.bf16.mxu0 %v5883
        %7202 = vmatmul.mubr.bf16.gmra.mrb[0].mxu0 %v5871
        %v7203 = vpop.f32.mrb[0].mxu0
        %v7204 = vadd.f32 %v7059, %v7203
        %v7205 = vpop.f32.mrb[0].mxu0
        %v7206 = vpop.f32.mrb[0].mxu0
        %v7207 = vadd.f32 %v7062, %v7206
        %v7208 = vpop.f32.mrb[0].mxu0
        %7209 = vmatprep.mubr.bf16.mxu0 %v5979
        %7210 = vmatmul.mubr.bf16.gmra.mrb[0].mxu0 %v5967
        %v7211 = vpop.f32.mrb[0].mxu0
        %v7212 = vadd.f32 %v7067, %v7211
        %v7213 = vpop.f32.mrb[0].mxu0
        %v7214 = vpop.f32.mrb[0].mxu0
        %v7215 = vadd.f32 %v7070, %v7214
        %v7216 = vpop.f32.mrb[0].mxu0
        %7217 = vmatprep.mubr.bf16.mxu0 %v6075
        %7218 = vmatmul.mubr.bf16.gmra.mrb[0].mxu0 %v6063
        %v7219 = vpop.f32.mrb[0].mxu0
        %v7220 = vadd.f32 %v7075, %v7219
        %v7221 = vpop.f32.mrb[0].mxu0
        %v7222 = vpop.f32.mrb[0].mxu0
        %v7223 = vadd.f32 %v7078, %v7222
        %v7224 = vpop.f32.mrb[0].mxu0
        %7225 = vdwg.mxu0
        %7226 = vmatprep.subr.bf16.mxu0 0
        %7227 = vmatpush1.bf16.msra.mxu0 %v6566
        %7228 = vmatprep.subr.bf16.mxu0 0
        %7229 = vmatpush1.bf16.msra.mxu0 %v6567
        %7230 = vmatprep.subr.bf16.mxu0 0
        %7231 = vmatpush1.bf16.msra.mxu0 %v6568
        %7232 = vmatprep.subr.bf16.mxu0 0
        %7233 = vmatpush1.bf16.msra.mxu0 %v6569
        %7234 = vmatprep.subr.bf16.mxu0 0
        %7235 = vmatpush1.bf16.msra.mxu0 %v6570
        %7236 = vmatprep.subr.bf16.mxu0 0
        %7237 = vmatpush1.bf16.msra.mxu0 %v6571
        %7238 = vmatprep.subr.bf16.mxu0 0
        %7239 = vmatpush1.bf16.msra.mxu0 %v6572
        %7240 = vmatprep.subr.bf16.mxu0 0
        %7241 = vmatpush1.bf16.msra.mxu0 %v6573
        %7242 = vmatprep.subr.bf16.mxu0 0
        %7243 = vmatpush1.bf16.msra.mxu0 0
        %7244 = vmatprep.subr.bf16.mxu0 0
        %7245 = vmatpush1.bf16.msra.mxu0 0
        %7246 = vmatprep.subr.bf16.mxu0 0
        %7247 = vmatpush1.bf16.msra.mxu0 0
        %7248 = vmatprep.subr.bf16.mxu0 0
        %7249 = vmatpush1.bf16.msra.mxu0 0
        %7250 = vmatprep.subr.bf16.mxu0 0
        %7251 = vmatpush1.bf16.msra.mxu0 0
        %7252 = vmatprep.subr.bf16.mxu0 0
        %7253 = vmatpush1.bf16.msra.mxu0 0
        %7254 = vmatprep.subr.bf16.mxu0 0
        %7255 = vmatpush1.bf16.msra.mxu0 0
        %7256 = vmatprep.subr.bf16.mxu0 0
        %7257 = vmatpush1.bf16.msra.mxu0 0
        %7258 = vmatprep.mubr.bf16.mxu0 0
        %7259 = vmatmul.mubr.bf16.gmra.mrb[0].mxu0 %v4839
        %v7260 = vpop.f32.mrb[0].mxu0
        %v7261 = vadd.f32 %v7116, %v7260
        %v7262 = vpop.f32.mrb[0].mxu0
        %v7263 = vpop.f32.mrb[0].mxu0
        %v7264 = vadd.f32 %v7119, %v7263
        %v7265 = vpop.f32.mrb[0].mxu0
        %7266 = vmatprep.mubr.bf16.mxu0 0
        %7267 = vmatmul.mubr.bf16.gmra.mrb[0].mxu0 %v4935
        %v7268 = vpop.f32.mrb[0].mxu0
        %v7269 = vadd.f32 %v7124, %v7268
        %v7270 = vpop.f32.mrb[0].mxu0
        %v7271 = vpop.f32.mrb[0].mxu0
        %v7272 = vadd.f32 %v7127, %v7271
        %v7273 = vpop.f32.mrb[0].mxu0
        %7274 = vmatprep.mubr.bf16.mxu0 0
        %7275 = vmatmul.mubr.bf16.gmra.mrb[0].mxu0 %v5031
        %v7276 = vpop.f32.mrb[0].mxu0
        %v7277 = vadd.f32 %v7132, %v7276
        %v7278 = vpop.f32.mrb[0].mxu0
        %v7279 = vpop.f32.mrb[0].mxu0
        %v7280 = vadd.f32 %v7135, %v7279
        %v7281 = vpop.f32.mrb[0].mxu0
        %7282 = vmatprep.mubr.bf16.mxu0 0
        %7283 = vmatmul.mubr.bf16.gmra.mrb[0].mxu0 %v5127
        %v7284 = vpop.f32.mrb[0].mxu0
        %v7285 = vadd.f32 %v7140, %v7284
        %v7286 = vpop.f32.mrb[0].mxu0
        %v7287 = vpop.f32.mrb[0].mxu0
        %v7288 = vadd.f32 %v7143, %v7287
        %v7289 = vpop.f32.mrb[0].mxu0
        %7290 = vmatprep.mubr.bf16.mxu0 0
        %7291 = vmatmul.mubr.bf16.gmra.mrb[0].mxu0 %v5223
        %v7292 = vpop.f32.mrb[0].mxu0
        %v7293 = vadd.f32 %v7148, %v7292
        %v7294 = vpop.f32.mrb[0].mxu0
        %v7295 = vpop.f32.mrb[0].mxu0
        %v7296 = vadd.f32 %v7151, %v7295
        %v7297 = vpop.f32.mrb[0].mxu0
        %7298 = vmatprep.mubr.bf16.mxu0 0
        %7299 = vmatmul.mubr.bf16.gmra.mrb[0].mxu0 %v5319
        %v7300 = vpop.f32.mrb[0].mxu0
        %v7301 = vadd.f32 %v7156, %v7300
        %v7302 = vpop.f32.mrb[0].mxu0
        %v7303 = vpop.f32.mrb[0].mxu0
        %v7304 = vadd.f32 %v7159, %v7303
        %v7305 = vpop.f32.mrb[0].mxu0
        %7306 = vmatprep.mubr.bf16.mxu0 0
        %7307 = vmatmul.mubr.bf16.gmra.mrb[0].mxu0 %v5415
        %v7308 = vpop.f32.mrb[0].mxu0
        %v7309 = vadd.f32 %v7164, %v7308
        %v7310 = vpop.f32.mrb[0].mxu0
        %v7311 = vpop.f32.mrb[0].mxu0
        %v7312 = vadd.f32 %v7167, %v7311
        %v7313 = vpop.f32.mrb[0].mxu0
        %7314 = vmatprep.mubr.bf16.mxu0 0
        %7315 = vmatmul.mubr.bf16.gmra.mrb[0].mxu0 %v5511
        %v7316 = vpop.f32.mrb[0].mxu0
        %v7317 = vadd.f32 %v7172, %v7316
        %v7318 = vpop.f32.mrb[0].mxu0
        %v7319 = vpop.f32.mrb[0].mxu0
        %v7320 = vadd.f32 %v7175, %v7319
        %v7321 = vpop.f32.mrb[0].mxu0
        %7322 = vmatprep.mubr.bf16.mxu0 0
        %7323 = vmatmul.mubr.bf16.gmra.mrb[0].mxu0 %v5607
        %v7324 = vpop.f32.mrb[0].mxu0
        %v7325 = vadd.f32 %v7180, %v7324
        %v7326 = vpop.f32.mrb[0].mxu0
        %v7327 = vpop.f32.mrb[0].mxu0
        %v7328 = vadd.f32 %v7183, %v7327
        %v7329 = vpop.f32.mrb[0].mxu0
        %7330 = vmatprep.mubr.bf16.mxu0 0
        %7331 = vmatmul.mubr.bf16.gmra.mrb[0].mxu0 %v5703
        %v7332 = vpop.f32.mrb[0].mxu0
        %v7333 = vadd.f32 %v7188, %v7332
        %v7334 = vpop.f32.mrb[0].mxu0
        %v7335 = vpop.f32.mrb[0].mxu0
        %v7336 = vadd.f32 %v7191, %v7335
        %v7337 = vpop.f32.mrb[0].mxu0
        %7338 = vmatprep.mubr.bf16.mxu0 0
        %7339 = vmatmul.mubr.bf16.gmra.mrb[0].mxu0 %v5799
        %v7340 = vpop.f32.mrb[0].mxu0
        %v7341 = vadd.f32 %v7196, %v7340
        %v7342 = vpop.f32.mrb[0].mxu0
        %v7343 = vpop.f32.mrb[0].mxu0
        %v7344 = vadd.f32 %v7199, %v7343
        %v7345 = vpop.f32.mrb[0].mxu0
        %7346 = vmatprep.mubr.bf16.mxu0 0
        %7347 = vmatmul.mubr.bf16.gmra.mrb[0].mxu0 %v5895
        %v7348 = vpop.f32.mrb[0].mxu0
        %v7349 = vadd.f32 %v7204, %v7348
        %v7350 = vpop.f32.mrb[0].mxu0
        %v7351 = vpop.f32.mrb[0].mxu0
        %v7352 = vadd.f32 %v7207, %v7351
        %v7353 = vpop.f32.mrb[0].mxu0
        %7354 = vmatprep.mubr.bf16.mxu0 0
        %7355 = vmatmul.mubr.bf16.gmra.mrb[0].mxu0 %v5991
        %v7356 = vpop.f32.mrb[0].mxu0
        %v7357 = vadd.f32 %v7212, %v7356
        %v7358 = vpop.f32.mrb[0].mxu0
        %v7359 = vpop.f32.mrb[0].mxu0
        %v7360 = vadd.f32 %v7215, %v7359
        %v7361 = vpop.f32.mrb[0].mxu0
        %7362 = vmatprep.mubr.bf16.mxu0 0
        %7363 = vmatmul.mubr.bf16.gmra.mrb[0].mxu0 %v6087
        %v7364 = vpop.f32.mrb[0].mxu0
        %v7365 = vadd.f32 %v7220, %v7364
        %v7366 = vpop.f32.mrb[0].mxu0
        %v7367 = vpop.f32.mrb[0].mxu0
        %v7368 = vadd.f32 %v7223, %v7367
        %v7369 = vpop.f32.mrb[0].mxu0
        %7370 = vdwg.mxu0
        %v7371 = vpack.c.bf16 %v7264, %v7261
        %v7372 = vpack.c.bf16 %v7272, %v7269
        %v7373 = vpack.c.bf16 %v7280, %v7277
        %v7374 = vpack.c.bf16 %v7288, %v7285
        %v7375 = vpack.c.bf16 %v7296, %v7293
        %v7376 = vpack.c.bf16 %v7304, %v7301
        %v7377 = vpack.c.bf16 %v7312, %v7309
        %v7378 = vpack.c.bf16 %v7320, %v7317
        %v7379 = vpack.c.bf16 %v7328, %v7325
        %v7380 = vpack.c.bf16 %v7336, %v7333
        %v7381 = vpack.c.bf16 %v7344, %v7341
        %v7382 = vpack.c.bf16 %v7352, %v7349
        %v7383 = vpack.c.bf16 %v7360, %v7357
        %v7384 = vpack.c.bf16 %v7368, %v7365
        %s7385 = scalar_lea.vmem [#allocation7], 576
        %v7386 = vld [vmem:[%s7385] sm:$0xf]
        %v7387 = vld [vmem:[%s7385 + $0x4] sm:$0xf]
        %v7388 = vld [vmem:[%s7385 + $0x8] sm:$0xf]
        %v7389 = vld [vmem:[%s7385 + $0xc] sm:$0xf]
        %v7390 = vld [vmem:[%s7385 + $0x10] sm:$0xf]
        %v7391 = vld [vmem:[%s7385 + $0x14] sm:$0xf]
        %v7392 = vld [vmem:[%s7385 + $0x18] sm:$0xf]
        %v7393 = vld [vmem:[%s7385 + $0x1c] sm:$0xf]
        %v7394 = vld [vmem:[%s7385 + $0x20] sm:$0xf]
        %v7395 = vld [vmem:[%s7385 + $0x24] sm:$0xf]
        %v7396 = vld [vmem:[%s7385 + $0x28] sm:$0xf]
        %v7397 = vld [vmem:[%s7385 + $0x2c] sm:$0xf]
        %v7398 = vld [vmem:[%s7385 + $0x30] sm:$0xf]
        %v7399 = vld [vmem:[%s7385 + $0x34] sm:$0xf]
        %v7400 = vld [vmem:[%s7385 + $0x38] sm:$0xf]
        %v7401 = vld [vmem:[%s7385 + $0x3c] sm:$0xf]
        %v7402 = vld [vmem:[%s7385 + $0x40] sm:$0xf]
        %v7403 = vld [vmem:[%s7385 + $0x44] sm:$0xf]
        %v7404 = vld [vmem:[%s7385 + $0x48] sm:$0xf]
        %v7405 = vld [vmem:[%s7385 + $0x4c] sm:$0xf]
        %v7406 = vld [vmem:[%s7385 + $0x50] sm:$0xf]
        %v7407 = vld [vmem:[%s7385 + $0x54] sm:$0xf]
        %v7408 = vld [vmem:[%s7385 + $0x58] sm:$0xf]
        %v7409 = vld [vmem:[%s7385 + $0x5c] sm:$0xf]
        %v7410 = vld [vmem:[%s7385 + $0x60] sm:$0xf]
        %v7411 = vld [vmem:[%s7385 + $0x64] sm:$0xf]
        %v7412 = vld [vmem:[%s7385 + $0x68] sm:$0xf]
        %v7413 = vld [vmem:[%s7385 + $0x6c] sm:$0xf]
        %v7414 = vld [vmem:[%s7385 + $0x70] sm:$0xf]
        %v7415 = vld [vmem:[%s7385 + $0x74] sm:$0xf]
        %v7416 = vld [vmem:[%s7385 + $0x78] sm:$0xf]
        %v7417 = vld [vmem:[%s7385 + $0x7c] sm:$0xf]
        %v7418 = vld [vmem:[%s7385 + $0x80] sm:$0xf]
        %v7419 = vld [vmem:[%s7385 + $0x84] sm:$0xf]
        %v7420 = vld [vmem:[%s7385 + $0x88] sm:$0xf]
        %v7421 = vld [vmem:[%s7385 + $0x8c] sm:$0xf]
        %v7422 = vld [vmem:[%s7385 + $0x90] sm:$0xf]
        %v7423 = vld [vmem:[%s7385 + $0x94] sm:$0xf]
        %v7424 = vld [vmem:[%s7385 + $0x98] sm:$0xf]
        %v7425 = vld [vmem:[%s7385 + $0x9c] sm:$0xf]
        %v7426 = vld [vmem:[%s7385 + $0xa0] sm:$0xf]
        %v7427 = vld [vmem:[%s7385 + $0xa4] sm:$0xf]
        %v7428 = vld [vmem:[%s7385 + $0xa8] sm:$0xf]
        %v7429 = vld [vmem:[%s7385 + $0xac] sm:$0xf]
        %v7430 = vld [vmem:[%s7385 + $0xb0] sm:$0xf]
        %v7431 = vld [vmem:[%s7385 + $0xb4] sm:$0xf]
        %v7432 = vld [vmem:[%s7385 + $0xb8] sm:$0xf]
        %v7433 = vld [vmem:[%s7385 + $0xbc] sm:$0xf]
        %v7434 = vld [vmem:[%s7385 + $0xc0] sm:$0xf]
        %v7435 = vld [vmem:[%s7385 + $0xc4] sm:$0xf]
        %v7436 = vld [vmem:[%s7385 + $0xc8] sm:$0xf]
        %v7437 = vld [vmem:[%s7385 + $0xcc] sm:$0xf]
        %v7438 = vld [vmem:[%s7385 + $0xd0] sm:$0xf]
        %v7439 = vld [vmem:[%s7385 + $0xd4] sm:$0xf]
        %v7440 = vld [vmem:[%s7385 + $0xd8] sm:$0xf]
        %v7441 = vld [vmem:[%s7385 + $0xdc] sm:$0xf]
        %v7442 = vld [vmem:[%s7385 + $0xe0] sm:$0xf]
        %v7443 = vld [vmem:[%s7385 + $0xe4] sm:$0xf]
        %v7444 = vld [vmem:[%s7385 + $0xe8] sm:$0xf]
        %v7445 = vld [vmem:[%s7385 + $0xec] sm:$0xf]
        %v7446 = vld [vmem:[%s7385 + $0xf0] sm:$0xf]
        %v7447 = vld [vmem:[%s7385 + $0xf4] sm:$0xf]
        %v7448 = vld [vmem:[%s7385 + $0xf8] sm:$0xf]
        %v7449 = vld [vmem:[%s7385 + $0xfc] sm:$0xf]
        %v7450 = vld [vmem:[%s7385 + $0x100] sm:$0xf]
        %v7451 = vld [vmem:[%s7385 + $0x104] sm:$0xf]
        %v7452 = vld [vmem:[%s7385 + $0x108] sm:$0xf]
        %v7453 = vld [vmem:[%s7385 + $0x10c] sm:$0xf]
        %v7454 = vld [vmem:[%s7385 + $0x110] sm:$0xf]
        %v7455 = vld [vmem:[%s7385 + $0x114] sm:$0xf]
        %v7456 = vld [vmem:[%s7385 + $0x118] sm:$0xf]
        %v7457 = vld [vmem:[%s7385 + $0x11c] sm:$0xf]
        %v7458 = vld [vmem:[%s7385 + $0x120] sm:$0xf]
        %v7459 = vld [vmem:[%s7385 + $0x124] sm:$0xf]
        %v7460 = vld [vmem:[%s7385 + $0x128] sm:$0xf]
        %v7461 = vld [vmem:[%s7385 + $0x12c] sm:$0xf]
        %v7462 = vld [vmem:[%s7385 + $0x130] sm:$0xf]
        %v7463 = vld [vmem:[%s7385 + $0x134] sm:$0xf]
        %v7464 = vld [vmem:[%s7385 + $0x138] sm:$0xf]
        %v7465 = vld [vmem:[%s7385 + $0x13c] sm:$0xf]
        %v7466 = vld [vmem:[%s7385 + $0x140] sm:$0xf]
        %v7467 = vld [vmem:[%s7385 + $0x144] sm:$0xf]
        %v7468 = vld [vmem:[%s7385 + $0x148] sm:$0xf]
        %v7469 = vld [vmem:[%s7385 + $0x14c] sm:$0xf]
        %v7470 = vld [vmem:[%s7385 + $0x150] sm:$0xf]
        %v7471 = vld [vmem:[%s7385 + $0x154] sm:$0xf]
        %v7472 = vld [vmem:[%s7385 + $0x158] sm:$0xf]
        %v7473 = vld [vmem:[%s7385 + $0x15c] sm:$0xf]
        %v7474 = vld [vmem:[%s7385 + $0x160] sm:$0xf]
        %v7475 = vld [vmem:[%s7385 + $0x164] sm:$0xf]
        %v7476 = vld [vmem:[%s7385 + $0x168] sm:$0xf]
        %v7477 = vld [vmem:[%s7385 + $0x16c] sm:$0xf]
        %v7478 = vld [vmem:[%s7385 + $0x170] sm:$0xf]
        %v7479 = vld [vmem:[%s7385 + $0x174] sm:$0xf]
        %v7480 = vld [vmem:[%s7385 + $0x178] sm:$0xf]
        %v7481 = vld [vmem:[%s7385 + $0x17c] sm:$0xf]
        %v7482 = vld [vmem:[%s7385 + $0x180] sm:$0xf]
        %v7483 = vld [vmem:[%s7385 + $0x184] sm:$0xf]
        %v7484 = vld [vmem:[%s7385 + $0x188] sm:$0xf]
        %v7485 = vld [vmem:[%s7385 + $0x18c] sm:$0xf]
        %v7486 = vld [vmem:[%s7385 + $0x190] sm:$0xf]
        %v7487 = vld [vmem:[%s7385 + $0x194] sm:$0xf]
        %v7488 = vld [vmem:[%s7385 + $0x198] sm:$0xf]
        %v7489 = vld [vmem:[%s7385 + $0x19c] sm:$0xf]
        %v7490 = vld [vmem:[%s7385 + $0x1a0] sm:$0xf]
        %v7491 = vld [vmem:[%s7385 + $0x1a4] sm:$0xf]
        %v7492 = vld [vmem:[%s7385 + $0x1a8] sm:$0xf]
        %v7493 = vld [vmem:[%s7385 + $0x1ac] sm:$0xf]
        %v7494 = vld [vmem:[%s7385 + $0x1b0] sm:$0xf]
        %v7495 = vld [vmem:[%s7385 + $0x1b4] sm:$0xf]
        %v7496 = vld [vmem:[%s7385 + $0x1b8] sm:$0xf]
        %v7497 = vld [vmem:[%s7385 + $0x1bc] sm:$0xf]
        %v7498 = vld [vmem:[%s7385 + $0x1c0] sm:$0xf]
        %v7499 = vld [vmem:[%s7385 + $0x1c4] sm:$0xf]
        %v7500 = vld [vmem:[%s7385 + $0x1c8] sm:$0xf]
        %v7501 = vld [vmem:[%s7385 + $0x1cc] sm:$0xf]
        %v7502 = vld [vmem:[%s7385 + $0x1d0] sm:$0xf]
        %v7503 = vld [vmem:[%s7385 + $0x1d4] sm:$0xf]
        %v7504 = vld [vmem:[%s7385 + $0x1d8] sm:$0xf]
        %v7505 = vld [vmem:[%s7385 + $0x1dc] sm:$0xf]
        %v7506 = vld [vmem:[%s7385 + $0x1e0] sm:$0xf]
        %v7507 = vld [vmem:[%s7385 + $0x1e4] sm:$0xf]
        %v7508 = vld [vmem:[%s7385 + $0x1e8] sm:$0xf]
        %v7509 = vld [vmem:[%s7385 + $0x1ec] sm:$0xf]
        %v7510 = vld [vmem:[%s7385 + $0x1f0] sm:$0xf]
        %v7511 = vld [vmem:[%s7385 + $0x1f4] sm:$0xf]
        %v7512 = vld [vmem:[%s7385 + $0x1f8] sm:$0xf]
        %v7513 = vld [vmem:[%s7385 + $0x1fc] sm:$0xf]
        %v7514 = vld [vmem:[%s7385 + $0x200] sm:$0xf]
        %v7515 = vld [vmem:[%s7385 + $0x204] sm:$0xf]
        %v7516 = vld [vmem:[%s7385 + $0x208] sm:$0xf]
        %v7517 = vld [vmem:[%s7385 + $0x20c] sm:$0xf]
        %v7518 = vld [vmem:[%s7385 + $0x210] sm:$0xf]
        %v7519 = vld [vmem:[%s7385 + $0x214] sm:$0xf]
        %v7520 = vld [vmem:[%s7385 + $0x218] sm:$0xf]
        %v7521 = vld [vmem:[%s7385 + $0x21c] sm:$0xf]
        %v7522 = vld [vmem:[%s7385 + $0x220] sm:$0xf]
        %v7523 = vld [vmem:[%s7385 + $0x224] sm:$0xf]
        %v7524 = vld [vmem:[%s7385 + $0x228] sm:$0xf]
        %v7525 = vld [vmem:[%s7385 + $0x22c] sm:$0xf]
        %v7526 = vld [vmem:[%s7385 + $0x230] sm:$0xf]
        %v7527 = vld [vmem:[%s7385 + $0x234] sm:$0xf]
        %v7528 = vld [vmem:[%s7385 + $0x238] sm:$0xf]
        %v7529 = vld [vmem:[%s7385 + $0x23c] sm:$0xf]
        %v7544 = vunpack.c.l.b16 %v7371
        %v7545 = vunpack.c.h.b16 %v7371
        %v7546 = vunpack.c.l.b16 %v7372
        %v7547 = vunpack.c.h.b16 %v7372
        %v7548 = vunpack.c.l.b16 %v7373
        %v7549 = vunpack.c.h.b16 %v7373
        %v7550 = vunpack.c.l.b16 %v7374
        %v7551 = vunpack.c.h.b16 %v7374
        %v7552 = vunpack.c.l.b16 %v7375
        %v7553 = vunpack.c.h.b16 %v7375
        %v7554 = vunpack.c.l.b16 %v7376
        %v7555 = vunpack.c.h.b16 %v7376
        %v7556 = vunpack.c.l.b16 %v7377
        %v7557 = vunpack.c.h.b16 %v7377
        %v7558 = vunpack.c.l.b16 %v7378
        %v7559 = vunpack.c.h.b16 %v7378
        %v7560 = vunpack.c.l.b16 %v7379
        %v7561 = vunpack.c.h.b16 %v7379
        %v7562 = vunpack.c.l.b16 %v7380
        %v7563 = vunpack.c.h.b16 %v7380
        %v7564 = vunpack.c.l.b16 %v7381
        %v7565 = vunpack.c.h.b16 %v7381
        %v7566 = vunpack.c.l.b16 %v7382
        %v7567 = vunpack.c.h.b16 %v7382
        %v7568 = vunpack.c.l.b16 %v7383
        %v7569 = vunpack.c.h.b16 %v7383
        %v7570 = vunpack.c.l.b16 %v7384
        %v7571 = vunpack.c.h.b16 %v7384
        %v7572 = vpack.c.b16 %v7544, %v7544
        %v7573 = vpack.c.b16 %v7545, %v7545
        %v7574 = vpack.c.b16 %v7546, %v7546
        %v7575 = vpack.c.b16 %v7547, %v7547
        %v7576 = vpack.c.b16 %v7548, %v7548
        %v7577 = vpack.c.b16 %v7549, %v7549
        %v7578 = vpack.c.b16 %v7550, %v7550
        %v7579 = vpack.c.b16 %v7551, %v7551
        %v7580 = vpack.c.b16 %v7552, %v7552
        %v7581 = vpack.c.b16 %v7553, %v7553
        %v7582 = vpack.c.b16 %v7554, %v7554
        %v7583 = vpack.c.b16 %v7555, %v7555
        %v7584 = vpack.c.b16 %v7556, %v7556
        %v7585 = vpack.c.b16 %v7557, %v7557
        %v7586 = vpack.c.b16 %v7558, %v7558
        %v7587 = vpack.c.b16 %v7559, %v7559
        %v7588 = vpack.c.b16 %v7560, %v7560
        %v7589 = vpack.c.b16 %v7561, %v7561
        %v7590 = vpack.c.b16 %v7562, %v7562
        %v7591 = vpack.c.b16 %v7563, %v7563
        %v7592 = vpack.c.b16 %v7564, %v7564
        %v7593 = vpack.c.b16 %v7565, %v7565
        %v7594 = vpack.c.b16 %v7566, %v7566
        %v7595 = vpack.c.b16 %v7567, %v7567
        %v7596 = vpack.c.b16 %v7568, %v7568
        %v7597 = vpack.c.b16 %v7569, %v7569
        %v7598 = vpack.c.b16 %v7570, %v7570
        %v7599 = vpack.c.b16 %v7571, %v7571
        %v7600 = vrot.slane %v7572, 7
        %v7601 = vrot.slane %v7600, 4
        %v7602 = vrot.slane %v7573, 7
        %v7603 = vsel %vm545, %v7601, %v7602
        %v7604 = vrot.slane %v7602, 4
        %v7605 = vrot.slane %v7574, 7
        %v7606 = vrot.slane %v7605, 4
        %v7607 = vrot.slane %v7575, 7
        %v7608 = vsel %vm545, %v7606, %v7607
        %v7609 = vrot.slane %v7607, 4
        %v7610 = vrot.slane %v7576, 7
        %v7611 = vrot.slane %v7610, 4
        %v7612 = vrot.slane %v7577, 7
        %v7613 = vsel %vm545, %v7611, %v7612
        %v7614 = vrot.slane %v7612, 4
        %v7615 = vrot.slane %v7578, 7
        %v7616 = vrot.slane %v7615, 4
        %v7617 = vrot.slane %v7579, 7
        %v7618 = vsel %vm545, %v7616, %v7617
        %v7619 = vrot.slane %v7617, 4
        %v7620 = vrot.slane %v7580, 7
        %v7621 = vrot.slane %v7620, 4
        %v7622 = vrot.slane %v7581, 7
        %v7623 = vsel %vm545, %v7621, %v7622
        %v7624 = vrot.slane %v7622, 4
        %v7625 = vrot.slane %v7582, 7
        %v7626 = vrot.slane %v7625, 4
        %v7627 = vrot.slane %v7583, 7
        %v7628 = vsel %vm545, %v7626, %v7627
        %v7629 = vrot.slane %v7627, 4
        %v7630 = vrot.slane %v7584, 7
        %v7631 = vrot.slane %v7630, 4
        %v7632 = vrot.slane %v7585, 7
        %v7633 = vsel %vm545, %v7631, %v7632
        %v7634 = vrot.slane %v7632, 4
        %v7635 = vrot.slane %v7586, 7
        %v7636 = vrot.slane %v7635, 4
        %v7637 = vrot.slane %v7587, 7
        %v7638 = vsel %vm545, %v7636, %v7637
        %v7639 = vrot.slane %v7637, 4
        %v7640 = vrot.slane %v7588, 7
        %v7641 = vrot.slane %v7640, 4
        %v7642 = vrot.slane %v7589, 7
        %v7643 = vsel %vm545, %v7641, %v7642
        %v7644 = vrot.slane %v7642, 4
        %v7645 = vrot.slane %v7590, 7
        %v7646 = vrot.slane %v7645, 4
        %v7647 = vrot.slane %v7591, 7
        %v7648 = vsel %vm545, %v7646, %v7647
        %v7649 = vrot.slane %v7647, 4
        %v7650 = vrot.slane %v7592, 7
        %v7651 = vrot.slane %v7650, 4
        %v7652 = vrot.slane %v7593, 7
        %v7653 = vsel %vm545, %v7651, %v7652
        %v7654 = vrot.slane %v7652, 4
        %v7655 = vrot.slane %v7594, 7
        %v7656 = vrot.slane %v7655, 4
        %v7657 = vrot.slane %v7595, 7
        %v7658 = vsel %vm545, %v7656, %v7657
        %v7659 = vrot.slane %v7657, 4
        %v7660 = vrot.slane %v7596, 7
        %v7661 = vrot.slane %v7660, 4
        %v7662 = vrot.slane %v7597, 7
        %v7663 = vsel %vm545, %v7661, %v7662
        %v7664 = vrot.slane %v7662, 4
        %v7665 = vrot.slane %v7598, 7
        %v7666 = vrot.slane %v7665, 4
        %v7667 = vrot.slane %v7599, 7
        %v7668 = vsel %vm545, %v7666, %v7667
        %v7669 = vrot.slane %v7667, 4
        %7712 = vst [vmem:[#allocation2] sm:$0xe] %v7600
        %7713 = vst [vmem:[#allocation2 + $0x4] sm:$0xf] %v7603
        %7714 = vst [vmem:[#allocation2 + $0x8] sm:$0x1] %v7604
        %7715 = vst [vmem:[#allocation2 + $0xc] sm:$0xe] %v7605
        %7716 = vst [vmem:[#allocation2 + $0x10] sm:$0xf] %v7608
        %7717 = vst [vmem:[#allocation2 + $0x14] sm:$0x1] %v7609
        %7718 = vst [vmem:[#allocation2 + $0x18] sm:$0xe] %v7610
        %7719 = vst [vmem:[#allocation2 + $0x1c] sm:$0xf] %v7613
        %7720 = vst [vmem:[#allocation2 + $0x20] sm:$0x1] %v7614
        %7721 = vst [vmem:[#allocation2 + $0x24] sm:$0xe] %v7615
        %7722 = vst [vmem:[#allocation2 + $0x28] sm:$0xf] %v7618
        %7723 = vst [vmem:[#allocation2 + $0x2c] sm:$0x1] %v7619
        %7724 = vst [vmem:[#allocation2 + $0x30] sm:$0xe] %v7620
        %7725 = vst [vmem:[#allocation2 + $0x34] sm:$0xf] %v7623
        %7726 = vst [vmem:[#allocation2 + $0x38] sm:$0x1] %v7624
        %7727 = vst [vmem:[#allocation2 + $0x3c] sm:$0xe] %v7625
        %7728 = vst [vmem:[#allocation2 + $0x40] sm:$0xf] %v7628
        %7729 = vst [vmem:[#allocation2 + $0x44] sm:$0x1] %v7629
        %7730 = vst [vmem:[#allocation2 + $0x48] sm:$0xe] %v7630
        %7731 = vst [vmem:[#allocation2 + $0x4c] sm:$0xf] %v7633
        %7732 = vst [vmem:[#allocation2 + $0x50] sm:$0x1] %v7634
        %7733 = vst [vmem:[#allocation2 + $0x54] sm:$0xe] %v7635
        %7734 = vst [vmem:[#allocation2 + $0x58] sm:$0xf] %v7638
        %7735 = vst [vmem:[#allocation2 + $0x5c] sm:$0x1] %v7639
        %7736 = vst [vmem:[#allocation2 + $0x60] sm:$0xe] %v7640
        %7737 = vst [vmem:[#allocation2 + $0x64] sm:$0xf] %v7643
        %7738 = vst [vmem:[#allocation2 + $0x68] sm:$0x1] %v7644
        %7739 = vst [vmem:[#allocation2 + $0x6c] sm:$0xe] %v7645
        %7740 = vst [vmem:[#allocation2 + $0x70] sm:$0xf] %v7648
        %7741 = vst [vmem:[#allocation2 + $0x74] sm:$0x1] %v7649
        %7742 = vst [vmem:[#allocation2 + $0x78] sm:$0xe] %v7650
        %7743 = vst [vmem:[#allocation2 + $0x7c] sm:$0xf] %v7653
        %7744 = vst [vmem:[#allocation2 + $0x80] sm:$0x1] %v7654
        %7745 = vst [vmem:[#allocation2 + $0x84] sm:$0xe] %v7655
        %7746 = vst [vmem:[#allocation2 + $0x88] sm:$0xf] %v7658
        %7747 = vst [vmem:[#allocation2 + $0x8c] sm:$0x1] %v7659
        %7748 = vst [vmem:[#allocation2 + $0x90] sm:$0xe] %v7660
        %7749 = vst [vmem:[#allocation2 + $0x94] sm:$0xf] %v7663
        %7750 = vst [vmem:[#allocation2 + $0x98] sm:$0x1] %v7664
        %7751 = vst [vmem:[#allocation2 + $0x9c] sm:$0xe] %v7665
        %7752 = vst [vmem:[#allocation2 + $0xa0] sm:$0xf] %v7668
        %7753 = vst [vmem:[#allocation2 + $0xa4] sm:$0x1] %v7669
        %7754 = vst [vmem:[#allocation2] sm:$0x1] 4048220490
        %7755 = vst [vmem:[#allocation2 + $0xc] sm:$0x1] 4048220490
        %7756 = vst [vmem:[#allocation2 + $0x18] sm:$0x1] 4048220490
        %7757 = vst [vmem:[#allocation2 + $0x24] sm:$0x1] 4048220490
        %7758 = vst [vmem:[#allocation2 + $0x30] sm:$0x1] 4048220490
        %7759 = vst [vmem:[#allocation2 + $0x3c] sm:$0x1] 4048220490
        %7760 = vst [vmem:[#allocation2 + $0x48] sm:$0x1] 4048220490
        %7761 = vst [vmem:[#allocation2 + $0x54] sm:$0x1] 4048220490
        %7762 = vst [vmem:[#allocation2 + $0x60] sm:$0x1] 4048220490
        %7763 = vst [vmem:[#allocation2 + $0x6c] sm:$0x1] 4048220490
        %7764 = vst [vmem:[#allocation2 + $0x78] sm:$0x1] 4048220490
        %7765 = vst [vmem:[#allocation2 + $0x84] sm:$0x1] 4048220490
        %7766 = vst [vmem:[#allocation2 + $0x90] sm:$0x1] 4048220490
        %7767 = vst [vmem:[#allocation2 + $0x9c] sm:$0x1] 4048220490
        %7768 = vst [vmem:[#allocation2 + $0x8] sm:$0x2] 4048220490
        %7769 = vst [vmem:[#allocation2 + $0x14] sm:$0x2] 4048220490
        %7770 = vst [vmem:[#allocation2 + $0x20] sm:$0x2] 4048220490
        %7771 = vst [vmem:[#allocation2 + $0x2c] sm:$0x2] 4048220490
        %7772 = vst [vmem:[#allocation2 + $0x38] sm:$0x2] 4048220490
        %7773 = vst [vmem:[#allocation2 + $0x44] sm:$0x2] 4048220490
        %7774 = vst [vmem:[#allocation2 + $0x50] sm:$0x2] 4048220490
        %7775 = vst [vmem:[#allocation2 + $0x5c] sm:$0x2] 4048220490
        %7776 = vst [vmem:[#allocation2 + $0x68] sm:$0x2] 4048220490
        %7777 = vst [vmem:[#allocation2 + $0x74] sm:$0x2] 4048220490
        %7778 = vst [vmem:[#allocation2 + $0x80] sm:$0x2] 4048220490
        %7779 = vst [vmem:[#allocation2 + $0x8c] sm:$0x2] 4048220490
        %7780 = vst [vmem:[#allocation2 + $0x98] sm:$0x2] 4048220490
        %7781 = vst [vmem:[#allocation2 + $0xa4] sm:$0x2] 4048220490
        // Predicated region
        $region53: #{tpu_custom_call.1} parent=27 // pred_check
          %p7782 = pneg %p194
        $region54: #{tpu_custom_call.1} parent=27 // pred_check_branch
          %7784 = sbr.rel (%p7782) target = $region56
        $region55: #{tpu_custom_call.1} parent=27 // pred_region
          %7785 = vst [vmem:[#allocation2] sm:$0xe] 4048220490
          %7786 = vst [vmem:[#allocation2 + $0x4] sm:$0xf] 4048220490
          %7787 = vst [vmem:[#allocation2 + $0x8] sm:$0x1] 4048220490
          %7788 = vst [vmem:[#allocation2 + $0xc] sm:$0xe] 4048220490
          %7789 = vst [vmem:[#allocation2 + $0x10] sm:$0xf] 4048220490
          %7790 = vst [vmem:[#allocation2 + $0x14] sm:$0x1] 4048220490
          %7791 = vst [vmem:[#allocation2 + $0x18] sm:$0xe] 4048220490
          %7792 = vst [vmem:[#allocation2 + $0x1c] sm:$0xf] 4048220490
          %7793 = vst [vmem:[#allocation2 + $0x20] sm:$0x1] 4048220490
        $region56: #{tpu_custom_call.1} parent=27 // pred_fallthru
          _
        // Predicated region
        $region57: #{tpu_custom_call.1} parent=27 // pred_check
          %p7794 = pneg %p195
        $region58: #{tpu_custom_call.1} parent=27 // pred_check_branch
          %7796 = sbr.rel (%p7794) target = $region60
        $region59: #{tpu_custom_call.1} parent=27 // pred_region
          %s7797 = scalar_lea.vmem [#allocation2], 132
          %7798 = vst [vmem:[%s7797] sm:$0xe] 4048220490
          %7799 = vst [vmem:[%s7797 + $0x4] sm:$0xf] 4048220490
          %7800 = vst [vmem:[%s7797 + $0x8] sm:$0x1] 4048220490
          %7801 = vst [vmem:[%s7797 + $0xc] sm:$0xe] 4048220490
          %7802 = vst [vmem:[%s7797 + $0x10] sm:$0xf] 4048220490
          %7803 = vst [vmem:[%s7797 + $0x14] sm:$0x1] 4048220490
          %7804 = vst [vmem:[%s7797 + $0x18] sm:$0xe] 4048220490
          %7805 = vst [vmem:[%s7797 + $0x1c] sm:$0xf] 4048220490
          %7806 = vst [vmem:[%s7797 + $0x20] sm:$0x1] 4048220490
        $region60: #{tpu_custom_call.1} parent=27 // pred_fallthru
          _
        %v7807 = vld [vmem:[#allocation2] sm:$0xf]
        %v7808 = vld [vmem:[#allocation2 + $0x4] sm:$0xf]
        %v7809 = vld [vmem:[#allocation2 + $0xc] sm:$0xf]
        %v7810 = vld [vmem:[#allocation2 + $0x10] sm:$0xf]
        %v7811 = vld [vmem:[#allocation2 + $0x18] sm:$0xf]
        %v7812 = vld [vmem:[#allocation2 + $0x1c] sm:$0xf]
        %v7813 = vld [vmem:[#allocation2 + $0x24] sm:$0xf]
        %v7814 = vld [vmem:[#allocation2 + $0x28] sm:$0xf]
        %v7815 = vld [vmem:[#allocation2 + $0x30] sm:$0xf]
        %v7816 = vld [vmem:[#allocation2 + $0x34] sm:$0xf]
        %v7817 = vld [vmem:[#allocation2 + $0x3c] sm:$0xf]
        %v7818 = vld [vmem:[#allocation2 + $0x40] sm:$0xf]
        %v7819 = vld [vmem:[#allocation2 + $0x48] sm:$0xf]
        %v7820 = vld [vmem:[#allocation2 + $0x4c] sm:$0xf]
        %v7821 = vld [vmem:[#allocation2 + $0x54] sm:$0xf]
        %v7822 = vld [vmem:[#allocation2 + $0x58] sm:$0xf]
        %v7823 = vld [vmem:[#allocation2 + $0x60] sm:$0xf]
        %v7824 = vld [vmem:[#allocation2 + $0x64] sm:$0xf]
        %v7825 = vld [vmem:[#allocation2 + $0x6c] sm:$0xf]
        %v7826 = vld [vmem:[#allocation2 + $0x70] sm:$0xf]
        %v7827 = vld [vmem:[#allocation2 + $0x78] sm:$0xf]
        %v7828 = vld [vmem:[#allocation2 + $0x7c] sm:$0xf]
        %v7829 = vld [vmem:[#allocation2 + $0x84] sm:$0xf]
        %v7830 = vld [vmem:[#allocation2 + $0x88] sm:$0xf]
        %v7831 = vld [vmem:[#allocation2 + $0x90] sm:$0xf]
        %v7832 = vld [vmem:[#allocation2 + $0x94] sm:$0xf]
        %v7833 = vld [vmem:[#allocation2 + $0x9c] sm:$0xf]
        %v7834 = vld [vmem:[#allocation2 + $0xa0] sm:$0xf]
        %v7835 = vld [vmem:[#allocation2 + $0x8] sm:$0x1]
        %v7836 = vld [vmem:[#allocation2 + $0x14] sm:$0x1]
        %v7837 = vld [vmem:[#allocation2 + $0x20] sm:$0x1]
        %v7838 = vld [vmem:[#allocation2 + $0x2c] sm:$0x1]
        %v7839 = vld [vmem:[#allocation2 + $0x38] sm:$0x1]
        %v7840 = vld [vmem:[#allocation2 + $0x44] sm:$0x1]
        %v7841 = vld [vmem:[#allocation2 + $0x50] sm:$0x1]
        %v7842 = vld [vmem:[#allocation2 + $0x5c] sm:$0x1]
        %v7843 = vld [vmem:[#allocation2 + $0x68] sm:$0x1]
        %v7844 = vld [vmem:[#allocation2 + $0x74] sm:$0x1]
        %v7845 = vld [vmem:[#allocation2 + $0x80] sm:$0x1]
        %v7846 = vld [vmem:[#allocation2 + $0x8c] sm:$0x1]
        %v7847 = vld [vmem:[#allocation2 + $0x98] sm:$0x1]
        %v7848 = vld [vmem:[#allocation2 + $0xa4] sm:$0x1]
        %v7850 = vshrl.u32 %v7807, 16
        %v7852 = vrot.slane %v7850, 4
        %v7853 = vshll.u32 %v7807, 16
        %v7855 = vrot.slane %v7853, 5
        %v7856 = vor.u32 %v7852, %v7855
        %v7857 = vrot.slane %v7856, 4
        %v7859 = vshll.u32 %v7808, 16
        %v7861 = vrot.slane %v7859, 5
        %v7862 = vsel %vm911, %v7857, %v7861
        %v7863 = vshrl.u32 %v7808, 16
        %v7865 = vrot.slane %v7863, 4
        %v7866 = vor.u32 %v7865, %v7861
        %v7867 = vrot.slane %v7866, 4
        %v7869 = vshll.u32 %v7835, 16
        %v7871 = vrot.slane %v7869, 5
        %v7872 = vsel %vm911, %v7867, %v7871
        %v7874 = vshrl.u32 %v7809, 16
        %v7876 = vrot.slane %v7874, 4
        %v7877 = vshll.u32 %v7809, 16
        %v7879 = vrot.slane %v7877, 5
        %v7880 = vor.u32 %v7876, %v7879
        %v7881 = vrot.slane %v7880, 4
        %v7883 = vshll.u32 %v7810, 16
        %v7885 = vrot.slane %v7883, 5
        %v7886 = vsel %vm911, %v7881, %v7885
        %v7887 = vshrl.u32 %v7810, 16
        %v7889 = vrot.slane %v7887, 4
        %v7890 = vor.u32 %v7889, %v7885
        %v7891 = vrot.slane %v7890, 4
        %v7893 = vshll.u32 %v7836, 16
        %v7895 = vrot.slane %v7893, 5
        %v7896 = vsel %vm911, %v7891, %v7895
        %v7898 = vshrl.u32 %v7811, 16
        %v7900 = vrot.slane %v7898, 4
        %v7901 = vshll.u32 %v7811, 16
        %v7903 = vrot.slane %v7901, 5
        %v7904 = vor.u32 %v7900, %v7903
        %v7905 = vrot.slane %v7904, 4
        %v7907 = vshll.u32 %v7812, 16
        %v7909 = vrot.slane %v7907, 5
        %v7910 = vsel %vm911, %v7905, %v7909
        %v7911 = vshrl.u32 %v7812, 16
        %v7913 = vrot.slane %v7911, 4
        %v7914 = vor.u32 %v7913, %v7909
        %v7915 = vrot.slane %v7914, 4
        %v7917 = vshll.u32 %v7837, 16
        %v7919 = vrot.slane %v7917, 5
        %v7920 = vsel %vm911, %v7915, %v7919
        %v7922 = vshrl.u32 %v7813, 16
        %v7924 = vrot.slane %v7922, 4
        %v7925 = vshll.u32 %v7813, 16
        %v7927 = vrot.slane %v7925, 5
        %v7928 = vor.u32 %v7924, %v7927
        %v7929 = vrot.slane %v7928, 4
        %v7931 = vshll.u32 %v7814, 16
        %v7933 = vrot.slane %v7931, 5
        %v7934 = vsel %vm911, %v7929, %v7933
        %v7935 = vshrl.u32 %v7814, 16
        %v7937 = vrot.slane %v7935, 4
        %v7938 = vor.u32 %v7937, %v7933
        %v7939 = vrot.slane %v7938, 4
        %v7941 = vshll.u32 %v7838, 16
        %v7943 = vrot.slane %v7941, 5
        %v7944 = vsel %vm911, %v7939, %v7943
        %v7946 = vshrl.u32 %v7815, 16
        %v7948 = vrot.slane %v7946, 4
        %v7949 = vshll.u32 %v7815, 16
        %v7951 = vrot.slane %v7949, 5
        %v7952 = vor.u32 %v7948, %v7951
        %v7953 = vrot.slane %v7952, 4
        %v7955 = vshll.u32 %v7816, 16
        %v7957 = vrot.slane %v7955, 5
        %v7958 = vsel %vm911, %v7953, %v7957
        %v7959 = vshrl.u32 %v7816, 16
        %v7961 = vrot.slane %v7959, 4
        %v7962 = vor.u32 %v7961, %v7957
        %v7963 = vrot.slane %v7962, 4
        %v7965 = vshll.u32 %v7839, 16
        %v7967 = vrot.slane %v7965, 5
        %v7968 = vsel %vm911, %v7963, %v7967
        %v7970 = vshrl.u32 %v7817, 16
        %v7972 = vrot.slane %v7970, 4
        %v7973 = vshll.u32 %v7817, 16
        %v7975 = vrot.slane %v7973, 5
        %v7976 = vor.u32 %v7972, %v7975
        %v7977 = vrot.slane %v7976, 4
        %v7979 = vshll.u32 %v7818, 16
        %v7981 = vrot.slane %v7979, 5
        %v7982 = vsel %vm911, %v7977, %v7981
        %v7983 = vshrl.u32 %v7818, 16
        %v7985 = vrot.slane %v7983, 4
        %v7986 = vor.u32 %v7985, %v7981
        %v7987 = vrot.slane %v7986, 4
        %v7989 = vshll.u32 %v7840, 16
        %v7991 = vrot.slane %v7989, 5
        %v7992 = vsel %vm911, %v7987, %v7991
        %v7994 = vshrl.u32 %v7819, 16
        %v7996 = vrot.slane %v7994, 4
        %v7997 = vshll.u32 %v7819, 16
        %v7999 = vrot.slane %v7997, 5
        %v8000 = vor.u32 %v7996, %v7999
        %v8001 = vrot.slane %v8000, 4
        %v8003 = vshll.u32 %v7820, 16
        %v8005 = vrot.slane %v8003, 5
        %v8006 = vsel %vm911, %v8001, %v8005
        %v8007 = vshrl.u32 %v7820, 16
        %v8009 = vrot.slane %v8007, 4
        %v8010 = vor.u32 %v8009, %v8005
        %v8011 = vrot.slane %v8010, 4
        %v8013 = vshll.u32 %v7841, 16
        %v8015 = vrot.slane %v8013, 5
        %v8016 = vsel %vm911, %v8011, %v8015
        %v8018 = vshrl.u32 %v7821, 16
        %v8020 = vrot.slane %v8018, 4
        %v8021 = vshll.u32 %v7821, 16
        %v8023 = vrot.slane %v8021, 5
        %v8024 = vor.u32 %v8020, %v8023
        %v8025 = vrot.slane %v8024, 4
        %v8027 = vshll.u32 %v7822, 16
        %v8029 = vrot.slane %v8027, 5
        %v8030 = vsel %vm911, %v8025, %v8029
        %v8031 = vshrl.u32 %v7822, 16
        %v8033 = vrot.slane %v8031, 4
        %v8034 = vor.u32 %v8033, %v8029
        %v8035 = vrot.slane %v8034, 4
        %v8037 = vshll.u32 %v7842, 16
        %v8039 = vrot.slane %v8037, 5
        %v8040 = vsel %vm911, %v8035, %v8039
        %v8042 = vshrl.u32 %v7823, 16
        %v8044 = vrot.slane %v8042, 4
        %v8045 = vshll.u32 %v7823, 16
        %v8047 = vrot.slane %v8045, 5
        %v8048 = vor.u32 %v8044, %v8047
        %v8049 = vrot.slane %v8048, 4
        %v8051 = vshll.u32 %v7824, 16
        %v8053 = vrot.slane %v8051, 5
        %v8054 = vsel %vm911, %v8049, %v8053
        %v8055 = vshrl.u32 %v7824, 16
        %v8057 = vrot.slane %v8055, 4
        %v8058 = vor.u32 %v8057, %v8053
        %v8059 = vrot.slane %v8058, 4
        %v8061 = vshll.u32 %v7843, 16
        %v8063 = vrot.slane %v8061, 5
        %v8064 = vsel %vm911, %v8059, %v8063
        %v8066 = vshrl.u32 %v7825, 16
        %v8068 = vrot.slane %v8066, 4
        %v8069 = vshll.u32 %v7825, 16
        %v8071 = vrot.slane %v8069, 5
        %v8072 = vor.u32 %v8068, %v8071
        %v8073 = vrot.slane %v8072, 4
        %v8075 = vshll.u32 %v7826, 16
        %v8077 = vrot.slane %v8075, 5
        %v8078 = vsel %vm911, %v8073, %v8077
        %v8079 = vshrl.u32 %v7826, 16
        %v8081 = vrot.slane %v8079, 4
        %v8082 = vor.u32 %v8081, %v8077
        %v8083 = vrot.slane %v8082, 4
        %v8085 = vshll.u32 %v7844, 16
        %v8087 = vrot.slane %v8085, 5
        %v8088 = vsel %vm911, %v8083, %v8087
        %v8090 = vshrl.u32 %v7827, 16
        %v8092 = vrot.slane %v8090, 4
        %v8093 = vshll.u32 %v7827, 16
        %v8095 = vrot.slane %v8093, 5
        %v8096 = vor.u32 %v8092, %v8095
        %v8097 = vrot.slane %v8096, 4
        %v8099 = vshll.u32 %v7828, 16
        %v8101 = vrot.slane %v8099, 5
        %v8102 = vsel %vm911, %v8097, %v8101
        %v8103 = vshrl.u32 %v7828, 16
        %v8105 = vrot.slane %v8103, 4
        %v8106 = vor.u32 %v8105, %v8101
        %v8107 = vrot.slane %v8106, 4
        %v8109 = vshll.u32 %v7845, 16
        %v8111 = vrot.slane %v8109, 5
        %v8112 = vsel %vm911, %v8107, %v8111
        %v8114 = vshrl.u32 %v7829, 16
        %v8116 = vrot.slane %v8114, 4
        %v8117 = vshll.u32 %v7829, 16
        %v8119 = vrot.slane %v8117, 5
        %v8120 = vor.u32 %v8116, %v8119
        %v8121 = vrot.slane %v8120, 4
        %v8123 = vshll.u32 %v7830, 16
        %v8125 = vrot.slane %v8123, 5
        %v8126 = vsel %vm911, %v8121, %v8125
        %v8127 = vshrl.u32 %v7830, 16
        %v8129 = vrot.slane %v8127, 4
        %v8130 = vor.u32 %v8129, %v8125
        %v8131 = vrot.slane %v8130, 4
        %v8133 = vshll.u32 %v7846, 16
        %v8135 = vrot.slane %v8133, 5
        %v8136 = vsel %vm911, %v8131, %v8135
        %v8138 = vshrl.u32 %v7831, 16
        %v8140 = vrot.slane %v8138, 4
        %v8141 = vshll.u32 %v7831, 16
        %v8143 = vrot.slane %v8141, 5
        %v8144 = vor.u32 %v8140, %v8143
        %v8145 = vrot.slane %v8144, 4
        %v8147 = vshll.u32 %v7832, 16
        %v8149 = vrot.slane %v8147, 5
        %v8150 = vsel %vm911, %v8145, %v8149
        %v8151 = vshrl.u32 %v7832, 16
        %v8153 = vrot.slane %v8151, 4
        %v8154 = vor.u32 %v8153, %v8149
        %v8155 = vrot.slane %v8154, 4
        %v8157 = vshll.u32 %v7847, 16
        %v8159 = vrot.slane %v8157, 5
        %v8160 = vsel %vm911, %v8155, %v8159
        %v8162 = vshrl.u32 %v7833, 16
        %v8164 = vrot.slane %v8162, 4
        %v8165 = vshll.u32 %v7833, 16
        %v8167 = vrot.slane %v8165, 5
        %v8168 = vor.u32 %v8164, %v8167
        %v8169 = vrot.slane %v8168, 4
        %v8171 = vshll.u32 %v7834, 16
        %v8173 = vrot.slane %v8171, 5
        %v8174 = vsel %vm911, %v8169, %v8173
        %v8175 = vshrl.u32 %v7834, 16
        %v8177 = vrot.slane %v8175, 4
        %v8178 = vor.u32 %v8177, %v8173
        %v8179 = vrot.slane %v8178, 4
        %v8181 = vshll.u32 %v7848, 16
        %v8183 = vrot.slane %v8181, 5
        %v8184 = vsel %vm911, %v8179, %v8183
        %v8213 = vmax.bf16 %v7807, %v7862
        %v8214 = vmax.bf16 %v7808, %v7872
        %v8215 = vmax.bf16 %v7809, %v7886
        %v8216 = vmax.bf16 %v7810, %v7896
        %v8217 = vmax.bf16 %v7811, %v7910
        %v8218 = vmax.bf16 %v7812, %v7920
        %v8219 = vmax.bf16 %v7813, %v7934
        %v8220 = vmax.bf16 %v7814, %v7944
        %v8221 = vmax.bf16 %v7815, %v7958
        %v8222 = vmax.bf16 %v7816, %v7968
        %v8223 = vmax.bf16 %v7817, %v7982
        %v8224 = vmax.bf16 %v7818, %v7992
        %v8225 = vmax.bf16 %v7819, %v8006
        %v8226 = vmax.bf16 %v7820, %v8016
        %v8227 = vmax.bf16 %v7821, %v8030
        %v8228 = vmax.bf16 %v7822, %v8040
        %v8229 = vmax.bf16 %v7823, %v8054
        %v8230 = vmax.bf16 %v7824, %v8064
        %v8231 = vmax.bf16 %v7825, %v8078
        %v8232 = vmax.bf16 %v7826, %v8088
        %v8233 = vmax.bf16 %v7827, %v8102
        %v8234 = vmax.bf16 %v7828, %v8112
        %v8235 = vmax.bf16 %v7829, %v8126
        %v8236 = vmax.bf16 %v7830, %v8136
        %v8237 = vmax.bf16 %v7831, %v8150
        %v8238 = vmax.bf16 %v7832, %v8160
        %v8239 = vmax.bf16 %v7833, %v8174
        %v8240 = vmax.bf16 %v7834, %v8184
        %v8241 = vld [vmem:[#allocation2] sm:$0xe]
        %v8242 = vld [vmem:[#allocation2 + $0xc] sm:$0xe]
        %v8243 = vld [vmem:[#allocation2 + $0x18] sm:$0xe]
        %v8244 = vld [vmem:[#allocation2 + $0x24] sm:$0xe]
        %v8245 = vld [vmem:[#allocation2 + $0x30] sm:$0xe]
        %v8246 = vld [vmem:[#allocation2 + $0x3c] sm:$0xe]
        %v8247 = vld [vmem:[#allocation2 + $0x48] sm:$0xe]
        %v8248 = vld [vmem:[#allocation2 + $0x54] sm:$0xe]
        %v8249 = vld [vmem:[#allocation2 + $0x60] sm:$0xe]
        %v8250 = vld [vmem:[#allocation2 + $0x6c] sm:$0xe]
        %v8251 = vld [vmem:[#allocation2 + $0x78] sm:$0xe]
        %v8252 = vld [vmem:[#allocation2 + $0x84] sm:$0xe]
        %v8253 = vld [vmem:[#allocation2 + $0x90] sm:$0xe]
        %v8254 = vld [vmem:[#allocation2 + $0x9c] sm:$0xe]
        %v8297 = vrot.slane %v8241, 5
        %v8298 = vrot.slane %v8297, 4
        %v8299 = vrot.slane %v7808, 5
        %v8300 = vsel %vm1554, %v8298, %v8299
        %v8301 = vrot.slane %v8299, 4
        %v8302 = vrot.slane %v7835, 5
        %v8303 = vsel %vm1554, %v8301, %v8302
        %v8304 = vrot.slane %v8242, 5
        %v8305 = vrot.slane %v8304, 4
        %v8306 = vrot.slane %v7810, 5
        %v8307 = vsel %vm1554, %v8305, %v8306
        %v8308 = vrot.slane %v8306, 4
        %v8309 = vrot.slane %v7836, 5
        %v8310 = vsel %vm1554, %v8308, %v8309
        %v8311 = vrot.slane %v8243, 5
        %v8312 = vrot.slane %v8311, 4
        %v8313 = vrot.slane %v7812, 5
        %v8314 = vsel %vm1554, %v8312, %v8313
        %v8315 = vrot.slane %v8313, 4
        %v8316 = vrot.slane %v7837, 5
        %v8317 = vsel %vm1554, %v8315, %v8316
        %v8318 = vrot.slane %v8244, 5
        %v8319 = vrot.slane %v8318, 4
        %v8320 = vrot.slane %v7814, 5
        %v8321 = vsel %vm1554, %v8319, %v8320
        %v8322 = vrot.slane %v8320, 4
        %v8323 = vrot.slane %v7838, 5
        %v8324 = vsel %vm1554, %v8322, %v8323
        %v8325 = vrot.slane %v8245, 5
        %v8326 = vrot.slane %v8325, 4
        %v8327 = vrot.slane %v7816, 5
        %v8328 = vsel %vm1554, %v8326, %v8327
        %v8329 = vrot.slane %v8327, 4
        %v8330 = vrot.slane %v7839, 5
        %v8331 = vsel %vm1554, %v8329, %v8330
        %v8332 = vrot.slane %v8246, 5
        %v8333 = vrot.slane %v8332, 4
        %v8334 = vrot.slane %v7818, 5
        %v8335 = vsel %vm1554, %v8333, %v8334
        %v8336 = vrot.slane %v8334, 4
        %v8337 = vrot.slane %v7840, 5
        %v8338 = vsel %vm1554, %v8336, %v8337
        %v8339 = vrot.slane %v8247, 5
        %v8340 = vrot.slane %v8339, 4
        %v8341 = vrot.slane %v7820, 5
        %v8342 = vsel %vm1554, %v8340, %v8341
        %v8343 = vrot.slane %v8341, 4
        %v8344 = vrot.slane %v7841, 5
        %v8345 = vsel %vm1554, %v8343, %v8344
        %v8346 = vrot.slane %v8248, 5
        %v8347 = vrot.slane %v8346, 4
        %v8348 = vrot.slane %v7822, 5
        %v8349 = vsel %vm1554, %v8347, %v8348
        %v8350 = vrot.slane %v8348, 4
        %v8351 = vrot.slane %v7842, 5
        %v8352 = vsel %vm1554, %v8350, %v8351
        %v8353 = vrot.slane %v8249, 5
        %v8354 = vrot.slane %v8353, 4
        %v8355 = vrot.slane %v7824, 5
        %v8356 = vsel %vm1554, %v8354, %v8355
        %v8357 = vrot.slane %v8355, 4
        %v8358 = vrot.slane %v7843, 5
        %v8359 = vsel %vm1554, %v8357, %v8358
        %v8360 = vrot.slane %v8250, 5
        %v8361 = vrot.slane %v8360, 4
        %v8362 = vrot.slane %v7826, 5
        %v8363 = vsel %vm1554, %v8361, %v8362
        %v8364 = vrot.slane %v8362, 4
        %v8365 = vrot.slane %v7844, 5
        %v8366 = vsel %vm1554, %v8364, %v8365
        %v8367 = vrot.slane %v8251, 5
        %v8368 = vrot.slane %v8367, 4
        %v8369 = vrot.slane %v7828, 5
        %v8370 = vsel %vm1554, %v8368, %v8369
        %v8371 = vrot.slane %v8369, 4
        %v8372 = vrot.slane %v7845, 5
        %v8373 = vsel %vm1554, %v8371, %v8372
        %v8374 = vrot.slane %v8252, 5
        %v8375 = vrot.slane %v8374, 4
        %v8376 = vrot.slane %v7830, 5
        %v8377 = vsel %vm1554, %v8375, %v8376
        %v8378 = vrot.slane %v8376, 4
        %v8379 = vrot.slane %v7846, 5
        %v8380 = vsel %vm1554, %v8378, %v8379
        %v8381 = vrot.slane %v8253, 5
        %v8382 = vrot.slane %v8381, 4
        %v8383 = vrot.slane %v7832, 5
        %v8384 = vsel %vm1554, %v8382, %v8383
        %v8385 = vrot.slane %v8383, 4
        %v8386 = vrot.slane %v7847, 5
        %v8387 = vsel %vm1554, %v8385, %v8386
        %v8388 = vrot.slane %v8254, 5
        %v8389 = vrot.slane %v8388, 4
        %v8390 = vrot.slane %v7834, 5
        %v8391 = vsel %vm1554, %v8389, %v8390
        %v8392 = vrot.slane %v8390, 4
        %v8393 = vrot.slane %v7848, 5
        %v8394 = vsel %vm1554, %v8392, %v8393
        %v8423 = vmax.bf16 %v8213, %v8300
        %v8424 = vmax.bf16 %v8214, %v8303
        %v8425 = vmax.bf16 %v8215, %v8307
        %v8426 = vmax.bf16 %v8216, %v8310
        %v8427 = vmax.bf16 %v8217, %v8314
        %v8428 = vmax.bf16 %v8218, %v8317
        %v8429 = vmax.bf16 %v8219, %v8321
        %v8430 = vmax.bf16 %v8220, %v8324
        %v8431 = vmax.bf16 %v8221, %v8328
        %v8432 = vmax.bf16 %v8222, %v8331
        %v8433 = vmax.bf16 %v8223, %v8335
        %v8434 = vmax.bf16 %v8224, %v8338
        %v8435 = vmax.bf16 %v8225, %v8342
        %v8436 = vmax.bf16 %v8226, %v8345
        %v8437 = vmax.bf16 %v8227, %v8349
        %v8438 = vmax.bf16 %v8228, %v8352
        %v8439 = vmax.bf16 %v8229, %v8356
        %v8440 = vmax.bf16 %v8230, %v8359
        %v8441 = vmax.bf16 %v8231, %v8363
        %v8442 = vmax.bf16 %v8232, %v8366
        %v8443 = vmax.bf16 %v8233, %v8370
        %v8444 = vmax.bf16 %v8234, %v8373
        %v8445 = vmax.bf16 %v8235, %v8377
        %v8446 = vmax.bf16 %v8236, %v8380
        %v8447 = vmax.bf16 %v8237, %v8384
        %v8448 = vmax.bf16 %v8238, %v8387
        %v8449 = vmax.bf16 %v8239, %v8391
        %v8450 = vmax.bf16 %v8240, %v8394
        %v8451 = vld [vmem:[#allocation2 + $0x8] sm:$0x3]
        %v8452 = vld [vmem:[#allocation2 + $0x14] sm:$0x3]
        %v8453 = vld [vmem:[#allocation2 + $0x20] sm:$0x3]
        %v8454 = vld [vmem:[#allocation2 + $0x2c] sm:$0x3]
        %v8455 = vld [vmem:[#allocation2 + $0x38] sm:$0x3]
        %v8456 = vld [vmem:[#allocation2 + $0x44] sm:$0x3]
        %v8457 = vld [vmem:[#allocation2 + $0x50] sm:$0x3]
        %v8458 = vld [vmem:[#allocation2 + $0x5c] sm:$0x3]
        %v8459 = vld [vmem:[#allocation2 + $0x68] sm:$0x3]
        %v8460 = vld [vmem:[#allocation2 + $0x74] sm:$0x3]
        %v8461 = vld [vmem:[#allocation2 + $0x80] sm:$0x3]
        %v8462 = vld [vmem:[#allocation2 + $0x8c] sm:$0x3]
        %v8463 = vld [vmem:[#allocation2 + $0x98] sm:$0x3]
        %v8464 = vld [vmem:[#allocation2 + $0xa4] sm:$0x3]
        %v8466 = vshrl.u32 %v8241, 16
        %v8468 = vrot.slane %v8466, 5
        %v8469 = vshll.u32 %v8241, 16
        %v8471 = vrot.slane %v8469, 6
        %v8472 = vor.u32 %v8468, %v8471
        %v8473 = vrot.slane %v8472, 4
        %v8474 = vrot.slane %v7863, 5
        %v8475 = vrot.slane %v7859, 6
        %v8476 = vor.u32 %v8474, %v8475
        %v8477 = vsel %vm1797, %v8473, %v8476
        %v8478 = vrot.slane %v8476, 4
        %v8480 = vshrl.u32 %v8451, 16
        %v8482 = vrot.slane %v8480, 5
        %v8483 = vshll.u32 %v8451, 16
        %v8485 = vrot.slane %v8483, 6
        %v8486 = vor.u32 %v8482, %v8485
        %v8487 = vsel %vm1797, %v8478, %v8486
        %v8489 = vshrl.u32 %v8242, 16
        %v8491 = vrot.slane %v8489, 5
        %v8492 = vshll.u32 %v8242, 16
        %v8494 = vrot.slane %v8492, 6
        %v8495 = vor.u32 %v8491, %v8494
        %v8496 = vrot.slane %v8495, 4
        %v8497 = vrot.slane %v7887, 5
        %v8498 = vrot.slane %v7883, 6
        %v8499 = vor.u32 %v8497, %v8498
        %v8500 = vsel %vm1797, %v8496, %v8499
        %v8501 = vrot.slane %v8499, 4
        %v8503 = vshrl.u32 %v8452, 16
        %v8505 = vrot.slane %v8503, 5
        %v8506 = vshll.u32 %v8452, 16
        %v8508 = vrot.slane %v8506, 6
        %v8509 = vor.u32 %v8505, %v8508
        %v8510 = vsel %vm1797, %v8501, %v8509
        %v8512 = vshrl.u32 %v8243, 16
        %v8514 = vrot.slane %v8512, 5
        %v8515 = vshll.u32 %v8243, 16
        %v8517 = vrot.slane %v8515, 6
        %v8518 = vor.u32 %v8514, %v8517
        %v8519 = vrot.slane %v8518, 4
        %v8520 = vrot.slane %v7911, 5
        %v8521 = vrot.slane %v7907, 6
        %v8522 = vor.u32 %v8520, %v8521
        %v8523 = vsel %vm1797, %v8519, %v8522
        %v8524 = vrot.slane %v8522, 4
        %v8526 = vshrl.u32 %v8453, 16
        %v8528 = vrot.slane %v8526, 5
        %v8529 = vshll.u32 %v8453, 16
        %v8531 = vrot.slane %v8529, 6
        %v8532 = vor.u32 %v8528, %v8531
        %v8533 = vsel %vm1797, %v8524, %v8532
        %v8535 = vshrl.u32 %v8244, 16
        %v8537 = vrot.slane %v8535, 5
        %v8538 = vshll.u32 %v8244, 16
        %v8540 = vrot.slane %v8538, 6
        %v8541 = vor.u32 %v8537, %v8540
        %v8542 = vrot.slane %v8541, 4
        %v8543 = vrot.slane %v7935, 5
        %v8544 = vrot.slane %v7931, 6
        %v8545 = vor.u32 %v8543, %v8544
        %v8546 = vsel %vm1797, %v8542, %v8545
        %v8547 = vrot.slane %v8545, 4
        %v8549 = vshrl.u32 %v8454, 16
        %v8551 = vrot.slane %v8549, 5
        %v8552 = vshll.u32 %v8454, 16
        %v8554 = vrot.slane %v8552, 6
        %v8555 = vor.u32 %v8551, %v8554
        %v8556 = vsel %vm1797, %v8547, %v8555
        %v8558 = vshrl.u32 %v8245, 16
        %v8560 = vrot.slane %v8558, 5
        %v8561 = vshll.u32 %v8245, 16
        %v8563 = vrot.slane %v8561, 6
        %v8564 = vor.u32 %v8560, %v8563
        %v8565 = vrot.slane %v8564, 4
        %v8566 = vrot.slane %v7959, 5
        %v8567 = vrot.slane %v7955, 6
        %v8568 = vor.u32 %v8566, %v8567
        %v8569 = vsel %vm1797, %v8565, %v8568
        %v8570 = vrot.slane %v8568, 4
        %v8572 = vshrl.u32 %v8455, 16
        %v8574 = vrot.slane %v8572, 5
        %v8575 = vshll.u32 %v8455, 16
        %v8577 = vrot.slane %v8575, 6
        %v8578 = vor.u32 %v8574, %v8577
        %v8579 = vsel %vm1797, %v8570, %v8578
        %v8581 = vshrl.u32 %v8246, 16
        %v8583 = vrot.slane %v8581, 5
        %v8584 = vshll.u32 %v8246, 16
        %v8586 = vrot.slane %v8584, 6
        %v8587 = vor.u32 %v8583, %v8586
        %v8588 = vrot.slane %v8587, 4
        %v8589 = vrot.slane %v7983, 5
        %v8590 = vrot.slane %v7979, 6
        %v8591 = vor.u32 %v8589, %v8590
        %v8592 = vsel %vm1797, %v8588, %v8591
        %v8593 = vrot.slane %v8591, 4
        %v8595 = vshrl.u32 %v8456, 16
        %v8597 = vrot.slane %v8595, 5
        %v8598 = vshll.u32 %v8456, 16
        %v8600 = vrot.slane %v8598, 6
        %v8601 = vor.u32 %v8597, %v8600
        %v8602 = vsel %vm1797, %v8593, %v8601
        %v8604 = vshrl.u32 %v8247, 16
        %v8606 = vrot.slane %v8604, 5
        %v8607 = vshll.u32 %v8247, 16
        %v8609 = vrot.slane %v8607, 6
        %v8610 = vor.u32 %v8606, %v8609
        %v8611 = vrot.slane %v8610, 4
        %v8612 = vrot.slane %v8007, 5
        %v8613 = vrot.slane %v8003, 6
        %v8614 = vor.u32 %v8612, %v8613
        %v8615 = vsel %vm1797, %v8611, %v8614
        %v8616 = vrot.slane %v8614, 4
        %v8618 = vshrl.u32 %v8457, 16
        %v8620 = vrot.slane %v8618, 5
        %v8621 = vshll.u32 %v8457, 16
        %v8623 = vrot.slane %v8621, 6
        %v8624 = vor.u32 %v8620, %v8623
        %v8625 = vsel %vm1797, %v8616, %v8624
        %v8627 = vshrl.u32 %v8248, 16
        %v8629 = vrot.slane %v8627, 5
        %v8630 = vshll.u32 %v8248, 16
        %v8632 = vrot.slane %v8630, 6
        %v8633 = vor.u32 %v8629, %v8632
        %v8634 = vrot.slane %v8633, 4
        %v8635 = vrot.slane %v8031, 5
        %v8636 = vrot.slane %v8027, 6
        %v8637 = vor.u32 %v8635, %v8636
        %v8638 = vsel %vm1797, %v8634, %v8637
        %v8639 = vrot.slane %v8637, 4
        %v8641 = vshrl.u32 %v8458, 16
        %v8643 = vrot.slane %v8641, 5
        %v8644 = vshll.u32 %v8458, 16
        %v8646 = vrot.slane %v8644, 6
        %v8647 = vor.u32 %v8643, %v8646
        %v8648 = vsel %vm1797, %v8639, %v8647
        %v8650 = vshrl.u32 %v8249, 16
        %v8652 = vrot.slane %v8650, 5
        %v8653 = vshll.u32 %v8249, 16
        %v8655 = vrot.slane %v8653, 6
        %v8656 = vor.u32 %v8652, %v8655
        %v8657 = vrot.slane %v8656, 4
        %v8658 = vrot.slane %v8055, 5
        %v8659 = vrot.slane %v8051, 6
        %v8660 = vor.u32 %v8658, %v8659
        %v8661 = vsel %vm1797, %v8657, %v8660
        %v8662 = vrot.slane %v8660, 4
        %v8664 = vshrl.u32 %v8459, 16
        %v8666 = vrot.slane %v8664, 5
        %v8667 = vshll.u32 %v8459, 16
        %v8669 = vrot.slane %v8667, 6
        %v8670 = vor.u32 %v8666, %v8669
        %v8671 = vsel %vm1797, %v8662, %v8670
        %v8673 = vshrl.u32 %v8250, 16
        %v8675 = vrot.slane %v8673, 5
        %v8676 = vshll.u32 %v8250, 16
        %v8678 = vrot.slane %v8676, 6
        %v8679 = vor.u32 %v8675, %v8678
        %v8680 = vrot.slane %v8679, 4
        %v8681 = vrot.slane %v8079, 5
        %v8682 = vrot.slane %v8075, 6
        %v8683 = vor.u32 %v8681, %v8682
        %v8684 = vsel %vm1797, %v8680, %v8683
        %v8685 = vrot.slane %v8683, 4
        %v8687 = vshrl.u32 %v8460, 16
        %v8689 = vrot.slane %v8687, 5
        %v8690 = vshll.u32 %v8460, 16
        %v8692 = vrot.slane %v8690, 6
        %v8693 = vor.u32 %v8689, %v8692
        %v8694 = vsel %vm1797, %v8685, %v8693
        %v8696 = vshrl.u32 %v8251, 16
        %v8698 = vrot.slane %v8696, 5
        %v8699 = vshll.u32 %v8251, 16
        %v8701 = vrot.slane %v8699, 6
        %v8702 = vor.u32 %v8698, %v8701
        %v8703 = vrot.slane %v8702, 4
        %v8704 = vrot.slane %v8103, 5
        %v8705 = vrot.slane %v8099, 6
        %v8706 = vor.u32 %v8704, %v8705
        %v8707 = vsel %vm1797, %v8703, %v8706
        %v8708 = vrot.slane %v8706, 4
        %v8710 = vshrl.u32 %v8461, 16
        %v8712 = vrot.slane %v8710, 5
        %v8713 = vshll.u32 %v8461, 16
        %v8715 = vrot.slane %v8713, 6
        %v8716 = vor.u32 %v8712, %v8715
        %v8717 = vsel %vm1797, %v8708, %v8716
        %v8719 = vshrl.u32 %v8252, 16
        %v8721 = vrot.slane %v8719, 5
        %v8722 = vshll.u32 %v8252, 16
        %v8724 = vrot.slane %v8722, 6
        %v8725 = vor.u32 %v8721, %v8724
        %v8726 = vrot.slane %v8725, 4
        %v8727 = vrot.slane %v8127, 5
        %v8728 = vrot.slane %v8123, 6
        %v8729 = vor.u32 %v8727, %v8728
        %v8730 = vsel %vm1797, %v8726, %v8729
        %v8731 = vrot.slane %v8729, 4
        %v8733 = vshrl.u32 %v8462, 16
        %v8735 = vrot.slane %v8733, 5
        %v8736 = vshll.u32 %v8462, 16
        %v8738 = vrot.slane %v8736, 6
        %v8739 = vor.u32 %v8735, %v8738
        %v8740 = vsel %vm1797, %v8731, %v8739
        %v8742 = vshrl.u32 %v8253, 16
        %v8744 = vrot.slane %v8742, 5
        %v8745 = vshll.u32 %v8253, 16
        %v8747 = vrot.slane %v8745, 6
        %v8748 = vor.u32 %v8744, %v8747
        %v8749 = vrot.slane %v8748, 4
        %v8750 = vrot.slane %v8151, 5
        %v8751 = vrot.slane %v8147, 6
        %v8752 = vor.u32 %v8750, %v8751
        %v8753 = vsel %vm1797, %v8749, %v8752
        %v8754 = vrot.slane %v8752, 4
        %v8756 = vshrl.u32 %v8463, 16
        %v8758 = vrot.slane %v8756, 5
        %v8759 = vshll.u32 %v8463, 16
        %v8761 = vrot.slane %v8759, 6
        %v8762 = vor.u32 %v8758, %v8761
        %v8763 = vsel %vm1797, %v8754, %v8762
        %v8765 = vshrl.u32 %v8254, 16
        %v8767 = vrot.slane %v8765, 5
        %v8768 = vshll.u32 %v8254, 16
        %v8770 = vrot.slane %v8768, 6
        %v8771 = vor.u32 %v8767, %v8770
        %v8772 = vrot.slane %v8771, 4
        %v8773 = vrot.slane %v8175, 5
        %v8774 = vrot.slane %v8171, 6
        %v8775 = vor.u32 %v8773, %v8774
        %v8776 = vsel %vm1797, %v8772, %v8775
        %v8777 = vrot.slane %v8775, 4
        %v8779 = vshrl.u32 %v8464, 16
        %v8781 = vrot.slane %v8779, 5
        %v8782 = vshll.u32 %v8464, 16
        %v8784 = vrot.slane %v8782, 6
        %v8785 = vor.u32 %v8781, %v8784
        %v8786 = vsel %vm1797, %v8777, %v8785
        %v8815 = vmax.bf16 %v8423, %v8477
        %v8816 = vmax.bf16 %v8424, %v8487
        %v8817 = vmax.bf16 %v8425, %v8500
        %v8818 = vmax.bf16 %v8426, %v8510
        %v8819 = vmax.bf16 %v8427, %v8523
        %v8820 = vmax.bf16 %v8428, %v8533
        %v8821 = vmax.bf16 %v8429, %v8546
        %v8822 = vmax.bf16 %v8430, %v8556
        %v8823 = vmax.bf16 %v8431, %v8569
        %v8824 = vmax.bf16 %v8432, %v8579
        %v8825 = vmax.bf16 %v8433, %v8592
        %v8826 = vmax.bf16 %v8434, %v8602
        %v8827 = vmax.bf16 %v8435, %v8615
        %v8828 = vmax.bf16 %v8436, %v8625
        %v8829 = vmax.bf16 %v8437, %v8638
        %v8830 = vmax.bf16 %v8438, %v8648
        %v8831 = vmax.bf16 %v8439, %v8661
        %v8832 = vmax.bf16 %v8440, %v8671
        %v8833 = vmax.bf16 %v8441, %v8684
        %v8834 = vmax.bf16 %v8442, %v8694
        %v8835 = vmax.bf16 %v8443, %v8707
        %v8836 = vmax.bf16 %v8444, %v8717
        %v8837 = vmax.bf16 %v8445, %v8730
        %v8838 = vmax.bf16 %v8446, %v8740
        %v8839 = vmax.bf16 %v8447, %v8753
        %v8840 = vmax.bf16 %v8448, %v8763
        %v8841 = vmax.bf16 %v8449, %v8776
        %v8842 = vmax.bf16 %v8450, %v8786
        %v8843 = vld [vmem:[#allocation2] sm:$0xc]
        %v8844 = vld [vmem:[#allocation2 + $0xc] sm:$0xc]
        %v8845 = vld [vmem:[#allocation2 + $0x18] sm:$0xc]
        %v8846 = vld [vmem:[#allocation2 + $0x24] sm:$0xc]
        %v8847 = vld [vmem:[#allocation2 + $0x30] sm:$0xc]
        %v8848 = vld [vmem:[#allocation2 + $0x3c] sm:$0xc]
        %v8849 = vld [vmem:[#allocation2 + $0x48] sm:$0xc]
        %v8850 = vld [vmem:[#allocation2 + $0x54] sm:$0xc]
        %v8851 = vld [vmem:[#allocation2 + $0x60] sm:$0xc]
        %v8852 = vld [vmem:[#allocation2 + $0x6c] sm:$0xc]
        %v8853 = vld [vmem:[#allocation2 + $0x78] sm:$0xc]
        %v8854 = vld [vmem:[#allocation2 + $0x84] sm:$0xc]
        %v8855 = vld [vmem:[#allocation2 + $0x90] sm:$0xc]
        %v8856 = vld [vmem:[#allocation2 + $0x9c] sm:$0xc]
        %v8885 = vrot.slane %v8843, 6
        %v8886 = vrot.slane %v8885, 4
        %v8887 = vrot.slane %v7808, 6
        %v8888 = vsel %vm2400, %v8886, %v8887
        %v8889 = vrot.slane %v8887, 4
        %v8890 = vrot.slane %v8451, 6
        %v8891 = vsel %vm2400, %v8889, %v8890
        %v8892 = vrot.slane %v8844, 6
        %v8893 = vrot.slane %v8892, 4
        %v8894 = vrot.slane %v7810, 6
        %v8895 = vsel %vm2400, %v8893, %v8894
        %v8896 = vrot.slane %v8894, 4
        %v8897 = vrot.slane %v8452, 6
        %v8898 = vsel %vm2400, %v8896, %v8897
        %v8899 = vrot.slane %v8845, 6
        %v8900 = vrot.slane %v8899, 4
        %v8901 = vrot.slane %v7812, 6
        %v8902 = vsel %vm2400, %v8900, %v8901
        %v8903 = vrot.slane %v8901, 4
        %v8904 = vrot.slane %v8453, 6
        %v8905 = vsel %vm2400, %v8903, %v8904
        %v8906 = vrot.slane %v8846, 6
        %v8907 = vrot.slane %v8906, 4
        %v8908 = vrot.slane %v7814, 6
        %v8909 = vsel %vm2400, %v8907, %v8908
        %v8910 = vrot.slane %v8908, 4
        %v8911 = vrot.slane %v8454, 6
        %v8912 = vsel %vm2400, %v8910, %v8911
        %v8913 = vrot.slane %v8847, 6
        %v8914 = vrot.slane %v8913, 4
        %v8915 = vrot.slane %v7816, 6
        %v8916 = vsel %vm2400, %v8914, %v8915
        %v8917 = vrot.slane %v8915, 4
        %v8918 = vrot.slane %v8455, 6
        %v8919 = vsel %vm2400, %v8917, %v8918
        %v8920 = vrot.slane %v8848, 6
        %v8921 = vrot.slane %v8920, 4
        %v8922 = vrot.slane %v7818, 6
        %v8923 = vsel %vm2400, %v8921, %v8922
        %v8924 = vrot.slane %v8922, 4
        %v8925 = vrot.slane %v8456, 6
        %v8926 = vsel %vm2400, %v8924, %v8925
        %v8927 = vrot.slane %v8849, 6
        %v8928 = vrot.slane %v8927, 4
        %v8929 = vrot.slane %v7820, 6
        %v8930 = vsel %vm2400, %v8928, %v8929
        %v8931 = vrot.slane %v8929, 4
        %v8932 = vrot.slane %v8457, 6
        %v8933 = vsel %vm2400, %v8931, %v8932
        %v8934 = vrot.slane %v8850, 6
        %v8935 = vrot.slane %v8934, 4
        %v8936 = vrot.slane %v7822, 6
        %v8937 = vsel %vm2400, %v8935, %v8936
        %v8938 = vrot.slane %v8936, 4
        %v8939 = vrot.slane %v8458, 6
        %v8940 = vsel %vm2400, %v8938, %v8939
        %v8941 = vrot.slane %v8851, 6
        %v8942 = vrot.slane %v8941, 4
        %v8943 = vrot.slane %v7824, 6
        %v8944 = vsel %vm2400, %v8942, %v8943
        %v8945 = vrot.slane %v8943, 4
        %v8946 = vrot.slane %v8459, 6
        %v8947 = vsel %vm2400, %v8945, %v8946
        %v8948 = vrot.slane %v8852, 6
        %v8949 = vrot.slane %v8948, 4
        %v8950 = vrot.slane %v7826, 6
        %v8951 = vsel %vm2400, %v8949, %v8950
        %v8952 = vrot.slane %v8950, 4
        %v8953 = vrot.slane %v8460, 6
        %v8954 = vsel %vm2400, %v8952, %v8953
        %v8955 = vrot.slane %v8853, 6
        %v8956 = vrot.slane %v8955, 4
        %v8957 = vrot.slane %v7828, 6
        %v8958 = vsel %vm2400, %v8956, %v8957
        %v8959 = vrot.slane %v8957, 4
        %v8960 = vrot.slane %v8461, 6
        %v8961 = vsel %vm2400, %v8959, %v8960
        %v8962 = vrot.slane %v8854, 6
        %v8963 = vrot.slane %v8962, 4
        %v8964 = vrot.slane %v7830, 6
        %v8965 = vsel %vm2400, %v8963, %v8964
        %v8966 = vrot.slane %v8964, 4
        %v8967 = vrot.slane %v8462, 6
        %v8968 = vsel %vm2400, %v8966, %v8967
        %v8969 = vrot.slane %v8855, 6
        %v8970 = vrot.slane %v8969, 4
        %v8971 = vrot.slane %v7832, 6
        %v8972 = vsel %vm2400, %v8970, %v8971
        %v8973 = vrot.slane %v8971, 4
        %v8974 = vrot.slane %v8463, 6
        %v8975 = vsel %vm2400, %v8973, %v8974
        %v8976 = vrot.slane %v8856, 6
        %v8977 = vrot.slane %v8976, 4
        %v8978 = vrot.slane %v7834, 6
        %v8979 = vsel %vm2400, %v8977, %v8978
        %v8980 = vrot.slane %v8978, 4
        %v8981 = vrot.slane %v8464, 6
        %v8982 = vsel %vm2400, %v8980, %v8981
        %v9011 = vmax.bf16 %v8815, %v8888
        %v9012 = vmax.bf16 %v8816, %v8891
        %v9013 = vmax.bf16 %v8817, %v8895
        %v9014 = vmax.bf16 %v8818, %v8898
        %v9015 = vmax.bf16 %v8819, %v8902
        %v9016 = vmax.bf16 %v8820, %v8905
        %v9017 = vmax.bf16 %v8821, %v8909
        %v9018 = vmax.bf16 %v8822, %v8912
        %v9019 = vmax.bf16 %v8823, %v8916
        %v9020 = vmax.bf16 %v8824, %v8919
        %v9021 = vmax.bf16 %v8825, %v8923
        %v9022 = vmax.bf16 %v8826, %v8926
        %v9023 = vmax.bf16 %v8827, %v8930
        %v9024 = vmax.bf16 %v8828, %v8933
        %v9025 = vmax.bf16 %v8829, %v8937
        %v9026 = vmax.bf16 %v8830, %v8940
        %v9027 = vmax.bf16 %v8831, %v8944
        %v9028 = vmax.bf16 %v8832, %v8947
        %v9029 = vmax.bf16 %v8833, %v8951
        %v9030 = vmax.bf16 %v8834, %v8954
        %v9031 = vmax.bf16 %v8835, %v8958
        %v9032 = vmax.bf16 %v8836, %v8961
        %v9033 = vmax.bf16 %v8837, %v8965
        %v9034 = vmax.bf16 %v8838, %v8968
        %v9035 = vmax.bf16 %v8839, %v8972
        %v9036 = vmax.bf16 %v8840, %v8975
        %v9037 = vmax.bf16 %v8841, %v8979
        %v9038 = vmax.bf16 %v8842, %v8982
        %v9067 = vunpack.c.l.b16 %v9011
        %v9068 = vunpack.c.l.b16 %v9012
        %v9069 = vunpack.c.l.b16 %v9013
        %v9070 = vunpack.c.l.b16 %v9014
        %v9071 = vunpack.c.l.b16 %v9015
        %v9072 = vunpack.c.l.b16 %v9016
        %v9073 = vunpack.c.l.b16 %v9017
        %v9074 = vunpack.c.l.b16 %v9018
        %v9075 = vunpack.c.l.b16 %v9019
        %v9076 = vunpack.c.l.b16 %v9020
        %v9077 = vunpack.c.l.b16 %v9021
        %v9078 = vunpack.c.l.b16 %v9022
        %v9079 = vunpack.c.l.b16 %v9023
        %v9080 = vunpack.c.l.b16 %v9024
        %v9081 = vunpack.c.l.b16 %v9025
        %v9082 = vunpack.c.l.b16 %v9026
        %v9083 = vunpack.c.l.b16 %v9027
        %v9084 = vunpack.c.l.b16 %v9028
        %v9085 = vunpack.c.l.b16 %v9029
        %v9086 = vunpack.c.l.b16 %v9030
        %v9087 = vunpack.c.l.b16 %v9031
        %v9088 = vunpack.c.l.b16 %v9032
        %v9089 = vunpack.c.l.b16 %v9033
        %v9090 = vunpack.c.l.b16 %v9034
        %v9091 = vunpack.c.l.b16 %v9035
        %v9092 = vunpack.c.l.b16 %v9036
        %v9093 = vunpack.c.l.b16 %v9037
        %v9094 = vunpack.c.l.b16 %v9038
        %v9095 = vpack.c.b16 %v9068, %v9067
        %v9096 = vpack.c.b16 %v9070, %v9069
        %v9097 = vpack.c.b16 %v9072, %v9071
        %v9098 = vpack.c.b16 %v9074, %v9073
        %v9099 = vpack.c.b16 %v9076, %v9075
        %v9100 = vpack.c.b16 %v9078, %v9077
        %v9101 = vpack.c.b16 %v9080, %v9079
        %v9102 = vpack.c.b16 %v9082, %v9081
        %v9103 = vpack.c.b16 %v9084, %v9083
        %v9104 = vpack.c.b16 %v9086, %v9085
        %v9105 = vpack.c.b16 %v9088, %v9087
        %v9106 = vpack.c.b16 %v9090, %v9089
        %v9107 = vpack.c.b16 %v9092, %v9091
        %v9108 = vpack.c.b16 %v9094, %v9093
        %9123 = vst [vmem:[#allocation3] sm:$0xff] %v9095
        %9124 = vst [vmem:[#allocation3 + $0x8] sm:$0xff] %v9096
        %9125 = vst [vmem:[#allocation3 + $0x10] sm:$0xff] %v9097
        %9126 = vst [vmem:[#allocation3 + $0x18] sm:$0xff] %v9098
        %9127 = vst [vmem:[#allocation3 + $0x20] sm:$0xff] %v9099
        %9128 = vst [vmem:[#allocation3 + $0x28] sm:$0xff] %v9100
        %9129 = vst [vmem:[#allocation3 + $0x30] sm:$0xff] %v9101
        %9130 = vst [vmem:[#allocation3 + $0x38] sm:$0xff] %v9102
        %9131 = vst [vmem:[#allocation3 + $0x40] sm:$0xff] %v9103
        %9132 = vst [vmem:[#allocation3 + $0x48] sm:$0xff] %v9104
        %9133 = vst [vmem:[#allocation3 + $0x50] sm:$0xff] %v9105
        %9134 = vst [vmem:[#allocation3 + $0x58] sm:$0xff] %v9106
        %9135 = vst [vmem:[#allocation3 + $0x60] sm:$0xff] %v9107
        %9136 = vst [vmem:[#allocation3 + $0x68] sm:$0xff] %v9108
        %v9137 = vld [vmem:[#allocation3] sm:$0xff]
        %v9138 = vld [vmem:[#allocation3 + $0x8] sm:$0xff]
        %v9139 = vld [vmem:[#allocation3 + $0x10] sm:$0xff]
        %v9140 = vld [vmem:[#allocation3 + $0x18] sm:$0xff]
        %v9141 = vld [vmem:[#allocation3 + $0x20] sm:$0xff]
        %v9142 = vld [vmem:[#allocation3 + $0x28] sm:$0xff]
        %v9143 = vld [vmem:[#allocation3 + $0x30] sm:$0xff]
        %v9144 = vld [vmem:[#allocation3 + $0x38] sm:$0xff]
        %v9145 = vld [vmem:[#allocation3 + $0x40] sm:$0xff]
        %v9146 = vld [vmem:[#allocation3 + $0x48] sm:$0xff]
        %v9147 = vld [vmem:[%s2777] sm:$0xff]
        %v9148 = vld [vmem:[%s2777 + $0x8] sm:$0xff]
        %v9149 = vld [vmem:[%s2777 + $0x10] sm:$0xff]
        %v9150 = vld [vmem:[%s2777 + $0x18] sm:$0xff]
        %v9151 = vld [vmem:[%s2777 + $0x20] sm:$0xff]
        %v9152 = vld [vmem:[%s2777 + $0x28] sm:$0xff]
        %v9153 = vld [vmem:[%s2777 + $0x30] sm:$0xff]
        %v9154 = vld [vmem:[%s2777 + $0x38] sm:$0xff]
        %v9155 = vld [vmem:[%s2777 + $0x40] sm:$0xff]
        %v9156 = vld [vmem:[%s2777 + $0x48] sm:$0xff]
        %v9157 = vmax.bf16 %v9137, %v9147
        %v9158 = vmax.bf16 %v9138, %v9148
        %v9159 = vmax.bf16 %v9139, %v9149
        %v9160 = vmax.bf16 %v9140, %v9150
        %v9161 = vmax.bf16 %v9141, %v9151
        %v9162 = vmax.bf16 %v9142, %v9152
        %v9163 = vmax.bf16 %v9143, %v9153
        %v9164 = vmax.bf16 %v9144, %v9154
        %v9165 = vmax.bf16 %v9145, %v9155
        %v9166 = vmax.bf16 %v9146, %v9156
        %v9167 = vld [vmem:[%s2810] sm:$0xff]
        %v9168 = vld [vmem:[%s2810 + $0x8] sm:$0xff]
        %v9169 = vld [vmem:[%s2810 + $0x10] sm:$0xff]
        %v9170 = vld [vmem:[%s2810 + $0x18] sm:$0xff]
        %v9171 = vld [vmem:[%s2810 + $0x20] sm:$0xff]
        %v9172 = vld [vmem:[%s2810 + $0x28] sm:$0xff]
        %v9173 = vld [vmem:[%s2810 + $0x30] sm:$0xff]
        %v9174 = vld [vmem:[%s2810 + $0x38] sm:$0xff]
        %v9175 = vld [vmem:[%s2810 + $0x40] sm:$0xff]
        %v9176 = vld [vmem:[%s2810 + $0x48] sm:$0xff]
        %v9177 = vmax.bf16 %v9157, %v9167
        %v9178 = vmax.bf16 %v9158, %v9168
        %v9179 = vmax.bf16 %v9159, %v9169
        %v9180 = vmax.bf16 %v9160, %v9170
        %v9181 = vmax.bf16 %v9161, %v9171
        %v9182 = vmax.bf16 %v9162, %v9172
        %v9183 = vmax.bf16 %v9163, %v9173
        %v9184 = vmax.bf16 %v9164, %v9174
        %v9185 = vmax.bf16 %v9165, %v9175
        %v9186 = vmax.bf16 %v9166, %v9176
        %v9187 = vld [vmem:[%s2843] sm:$0xff]
        %v9188 = vld [vmem:[%s2843 + $0x8] sm:$0xff]
        %v9189 = vld [vmem:[%s2843 + $0x10] sm:$0xff]
        %v9190 = vld [vmem:[%s2843 + $0x18] sm:$0xff]
        %v9191 = vld [vmem:[%s2843 + $0x20] sm:$0xff]
        %v9192 = vld [vmem:[%s2843 + $0x28] sm:$0xff]
        %v9193 = vld [vmem:[%s2843 + $0x30] sm:$0xff]
        %v9194 = vld [vmem:[%s2843 + $0x38] sm:$0xff]
        %v9195 = vld [vmem:[%s2843 + $0x40] sm:$0xff]
        %v9196 = vld [vmem:[%s2843 + $0x48] sm:$0xff]
        %v9197 = vmax.bf16 %v9177, %v9187
        %v9198 = vmax.bf16 %v9178, %v9188
        %v9199 = vmax.bf16 %v9179, %v9189
        %v9200 = vmax.bf16 %v9180, %v9190
        %v9201 = vmax.bf16 %v9181, %v9191
        %v9202 = vmax.bf16 %v9182, %v9192
        %v9203 = vmax.bf16 %v9183, %v9193
        %v9204 = vmax.bf16 %v9184, %v9194
        %v9205 = vmax.bf16 %v9185, %v9195
        %v9206 = vmax.bf16 %v9186, %v9196
        %v9207 = vld [vmem:[%s2876] sm:$0xff]
        %v9208 = vld [vmem:[%s2876 + $0x8] sm:$0xff]
        %v9209 = vld [vmem:[%s2876 + $0x10] sm:$0xff]
        %v9210 = vld [vmem:[%s2876 + $0x18] sm:$0xff]
        %v9211 = vld [vmem:[%s2876 + $0x20] sm:$0xff]
        %v9212 = vld [vmem:[%s2876 + $0x28] sm:$0xff]
        %v9213 = vld [vmem:[%s2876 + $0x30] sm:$0xff]
        %v9214 = vld [vmem:[%s2876 + $0x38] sm:$0xff]
        %v9215 = vld [vmem:[%s2876 + $0x40] sm:$0xff]
        %v9216 = vld [vmem:[%s2876 + $0x48] sm:$0xff]
        %v9217 = vmax.bf16 %v9197, %v9207
        %v9218 = vmax.bf16 %v9198, %v9208
        %v9219 = vmax.bf16 %v9199, %v9209
        %v9220 = vmax.bf16 %v9200, %v9210
        %v9221 = vmax.bf16 %v9201, %v9211
        %v9222 = vmax.bf16 %v9202, %v9212
        %v9223 = vmax.bf16 %v9203, %v9213
        %v9224 = vmax.bf16 %v9204, %v9214
        %v9225 = vmax.bf16 %v9205, %v9215
        %v9226 = vmax.bf16 %v9206, %v9216
        %v9237 = vunpack.c.l.b16 %v9217
        %v9238 = vunpack.c.h.b16 %v9217
        %v9239 = vunpack.c.l.b16 %v9218
        %v9240 = vunpack.c.h.b16 %v9218
        %v9241 = vunpack.c.l.b16 %v9219
        %v9242 = vunpack.c.h.b16 %v9219
        %v9243 = vunpack.c.l.b16 %v9220
        %v9244 = vunpack.c.h.b16 %v9220
        %v9245 = vunpack.c.l.b16 %v9221
        %v9246 = vunpack.c.h.b16 %v9221
        %v9247 = vunpack.c.l.b16 %v9222
        %v9248 = vunpack.c.h.b16 %v9222
        %v9249 = vunpack.c.l.b16 %v9223
        %v9250 = vunpack.c.h.b16 %v9223
        %v9251 = vunpack.c.l.b16 %v9224
        %v9252 = vunpack.c.h.b16 %v9224
        %v9253 = vunpack.c.l.b16 %v9225
        %v9254 = vunpack.c.h.b16 %v9225
        %v9255 = vunpack.c.l.b16 %v9226
        %v9256 = vunpack.c.h.b16 %v9226
        %v9257 = vpack.c.b16 %v9237, %v9237
        %v9258 = vpack.c.b16 %v9238, %v9238
        %v9259 = vpack.c.b16 %v9239, %v9239
        %v9260 = vpack.c.b16 %v9240, %v9240
        %v9261 = vpack.c.b16 %v9241, %v9241
        %v9262 = vpack.c.b16 %v9242, %v9242
        %v9263 = vpack.c.b16 %v9243, %v9243
        %v9264 = vpack.c.b16 %v9244, %v9244
        %v9265 = vpack.c.b16 %v9245, %v9245
        %v9266 = vpack.c.b16 %v9246, %v9246
        %v9267 = vpack.c.b16 %v9247, %v9247
        %v9268 = vpack.c.b16 %v9248, %v9248
        %v9269 = vpack.c.b16 %v9249, %v9249
        %v9270 = vpack.c.b16 %v9250, %v9250
        %v9271 = vpack.c.b16 %v9251, %v9251
        %v9272 = vpack.c.b16 %v9252, %v9252
        %v9273 = vpack.c.b16 %v9253, %v9253
        %v9274 = vpack.c.b16 %v9254, %v9254
        %v9275 = vpack.c.b16 %v9255, %v9255
        %v9276 = vpack.c.b16 %v9256, %v9256
        %v9277 = vrot.slane %v9257, 7
        %v9278 = vrot.slane %v9277, 4
        %v9279 = vrot.slane %v9258, 7
        %v9280 = vsel %vm545, %v9278, %v9279
        %v9281 = vrot.slane %v9279, 4
        %v9282 = vrot.slane %v9259, 7
        %v9283 = vrot.slane %v9282, 4
        %v9284 = vrot.slane %v9260, 7
        %v9285 = vsel %vm545, %v9283, %v9284
        %v9286 = vrot.slane %v9284, 4
        %v9287 = vrot.slane %v9261, 7
        %v9288 = vrot.slane %v9287, 4
        %v9289 = vrot.slane %v9262, 7
        %v9290 = vsel %vm545, %v9288, %v9289
        %v9291 = vrot.slane %v9289, 4
        %v9292 = vrot.slane %v9263, 7
        %v9293 = vrot.slane %v9292, 4
        %v9294 = vrot.slane %v9264, 7
        %v9295 = vsel %vm545, %v9293, %v9294
        %v9296 = vrot.slane %v9294, 4
        %v9297 = vrot.slane %v9265, 7
        %v9298 = vrot.slane %v9297, 4
        %v9299 = vrot.slane %v9266, 7
        %v9300 = vsel %vm545, %v9298, %v9299
        %v9301 = vrot.slane %v9299, 4
        %v9302 = vrot.slane %v9267, 7
        %v9303 = vrot.slane %v9302, 4
        %v9304 = vrot.slane %v9268, 7
        %v9305 = vsel %vm545, %v9303, %v9304
        %v9306 = vrot.slane %v9304, 4
        %v9307 = vrot.slane %v9269, 7
        %v9308 = vrot.slane %v9307, 4
        %v9309 = vrot.slane %v9270, 7
        %v9310 = vsel %vm545, %v9308, %v9309
        %v9311 = vrot.slane %v9309, 4
        %v9312 = vrot.slane %v9271, 7
        %v9313 = vrot.slane %v9312, 4
        %v9314 = vrot.slane %v9272, 7
        %v9315 = vsel %vm545, %v9313, %v9314
        %v9316 = vrot.slane %v9314, 4
        %v9317 = vrot.slane %v9273, 7
        %v9318 = vrot.slane %v9317, 4
        %v9319 = vrot.slane %v9274, 7
        %v9320 = vsel %vm545, %v9318, %v9319
        %v9321 = vrot.slane %v9319, 4
        %v9322 = vrot.slane %v9275, 7
        %v9323 = vrot.slane %v9322, 4
        %v9324 = vrot.slane %v9276, 7
        %v9325 = vsel %vm545, %v9323, %v9324
        %v9326 = vrot.slane %v9324, 4
        %9357 = vst [vmem:[#allocation2] sm:$0xe] %v9277
        %9358 = vst [vmem:[#allocation2 + $0x4] sm:$0xf] %v9280
        %9359 = vst [vmem:[#allocation2 + $0x8] sm:$0x1] %v9281
        %9360 = vst [vmem:[#allocation2 + $0xc] sm:$0xe] %v9282
        %9361 = vst [vmem:[#allocation2 + $0x10] sm:$0xf] %v9285
        %9362 = vst [vmem:[#allocation2 + $0x14] sm:$0x1] %v9286
        %9363 = vst [vmem:[#allocation2 + $0x18] sm:$0xe] %v9287
        %9364 = vst [vmem:[#allocation2 + $0x1c] sm:$0xf] %v9290
        %9365 = vst [vmem:[#allocation2 + $0x20] sm:$0x1] %v9291
        %9366 = vst [vmem:[#allocation2 + $0x24] sm:$0xe] %v9292
        %9367 = vst [vmem:[#allocation2 + $0x28] sm:$0xf] %v9295
        %9368 = vst [vmem:[#allocation2 + $0x2c] sm:$0x1] %v9296
        %9369 = vst [vmem:[#allocation2 + $0x30] sm:$0xe] %v9297
        %9370 = vst [vmem:[#allocation2 + $0x34] sm:$0xf] %v9300
        %9371 = vst [vmem:[#allocation2 + $0x38] sm:$0x1] %v9301
        %9372 = vst [vmem:[#allocation2 + $0x3c] sm:$0xe] %v9302
        %9373 = vst [vmem:[#allocation2 + $0x40] sm:$0xf] %v9305
        %9374 = vst [vmem:[#allocation2 + $0x44] sm:$0x1] %v9306
        %9375 = vst [vmem:[#allocation2 + $0x48] sm:$0xe] %v9307
        %9376 = vst [vmem:[#allocation2 + $0x4c] sm:$0xf] %v9310
        %9377 = vst [vmem:[#allocation2 + $0x50] sm:$0x1] %v9311
        %9378 = vst [vmem:[#allocation2 + $0x54] sm:$0xe] %v9312
        %9379 = vst [vmem:[#allocation2 + $0x58] sm:$0xf] %v9315
        %9380 = vst [vmem:[#allocation2 + $0x5c] sm:$0x1] %v9316
        %9381 = vst [vmem:[#allocation2 + $0x60] sm:$0xe] %v9317
        %9382 = vst [vmem:[#allocation2 + $0x64] sm:$0xf] %v9320
        %9383 = vst [vmem:[#allocation2 + $0x68] sm:$0x1] %v9321
        %9384 = vst [vmem:[#allocation2 + $0x6c] sm:$0xe] %v9322
        %9385 = vst [vmem:[#allocation2 + $0x70] sm:$0xf] %v9325
        %9386 = vst [vmem:[#allocation2 + $0x74] sm:$0x1] %v9326
        %9387 = vst [vmem:[#allocation2] sm:$0x1] 0
        %9388 = vst [vmem:[#allocation2 + $0xc] sm:$0x1] 0
        %9389 = vst [vmem:[#allocation2 + $0x18] sm:$0x1] 0
        %9390 = vst [vmem:[#allocation2 + $0x24] sm:$0x1] 0
        %9391 = vst [vmem:[#allocation2 + $0x30] sm:$0x1] 0
        %9392 = vst [vmem:[#allocation2 + $0x3c] sm:$0x1] 0
        %9393 = vst [vmem:[#allocation2 + $0x48] sm:$0x1] 0
        %9394 = vst [vmem:[#allocation2 + $0x54] sm:$0x1] 0
        %9395 = vst [vmem:[#allocation2 + $0x60] sm:$0x1] 0
        %9396 = vst [vmem:[#allocation2 + $0x6c] sm:$0x1] 0
        %9397 = vst [vmem:[#allocation2 + $0x8] sm:$0x2] 0
        %9398 = vst [vmem:[#allocation2 + $0x14] sm:$0x2] 0
        %9399 = vst [vmem:[#allocation2 + $0x20] sm:$0x2] 0
        %9400 = vst [vmem:[#allocation2 + $0x2c] sm:$0x2] 0
        %9401 = vst [vmem:[#allocation2 + $0x38] sm:$0x2] 0
        %9402 = vst [vmem:[#allocation2 + $0x44] sm:$0x2] 0
        %9403 = vst [vmem:[#allocation2 + $0x50] sm:$0x2] 0
        %9404 = vst [vmem:[#allocation2 + $0x5c] sm:$0x2] 0
        %9405 = vst [vmem:[#allocation2 + $0x68] sm:$0x2] 0
        %9406 = vst [vmem:[#allocation2 + $0x74] sm:$0x2] 0
        // Predicated region
        $region61: #{tpu_custom_call.1} parent=27 // pred_check
          %p9407 = pneg %p194
        $region62: #{tpu_custom_call.1} parent=27 // pred_check_branch
          %9409 = sbr.rel (%p9407) target = $region64
        $region63: #{tpu_custom_call.1} parent=27 // pred_region
          %9410 = vst [vmem:[#allocation2] sm:$0xe] 0
          %9411 = vst [vmem:[#allocation2 + $0x4] sm:$0xf] 0
          %9412 = vst [vmem:[#allocation2 + $0x8] sm:$0x1] 0
        $region64: #{tpu_custom_call.1} parent=27 // pred_fallthru
          _
        // Predicated region
        $region65: #{tpu_custom_call.1} parent=27 // pred_check
          %p9413 = pneg %p195
        $region66: #{tpu_custom_call.1} parent=27 // pred_check_branch
          %9415 = sbr.rel (%p9413) target = $region68
        $region67: #{tpu_custom_call.1} parent=27 // pred_region
          %s9416 = scalar_lea.vmem [#allocation2], 108
          %9417 = vst [vmem:[%s9416] sm:$0xe] 0
          %9418 = vst [vmem:[%s9416 + $0x4] sm:$0xf] 0
          %9419 = vst [vmem:[%s9416 + $0x8] sm:$0x1] 0
        $region68: #{tpu_custom_call.1} parent=27 // pred_fallthru
          _
        %v9420 = vld [vmem:[#allocation2] sm:$0xf]
        %v9421 = vld [vmem:[#allocation2 + $0x4] sm:$0xf]
        %v9422 = vld [vmem:[#allocation2 + $0x8] sm:$0x1]
        %v9423 = vld [vmem:[#allocation2 + $0xc] sm:$0xf]
        %v9424 = vld [vmem:[#allocation2 + $0x10] sm:$0xf]
        %v9425 = vld [vmem:[#allocation2 + $0x14] sm:$0x1]
        %v9426 = vld [vmem:[#allocation2 + $0x18] sm:$0xf]
        %v9427 = vld [vmem:[#allocation2 + $0x1c] sm:$0xf]
        %v9428 = vld [vmem:[#allocation2 + $0x20] sm:$0x1]
        %v9429 = vld [vmem:[#allocation2 + $0x24] sm:$0xf]
        %v9430 = vld [vmem:[#allocation2 + $0x28] sm:$0xf]
        %v9431 = vld [vmem:[#allocation2 + $0x2c] sm:$0x1]
        %v9432 = vld [vmem:[#allocation2 + $0x30] sm:$0xf]
        %v9433 = vld [vmem:[#allocation2 + $0x34] sm:$0xf]
        %v9434 = vld [vmem:[#allocation2 + $0x38] sm:$0x1]
        %v9435 = vld [vmem:[#allocation2 + $0x3c] sm:$0xf]
        %v9436 = vld [vmem:[#allocation2 + $0x40] sm:$0xf]
        %v9437 = vld [vmem:[#allocation2 + $0x44] sm:$0x1]
        %v9438 = vld [vmem:[#allocation2 + $0x48] sm:$0xf]
        %v9439 = vld [vmem:[#allocation2 + $0x4c] sm:$0xf]
        %v9440 = vld [vmem:[#allocation2 + $0x50] sm:$0x1]
        %v9441 = vld [vmem:[#allocation2 + $0x54] sm:$0xf]
        %v9442 = vld [vmem:[#allocation2 + $0x58] sm:$0xf]
        %v9443 = vld [vmem:[#allocation2 + $0x5c] sm:$0x1]
        %v9444 = vld [vmem:[#allocation2] sm:$0xe]
        %v9445 = vld [vmem:[#allocation2 + $0xc] sm:$0xe]
        %v9446 = vld [vmem:[#allocation2 + $0x18] sm:$0xe]
        %v9447 = vld [vmem:[#allocation2 + $0x24] sm:$0xe]
        %v9448 = vld [vmem:[#allocation2 + $0x30] sm:$0xe]
        %v9449 = vld [vmem:[#allocation2 + $0x3c] sm:$0xe]
        %v9450 = vld [vmem:[#allocation2 + $0x48] sm:$0xe]
        %v9451 = vld [vmem:[#allocation2 + $0x54] sm:$0xe]
        %v9452 = vld [vmem:[#allocation2 + $0x8] sm:$0x3]
        %v9453 = vld [vmem:[#allocation2 + $0x14] sm:$0x3]
        %v9454 = vld [vmem:[#allocation2 + $0x20] sm:$0x3]
        %v9455 = vld [vmem:[#allocation2 + $0x2c] sm:$0x3]
        %v9456 = vld [vmem:[#allocation2 + $0x38] sm:$0x3]
        %v9457 = vld [vmem:[#allocation2 + $0x44] sm:$0x3]
        %v9458 = vld [vmem:[#allocation2 + $0x50] sm:$0x3]
        %v9459 = vld [vmem:[#allocation2 + $0x5c] sm:$0x3]
        %v9460 = vld [vmem:[%s3298] sm:$0xf]
        %v9461 = vld [vmem:[%s3298 + $0x4] sm:$0xf]
        %v9462 = vld [vmem:[%s3298 + $0x8] sm:$0x1]
        %v9463 = vld [vmem:[%s3298 + $0xc] sm:$0xf]
        %v9464 = vld [vmem:[%s3298 + $0x10] sm:$0xf]
        %v9465 = vld [vmem:[%s3298 + $0x14] sm:$0x1]
        %v9466 = vld [vmem:[%s3298 + $0x18] sm:$0xf]
        %v9467 = vld [vmem:[%s3298 + $0x1c] sm:$0xf]
        %v9468 = vld [vmem:[%s3298 + $0x20] sm:$0x1]
        %v9469 = vld [vmem:[%s3298 + $0x24] sm:$0xf]
        %v9470 = vld [vmem:[%s3298 + $0x28] sm:$0xf]
        %v9471 = vld [vmem:[%s3298 + $0x2c] sm:$0x1]
        %v9472 = vld [vmem:[%s3298 + $0x30] sm:$0xf]
        %v9473 = vld [vmem:[%s3298 + $0x34] sm:$0xf]
        %v9474 = vld [vmem:[%s3298 + $0x38] sm:$0x1]
        %v9475 = vld [vmem:[%s3298 + $0x3c] sm:$0xf]
        %v9476 = vld [vmem:[%s3298 + $0x40] sm:$0xf]
        %v9477 = vld [vmem:[%s3298 + $0x44] sm:$0x1]
        %v9478 = vld [vmem:[%s3298 + $0x48] sm:$0xf]
        %v9479 = vld [vmem:[%s3298 + $0x4c] sm:$0xf]
        %v9480 = vld [vmem:[%s3298 + $0x50] sm:$0x1]
        %v9481 = vld [vmem:[%s3298 + $0x54] sm:$0xf]
        %v9482 = vld [vmem:[%s3298 + $0x58] sm:$0xf]
        %v9483 = vld [vmem:[%s3298 + $0x5c] sm:$0x1]
        %v9484 = vld [vmem:[%s3298] sm:$0xe]
        %v9485 = vld [vmem:[%s3298 + $0xc] sm:$0xe]
        %v9486 = vld [vmem:[%s3298 + $0x18] sm:$0xe]
        %v9487 = vld [vmem:[%s3298 + $0x24] sm:$0xe]
        %v9488 = vld [vmem:[%s3298 + $0x30] sm:$0xe]
        %v9489 = vld [vmem:[%s3298 + $0x3c] sm:$0xe]
        %v9490 = vld [vmem:[%s3298 + $0x48] sm:$0xe]
        %v9491 = vld [vmem:[%s3298 + $0x54] sm:$0xe]
        %v9492 = vld [vmem:[%s3298 + $0x8] sm:$0x3]
        %v9493 = vld [vmem:[%s3298 + $0x14] sm:$0x3]
        %v9494 = vld [vmem:[%s3298 + $0x20] sm:$0x3]
        %v9495 = vld [vmem:[%s3298 + $0x2c] sm:$0x3]
        %v9496 = vld [vmem:[%s3298 + $0x38] sm:$0x3]
        %v9497 = vld [vmem:[%s3298 + $0x44] sm:$0x3]
        %v9498 = vld [vmem:[%s3298 + $0x50] sm:$0x3]
        %v9499 = vld [vmem:[%s3298 + $0x5c] sm:$0x3]
        %v9500 = vld [vmem:[%s3369] sm:$0xf]
        %v9501 = vld [vmem:[%s3369 + $0x4] sm:$0xf]
        %v9502 = vld [vmem:[%s3369 + $0x8] sm:$0x1]
        %v9503 = vld [vmem:[%s3369 + $0xc] sm:$0xf]
        %v9504 = vld [vmem:[%s3369 + $0x10] sm:$0xf]
        %v9505 = vld [vmem:[%s3369 + $0x14] sm:$0x1]
        %v9506 = vld [vmem:[%s3369 + $0x18] sm:$0xf]
        %v9507 = vld [vmem:[%s3369 + $0x1c] sm:$0xf]
        %v9508 = vld [vmem:[%s3369 + $0x20] sm:$0x1]
        %v9509 = vld [vmem:[%s3369 + $0x24] sm:$0xf]
        %v9510 = vld [vmem:[%s3369 + $0x28] sm:$0xf]
        %v9511 = vld [vmem:[%s3369 + $0x2c] sm:$0x1]
        %v9512 = vld [vmem:[%s3369 + $0x30] sm:$0xf]
        %v9513 = vld [vmem:[%s3369 + $0x34] sm:$0xf]
        %v9514 = vld [vmem:[%s3369 + $0x38] sm:$0x1]
        %v9515 = vld [vmem:[%s3369 + $0x3c] sm:$0xf]
        %v9516 = vld [vmem:[%s3369 + $0x40] sm:$0xf]
        %v9517 = vld [vmem:[%s3369 + $0x44] sm:$0x1]
        %v9518 = vld [vmem:[%s3369 + $0x48] sm:$0xf]
        %v9519 = vld [vmem:[%s3369 + $0x4c] sm:$0xf]
        %v9520 = vld [vmem:[%s3369 + $0x50] sm:$0x1]
        %v9521 = vld [vmem:[%s3369 + $0x54] sm:$0xf]
        %v9522 = vld [vmem:[%s3369 + $0x58] sm:$0xf]
        %v9523 = vld [vmem:[%s3369 + $0x5c] sm:$0x1]
        %v9524 = vld [vmem:[%s3369] sm:$0xe]
        %v9525 = vld [vmem:[%s3369 + $0xc] sm:$0xe]
        %v9526 = vld [vmem:[%s3369 + $0x18] sm:$0xe]
        %v9527 = vld [vmem:[%s3369 + $0x24] sm:$0xe]
        %v9528 = vld [vmem:[%s3369 + $0x30] sm:$0xe]
        %v9529 = vld [vmem:[%s3369 + $0x3c] sm:$0xe]
        %v9530 = vld [vmem:[%s3369 + $0x48] sm:$0xe]
        %v9531 = vld [vmem:[%s3369 + $0x54] sm:$0xe]
        %v9532 = vld [vmem:[%s3369 + $0x8] sm:$0x3]
        %v9533 = vld [vmem:[%s3369 + $0x14] sm:$0x3]
        %v9534 = vld [vmem:[%s3369 + $0x20] sm:$0x3]
        %v9535 = vld [vmem:[%s3369 + $0x2c] sm:$0x3]
        %v9536 = vld [vmem:[%s3369 + $0x38] sm:$0x3]
        %v9537 = vld [vmem:[%s3369 + $0x44] sm:$0x3]
        %v9538 = vld [vmem:[%s3369 + $0x50] sm:$0x3]
        %v9539 = vld [vmem:[%s3369 + $0x5c] sm:$0x3]
        %v9564 = vunpack.c.l.b16 %v9420
        %v9565 = vunpack.c.l.b16 %v9421
        %v9566 = vunpack.c.l.b16 %v9422
        %v9567 = vunpack.c.l.b16 %v9423
        %v9568 = vunpack.c.l.b16 %v9424
        %v9569 = vunpack.c.l.b16 %v9425
        %v9570 = vunpack.c.l.b16 %v9426
        %v9571 = vunpack.c.l.b16 %v9427
        %v9572 = vunpack.c.l.b16 %v9428
        %v9573 = vunpack.c.l.b16 %v9429
        %v9574 = vunpack.c.l.b16 %v9430
        %v9575 = vunpack.c.l.b16 %v9431
        %v9576 = vunpack.c.l.b16 %v9432
        %v9577 = vunpack.c.l.b16 %v9433
        %v9578 = vunpack.c.l.b16 %v9434
        %v9579 = vunpack.c.l.b16 %v9435
        %v9580 = vunpack.c.l.b16 %v9436
        %v9581 = vunpack.c.l.b16 %v9437
        %v9582 = vunpack.c.l.b16 %v9438
        %v9583 = vunpack.c.l.b16 %v9439
        %v9584 = vunpack.c.l.b16 %v9440
        %v9585 = vunpack.c.l.b16 %v9441
        %v9586 = vunpack.c.l.b16 %v9442
        %v9587 = vunpack.c.l.b16 %v9443
        %v9588 = vpack.c.b16 %v9565, %v9564
        %v9589 = vpack.c.b16 %v9566, %v9566
        %v9590 = vpack.c.b16 %v9568, %v9567
        %v9591 = vpack.c.b16 %v9569, %v9569
        %v9592 = vpack.c.b16 %v9571, %v9570
        %v9593 = vpack.c.b16 %v9572, %v9572
        %v9594 = vpack.c.b16 %v9574, %v9573
        %v9595 = vpack.c.b16 %v9575, %v9575
        %v9596 = vpack.c.b16 %v9577, %v9576
        %v9597 = vpack.c.b16 %v9578, %v9578
        %v9598 = vpack.c.b16 %v9580, %v9579
        %v9599 = vpack.c.b16 %v9581, %v9581
        %v9600 = vpack.c.b16 %v9583, %v9582
        %v9601 = vpack.c.b16 %v9584, %v9584
        %v9602 = vpack.c.b16 %v9586, %v9585
        %v9603 = vpack.c.b16 %v9587, %v9587
        %v9612 = vunpack.c.l.b16 %v9444
        %v9613 = vunpack.c.l.b16 %v9445
        %v9614 = vunpack.c.l.b16 %v9446
        %v9615 = vunpack.c.l.b16 %v9447
        %v9616 = vunpack.c.l.b16 %v9448
        %v9617 = vunpack.c.l.b16 %v9449
        %v9618 = vunpack.c.l.b16 %v9450
        %v9619 = vunpack.c.l.b16 %v9451
        %v9620 = vpack.c.b16 %v9565, %v9612
        %v9621 = vpack.c.b16 %v9568, %v9613
        %v9622 = vpack.c.b16 %v9571, %v9614
        %v9623 = vpack.c.b16 %v9574, %v9615
        %v9624 = vpack.c.b16 %v9577, %v9616
        %v9625 = vpack.c.b16 %v9580, %v9617
        %v9626 = vpack.c.b16 %v9583, %v9618
        %v9627 = vpack.c.b16 %v9586, %v9619
        %v9629 = vshrl.u32 %v9620, 16
        %v9631 = vshll.u32 %v9620, 16
        %v9633 = vrot.slane %v9631, 1
        %v9634 = vor.u32 %v9629, %v9633
        %v9636 = vshll.u32 %v9589, 16
        %v9638 = vrot.slane %v9636, 1
        %v9639 = vsel %vm3594, %v9634, %v9638
        %v9640 = vshrl.u32 %v9589, 16
        %v9643 = vshrl.u32 %v9621, 16
        %v9645 = vshll.u32 %v9621, 16
        %v9647 = vrot.slane %v9645, 1
        %v9648 = vor.u32 %v9643, %v9647
        %v9650 = vshll.u32 %v9591, 16
        %v9652 = vrot.slane %v9650, 1
        %v9653 = vsel %vm3594, %v9648, %v9652
        %v9654 = vshrl.u32 %v9591, 16
        %v9657 = vshrl.u32 %v9622, 16
        %v9659 = vshll.u32 %v9622, 16
        %v9661 = vrot.slane %v9659, 1
        %v9662 = vor.u32 %v9657, %v9661
        %v9664 = vshll.u32 %v9593, 16
        %v9666 = vrot.slane %v9664, 1
        %v9667 = vsel %vm3594, %v9662, %v9666
        %v9668 = vshrl.u32 %v9593, 16
        %v9671 = vshrl.u32 %v9623, 16
        %v9673 = vshll.u32 %v9623, 16
        %v9675 = vrot.slane %v9673, 1
        %v9676 = vor.u32 %v9671, %v9675
        %v9678 = vshll.u32 %v9595, 16
        %v9680 = vrot.slane %v9678, 1
        %v9681 = vsel %vm3594, %v9676, %v9680
        %v9682 = vshrl.u32 %v9595, 16
        %v9685 = vshrl.u32 %v9624, 16
        %v9687 = vshll.u32 %v9624, 16
        %v9689 = vrot.slane %v9687, 1
        %v9690 = vor.u32 %v9685, %v9689
        %v9692 = vshll.u32 %v9597, 16
        %v9694 = vrot.slane %v9692, 1
        %v9695 = vsel %vm3594, %v9690, %v9694
        %v9696 = vshrl.u32 %v9597, 16
        %v9699 = vshrl.u32 %v9625, 16
        %v9701 = vshll.u32 %v9625, 16
        %v9703 = vrot.slane %v9701, 1
        %v9704 = vor.u32 %v9699, %v9703
        %v9706 = vshll.u32 %v9599, 16
        %v9708 = vrot.slane %v9706, 1
        %v9709 = vsel %vm3594, %v9704, %v9708
        %v9710 = vshrl.u32 %v9599, 16
        %v9713 = vshrl.u32 %v9626, 16
        %v9715 = vshll.u32 %v9626, 16
        %v9717 = vrot.slane %v9715, 1
        %v9718 = vor.u32 %v9713, %v9717
        %v9720 = vshll.u32 %v9601, 16
        %v9722 = vrot.slane %v9720, 1
        %v9723 = vsel %vm3594, %v9718, %v9722
        %v9724 = vshrl.u32 %v9601, 16
        %v9727 = vshrl.u32 %v9627, 16
        %v9729 = vshll.u32 %v9627, 16
        %v9731 = vrot.slane %v9729, 1
        %v9732 = vor.u32 %v9727, %v9731
        %v9734 = vshll.u32 %v9603, 16
        %v9736 = vrot.slane %v9734, 1
        %v9737 = vsel %vm3594, %v9732, %v9736
        %v9738 = vshrl.u32 %v9603, 16
        %v9748 = vunpack.c.l.b16 %v9452
        %v9749 = vunpack.c.l.b16 %v9453
        %v9750 = vunpack.c.l.b16 %v9454
        %v9751 = vunpack.c.l.b16 %v9455
        %v9752 = vunpack.c.l.b16 %v9456
        %v9753 = vunpack.c.l.b16 %v9457
        %v9754 = vunpack.c.l.b16 %v9458
        %v9755 = vunpack.c.l.b16 %v9459
        %v9756 = vpack.c.b16 %v9748, %v9748
        %v9757 = vpack.c.b16 %v9749, %v9749
        %v9758 = vpack.c.b16 %v9750, %v9750
        %v9759 = vpack.c.b16 %v9751, %v9751
        %v9760 = vpack.c.b16 %v9752, %v9752
        %v9761 = vpack.c.b16 %v9753, %v9753
        %v9762 = vpack.c.b16 %v9754, %v9754
        %v9763 = vpack.c.b16 %v9755, %v9755
        %v9764 = vrot.slane %v9620, 1
        %v9765 = vrot.slane %v9756, 1
        %v9766 = vsel %vm3833, %v9764, %v9765
        %v9767 = vrot.slane %v9621, 1
        %v9768 = vrot.slane %v9757, 1
        %v9769 = vsel %vm3833, %v9767, %v9768
        %v9770 = vrot.slane %v9622, 1
        %v9771 = vrot.slane %v9758, 1
        %v9772 = vsel %vm3833, %v9770, %v9771
        %v9773 = vrot.slane %v9623, 1
        %v9774 = vrot.slane %v9759, 1
        %v9775 = vsel %vm3833, %v9773, %v9774
        %v9776 = vrot.slane %v9624, 1
        %v9777 = vrot.slane %v9760, 1
        %v9778 = vsel %vm3833, %v9776, %v9777
        %v9779 = vrot.slane %v9625, 1
        %v9780 = vrot.slane %v9761, 1
        %v9781 = vsel %vm3833, %v9779, %v9780
        %v9782 = vrot.slane %v9626, 1
        %v9783 = vrot.slane %v9762, 1
        %v9784 = vsel %vm3833, %v9782, %v9783
        %v9785 = vrot.slane %v9627, 1
        %v9786 = vrot.slane %v9763, 1
        %v9787 = vsel %vm3833, %v9785, %v9786
        %v9812 = vunpack.c.l.b16 %v9460
        %v9813 = vunpack.c.l.b16 %v9461
        %v9814 = vunpack.c.l.b16 %v9462
        %v9815 = vunpack.c.l.b16 %v9463
        %v9816 = vunpack.c.l.b16 %v9464
        %v9817 = vunpack.c.l.b16 %v9465
        %v9818 = vunpack.c.l.b16 %v9466
        %v9819 = vunpack.c.l.b16 %v9467
        %v9820 = vunpack.c.l.b16 %v9468
        %v9821 = vunpack.c.l.b16 %v9469
        %v9822 = vunpack.c.l.b16 %v9470
        %v9823 = vunpack.c.l.b16 %v9471
        %v9824 = vunpack.c.l.b16 %v9472
        %v9825 = vunpack.c.l.b16 %v9473
        %v9826 = vunpack.c.l.b16 %v9474
        %v9827 = vunpack.c.l.b16 %v9475
        %v9828 = vunpack.c.l.b16 %v9476
        %v9829 = vunpack.c.l.b16 %v9477
        %v9830 = vunpack.c.l.b16 %v9478
        %v9831 = vunpack.c.l.b16 %v9479
        %v9832 = vunpack.c.l.b16 %v9480
        %v9833 = vunpack.c.l.b16 %v9481
        %v9834 = vunpack.c.l.b16 %v9482
        %v9835 = vunpack.c.l.b16 %v9483
        %v9836 = vpack.c.b16 %v9813, %v9812
        %v9837 = vpack.c.b16 %v9814, %v9814
        %v9838 = vpack.c.b16 %v9816, %v9815
        %v9839 = vpack.c.b16 %v9817, %v9817
        %v9840 = vpack.c.b16 %v9819, %v9818
        %v9841 = vpack.c.b16 %v9820, %v9820
        %v9842 = vpack.c.b16 %v9822, %v9821
        %v9843 = vpack.c.b16 %v9823, %v9823
        %v9844 = vpack.c.b16 %v9825, %v9824
        %v9845 = vpack.c.b16 %v9826, %v9826
        %v9846 = vpack.c.b16 %v9828, %v9827
        %v9847 = vpack.c.b16 %v9829, %v9829
        %v9848 = vpack.c.b16 %v9831, %v9830
        %v9849 = vpack.c.b16 %v9832, %v9832
        %v9850 = vpack.c.b16 %v9834, %v9833
        %v9851 = vpack.c.b16 %v9835, %v9835
        %v9860 = vunpack.c.l.b16 %v9484
        %v9861 = vunpack.c.l.b16 %v9485
        %v9862 = vunpack.c.l.b16 %v9486
        %v9863 = vunpack.c.l.b16 %v9487
        %v9864 = vunpack.c.l.b16 %v9488
        %v9865 = vunpack.c.l.b16 %v9489
        %v9866 = vunpack.c.l.b16 %v9490
        %v9867 = vunpack.c.l.b16 %v9491
        %v9868 = vpack.c.b16 %v9813, %v9860
        %v9869 = vpack.c.b16 %v9816, %v9861
        %v9870 = vpack.c.b16 %v9819, %v9862
        %v9871 = vpack.c.b16 %v9822, %v9863
        %v9872 = vpack.c.b16 %v9825, %v9864
        %v9873 = vpack.c.b16 %v9828, %v9865
        %v9874 = vpack.c.b16 %v9831, %v9866
        %v9875 = vpack.c.b16 %v9834, %v9867
        %v9877 = vshrl.u32 %v9868, 16
        %v9879 = vshll.u32 %v9868, 16
        %v9881 = vrot.slane %v9879, 1
        %v9882 = vor.u32 %v9877, %v9881
        %v9884 = vshll.u32 %v9837, 16
        %v9886 = vrot.slane %v9884, 1
        %v9887 = vsel %vm3594, %v9882, %v9886
        %v9888 = vshrl.u32 %v9837, 16
        %v9891 = vshrl.u32 %v9869, 16
        %v9893 = vshll.u32 %v9869, 16
        %v9895 = vrot.slane %v9893, 1
        %v9896 = vor.u32 %v9891, %v9895
        %v9898 = vshll.u32 %v9839, 16
        %v9900 = vrot.slane %v9898, 1
        %v9901 = vsel %vm3594, %v9896, %v9900
        %v9902 = vshrl.u32 %v9839, 16
        %v9905 = vshrl.u32 %v9870, 16
        %v9907 = vshll.u32 %v9870, 16
        %v9909 = vrot.slane %v9907, 1
        %v9910 = vor.u32 %v9905, %v9909
        %v9912 = vshll.u32 %v9841, 16
        %v9914 = vrot.slane %v9912, 1
        %v9915 = vsel %vm3594, %v9910, %v9914
        %v9916 = vshrl.u32 %v9841, 16
        %v9919 = vshrl.u32 %v9871, 16
        %v9921 = vshll.u32 %v9871, 16
        %v9923 = vrot.slane %v9921, 1
        %v9924 = vor.u32 %v9919, %v9923
        %v9926 = vshll.u32 %v9843, 16
        %v9928 = vrot.slane %v9926, 1
        %v9929 = vsel %vm3594, %v9924, %v9928
        %v9930 = vshrl.u32 %v9843, 16
        %v9933 = vshrl.u32 %v9872, 16
        %v9935 = vshll.u32 %v9872, 16
        %v9937 = vrot.slane %v9935, 1
        %v9938 = vor.u32 %v9933, %v9937
        %v9940 = vshll.u32 %v9845, 16
        %v9942 = vrot.slane %v9940, 1
        %v9943 = vsel %vm3594, %v9938, %v9942
        %v9944 = vshrl.u32 %v9845, 16
        %v9947 = vshrl.u32 %v9873, 16
        %v9949 = vshll.u32 %v9873, 16
        %v9951 = vrot.slane %v9949, 1
        %v9952 = vor.u32 %v9947, %v9951
        %v9954 = vshll.u32 %v9847, 16
        %v9956 = vrot.slane %v9954, 1
        %v9957 = vsel %vm3594, %v9952, %v9956
        %v9958 = vshrl.u32 %v9847, 16
        %v9961 = vshrl.u32 %v9874, 16
        %v9963 = vshll.u32 %v9874, 16
        %v9965 = vrot.slane %v9963, 1
        %v9966 = vor.u32 %v9961, %v9965
        %v9968 = vshll.u32 %v9849, 16
        %v9970 = vrot.slane %v9968, 1
        %v9971 = vsel %vm3594, %v9966, %v9970
        %v9972 = vshrl.u32 %v9849, 16
        %v9975 = vshrl.u32 %v9875, 16
        %v9977 = vshll.u32 %v9875, 16
        %v9979 = vrot.slane %v9977, 1
        %v9980 = vor.u32 %v9975, %v9979
        %v9982 = vshll.u32 %v9851, 16
        %v9984 = vrot.slane %v9982, 1
        %v9985 = vsel %vm3594, %v9980, %v9984
        %v9986 = vshrl.u32 %v9851, 16
        %v9996 = vunpack.c.l.b16 %v9492
        %v9997 = vunpack.c.l.b16 %v9493
        %v9998 = vunpack.c.l.b16 %v9494
        %v9999 = vunpack.c.l.b16 %v9495
        %v10000 = vunpack.c.l.b16 %v9496
        %v10001 = vunpack.c.l.b16 %v9497
        %v10002 = vunpack.c.l.b16 %v9498
        %v10003 = vunpack.c.l.b16 %v9499
        %v10004 = vpack.c.b16 %v9996, %v9996
        %v10005 = vpack.c.b16 %v9997, %v9997
        %v10006 = vpack.c.b16 %v9998, %v9998
        %v10007 = vpack.c.b16 %v9999, %v9999
        %v10008 = vpack.c.b16 %v10000, %v10000
        %v10009 = vpack.c.b16 %v10001, %v10001
        %v10010 = vpack.c.b16 %v10002, %v10002
        %v10011 = vpack.c.b16 %v10003, %v10003
        %v10012 = vrot.slane %v9868, 1
        %v10013 = vrot.slane %v10004, 1
        %v10014 = vsel %vm3833, %v10012, %v10013
        %v10015 = vrot.slane %v9869, 1
        %v10016 = vrot.slane %v10005, 1
        %v10017 = vsel %vm3833, %v10015, %v10016
        %v10018 = vrot.slane %v9870, 1
        %v10019 = vrot.slane %v10006, 1
        %v10020 = vsel %vm3833, %v10018, %v10019
        %v10021 = vrot.slane %v9871, 1
        %v10022 = vrot.slane %v10007, 1
        %v10023 = vsel %vm3833, %v10021, %v10022
        %v10024 = vrot.slane %v9872, 1
        %v10025 = vrot.slane %v10008, 1
        %v10026 = vsel %vm3833, %v10024, %v10025
        %v10027 = vrot.slane %v9873, 1
        %v10028 = vrot.slane %v10009, 1
        %v10029 = vsel %vm3833, %v10027, %v10028
        %v10030 = vrot.slane %v9874, 1
        %v10031 = vrot.slane %v10010, 1
        %v10032 = vsel %vm3833, %v10030, %v10031
        %v10033 = vrot.slane %v9875, 1
        %v10034 = vrot.slane %v10011, 1
        %v10035 = vsel %vm3833, %v10033, %v10034
        %v10060 = vunpack.c.l.b16 %v9500
        %v10061 = vunpack.c.l.b16 %v9501
        %v10062 = vunpack.c.l.b16 %v9502
        %v10063 = vunpack.c.l.b16 %v9503
        %v10064 = vunpack.c.l.b16 %v9504
        %v10065 = vunpack.c.l.b16 %v9505
        %v10066 = vunpack.c.l.b16 %v9506
        %v10067 = vunpack.c.l.b16 %v9507
        %v10068 = vunpack.c.l.b16 %v9508
        %v10069 = vunpack.c.l.b16 %v9509
        %v10070 = vunpack.c.l.b16 %v9510
        %v10071 = vunpack.c.l.b16 %v9511
        %v10072 = vunpack.c.l.b16 %v9512
        %v10073 = vunpack.c.l.b16 %v9513
        %v10074 = vunpack.c.l.b16 %v9514
        %v10075 = vunpack.c.l.b16 %v9515
        %v10076 = vunpack.c.l.b16 %v9516
        %v10077 = vunpack.c.l.b16 %v9517
        %v10078 = vunpack.c.l.b16 %v9518
        %v10079 = vunpack.c.l.b16 %v9519
        %v10080 = vunpack.c.l.b16 %v9520
        %v10081 = vunpack.c.l.b16 %v9521
        %v10082 = vunpack.c.l.b16 %v9522
        %v10083 = vunpack.c.l.b16 %v9523
        %v10084 = vpack.c.b16 %v10061, %v10060
        %v10085 = vpack.c.b16 %v10062, %v10062
        %v10086 = vpack.c.b16 %v10064, %v10063
        %v10087 = vpack.c.b16 %v10065, %v10065
        %v10088 = vpack.c.b16 %v10067, %v10066
        %v10089 = vpack.c.b16 %v10068, %v10068
        %v10090 = vpack.c.b16 %v10070, %v10069
        %v10091 = vpack.c.b16 %v10071, %v10071
        %v10092 = vpack.c.b16 %v10073, %v10072
        %v10093 = vpack.c.b16 %v10074, %v10074
        %v10094 = vpack.c.b16 %v10076, %v10075
        %v10095 = vpack.c.b16 %v10077, %v10077
        %v10096 = vpack.c.b16 %v10079, %v10078
        %v10097 = vpack.c.b16 %v10080, %v10080
        %v10098 = vpack.c.b16 %v10082, %v10081
        %v10099 = vpack.c.b16 %v10083, %v10083
        %v10108 = vunpack.c.l.b16 %v9524
        %v10109 = vunpack.c.l.b16 %v9525
        %v10110 = vunpack.c.l.b16 %v9526
        %v10111 = vunpack.c.l.b16 %v9527
        %v10112 = vunpack.c.l.b16 %v9528
        %v10113 = vunpack.c.l.b16 %v9529
        %v10114 = vunpack.c.l.b16 %v9530
        %v10115 = vunpack.c.l.b16 %v9531
        %v10116 = vpack.c.b16 %v10061, %v10108
        %v10117 = vpack.c.b16 %v10064, %v10109
        %v10118 = vpack.c.b16 %v10067, %v10110
        %v10119 = vpack.c.b16 %v10070, %v10111
        %v10120 = vpack.c.b16 %v10073, %v10112
        %v10121 = vpack.c.b16 %v10076, %v10113
        %v10122 = vpack.c.b16 %v10079, %v10114
        %v10123 = vpack.c.b16 %v10082, %v10115
        %v10125 = vshrl.u32 %v10116, 16
        %v10127 = vshll.u32 %v10116, 16
        %v10129 = vrot.slane %v10127, 1
        %v10130 = vor.u32 %v10125, %v10129
        %v10132 = vshll.u32 %v10085, 16
        %v10134 = vrot.slane %v10132, 1
        %v10135 = vsel %vm3594, %v10130, %v10134
        %v10136 = vshrl.u32 %v10085, 16
        %v10139 = vshrl.u32 %v10117, 16
        %v10141 = vshll.u32 %v10117, 16
        %v10143 = vrot.slane %v10141, 1
        %v10144 = vor.u32 %v10139, %v10143
        %v10146 = vshll.u32 %v10087, 16
        %v10148 = vrot.slane %v10146, 1
        %v10149 = vsel %vm3594, %v10144, %v10148
        %v10150 = vshrl.u32 %v10087, 16
        %v10153 = vshrl.u32 %v10118, 16
        %v10155 = vshll.u32 %v10118, 16
        %v10157 = vrot.slane %v10155, 1
        %v10158 = vor.u32 %v10153, %v10157
        %v10160 = vshll.u32 %v10089, 16
        %v10162 = vrot.slane %v10160, 1
        %v10163 = vsel %vm3594, %v10158, %v10162
        %v10164 = vshrl.u32 %v10089, 16
        %v10167 = vshrl.u32 %v10119, 16
        %v10169 = vshll.u32 %v10119, 16
        %v10171 = vrot.slane %v10169, 1
        %v10172 = vor.u32 %v10167, %v10171
        %v10174 = vshll.u32 %v10091, 16
        %v10176 = vrot.slane %v10174, 1
        %v10177 = vsel %vm3594, %v10172, %v10176
        %v10178 = vshrl.u32 %v10091, 16
        %v10181 = vshrl.u32 %v10120, 16
        %v10183 = vshll.u32 %v10120, 16
        %v10185 = vrot.slane %v10183, 1
        %v10186 = vor.u32 %v10181, %v10185
        %v10188 = vshll.u32 %v10093, 16
        %v10190 = vrot.slane %v10188, 1
        %v10191 = vsel %vm3594, %v10186, %v10190
        %v10192 = vshrl.u32 %v10093, 16
        %v10195 = vshrl.u32 %v10121, 16
        %v10197 = vshll.u32 %v10121, 16
        %v10199 = vrot.slane %v10197, 1
        %v10200 = vor.u32 %v10195, %v10199
        %v10202 = vshll.u32 %v10095, 16
        %v10204 = vrot.slane %v10202, 1
        %v10205 = vsel %vm3594, %v10200, %v10204
        %v10206 = vshrl.u32 %v10095, 16
        %v10209 = vshrl.u32 %v10122, 16
        %v10211 = vshll.u32 %v10122, 16
        %v10213 = vrot.slane %v10211, 1
        %v10214 = vor.u32 %v10209, %v10213
        %v10216 = vshll.u32 %v10097, 16
        %v10218 = vrot.slane %v10216, 1
        %v10219 = vsel %vm3594, %v10214, %v10218
        %v10220 = vshrl.u32 %v10097, 16
        %v10223 = vshrl.u32 %v10123, 16
        %v10225 = vshll.u32 %v10123, 16
        %v10227 = vrot.slane %v10225, 1
        %v10228 = vor.u32 %v10223, %v10227
        %v10230 = vshll.u32 %v10099, 16
        %v10232 = vrot.slane %v10230, 1
        %v10233 = vsel %vm3594, %v10228, %v10232
        %v10234 = vshrl.u32 %v10099, 16
        %v10244 = vunpack.c.l.b16 %v9532
        %v10245 = vunpack.c.l.b16 %v9533
        %v10246 = vunpack.c.l.b16 %v9534
        %v10247 = vunpack.c.l.b16 %v9535
        %v10248 = vunpack.c.l.b16 %v9536
        %v10249 = vunpack.c.l.b16 %v9537
        %v10250 = vunpack.c.l.b16 %v9538
        %v10251 = vunpack.c.l.b16 %v9539
        %v10252 = vpack.c.b16 %v10244, %v10244
        %v10253 = vpack.c.b16 %v10245, %v10245
        %v10254 = vpack.c.b16 %v10246, %v10246
        %v10255 = vpack.c.b16 %v10247, %v10247
        %v10256 = vpack.c.b16 %v10248, %v10248
        %v10257 = vpack.c.b16 %v10249, %v10249
        %v10258 = vpack.c.b16 %v10250, %v10250
        %v10259 = vpack.c.b16 %v10251, %v10251
        %v10260 = vrot.slane %v10116, 1
        %v10261 = vrot.slane %v10252, 1
        %v10262 = vsel %vm3833, %v10260, %v10261
        %v10263 = vrot.slane %v10117, 1
        %v10264 = vrot.slane %v10253, 1
        %v10265 = vsel %vm3833, %v10263, %v10264
        %v10266 = vrot.slane %v10118, 1
        %v10267 = vrot.slane %v10254, 1
        %v10268 = vsel %vm3833, %v10266, %v10267
        %v10269 = vrot.slane %v10119, 1
        %v10270 = vrot.slane %v10255, 1
        %v10271 = vsel %vm3833, %v10269, %v10270
        %v10272 = vrot.slane %v10120, 1
        %v10273 = vrot.slane %v10256, 1
        %v10274 = vsel %vm3833, %v10272, %v10273
        %v10275 = vrot.slane %v10121, 1
        %v10276 = vrot.slane %v10257, 1
        %v10277 = vsel %vm3833, %v10275, %v10276
        %v10278 = vrot.slane %v10122, 1
        %v10279 = vrot.slane %v10258, 1
        %v10280 = vsel %vm3833, %v10278, %v10279
        %v10281 = vrot.slane %v10123, 1
        %v10282 = vrot.slane %v10259, 1
        %v10283 = vsel %vm3833, %v10281, %v10282
        %v10285 = vshrl.u32 %v9588, 16
        %v10287 = vshll.u32 %v9588, 16
        %v10289 = vrot.slane %v10287, 1
        %v10290 = vor.u32 %v10285, %v10289
        %v10291 = vsel %vm3594, %v10290, %v9638
        %v10293 = vshrl.u32 %v9639, 16
        %v10295 = vshll.u32 %v9639, 16
        %v10297 = vrot.slane %v10295, 1
        %v10298 = vor.u32 %v10293, %v10297
        %v10300 = vshll.u32 %v9640, 16
        %v10302 = vrot.slane %v10300, 1
        %v10303 = vsel %vm3594, %v10298, %v10302
        %v10305 = vshrl.u32 %v9766, 16
        %v10307 = vshll.u32 %v9766, 16
        %v10309 = vrot.slane %v10307, 1
        %v10310 = vor.u32 %v10305, %v10309
        %v10312 = vshll.u32 %v9765, 16
        %v10314 = vrot.slane %v10312, 1
        %v10315 = vsel %vm3594, %v10310, %v10314
        %v10317 = vshrl.u32 %v9836, 16
        %v10319 = vshll.u32 %v9836, 16
        %v10321 = vrot.slane %v10319, 1
        %v10322 = vor.u32 %v10317, %v10321
        %v10323 = vsel %vm3594, %v10322, %v9886
        %v10325 = vshrl.u32 %v9887, 16
        %v10327 = vshll.u32 %v9887, 16
        %v10329 = vrot.slane %v10327, 1
        %v10330 = vor.u32 %v10325, %v10329
        %v10332 = vshll.u32 %v9888, 16
        %v10334 = vrot.slane %v10332, 1
        %v10335 = vsel %vm3594, %v10330, %v10334
        %v10337 = vshrl.u32 %v10014, 16
        %v10339 = vshll.u32 %v10014, 16
        %v10341 = vrot.slane %v10339, 1
        %v10342 = vor.u32 %v10337, %v10341
        %v10344 = vshll.u32 %v10013, 16
        %v10346 = vrot.slane %v10344, 1
        %v10347 = vsel %vm3594, %v10342, %v10346
        %v10349 = vshrl.u32 %v10084, 16
        %v10351 = vshll.u32 %v10084, 16
        %v10353 = vrot.slane %v10351, 1
        %v10354 = vor.u32 %v10349, %v10353
        %v10355 = vsel %vm3594, %v10354, %v10134
        %v10357 = vshrl.u32 %v10135, 16
        %v10359 = vshll.u32 %v10135, 16
        %v10361 = vrot.slane %v10359, 1
        %v10362 = vor.u32 %v10357, %v10361
        %v10364 = vshll.u32 %v10136, 16
        %v10366 = vrot.slane %v10364, 1
        %v10367 = vsel %vm3594, %v10362, %v10366
        %v10369 = vshrl.u32 %v10262, 16
        %v10371 = vshll.u32 %v10262, 16
        %v10373 = vrot.slane %v10371, 1
        %v10374 = vor.u32 %v10369, %v10373
        %v10376 = vshll.u32 %v10261, 16
        %v10378 = vrot.slane %v10376, 1
        %v10379 = vsel %vm3594, %v10374, %v10378
        %v10381 = vshrl.u32 %v9590, 16
        %v10383 = vshll.u32 %v9590, 16
        %v10385 = vrot.slane %v10383, 1
        %v10386 = vor.u32 %v10381, %v10385
        %v10387 = vsel %vm3594, %v10386, %v9652
        %v10389 = vshrl.u32 %v9653, 16
        %v10391 = vshll.u32 %v9653, 16
        %v10393 = vrot.slane %v10391, 1
        %v10394 = vor.u32 %v10389, %v10393
        %v10396 = vshll.u32 %v9654, 16
        %v10398 = vrot.slane %v10396, 1
        %v10399 = vsel %vm3594, %v10394, %v10398
        %v10401 = vshrl.u32 %v9769, 16
        %v10403 = vshll.u32 %v9769, 16
        %v10405 = vrot.slane %v10403, 1
        %v10406 = vor.u32 %v10401, %v10405
        %v10408 = vshll.u32 %v9768, 16
        %v10410 = vrot.slane %v10408, 1
        %v10411 = vsel %vm3594, %v10406, %v10410
        %v10413 = vshrl.u32 %v9838, 16
        %v10415 = vshll.u32 %v9838, 16
        %v10417 = vrot.slane %v10415, 1
        %v10418 = vor.u32 %v10413, %v10417
        %v10419 = vsel %vm3594, %v10418, %v9900
        %v10421 = vshrl.u32 %v9901, 16
        %v10423 = vshll.u32 %v9901, 16
        %v10425 = vrot.slane %v10423, 1
        %v10426 = vor.u32 %v10421, %v10425
        %v10428 = vshll.u32 %v9902, 16
        %v10430 = vrot.slane %v10428, 1
        %v10431 = vsel %vm3594, %v10426, %v10430
        %v10433 = vshrl.u32 %v10017, 16
        %v10435 = vshll.u32 %v10017, 16
        %v10437 = vrot.slane %v10435, 1
        %v10438 = vor.u32 %v10433, %v10437
        %v10440 = vshll.u32 %v10016, 16
        %v10442 = vrot.slane %v10440, 1
        %v10443 = vsel %vm3594, %v10438, %v10442
        %v10445 = vshrl.u32 %v10086, 16
        %v10447 = vshll.u32 %v10086, 16
        %v10449 = vrot.slane %v10447, 1
        %v10450 = vor.u32 %v10445, %v10449
        %v10451 = vsel %vm3594, %v10450, %v10148
        %v10453 = vshrl.u32 %v10149, 16
        %v10455 = vshll.u32 %v10149, 16
        %v10457 = vrot.slane %v10455, 1
        %v10458 = vor.u32 %v10453, %v10457
        %v10460 = vshll.u32 %v10150, 16
        %v10462 = vrot.slane %v10460, 1
        %v10463 = vsel %vm3594, %v10458, %v10462
        %v10465 = vshrl.u32 %v10265, 16
        %v10467 = vshll.u32 %v10265, 16
        %v10469 = vrot.slane %v10467, 1
        %v10470 = vor.u32 %v10465, %v10469
        %v10472 = vshll.u32 %v10264, 16
        %v10474 = vrot.slane %v10472, 1
        %v10475 = vsel %vm3594, %v10470, %v10474
        %v10477 = vshrl.u32 %v9592, 16
        %v10479 = vshll.u32 %v9592, 16
        %v10481 = vrot.slane %v10479, 1
        %v10482 = vor.u32 %v10477, %v10481
        %v10483 = vsel %vm3594, %v10482, %v9666
        %v10485 = vshrl.u32 %v9667, 16
        %v10487 = vshll.u32 %v9667, 16
        %v10489 = vrot.slane %v10487, 1
        %v10490 = vor.u32 %v10485, %v10489
        %v10492 = vshll.u32 %v9668, 16
        %v10494 = vrot.slane %v10492, 1
        %v10495 = vsel %vm3594, %v10490, %v10494
        %v10497 = vshrl.u32 %v9772, 16
        %v10499 = vshll.u32 %v9772, 16
        %v10501 = vrot.slane %v10499, 1
        %v10502 = vor.u32 %v10497, %v10501
        %v10504 = vshll.u32 %v9771, 16
        %v10506 = vrot.slane %v10504, 1
        %v10507 = vsel %vm3594, %v10502, %v10506
        %v10509 = vshrl.u32 %v9840, 16
        %v10511 = vshll.u32 %v9840, 16
        %v10513 = vrot.slane %v10511, 1
        %v10514 = vor.u32 %v10509, %v10513
        %v10515 = vsel %vm3594, %v10514, %v9914
        %v10517 = vshrl.u32 %v9915, 16
        %v10519 = vshll.u32 %v9915, 16
        %v10521 = vrot.slane %v10519, 1
        %v10522 = vor.u32 %v10517, %v10521
        %v10524 = vshll.u32 %v9916, 16
        %v10526 = vrot.slane %v10524, 1
        %v10527 = vsel %vm3594, %v10522, %v10526
        %v10529 = vshrl.u32 %v10020, 16
        %v10531 = vshll.u32 %v10020, 16
        %v10533 = vrot.slane %v10531, 1
        %v10534 = vor.u32 %v10529, %v10533
        %v10536 = vshll.u32 %v10019, 16
        %v10538 = vrot.slane %v10536, 1
        %v10539 = vsel %vm3594, %v10534, %v10538
        %v10541 = vshrl.u32 %v10088, 16
        %v10543 = vshll.u32 %v10088, 16
        %v10545 = vrot.slane %v10543, 1
        %v10546 = vor.u32 %v10541, %v10545
        %v10547 = vsel %vm3594, %v10546, %v10162
        %v10549 = vshrl.u32 %v10163, 16
        %v10551 = vshll.u32 %v10163, 16
        %v10553 = vrot.slane %v10551, 1
        %v10554 = vor.u32 %v10549, %v10553
        %v10556 = vshll.u32 %v10164, 16
        %v10558 = vrot.slane %v10556, 1
        %v10559 = vsel %vm3594, %v10554, %v10558
        %v10561 = vshrl.u32 %v10268, 16
        %v10563 = vshll.u32 %v10268, 16
        %v10565 = vrot.slane %v10563, 1
        %v10566 = vor.u32 %v10561, %v10565
        %v10568 = vshll.u32 %v10267, 16
        %v10570 = vrot.slane %v10568, 1
        %v10571 = vsel %vm3594, %v10566, %v10570
        %v10573 = vshrl.u32 %v9594, 16
        %v10575 = vshll.u32 %v9594, 16
        %v10577 = vrot.slane %v10575, 1
        %v10578 = vor.u32 %v10573, %v10577
        %v10579 = vsel %vm3594, %v10578, %v9680
        %v10581 = vshrl.u32 %v9681, 16
        %v10583 = vshll.u32 %v9681, 16
        %v10585 = vrot.slane %v10583, 1
        %v10586 = vor.u32 %v10581, %v10585
        %v10588 = vshll.u32 %v9682, 16
        %v10590 = vrot.slane %v10588, 1
        %v10591 = vsel %vm3594, %v10586, %v10590
        %v10593 = vshrl.u32 %v9775, 16
        %v10595 = vshll.u32 %v9775, 16
        %v10597 = vrot.slane %v10595, 1
        %v10598 = vor.u32 %v10593, %v10597
        %v10600 = vshll.u32 %v9774, 16
        %v10602 = vrot.slane %v10600, 1
        %v10603 = vsel %vm3594, %v10598, %v10602
        %v10605 = vshrl.u32 %v9842, 16
        %v10607 = vshll.u32 %v9842, 16
        %v10609 = vrot.slane %v10607, 1
        %v10610 = vor.u32 %v10605, %v10609
        %v10611 = vsel %vm3594, %v10610, %v9928
        %v10613 = vshrl.u32 %v9929, 16
        %v10615 = vshll.u32 %v9929, 16
        %v10617 = vrot.slane %v10615, 1
        %v10618 = vor.u32 %v10613, %v10617
        %v10620 = vshll.u32 %v9930, 16
        %v10622 = vrot.slane %v10620, 1
        %v10623 = vsel %vm3594, %v10618, %v10622
        %v10625 = vshrl.u32 %v10023, 16
        %v10627 = vshll.u32 %v10023, 16
        %v10629 = vrot.slane %v10627, 1
        %v10630 = vor.u32 %v10625, %v10629
        %v10632 = vshll.u32 %v10022, 16
        %v10634 = vrot.slane %v10632, 1
        %v10635 = vsel %vm3594, %v10630, %v10634
        %v10637 = vshrl.u32 %v10090, 16
        %v10639 = vshll.u32 %v10090, 16
        %v10641 = vrot.slane %v10639, 1
        %v10642 = vor.u32 %v10637, %v10641
        %v10643 = vsel %vm3594, %v10642, %v10176
        %v10645 = vshrl.u32 %v10177, 16
        %v10647 = vshll.u32 %v10177, 16
        %v10649 = vrot.slane %v10647, 1
        %v10650 = vor.u32 %v10645, %v10649
        %v10652 = vshll.u32 %v10178, 16
        %v10654 = vrot.slane %v10652, 1
        %v10655 = vsel %vm3594, %v10650, %v10654
        %v10657 = vshrl.u32 %v10271, 16
        %v10659 = vshll.u32 %v10271, 16
        %v10661 = vrot.slane %v10659, 1
        %v10662 = vor.u32 %v10657, %v10661
        %v10664 = vshll.u32 %v10270, 16
        %v10666 = vrot.slane %v10664, 1
        %v10667 = vsel %vm3594, %v10662, %v10666
        %v10669 = vshrl.u32 %v9596, 16
        %v10671 = vshll.u32 %v9596, 16
        %v10673 = vrot.slane %v10671, 1
        %v10674 = vor.u32 %v10669, %v10673
        %v10675 = vsel %vm3594, %v10674, %v9694
        %v10677 = vshrl.u32 %v9695, 16
        %v10679 = vshll.u32 %v9695, 16
        %v10681 = vrot.slane %v10679, 1
        %v10682 = vor.u32 %v10677, %v10681
        %v10684 = vshll.u32 %v9696, 16
        %v10686 = vrot.slane %v10684, 1
        %v10687 = vsel %vm3594, %v10682, %v10686
        %v10689 = vshrl.u32 %v9778, 16
        %v10691 = vshll.u32 %v9778, 16
        %v10693 = vrot.slane %v10691, 1
        %v10694 = vor.u32 %v10689, %v10693
        %v10696 = vshll.u32 %v9777, 16
        %v10698 = vrot.slane %v10696, 1
        %v10699 = vsel %vm3594, %v10694, %v10698
        %v10701 = vshrl.u32 %v9844, 16
        %v10703 = vshll.u32 %v9844, 16
        %v10705 = vrot.slane %v10703, 1
        %v10706 = vor.u32 %v10701, %v10705
        %v10707 = vsel %vm3594, %v10706, %v9942
        %v10709 = vshrl.u32 %v9943, 16
        %v10711 = vshll.u32 %v9943, 16
        %v10713 = vrot.slane %v10711, 1
        %v10714 = vor.u32 %v10709, %v10713
        %v10716 = vshll.u32 %v9944, 16
        %v10718 = vrot.slane %v10716, 1
        %v10719 = vsel %vm3594, %v10714, %v10718
        %v10721 = vshrl.u32 %v10026, 16
        %v10723 = vshll.u32 %v10026, 16
        %v10725 = vrot.slane %v10723, 1
        %v10726 = vor.u32 %v10721, %v10725
        %v10728 = vshll.u32 %v10025, 16
        %v10730 = vrot.slane %v10728, 1
        %v10731 = vsel %vm3594, %v10726, %v10730
        %v10733 = vshrl.u32 %v10092, 16
        %v10735 = vshll.u32 %v10092, 16
        %v10737 = vrot.slane %v10735, 1
        %v10738 = vor.u32 %v10733, %v10737
        %v10739 = vsel %vm3594, %v10738, %v10190
        %v10741 = vshrl.u32 %v10191, 16
        %v10743 = vshll.u32 %v10191, 16
        %v10745 = vrot.slane %v10743, 1
        %v10746 = vor.u32 %v10741, %v10745
        %v10748 = vshll.u32 %v10192, 16
        %v10750 = vrot.slane %v10748, 1
        %v10751 = vsel %vm3594, %v10746, %v10750
        %v10753 = vshrl.u32 %v10274, 16
        %v10755 = vshll.u32 %v10274, 16
        %v10757 = vrot.slane %v10755, 1
        %v10758 = vor.u32 %v10753, %v10757
        %v10760 = vshll.u32 %v10273, 16
        %v10762 = vrot.slane %v10760, 1
        %v10763 = vsel %vm3594, %v10758, %v10762
        %v10765 = vshrl.u32 %v9598, 16
        %v10767 = vshll.u32 %v9598, 16
        %v10769 = vrot.slane %v10767, 1
        %v10770 = vor.u32 %v10765, %v10769
        %v10771 = vsel %vm3594, %v10770, %v9708
        %v10773 = vshrl.u32 %v9709, 16
        %v10775 = vshll.u32 %v9709, 16
        %v10777 = vrot.slane %v10775, 1
        %v10778 = vor.u32 %v10773, %v10777
        %v10780 = vshll.u32 %v9710, 16
        %v10782 = vrot.slane %v10780, 1
        %v10783 = vsel %vm3594, %v10778, %v10782
        %v10785 = vshrl.u32 %v9781, 16
        %v10787 = vshll.u32 %v9781, 16
        %v10789 = vrot.slane %v10787, 1
        %v10790 = vor.u32 %v10785, %v10789
        %v10792 = vshll.u32 %v9780, 16
        %v10794 = vrot.slane %v10792, 1
        %v10795 = vsel %vm3594, %v10790, %v10794
        %v10797 = vshrl.u32 %v9846, 16
        %v10799 = vshll.u32 %v9846, 16
        %v10801 = vrot.slane %v10799, 1
        %v10802 = vor.u32 %v10797, %v10801
        %v10803 = vsel %vm3594, %v10802, %v9956
        %v10805 = vshrl.u32 %v9957, 16
        %v10807 = vshll.u32 %v9957, 16
        %v10809 = vrot.slane %v10807, 1
        %v10810 = vor.u32 %v10805, %v10809
        %v10812 = vshll.u32 %v9958, 16
        %v10814 = vrot.slane %v10812, 1
        %v10815 = vsel %vm3594, %v10810, %v10814
        %v10817 = vshrl.u32 %v10029, 16
        %v10819 = vshll.u32 %v10029, 16
        %v10821 = vrot.slane %v10819, 1
        %v10822 = vor.u32 %v10817, %v10821
        %v10824 = vshll.u32 %v10028, 16
        %v10826 = vrot.slane %v10824, 1
        %v10827 = vsel %vm3594, %v10822, %v10826
        %v10829 = vshrl.u32 %v10094, 16
        %v10831 = vshll.u32 %v10094, 16
        %v10833 = vrot.slane %v10831, 1
        %v10834 = vor.u32 %v10829, %v10833
        %v10835 = vsel %vm3594, %v10834, %v10204
        %v10837 = vshrl.u32 %v10205, 16
        %v10839 = vshll.u32 %v10205, 16
        %v10841 = vrot.slane %v10839, 1
        %v10842 = vor.u32 %v10837, %v10841
        %v10844 = vshll.u32 %v10206, 16
        %v10846 = vrot.slane %v10844, 1
        %v10847 = vsel %vm3594, %v10842, %v10846
        %v10849 = vshrl.u32 %v10277, 16
        %v10851 = vshll.u32 %v10277, 16
        %v10853 = vrot.slane %v10851, 1
        %v10854 = vor.u32 %v10849, %v10853
        %v10856 = vshll.u32 %v10276, 16
        %v10858 = vrot.slane %v10856, 1
        %v10859 = vsel %vm3594, %v10854, %v10858
        %v10861 = vshrl.u32 %v9600, 16
        %v10863 = vshll.u32 %v9600, 16
        %v10865 = vrot.slane %v10863, 1
        %v10866 = vor.u32 %v10861, %v10865
        %v10867 = vsel %vm3594, %v10866, %v9722
        %v10869 = vshrl.u32 %v9723, 16
        %v10871 = vshll.u32 %v9723, 16
        %v10873 = vrot.slane %v10871, 1
        %v10874 = vor.u32 %v10869, %v10873
        %v10876 = vshll.u32 %v9724, 16
        %v10878 = vrot.slane %v10876, 1
        %v10879 = vsel %vm3594, %v10874, %v10878
        %v10881 = vshrl.u32 %v9784, 16
        %v10883 = vshll.u32 %v9784, 16
        %v10885 = vrot.slane %v10883, 1
        %v10886 = vor.u32 %v10881, %v10885
        %v10888 = vshll.u32 %v9783, 16
        %v10890 = vrot.slane %v10888, 1
        %v10891 = vsel %vm3594, %v10886, %v10890
        %v10893 = vshrl.u32 %v9848, 16
        %v10895 = vshll.u32 %v9848, 16
        %v10897 = vrot.slane %v10895, 1
        %v10898 = vor.u32 %v10893, %v10897
        %v10899 = vsel %vm3594, %v10898, %v9970
        %v10901 = vshrl.u32 %v9971, 16
        %v10903 = vshll.u32 %v9971, 16
        %v10905 = vrot.slane %v10903, 1
        %v10906 = vor.u32 %v10901, %v10905
        %v10908 = vshll.u32 %v9972, 16
        %v10910 = vrot.slane %v10908, 1
        %v10911 = vsel %vm3594, %v10906, %v10910
        %v10913 = vshrl.u32 %v10032, 16
        %v10915 = vshll.u32 %v10032, 16
        %v10917 = vrot.slane %v10915, 1
        %v10918 = vor.u32 %v10913, %v10917
        %v10920 = vshll.u32 %v10031, 16
        %v10922 = vrot.slane %v10920, 1
        %v10923 = vsel %vm3594, %v10918, %v10922
        %v10925 = vshrl.u32 %v10096, 16
        %v10927 = vshll.u32 %v10096, 16
        %v10929 = vrot.slane %v10927, 1
        %v10930 = vor.u32 %v10925, %v10929
        %v10931 = vsel %vm3594, %v10930, %v10218
        %v10933 = vshrl.u32 %v10219, 16
        %v10935 = vshll.u32 %v10219, 16
        %v10937 = vrot.slane %v10935, 1
        %v10938 = vor.u32 %v10933, %v10937
        %v10940 = vshll.u32 %v10220, 16
        %v10942 = vrot.slane %v10940, 1
        %v10943 = vsel %vm3594, %v10938, %v10942
        %v10945 = vshrl.u32 %v10280, 16
        %v10947 = vshll.u32 %v10280, 16
        %v10949 = vrot.slane %v10947, 1
        %v10950 = vor.u32 %v10945, %v10949
        %v10952 = vshll.u32 %v10279, 16
        %v10954 = vrot.slane %v10952, 1
        %v10955 = vsel %vm3594, %v10950, %v10954
        %v10957 = vshrl.u32 %v9602, 16
        %v10959 = vshll.u32 %v9602, 16
        %v10961 = vrot.slane %v10959, 1
        %v10962 = vor.u32 %v10957, %v10961
        %v10963 = vsel %vm3594, %v10962, %v9736
        %v10965 = vshrl.u32 %v9737, 16
        %v10967 = vshll.u32 %v9737, 16
        %v10969 = vrot.slane %v10967, 1
        %v10970 = vor.u32 %v10965, %v10969
        %v10972 = vshll.u32 %v9738, 16
        %v10974 = vrot.slane %v10972, 1
        %v10975 = vsel %vm3594, %v10970, %v10974
        %v10977 = vshrl.u32 %v9787, 16
        %v10979 = vshll.u32 %v9787, 16
        %v10981 = vrot.slane %v10979, 1
        %v10982 = vor.u32 %v10977, %v10981
        %v10984 = vshll.u32 %v9786, 16
        %v10986 = vrot.slane %v10984, 1
        %v10987 = vsel %vm3594, %v10982, %v10986
        %v10989 = vshrl.u32 %v9850, 16
        %v10991 = vshll.u32 %v9850, 16
        %v10993 = vrot.slane %v10991, 1
        %v10994 = vor.u32 %v10989, %v10993
        %v10995 = vsel %vm3594, %v10994, %v9984
        %v10997 = vshrl.u32 %v9985, 16
        %v10999 = vshll.u32 %v9985, 16
        %v11001 = vrot.slane %v10999, 1
        %v11002 = vor.u32 %v10997, %v11001
        %v11004 = vshll.u32 %v9986, 16
        %v11006 = vrot.slane %v11004, 1
        %v11007 = vsel %vm3594, %v11002, %v11006
        %v11009 = vshrl.u32 %v10035, 16
        %v11011 = vshll.u32 %v10035, 16
        %v11013 = vrot.slane %v11011, 1
        %v11014 = vor.u32 %v11009, %v11013
        %v11016 = vshll.u32 %v10034, 16
        %v11018 = vrot.slane %v11016, 1
        %v11019 = vsel %vm3594, %v11014, %v11018
        %v11021 = vshrl.u32 %v10098, 16
        %v11023 = vshll.u32 %v10098, 16
        %v11025 = vrot.slane %v11023, 1
        %v11026 = vor.u32 %v11021, %v11025
        %v11027 = vsel %vm3594, %v11026, %v10232
        %v11029 = vshrl.u32 %v10233, 16
        %v11031 = vshll.u32 %v10233, 16
        %v11033 = vrot.slane %v11031, 1
        %v11034 = vor.u32 %v11029, %v11033
        %v11036 = vshll.u32 %v10234, 16
        %v11038 = vrot.slane %v11036, 1
        %v11039 = vsel %vm3594, %v11034, %v11038
        %v11041 = vshrl.u32 %v10283, 16
        %v11043 = vshll.u32 %v10283, 16
        %v11045 = vrot.slane %v11043, 1
        %v11046 = vor.u32 %v11041, %v11045
        %v11048 = vshll.u32 %v10282, 16
        %v11050 = vrot.slane %v11048, 1
        %v11051 = vsel %vm3594, %v11046, %v11050
        %v11268 = vunpack.c.l.b16 %v7386
        %v11269 = vunpack.c.l.b16 %v7387
        %v11270 = vunpack.c.l.b16 %v7388
        %v11271 = vunpack.c.l.b16 %v7389
        %v11272 = vunpack.c.l.b16 %v7390
        %v11273 = vunpack.c.l.b16 %v7391
        %v11274 = vunpack.c.l.b16 %v7392
        %v11275 = vunpack.c.l.b16 %v7393
        %v11276 = vunpack.c.l.b16 %v7394
        %v11277 = vunpack.c.l.b16 %v7395
        %v11278 = vunpack.c.l.b16 %v7396
        %v11279 = vunpack.c.l.b16 %v7397
        %v11280 = vunpack.c.l.b16 %v7398
        %v11281 = vunpack.c.l.b16 %v7399
        %v11282 = vunpack.c.l.b16 %v7400
        %v11283 = vunpack.c.l.b16 %v7401
        %v11284 = vunpack.c.l.b16 %v7402
        %v11285 = vunpack.c.l.b16 %v7403
        %v11286 = vunpack.c.l.b16 %v7404
        %v11287 = vunpack.c.l.b16 %v7405
        %v11288 = vunpack.c.l.b16 %v7406
        %v11289 = vunpack.c.l.b16 %v7407
        %v11290 = vunpack.c.l.b16 %v7408
        %v11291 = vunpack.c.l.b16 %v7409
        %v11292 = vunpack.c.l.b16 %v7410
        %v11293 = vunpack.c.l.b16 %v7411
        %v11294 = vunpack.c.l.b16 %v7412
        %v11295 = vunpack.c.l.b16 %v7413
        %v11296 = vunpack.c.l.b16 %v7414
        %v11297 = vunpack.c.l.b16 %v7415
        %v11298 = vunpack.c.l.b16 %v7416
        %v11299 = vunpack.c.l.b16 %v7417
        %v11300 = vunpack.c.l.b16 %v7418
        %v11301 = vunpack.c.l.b16 %v7419
        %v11302 = vunpack.c.l.b16 %v7420
        %v11303 = vunpack.c.l.b16 %v7421
        %v11304 = vunpack.c.l.b16 %v7422
        %v11305 = vunpack.c.l.b16 %v7423
        %v11306 = vunpack.c.l.b16 %v7424
        %v11307 = vunpack.c.l.b16 %v7425
        %v11308 = vunpack.c.l.b16 %v7426
        %v11309 = vunpack.c.l.b16 %v7427
        %v11310 = vunpack.c.l.b16 %v7428
        %v11311 = vunpack.c.l.b16 %v7429
        %v11312 = vunpack.c.l.b16 %v7430
        %v11313 = vunpack.c.l.b16 %v7431
        %v11314 = vunpack.c.l.b16 %v7432
        %v11315 = vunpack.c.l.b16 %v7433
        %v11316 = vunpack.c.l.b16 %v7434
        %v11317 = vunpack.c.l.b16 %v7435
        %v11318 = vunpack.c.l.b16 %v7436
        %v11319 = vunpack.c.l.b16 %v7437
        %v11320 = vunpack.c.l.b16 %v7438
        %v11321 = vunpack.c.l.b16 %v7439
        %v11322 = vunpack.c.l.b16 %v7440
        %v11323 = vunpack.c.l.b16 %v7441
        %v11324 = vunpack.c.l.b16 %v7442
        %v11325 = vunpack.c.l.b16 %v7443
        %v11326 = vunpack.c.l.b16 %v7444
        %v11327 = vunpack.c.l.b16 %v7445
        %v11328 = vunpack.c.l.b16 %v7446
        %v11329 = vunpack.c.l.b16 %v7447
        %v11330 = vunpack.c.l.b16 %v7448
        %v11331 = vunpack.c.l.b16 %v7449
        %v11332 = vunpack.c.l.b16 %v7450
        %v11333 = vunpack.c.l.b16 %v7451
        %v11334 = vunpack.c.l.b16 %v7452
        %v11335 = vunpack.c.l.b16 %v7453
        %v11336 = vunpack.c.l.b16 %v7454
        %v11337 = vunpack.c.l.b16 %v7455
        %v11338 = vunpack.c.l.b16 %v7456
        %v11339 = vunpack.c.l.b16 %v7457
        %v11340 = vunpack.c.l.b16 %v7458
        %v11341 = vunpack.c.l.b16 %v7459
        %v11342 = vunpack.c.l.b16 %v7460
        %v11343 = vunpack.c.l.b16 %v7461
        %v11344 = vunpack.c.l.b16 %v7462
        %v11345 = vunpack.c.l.b16 %v7463
        %v11346 = vunpack.c.l.b16 %v7464
        %v11347 = vunpack.c.l.b16 %v7465
        %v11348 = vunpack.c.l.b16 %v7466
        %v11349 = vunpack.c.l.b16 %v7467
        %v11350 = vunpack.c.l.b16 %v7468
        %v11351 = vunpack.c.l.b16 %v7469
        %v11352 = vunpack.c.l.b16 %v7470
        %v11353 = vunpack.c.l.b16 %v7471
        %v11354 = vunpack.c.l.b16 %v7472
        %v11355 = vunpack.c.l.b16 %v7473
        %v11356 = vunpack.c.l.b16 %v7474
        %v11357 = vunpack.c.l.b16 %v7475
        %v11358 = vunpack.c.l.b16 %v7476
        %v11359 = vunpack.c.l.b16 %v7477
        %v11360 = vunpack.c.l.b16 %v7478
        %v11361 = vunpack.c.l.b16 %v7479
        %v11362 = vunpack.c.l.b16 %v7480
        %v11363 = vunpack.c.l.b16 %v7481
        %v11364 = vunpack.c.l.b16 %v7482
        %v11365 = vunpack.c.l.b16 %v7483
        %v11366 = vunpack.c.l.b16 %v7484
        %v11367 = vunpack.c.l.b16 %v7485
        %v11368 = vunpack.c.l.b16 %v7486
        %v11369 = vunpack.c.l.b16 %v7487
        %v11370 = vunpack.c.l.b16 %v7488
        %v11371 = vunpack.c.l.b16 %v7489
        %v11372 = vunpack.c.l.b16 %v7490
        %v11373 = vunpack.c.l.b16 %v7491
        %v11374 = vunpack.c.l.b16 %v7492
        %v11375 = vunpack.c.l.b16 %v7493
        %v11376 = vunpack.c.l.b16 %v7494
        %v11377 = vunpack.c.l.b16 %v7495
        %v11378 = vunpack.c.l.b16 %v7496
        %v11379 = vunpack.c.l.b16 %v7497
        %v11380 = vunpack.c.l.b16 %v7498
        %v11381 = vunpack.c.l.b16 %v7499
        %v11382 = vunpack.c.l.b16 %v7500
        %v11383 = vunpack.c.l.b16 %v7501
        %v11384 = vunpack.c.l.b16 %v7502
        %v11385 = vunpack.c.l.b16 %v7503
        %v11386 = vunpack.c.l.b16 %v7504
        %v11387 = vunpack.c.l.b16 %v7505
        %v11388 = vunpack.c.l.b16 %v7506
        %v11389 = vunpack.c.l.b16 %v7507
        %v11390 = vunpack.c.l.b16 %v7508
        %v11391 = vunpack.c.l.b16 %v7509
        %v11392 = vunpack.c.l.b16 %v7510
        %v11393 = vunpack.c.l.b16 %v7511
        %v11394 = vunpack.c.l.b16 %v7512
        %v11395 = vunpack.c.l.b16 %v7513
        %v11396 = vunpack.c.l.b16 %v7514
        %v11397 = vunpack.c.l.b16 %v7515
        %v11398 = vunpack.c.l.b16 %v7516
        %v11399 = vunpack.c.l.b16 %v7517
        %v11400 = vunpack.c.l.b16 %v7518
        %v11401 = vunpack.c.l.b16 %v7519
        %v11402 = vunpack.c.l.b16 %v7520
        %v11403 = vunpack.c.l.b16 %v7521
        %v11404 = vunpack.c.l.b16 %v7522
        %v11405 = vunpack.c.l.b16 %v7523
        %v11406 = vunpack.c.l.b16 %v7524
        %v11407 = vunpack.c.l.b16 %v7525
        %v11408 = vunpack.c.l.b16 %v7526
        %v11409 = vunpack.c.l.b16 %v7527
        %v11410 = vunpack.c.l.b16 %v7528
        %v11411 = vunpack.c.l.b16 %v7529
        %v11412 = vpack.c.b16 %v11269, %v11268
        %v11413 = vpack.c.b16 %v11271, %v11270
        %v11414 = vpack.c.b16 %v11273, %v11272
        %v11415 = vpack.c.b16 %v11275, %v11274
        %v11416 = vpack.c.b16 %v11277, %v11276
        %v11417 = vpack.c.b16 %v11279, %v11278
        %v11418 = vpack.c.b16 %v11281, %v11280
        %v11419 = vpack.c.b16 %v11283, %v11282
        %v11420 = vpack.c.b16 %v11285, %v11284
        %v11421 = vpack.c.b16 %v11287, %v11286
        %v11422 = vpack.c.b16 %v11289, %v11288
        %v11423 = vpack.c.b16 %v11291, %v11290
        %v11424 = vpack.c.b16 %v11293, %v11292
        %v11425 = vpack.c.b16 %v11295, %v11294
        %v11426 = vpack.c.b16 %v11297, %v11296
        %v11427 = vpack.c.b16 %v11299, %v11298
        %v11428 = vpack.c.b16 %v11301, %v11300
        %v11429 = vpack.c.b16 %v11303, %v11302
        %v11430 = vpack.c.b16 %v11305, %v11304
        %v11431 = vpack.c.b16 %v11307, %v11306
        %v11432 = vpack.c.b16 %v11309, %v11308
        %v11433 = vpack.c.b16 %v11311, %v11310
        %v11434 = vpack.c.b16 %v11313, %v11312
        %v11435 = vpack.c.b16 %v11315, %v11314
        %v11436 = vpack.c.b16 %v11317, %v11316
        %v11437 = vpack.c.b16 %v11319, %v11318
        %v11438 = vpack.c.b16 %v11321, %v11320
        %v11439 = vpack.c.b16 %v11323, %v11322
        %v11440 = vpack.c.b16 %v11325, %v11324
        %v11441 = vpack.c.b16 %v11327, %v11326
        %v11442 = vpack.c.b16 %v11329, %v11328
        %v11443 = vpack.c.b16 %v11331, %v11330
        %v11444 = vpack.c.b16 %v11333, %v11332
        %v11445 = vpack.c.b16 %v11335, %v11334
        %v11446 = vpack.c.b16 %v11337, %v11336
        %v11447 = vpack.c.b16 %v11339, %v11338
        %v11448 = vpack.c.b16 %v11341, %v11340
        %v11449 = vpack.c.b16 %v11343, %v11342
        %v11450 = vpack.c.b16 %v11345, %v11344
        %v11451 = vpack.c.b16 %v11347, %v11346
        %v11452 = vpack.c.b16 %v11349, %v11348
        %v11453 = vpack.c.b16 %v11351, %v11350
        %v11454 = vpack.c.b16 %v11353, %v11352
        %v11455 = vpack.c.b16 %v11355, %v11354
        %v11456 = vpack.c.b16 %v11357, %v11356
        %v11457 = vpack.c.b16 %v11359, %v11358
        %v11458 = vpack.c.b16 %v11361, %v11360
        %v11459 = vpack.c.b16 %v11363, %v11362
        %v11460 = vpack.c.b16 %v11365, %v11364
        %v11461 = vpack.c.b16 %v11367, %v11366
        %v11462 = vpack.c.b16 %v11369, %v11368
        %v11463 = vpack.c.b16 %v11371, %v11370
        %v11464 = vpack.c.b16 %v11373, %v11372
        %v11465 = vpack.c.b16 %v11375, %v11374
        %v11466 = vpack.c.b16 %v11377, %v11376
        %v11467 = vpack.c.b16 %v11379, %v11378
        %v11468 = vpack.c.b16 %v11381, %v11380
        %v11469 = vpack.c.b16 %v11383, %v11382
        %v11470 = vpack.c.b16 %v11385, %v11384
        %v11471 = vpack.c.b16 %v11387, %v11386
        %v11472 = vpack.c.b16 %v11389, %v11388
        %v11473 = vpack.c.b16 %v11391, %v11390
        %v11474 = vpack.c.b16 %v11393, %v11392
        %v11475 = vpack.c.b16 %v11395, %v11394
        %v11476 = vpack.c.b16 %v11397, %v11396
        %v11477 = vpack.c.b16 %v11399, %v11398
        %v11478 = vpack.c.b16 %v11401, %v11400
        %v11479 = vpack.c.b16 %v11403, %v11402
        %v11480 = vpack.c.b16 %v11405, %v11404
        %v11481 = vpack.c.b16 %v11407, %v11406
        %v11482 = vpack.c.b16 %v11409, %v11408
        %v11483 = vpack.c.b16 %v11411, %v11410
        %11556 = vmatprep.subr.bf16.mxu0 0
        %11557 = vmatpush1.bf16.msra.mxu0 %v11412
        %11558 = vmatprep.subr.bf16.mxu0 0
        %11559 = vmatpush1.bf16.msra.mxu0 %v11413
        %11560 = vmatprep.subr.bf16.mxu0 0
        %11561 = vmatpush1.bf16.msra.mxu0 %v11414
        %11562 = vmatprep.subr.bf16.mxu0 0
        %11563 = vmatpush1.bf16.msra.mxu0 %v11415
        %11564 = vmatprep.subr.bf16.mxu0 0
        %11565 = vmatpush1.bf16.msra.mxu0 %v11416
        %11566 = vmatprep.subr.bf16.mxu0 0
        %11567 = vmatpush1.bf16.msra.mxu0 %v11417
        %11568 = vmatprep.subr.bf16.mxu0 0
        %11569 = vmatpush1.bf16.msra.mxu0 %v11418
        %11570 = vmatprep.subr.bf16.mxu0 0
        %11571 = vmatpush1.bf16.msra.mxu0 %v11419
        %11572 = vmatprep.subr.bf16.mxu0 0
        %11573 = vmatpush1.bf16.msra.mxu0 %v11420
        %11574 = vmatprep.subr.bf16.mxu0 0
        %11575 = vmatpush1.bf16.msra.mxu0 %v11421
        %11576 = vmatprep.subr.bf16.mxu0 0
        %11577 = vmatpush1.bf16.msra.mxu0 %v11422
        %11578 = vmatprep.subr.bf16.mxu0 0
        %11579 = vmatpush1.bf16.msra.mxu0 %v11423
        %11580 = vmatprep.subr.bf16.mxu0 0
        %11581 = vmatpush1.bf16.msra.mxu0 %v11424
        %11582 = vmatprep.subr.bf16.mxu0 0
        %11583 = vmatpush1.bf16.msra.mxu0 %v11425
        %11584 = vmatprep.subr.bf16.mxu0 0
        %11585 = vmatpush1.bf16.msra.mxu0 %v11426
        %11586 = vmatprep.subr.bf16.mxu0 0
        %11587 = vmatpush1.bf16.msra.mxu0 %v11427
        %11588 = vmatprep.mubr.bf16.mxu0 %v10303
        %11589 = vmatmul.mubr.bf16.gmra.mrb[0].mxu0 %v10291
        %v11590 = vpop.f32.mrb[0].mxu0
        %v11591 = vadd.f32 0.0, %v11590
        %v11592 = vpop.f32.mrb[0].mxu0
        %v11593 = vpop.f32.mrb[0].mxu0
        %v11594 = vadd.f32 0.0, %v11593
        %v11595 = vpop.f32.mrb[0].mxu0
        %11596 = vmatprep.mubr.bf16.mxu0 %v10399
        %11597 = vmatmul.mubr.bf16.gmra.mrb[0].mxu0 %v10387
        %v11598 = vpop.f32.mrb[0].mxu0
        %v11599 = vadd.f32 0.0, %v11598
        %v11600 = vpop.f32.mrb[0].mxu0
        %v11601 = vpop.f32.mrb[0].mxu0
        %v11602 = vadd.f32 0.0, %v11601
        %v11603 = vpop.f32.mrb[0].mxu0
        %11604 = vmatprep.mubr.bf16.mxu0 %v10495
        %11605 = vmatmul.mubr.bf16.gmra.mrb[0].mxu0 %v10483
        %v11606 = vpop.f32.mrb[0].mxu0
        %v11607 = vadd.f32 0.0, %v11606
        %v11608 = vpop.f32.mrb[0].mxu0
        %v11609 = vpop.f32.mrb[0].mxu0
        %v11610 = vadd.f32 0.0, %v11609
        %v11611 = vpop.f32.mrb[0].mxu0
        %11612 = vmatprep.mubr.bf16.mxu0 %v10591
        %11613 = vmatmul.mubr.bf16.gmra.mrb[0].mxu0 %v10579
        %v11614 = vpop.f32.mrb[0].mxu0
        %v11615 = vadd.f32 0.0, %v11614
        %v11616 = vpop.f32.mrb[0].mxu0
        %v11617 = vpop.f32.mrb[0].mxu0
        %v11618 = vadd.f32 0.0, %v11617
        %v11619 = vpop.f32.mrb[0].mxu0
        %11620 = vmatprep.mubr.bf16.mxu0 %v10687
        %11621 = vmatmul.mubr.bf16.gmra.mrb[0].mxu0 %v10675
        %v11622 = vpop.f32.mrb[0].mxu0
        %v11623 = vadd.f32 0.0, %v11622
        %v11624 = vpop.f32.mrb[0].mxu0
        %v11625 = vpop.f32.mrb[0].mxu0
        %v11626 = vadd.f32 0.0, %v11625
        %v11627 = vpop.f32.mrb[0].mxu0
        %11628 = vmatprep.mubr.bf16.mxu0 %v10783
        %11629 = vmatmul.mubr.bf16.gmra.mrb[0].mxu0 %v10771
        %v11630 = vpop.f32.mrb[0].mxu0
        %v11631 = vadd.f32 0.0, %v11630
        %v11632 = vpop.f32.mrb[0].mxu0
        %v11633 = vpop.f32.mrb[0].mxu0
        %v11634 = vadd.f32 0.0, %v11633
        %v11635 = vpop.f32.mrb[0].mxu0
        %11636 = vmatprep.mubr.bf16.mxu0 %v10879
        %11637 = vmatmul.mubr.bf16.gmra.mrb[0].mxu0 %v10867
        %v11638 = vpop.f32.mrb[0].mxu0
        %v11639 = vadd.f32 0.0, %v11638
        %v11640 = vpop.f32.mrb[0].mxu0
        %v11641 = vpop.f32.mrb[0].mxu0
        %v11642 = vadd.f32 0.0, %v11641
        %v11643 = vpop.f32.mrb[0].mxu0
        %11644 = vmatprep.mubr.bf16.mxu0 %v10975
        %11645 = vmatmul.mubr.bf16.gmra.mrb[0].mxu0 %v10963
        %v11646 = vpop.f32.mrb[0].mxu0
        %v11647 = vadd.f32 0.0, %v11646
        %v11648 = vpop.f32.mrb[0].mxu0
        %v11649 = vpop.f32.mrb[0].mxu0
        %v11650 = vadd.f32 0.0, %v11649
        %v11651 = vpop.f32.mrb[0].mxu0
        %11652 = vdwg.mxu0
        %11653 = vmatprep.subr.bf16.mxu0 0
        %11654 = vmatpush1.bf16.msra.mxu0 %v11428
        %11655 = vmatprep.subr.bf16.mxu0 0
        %11656 = vmatpush1.bf16.msra.mxu0 %v11429
        %11657 = vmatprep.subr.bf16.mxu0 0
        %11658 = vmatpush1.bf16.msra.mxu0 %v11430
        %11659 = vmatprep.subr.bf16.mxu0 0
        %11660 = vmatpush1.bf16.msra.mxu0 %v11431
        %11661 = vmatprep.subr.bf16.mxu0 0
        %11662 = vmatpush1.bf16.msra.mxu0 %v11432
        %11663 = vmatprep.subr.bf16.mxu0 0
        %11664 = vmatpush1.bf16.msra.mxu0 %v11433
        %11665 = vmatprep.subr.bf16.mxu0 0
        %11666 = vmatpush1.bf16.msra.mxu0 %v11434
        %11667 = vmatprep.subr.bf16.mxu0 0
        %11668 = vmatpush1.bf16.msra.mxu0 %v11435
        %11669 = vmatprep.subr.bf16.mxu0 0
        %11670 = vmatpush1.bf16.msra.mxu0 %v11436
        %11671 = vmatprep.subr.bf16.mxu0 0
        %11672 = vmatpush1.bf16.msra.mxu0 %v11437
        %11673 = vmatprep.subr.bf16.mxu0 0
        %11674 = vmatpush1.bf16.msra.mxu0 %v11438
        %11675 = vmatprep.subr.bf16.mxu0 0
        %11676 = vmatpush1.bf16.msra.mxu0 %v11439
        %11677 = vmatprep.subr.bf16.mxu0 0
        %11678 = vmatpush1.bf16.msra.mxu0 %v11440
        %11679 = vmatprep.subr.bf16.mxu0 0
        %11680 = vmatpush1.bf16.msra.mxu0 %v11441
        %11681 = vmatprep.subr.bf16.mxu0 0
        %11682 = vmatpush1.bf16.msra.mxu0 %v11442
        %11683 = vmatprep.subr.bf16.mxu0 0
        %11684 = vmatpush1.bf16.msra.mxu0 %v11443
        %11685 = vmatprep.mubr.bf16.mxu0 %v10323
        %11686 = vmatmul.mubr.bf16.gmra.mrb[0].mxu0 %v10315
        %v11687 = vpop.f32.mrb[0].mxu0
        %v11688 = vadd.f32 %v11591, %v11687
        %v11689 = vpop.f32.mrb[0].mxu0
        %v11690 = vpop.f32.mrb[0].mxu0
        %v11691 = vadd.f32 %v11594, %v11690
        %v11692 = vpop.f32.mrb[0].mxu0
        %11693 = vmatprep.mubr.bf16.mxu0 %v10419
        %11694 = vmatmul.mubr.bf16.gmra.mrb[0].mxu0 %v10411
        %v11695 = vpop.f32.mrb[0].mxu0
        %v11696 = vadd.f32 %v11599, %v11695
        %v11697 = vpop.f32.mrb[0].mxu0
        %v11698 = vpop.f32.mrb[0].mxu0
        %v11699 = vadd.f32 %v11602, %v11698
        %v11700 = vpop.f32.mrb[0].mxu0
        %11701 = vmatprep.mubr.bf16.mxu0 %v10515
        %11702 = vmatmul.mubr.bf16.gmra.mrb[0].mxu0 %v10507
        %v11703 = vpop.f32.mrb[0].mxu0
        %v11704 = vadd.f32 %v11607, %v11703
        %v11705 = vpop.f32.mrb[0].mxu0
        %v11706 = vpop.f32.mrb[0].mxu0
        %v11707 = vadd.f32 %v11610, %v11706
        %v11708 = vpop.f32.mrb[0].mxu0
        %11709 = vmatprep.mubr.bf16.mxu0 %v10611
        %11710 = vmatmul.mubr.bf16.gmra.mrb[0].mxu0 %v10603
        %v11711 = vpop.f32.mrb[0].mxu0
        %v11712 = vadd.f32 %v11615, %v11711
        %v11713 = vpop.f32.mrb[0].mxu0
        %v11714 = vpop.f32.mrb[0].mxu0
        %v11715 = vadd.f32 %v11618, %v11714
        %v11716 = vpop.f32.mrb[0].mxu0
        %11717 = vmatprep.mubr.bf16.mxu0 %v10707
        %11718 = vmatmul.mubr.bf16.gmra.mrb[0].mxu0 %v10699
        %v11719 = vpop.f32.mrb[0].mxu0
        %v11720 = vadd.f32 %v11623, %v11719
        %v11721 = vpop.f32.mrb[0].mxu0
        %v11722 = vpop.f32.mrb[0].mxu0
        %v11723 = vadd.f32 %v11626, %v11722
        %v11724 = vpop.f32.mrb[0].mxu0
        %11725 = vmatprep.mubr.bf16.mxu0 %v10803
        %11726 = vmatmul.mubr.bf16.gmra.mrb[0].mxu0 %v10795
        %v11727 = vpop.f32.mrb[0].mxu0
        %v11728 = vadd.f32 %v11631, %v11727
        %v11729 = vpop.f32.mrb[0].mxu0
        %v11730 = vpop.f32.mrb[0].mxu0
        %v11731 = vadd.f32 %v11634, %v11730
        %v11732 = vpop.f32.mrb[0].mxu0
        %11733 = vmatprep.mubr.bf16.mxu0 %v10899
        %11734 = vmatmul.mubr.bf16.gmra.mrb[0].mxu0 %v10891
        %v11735 = vpop.f32.mrb[0].mxu0
        %v11736 = vadd.f32 %v11639, %v11735
        %v11737 = vpop.f32.mrb[0].mxu0
        %v11738 = vpop.f32.mrb[0].mxu0
        %v11739 = vadd.f32 %v11642, %v11738
        %v11740 = vpop.f32.mrb[0].mxu0
        %11741 = vmatprep.mubr.bf16.mxu0 %v10995
        %11742 = vmatmul.mubr.bf16.gmra.mrb[0].mxu0 %v10987
        %v11743 = vpop.f32.mrb[0].mxu0
        %v11744 = vadd.f32 %v11647, %v11743
        %v11745 = vpop.f32.mrb[0].mxu0
        %v11746 = vpop.f32.mrb[0].mxu0
        %v11747 = vadd.f32 %v11650, %v11746
        %v11748 = vpop.f32.mrb[0].mxu0
        %11749 = vdwg.mxu0
        %11750 = vmatprep.subr.bf16.mxu0 0
        %11751 = vmatpush1.bf16.msra.mxu0 %v11444
        %11752 = vmatprep.subr.bf16.mxu0 0
        %11753 = vmatpush1.bf16.msra.mxu0 %v11445
        %11754 = vmatprep.subr.bf16.mxu0 0
        %11755 = vmatpush1.bf16.msra.mxu0 %v11446
        %11756 = vmatprep.subr.bf16.mxu0 0
        %11757 = vmatpush1.bf16.msra.mxu0 %v11447
        %11758 = vmatprep.subr.bf16.mxu0 0
        %11759 = vmatpush1.bf16.msra.mxu0 %v11448
        %11760 = vmatprep.subr.bf16.mxu0 0
        %11761 = vmatpush1.bf16.msra.mxu0 %v11449
        %11762 = vmatprep.subr.bf16.mxu0 0
        %11763 = vmatpush1.bf16.msra.mxu0 %v11450
        %11764 = vmatprep.subr.bf16.mxu0 0
        %11765 = vmatpush1.bf16.msra.mxu0 %v11451
        %11766 = vmatprep.subr.bf16.mxu0 0
        %11767 = vmatpush1.bf16.msra.mxu0 %v11452
        %11768 = vmatprep.subr.bf16.mxu0 0
        %11769 = vmatpush1.bf16.msra.mxu0 %v11453
        %11770 = vmatprep.subr.bf16.mxu0 0
        %11771 = vmatpush1.bf16.msra.mxu0 %v11454
        %11772 = vmatprep.subr.bf16.mxu0 0
        %11773 = vmatpush1.bf16.msra.mxu0 %v11455
        %11774 = vmatprep.subr.bf16.mxu0 0
        %11775 = vmatpush1.bf16.msra.mxu0 %v11456
        %11776 = vmatprep.subr.bf16.mxu0 0
        %11777 = vmatpush1.bf16.msra.mxu0 %v11457
        %11778 = vmatprep.subr.bf16.mxu0 0
        %11779 = vmatpush1.bf16.msra.mxu0 %v11458
        %11780 = vmatprep.subr.bf16.mxu0 0
        %11781 = vmatpush1.bf16.msra.mxu0 %v11459
        %11782 = vmatprep.mubr.bf16.mxu0 %v10347
        %11783 = vmatmul.mubr.bf16.gmra.mrb[0].mxu0 %v10335
        %v11784 = vpop.f32.mrb[0].mxu0
        %v11785 = vadd.f32 %v11688, %v11784
        %v11786 = vpop.f32.mrb[0].mxu0
        %v11787 = vpop.f32.mrb[0].mxu0
        %v11788 = vadd.f32 %v11691, %v11787
        %v11789 = vpop.f32.mrb[0].mxu0
        %11790 = vmatprep.mubr.bf16.mxu0 %v10443
        %11791 = vmatmul.mubr.bf16.gmra.mrb[0].mxu0 %v10431
        %v11792 = vpop.f32.mrb[0].mxu0
        %v11793 = vadd.f32 %v11696, %v11792
        %v11794 = vpop.f32.mrb[0].mxu0
        %v11795 = vpop.f32.mrb[0].mxu0
        %v11796 = vadd.f32 %v11699, %v11795
        %v11797 = vpop.f32.mrb[0].mxu0
        %11798 = vmatprep.mubr.bf16.mxu0 %v10539
        %11799 = vmatmul.mubr.bf16.gmra.mrb[0].mxu0 %v10527
        %v11800 = vpop.f32.mrb[0].mxu0
        %v11801 = vadd.f32 %v11704, %v11800
        %v11802 = vpop.f32.mrb[0].mxu0
        %v11803 = vpop.f32.mrb[0].mxu0
        %v11804 = vadd.f32 %v11707, %v11803
        %v11805 = vpop.f32.mrb[0].mxu0
        %11806 = vmatprep.mubr.bf16.mxu0 %v10635
        %11807 = vmatmul.mubr.bf16.gmra.mrb[0].mxu0 %v10623
        %v11808 = vpop.f32.mrb[0].mxu0
        %v11809 = vadd.f32 %v11712, %v11808
        %v11810 = vpop.f32.mrb[0].mxu0
        %v11811 = vpop.f32.mrb[0].mxu0
        %v11812 = vadd.f32 %v11715, %v11811
        %v11813 = vpop.f32.mrb[0].mxu0
        %11814 = vmatprep.mubr.bf16.mxu0 %v10731
        %11815 = vmatmul.mubr.bf16.gmra.mrb[0].mxu0 %v10719
        %v11816 = vpop.f32.mrb[0].mxu0
        %v11817 = vadd.f32 %v11720, %v11816
        %v11818 = vpop.f32.mrb[0].mxu0
        %v11819 = vpop.f32.mrb[0].mxu0
        %v11820 = vadd.f32 %v11723, %v11819
        %v11821 = vpop.f32.mrb[0].mxu0
        %11822 = vmatprep.mubr.bf16.mxu0 %v10827
        %11823 = vmatmul.mubr.bf16.gmra.mrb[0].mxu0 %v10815
        %v11824 = vpop.f32.mrb[0].mxu0
        %v11825 = vadd.f32 %v11728, %v11824
        %v11826 = vpop.f32.mrb[0].mxu0
        %v11827 = vpop.f32.mrb[0].mxu0
        %v11828 = vadd.f32 %v11731, %v11827
        %v11829 = vpop.f32.mrb[0].mxu0
        %11830 = vmatprep.mubr.bf16.mxu0 %v10923
        %11831 = vmatmul.mubr.bf16.gmra.mrb[0].mxu0 %v10911
        %v11832 = vpop.f32.mrb[0].mxu0
        %v11833 = vadd.f32 %v11736, %v11832
        %v11834 = vpop.f32.mrb[0].mxu0
        %v11835 = vpop.f32.mrb[0].mxu0
        %v11836 = vadd.f32 %v11739, %v11835
        %v11837 = vpop.f32.mrb[0].mxu0
        %11838 = vmatprep.mubr.bf16.mxu0 %v11019
        %11839 = vmatmul.mubr.bf16.gmra.mrb[0].mxu0 %v11007
        %v11840 = vpop.f32.mrb[0].mxu0
        %v11841 = vadd.f32 %v11744, %v11840
        %v11842 = vpop.f32.mrb[0].mxu0
        %v11843 = vpop.f32.mrb[0].mxu0
        %v11844 = vadd.f32 %v11747, %v11843
        %v11845 = vpop.f32.mrb[0].mxu0
        %11846 = vdwg.mxu0
        %11847 = vmatprep.subr.bf16.mxu0 0
        %11848 = vmatpush1.bf16.msra.mxu0 %v11460
        %11849 = vmatprep.subr.bf16.mxu0 0
        %11850 = vmatpush1.bf16.msra.mxu0 %v11461
        %11851 = vmatprep.subr.bf16.mxu0 0
        %11852 = vmatpush1.bf16.msra.mxu0 %v11462
        %11853 = vmatprep.subr.bf16.mxu0 0
        %11854 = vmatpush1.bf16.msra.mxu0 %v11463
        %11855 = vmatprep.subr.bf16.mxu0 0
        %11856 = vmatpush1.bf16.msra.mxu0 %v11464
        %11857 = vmatprep.subr.bf16.mxu0 0
        %11858 = vmatpush1.bf16.msra.mxu0 %v11465
        %11859 = vmatprep.subr.bf16.mxu0 0
        %11860 = vmatpush1.bf16.msra.mxu0 %v11466
        %11861 = vmatprep.subr.bf16.mxu0 0
        %11862 = vmatpush1.bf16.msra.mxu0 %v11467
        %11863 = vmatprep.subr.bf16.mxu0 0
        %11864 = vmatpush1.bf16.msra.mxu0 %v11468
        %11865 = vmatprep.subr.bf16.mxu0 0
        %11866 = vmatpush1.bf16.msra.mxu0 %v11469
        %11867 = vmatprep.subr.bf16.mxu0 0
        %11868 = vmatpush1.bf16.msra.mxu0 %v11470
        %11869 = vmatprep.subr.bf16.mxu0 0
        %11870 = vmatpush1.bf16.msra.mxu0 %v11471
        %11871 = vmatprep.subr.bf16.mxu0 0
        %11872 = vmatpush1.bf16.msra.mxu0 %v11472
        %11873 = vmatprep.subr.bf16.mxu0 0
        %11874 = vmatpush1.bf16.msra.mxu0 %v11473
        %11875 = vmatprep.subr.bf16.mxu0 0
        %11876 = vmatpush1.bf16.msra.mxu0 %v11474
        %11877 = vmatprep.subr.bf16.mxu0 0
        %11878 = vmatpush1.bf16.msra.mxu0 %v11475
        %11879 = vmatprep.mubr.bf16.mxu0 %v10367
        %11880 = vmatmul.mubr.bf16.gmra.mrb[0].mxu0 %v10355
        %v11881 = vpop.f32.mrb[0].mxu0
        %v11882 = vadd.f32 %v11785, %v11881
        %v11883 = vpop.f32.mrb[0].mxu0
        %v11884 = vpop.f32.mrb[0].mxu0
        %v11885 = vadd.f32 %v11788, %v11884
        %v11886 = vpop.f32.mrb[0].mxu0
        %11887 = vmatprep.mubr.bf16.mxu0 %v10463
        %11888 = vmatmul.mubr.bf16.gmra.mrb[0].mxu0 %v10451
        %v11889 = vpop.f32.mrb[0].mxu0
        %v11890 = vadd.f32 %v11793, %v11889
        %v11891 = vpop.f32.mrb[0].mxu0
        %v11892 = vpop.f32.mrb[0].mxu0
        %v11893 = vadd.f32 %v11796, %v11892
        %v11894 = vpop.f32.mrb[0].mxu0
        %11895 = vmatprep.mubr.bf16.mxu0 %v10559
        %11896 = vmatmul.mubr.bf16.gmra.mrb[0].mxu0 %v10547
        %v11897 = vpop.f32.mrb[0].mxu0
        %v11898 = vadd.f32 %v11801, %v11897
        %v11899 = vpop.f32.mrb[0].mxu0
        %v11900 = vpop.f32.mrb[0].mxu0
        %v11901 = vadd.f32 %v11804, %v11900
        %v11902 = vpop.f32.mrb[0].mxu0
        %11903 = vmatprep.mubr.bf16.mxu0 %v10655
        %11904 = vmatmul.mubr.bf16.gmra.mrb[0].mxu0 %v10643
        %v11905 = vpop.f32.mrb[0].mxu0
        %v11906 = vadd.f32 %v11809, %v11905
        %v11907 = vpop.f32.mrb[0].mxu0
        %v11908 = vpop.f32.mrb[0].mxu0
        %v11909 = vadd.f32 %v11812, %v11908
        %v11910 = vpop.f32.mrb[0].mxu0
        %11911 = vmatprep.mubr.bf16.mxu0 %v10751
        %11912 = vmatmul.mubr.bf16.gmra.mrb[0].mxu0 %v10739
        %v11913 = vpop.f32.mrb[0].mxu0
        %v11914 = vadd.f32 %v11817, %v11913
        %v11915 = vpop.f32.mrb[0].mxu0
        %v11916 = vpop.f32.mrb[0].mxu0
        %v11917 = vadd.f32 %v11820, %v11916
        %v11918 = vpop.f32.mrb[0].mxu0
        %11919 = vmatprep.mubr.bf16.mxu0 %v10847
        %11920 = vmatmul.mubr.bf16.gmra.mrb[0].mxu0 %v10835
        %v11921 = vpop.f32.mrb[0].mxu0
        %v11922 = vadd.f32 %v11825, %v11921
        %v11923 = vpop.f32.mrb[0].mxu0
        %v11924 = vpop.f32.mrb[0].mxu0
        %v11925 = vadd.f32 %v11828, %v11924
        %v11926 = vpop.f32.mrb[0].mxu0
        %11927 = vmatprep.mubr.bf16.mxu0 %v10943
        %11928 = vmatmul.mubr.bf16.gmra.mrb[0].mxu0 %v10931
        %v11929 = vpop.f32.mrb[0].mxu0
        %v11930 = vadd.f32 %v11833, %v11929
        %v11931 = vpop.f32.mrb[0].mxu0
        %v11932 = vpop.f32.mrb[0].mxu0
        %v11933 = vadd.f32 %v11836, %v11932
        %v11934 = vpop.f32.mrb[0].mxu0
        %11935 = vmatprep.mubr.bf16.mxu0 %v11039
        %11936 = vmatmul.mubr.bf16.gmra.mrb[0].mxu0 %v11027
        %v11937 = vpop.f32.mrb[0].mxu0
        %v11938 = vadd.f32 %v11841, %v11937
        %v11939 = vpop.f32.mrb[0].mxu0
        %v11940 = vpop.f32.mrb[0].mxu0
        %v11941 = vadd.f32 %v11844, %v11940
        %v11942 = vpop.f32.mrb[0].mxu0
        %11943 = vdwg.mxu0
        %11944 = vmatprep.subr.bf16.mxu0 0
        %11945 = vmatpush1.bf16.msra.mxu0 %v11476
        %11946 = vmatprep.subr.bf16.mxu0 0
        %11947 = vmatpush1.bf16.msra.mxu0 %v11477
        %11948 = vmatprep.subr.bf16.mxu0 0
        %11949 = vmatpush1.bf16.msra.mxu0 %v11478
        %11950 = vmatprep.subr.bf16.mxu0 0
        %11951 = vmatpush1.bf16.msra.mxu0 %v11479
        %11952 = vmatprep.subr.bf16.mxu0 0
        %11953 = vmatpush1.bf16.msra.mxu0 %v11480
        %11954 = vmatprep.subr.bf16.mxu0 0
        %11955 = vmatpush1.bf16.msra.mxu0 %v11481
        %11956 = vmatprep.subr.bf16.mxu0 0
        %11957 = vmatpush1.bf16.msra.mxu0 %v11482
        %11958 = vmatprep.subr.bf16.mxu0 0
        %11959 = vmatpush1.bf16.msra.mxu0 %v11483
        %11960 = vmatprep.subr.bf16.mxu0 0
        %11961 = vmatpush1.bf16.msra.mxu0 0
        %11962 = vmatprep.subr.bf16.mxu0 0
        %11963 = vmatpush1.bf16.msra.mxu0 0
        %11964 = vmatprep.subr.bf16.mxu0 0
        %11965 = vmatpush1.bf16.msra.mxu0 0
        %11966 = vmatprep.subr.bf16.mxu0 0
        %11967 = vmatpush1.bf16.msra.mxu0 0
        %11968 = vmatprep.subr.bf16.mxu0 0
        %11969 = vmatpush1.bf16.msra.mxu0 0
        %11970 = vmatprep.subr.bf16.mxu0 0
        %11971 = vmatpush1.bf16.msra.mxu0 0
        %11972 = vmatprep.subr.bf16.mxu0 0
        %11973 = vmatpush1.bf16.msra.mxu0 0
        %11974 = vmatprep.subr.bf16.mxu0 0
        %11975 = vmatpush1.bf16.msra.mxu0 0
        %11976 = vmatprep.mubr.bf16.mxu0 0
        %11977 = vmatmul.mubr.bf16.gmra.mrb[0].mxu0 %v10379
        %v11978 = vpop.f32.mrb[0].mxu0
        %v11979 = vadd.f32 %v11882, %v11978
        %v11980 = vpop.f32.mrb[0].mxu0
        %v11981 = vpop.f32.mrb[0].mxu0
        %v11982 = vadd.f32 %v11885, %v11981
        %v11983 = vpop.f32.mrb[0].mxu0
        %11984 = vmatprep.mubr.bf16.mxu0 0
        %11985 = vmatmul.mubr.bf16.gmra.mrb[0].mxu0 %v10475
        %v11986 = vpop.f32.mrb[0].mxu0
        %v11987 = vadd.f32 %v11890, %v11986
        %v11988 = vpop.f32.mrb[0].mxu0
        %v11989 = vpop.f32.mrb[0].mxu0
        %v11990 = vadd.f32 %v11893, %v11989
        %v11991 = vpop.f32.mrb[0].mxu0
        %11992 = vmatprep.mubr.bf16.mxu0 0
        %11993 = vmatmul.mubr.bf16.gmra.mrb[0].mxu0 %v10571
        %v11994 = vpop.f32.mrb[0].mxu0
        %v11995 = vadd.f32 %v11898, %v11994
        %v11996 = vpop.f32.mrb[0].mxu0
        %v11997 = vpop.f32.mrb[0].mxu0
        %v11998 = vadd.f32 %v11901, %v11997
        %v11999 = vpop.f32.mrb[0].mxu0
        %12000 = vmatprep.mubr.bf16.mxu0 0
        %12001 = vmatmul.mubr.bf16.gmra.mrb[0].mxu0 %v10667
        %v12002 = vpop.f32.mrb[0].mxu0
        %v12003 = vadd.f32 %v11906, %v12002
        %v12004 = vpop.f32.mrb[0].mxu0
        %v12005 = vpop.f32.mrb[0].mxu0
        %v12006 = vadd.f32 %v11909, %v12005
        %v12007 = vpop.f32.mrb[0].mxu0
        %12008 = vmatprep.mubr.bf16.mxu0 0
        %12009 = vmatmul.mubr.bf16.gmra.mrb[0].mxu0 %v10763
        %v12010 = vpop.f32.mrb[0].mxu0
        %v12011 = vadd.f32 %v11914, %v12010
        %v12012 = vpop.f32.mrb[0].mxu0
        %v12013 = vpop.f32.mrb[0].mxu0
        %v12014 = vadd.f32 %v11917, %v12013
        %v12015 = vpop.f32.mrb[0].mxu0
        %12016 = vmatprep.mubr.bf16.mxu0 0
        %12017 = vmatmul.mubr.bf16.gmra.mrb[0].mxu0 %v10859
        %v12018 = vpop.f32.mrb[0].mxu0
        %v12019 = vadd.f32 %v11922, %v12018
        %v12020 = vpop.f32.mrb[0].mxu0
        %v12021 = vpop.f32.mrb[0].mxu0
        %v12022 = vadd.f32 %v11925, %v12021
        %v12023 = vpop.f32.mrb[0].mxu0
        %12024 = vmatprep.mubr.bf16.mxu0 0
        %12025 = vmatmul.mubr.bf16.gmra.mrb[0].mxu0 %v10955
        %v12026 = vpop.f32.mrb[0].mxu0
        %v12027 = vadd.f32 %v11930, %v12026
        %v12028 = vpop.f32.mrb[0].mxu0
        %v12029 = vpop.f32.mrb[0].mxu0
        %v12030 = vadd.f32 %v11933, %v12029
        %v12031 = vpop.f32.mrb[0].mxu0
        %12032 = vmatprep.mubr.bf16.mxu0 0
        %12033 = vmatmul.mubr.bf16.gmra.mrb[0].mxu0 %v11051
        %v12034 = vpop.f32.mrb[0].mxu0
        %v12035 = vadd.f32 %v11938, %v12034
        %v12036 = vpop.f32.mrb[0].mxu0
        %v12037 = vpop.f32.mrb[0].mxu0
        %v12038 = vadd.f32 %v11941, %v12037
        %v12039 = vpop.f32.mrb[0].mxu0
        %12040 = vdwg.mxu0
        %v12041 = vadd.f32 %v251, %v7285
        %v12042 = vadd.f32 %v252, %v7288
        %v12043 = vadd.f32 %v253, %v7293
        %v12044 = vadd.f32 %v254, %v7296
        %v12045 = vadd.f32 %v255, %v7301
        %v12046 = vadd.f32 %v256, %v7304
        %v12047 = vadd.f32 %v257, %v7309
        %v12048 = vadd.f32 %v258, %v7312
        %v12049 = vadd.f32 %v259, %v7317
        %v12050 = vadd.f32 %v260, %v7320
        %v12051 = vadd.f32 %v261, %v7325
        %v12052 = vadd.f32 %v262, %v7328
        %v12053 = vadd.f32 %v263, %v7333
        %v12054 = vadd.f32 %v264, %v7336
        %v12055 = vadd.f32 %v265, %v7341
        %v12056 = vadd.f32 %v266, %v7344
        %v12057 = vadd.f32 %v12041, %v11979
        %v12058 = vadd.f32 %v12042, %v11982
        %v12059 = vadd.f32 %v12043, %v11987
        %v12060 = vadd.f32 %v12044, %v11990
        %v12061 = vadd.f32 %v12045, %v11995
        %v12062 = vadd.f32 %v12046, %v11998
        %v12063 = vadd.f32 %v12047, %v12003
        %v12064 = vadd.f32 %v12048, %v12006
        %v12065 = vadd.f32 %v12049, %v12011
        %v12066 = vadd.f32 %v12050, %v12014
        %v12067 = vadd.f32 %v12051, %v12019
        %v12068 = vadd.f32 %v12052, %v12022
        %v12069 = vadd.f32 %v12053, %v12027
        %v12070 = vadd.f32 %v12054, %v12030
        %v12071 = vadd.f32 %v12055, %v12035
        %v12072 = vadd.f32 %v12056, %v12038
        %12073 = vst [vmem:[%s190] sm:$0xff] %v12057
        %12074 = vst [vmem:[%s190 + $0x8] sm:$0xff] %v12058
        %12075 = vst [vmem:[%s190 + $0x10] sm:$0xff] %v12059
        %12076 = vst [vmem:[%s190 + $0x18] sm:$0xff] %v12060
        %12077 = vst [vmem:[%s190 + $0x20] sm:$0xff] %v12061
        %12078 = vst [vmem:[%s190 + $0x28] sm:$0xff] %v12062
        %12079 = vst [vmem:[%s190 + $0x30] sm:$0xff] %v12063
        %12080 = vst [vmem:[%s190 + $0x38] sm:$0xff] %v12064
        %12081 = vst [vmem:[%s190 + $0x40] sm:$0xff] %v12065
        %12082 = vst [vmem:[%s190 + $0x48] sm:$0xff] %v12066
        %12083 = vst [vmem:[%s190 + $0x50] sm:$0xff] %v12067
        %12084 = vst [vmem:[%s190 + $0x58] sm:$0xff] %v12068
        %12085 = vst [vmem:[%s190 + $0x60] sm:$0xff] %v12069
        %12086 = vst [vmem:[%s190 + $0x68] sm:$0xff] %v12070
        %12087 = vst [vmem:[%s190 + $0x70] sm:$0xff] %v12071
        %12088 = vst [vmem:[%s190 + $0x78] sm:$0xff] %v12072
        %s12089 = sand.u32 %s89, 1
        %s12090 = scalar_lea.sflag [#allocation6], %s12089
        %s12091 = sand.u32 %s89, 1
        %s12092 = smul.addr %s12091, 128
        %s12093 = scalar_lea.vmem [#allocation9], %s12092
        // Predicated region
        $region69: #{tpu_custom_call.1} parent=27 // pred_check
          %p12094 = pneg %p99
        $region70: #{tpu_custom_call.1} parent=27 // pred_check_branch
          %12096 = sbr.rel (%p12094) target = $region72
        $region71: #{tpu_custom_call.1} parent=27 // pred_region
          %s12097 = smul.u32 8, %s25
          %s12099 = ssub.s32 2048, 2048
          %12100 = vsyncadd %s12090, %s12099
          %s12101 = smul.addr %s12097, 2
          %s12102 = smul.addr %s24, 32
          %s12103 = sadd.s32 %s12101, %s12102
          %s12104 = smul.addr %s12103, 128
          %s12105 = scalar_lea.hbm %s2, %s12104
          %s12106 = sshll.u32 %s12093, 4
          %s12107 = int_to_ptr.vmem [resolvable:$true] %s12106
          %12112 = dma.vmem_to_hbm [thread:$0]  %s12107, 2048, %s12105, %s12090, 128, 128, 8
        $region72: #{tpu_custom_call.1} parent=27 // pred_fallthru
          _
      $region28: #{tpu_custom_call.1} parent=5 // pred_fallthru
        _
      %p12113 = scmp.le.s32.totalorder 2, %s15
      // Predicated region
      $region73: #{tpu_custom_call.1} parent=5 // pred_check
        %p12114 = pneg %p12113
      $region74: #{tpu_custom_call.1} parent=5 // pred_check_branch
        %12116 = sbr.rel (%p12114) target = $region76
      $region75: #{tpu_custom_call.1} parent=5 // pred_region
        %s12117 = ssub.s32 %s15, 2
        // Predicated region
        $region77: #{tpu_custom_call.1} parent=75 // pred_check
          %p12118 = pneg %p105
        $region78: #{tpu_custom_call.1} parent=75 // pred_check_branch
          %12120 = sbr.rel (%p12118) target = $region80
        $region79: #{tpu_custom_call.1} parent=75 // pred_region
          %s12121 = sand.u32 %s90, 1
          %s12122 = scalar_lea.sflag [#allocation6], %s12121
          %s12123 = sand.u32 %s90, 1
          %s12124 = smul.addr %s12123, 128
          %s12125 = scalar_lea.vmem [#allocation9], %s12124
          %12126 = dma.done %s12122, 2048
        $region80: #{tpu_custom_call.1} parent=75 // pred_fallthru
          _
      $region76: #{tpu_custom_call.1} parent=5 // pred_fallthru
        _
    $region6: #{tpu_custom_call.1} parent=1 // loop_footer
      %s19 = sadd.s32 1, %s15
    $region7: #{tpu_custom_call.1} parent=1 // loop_footer_branch
      %14 = sbr.rel target = $region3
    $region8: #{tpu_custom_call.1} parent=1 // loop_exit
      _
    %12127 = vsyncpa [#allocation5], 1
    %s12128 = scalar_lea.sflag [#allocation5], 1
    %12129 = vsyncpa %s12128, 1
    %12130 = vsyncpa [#allocation8], 1
    %12131 = vsyncpa [#allocation6], 1
    %s12132 = scalar_lea.sflag [#allocation6], 1
    %12133 = vsyncpa %s12132, 1

</llo_original>
